<compile_context>
chip_gen: v5e
topology: v5e:2x2
jax: 0.10.0
libtpu: 0.0.40
codegen_flags: <defaults>
</compile_context>

<pallas_src>
import math

import numpy as np

import jax
import jax.numpy as jnp
from jax.experimental import pallas as pl
from jax.experimental.pallas import tpu as pltpu

LEAKY_SLOPE = 0.1
CONV_STRIDE = 2                   # assumed default stride of the `Conv` helper
CONV_PLANES = (16, 32, 64, 96)
KERNEL_SIZES = (7, 5, 3, 3)


# ---------------------------------------------------------------------------
# static per-layer geometry (derived from shapes + module constants)
# ---------------------------------------------------------------------------
def _layer_cfgs(h, w, in_ch):
    cfgs = []
    ci = in_ch
    for co, k in zip(CONV_PLANES, KERNEL_SIZES):
        s = CONV_STRIDE
        p = (k - 1) // 2
        assert s == 2 and h % 2 == 0, "even/odd row planes assume stride 2 and even H"
        hp = h + 2 * p                      # height-padded extent (width is NOT padded)
        ho = (hp - k) // s + 1
        wo = (w + 2 * p - k) // s + 1
        cfgs.append(dict(k=k, s=s, p=p, ci=ci, co=co,
                         h=h, w=w, hp=hp, ho=ho, wo=wo))
        h, w, ci = ho, wo, co
    return cfgs


def _pick_nb(n):
    """Images per grid step: as large as possible while keeping >= 2 grid steps."""
    nb = 1
    for cand in (2, 4, 8, 16):
        if n % cand == 0 and n // cand >= 2:
            nb = cand
    return nb


# ---------------------------------------------------------------------------
# one-time weight preparation (hoisted out of the per-call forward path)
# ---------------------------------------------------------------------------
def _banded_weights(wt, cfg):
    """(k,k,Ci,Co) conv weights -> (k, W*Ci, Wo*Co) bf16 width-banded matrices.

    M[kh, w'*Ci+ci, w*Co+co] = wt[kh, kw, ci, co] with w' = s*w + kw - p restricted to
    [0, W); width zero-padding taps are dropped, so activations only need HEIGHT
    padding and K is lane friendly (192/256/256/256 instead of 228/320/320/384).
    """
    k, s, p = cfg["k"], cfg["s"], cfg["p"]
    w, wo, ci, co = cfg["w"], cfg["wo"], cfg["ci"], cfg["co"]
    sel = np.zeros((k, w, wo), np.float32)
    for kw in range(k):
        for wi in range(wo):
            src = s * wi + kw - p
            if 0 <= src < w:
                sel[kw, src, wi] = 1.0
    m = jnp.einsum("hkcd,kpw->hpcwd", wt, jnp.asarray(sel))
    return m.reshape(k, w * ci, wo * co).astype(jnp.bfloat16)


def prepare_pose_bottleneck_params(params, in_hw, in_ch=6):
    """Build resident bf16 banded weights + f32 bias rows once (cache across steps)."""
    cfgs = _layer_cfgs(in_hw[0], in_hw[1], in_ch)
    m_mats = tuple(_banded_weights(wt, cfg) for (wt, _), cfg in zip(params, cfgs))
    b_rows = tuple(jnp.tile(b, cfg["wo"]).reshape(1, cfg["wo"] * cfg["co"])
                   .astype(jnp.float32)
                   for (_, b), cfg in zip(params, cfgs))
    return m_mats, b_rows


# ---------------------------------------------------------------------------
# fused kernel: 4x (even/odd-row bf16 planes -> k contiguous-tap matmuls
#                   -> bias -> LeakyReLU), activations never leave VMEM
# ---------------------------------------------------------------------------
def _make_fused_kernel(cfgs, nb):
    n_layers = len(cfgs)

    def kernel(*refs):
        x_ref = refs[0]
        m_refs = refs[1:1 + n_layers]                  # (k, W*Ci, Wo*Co) bf16, resident
        b_refs = refs[1 + n_layers:1 + 2 * n_layers]   # (1, Wo*Co) f32 bias rows
        o_ref = refs[1 + 2 * n_layers]
        plane_refs = refs[2 + 2 * n_layers:]           # (2, (Hp/2)*NB, W*Ci) bf16 scratch

        def fill_planes(plane_ref, src, cfg):
            # De-interleave `src` (rows ordered h*NB + b) into even/odd padded-row
            # planes, casting to bf16 exactly once per row.  NB-row-group copies are
            # vreg aligned for NB=8; only the height-padding half-rows get zeroed.
            h, p = cfg["h"], cfg["p"]
            wc = cfg["w"] * cfg["ci"]
            rhalf = cfg["hp"] // 2
            for q in (0, 1):                  # parity of the padded row index r = h + p
                t = (q - p) % 2               # source rows h with h + p ≡ q (mod 2)
                d = (t + p) // 2              # first interior half-row in plane q
                lo, hi = d * nb, (d + h // 2) * nb
                if lo > 0:                    # top padding rows -> 0
                    plane_ref[q, 0:lo, :] = jnp.zeros((lo, wc), plane_ref.dtype)
                if hi < rhalf * nb:           # bottom padding rows -> 0
                    plane_ref[q, hi:, :] = jnp.zeros((rhalf * nb - hi, wc),
                                                     plane_ref.dtype)
                for j in range(h // 2):
                    s0 = (2 * j + t) * nb
                    plane_ref[q, (d + j) * nb:(d + j + 1) * nb, :] = (
                        src[s0:s0 + nb, :].astype(plane_ref.dtype))

        def conv_layer(plane_ref, m_ref, b_ref, cfg):
            k, ho = cfg["k"], cfg["ho"]
            oc = cfg["wo"] * cfg["co"]
            # bias folded into the f32 accumulator init (no extra pass)
            acc = jnp.broadcast_to(b_ref[...], (ho * nb, oc)).astype(jnp.float32)
            for kh in range(k):
                # tap kh touches padded rows 2*h_out + kh -> plane kh%2, half-rows kh//2..
                r0 = (kh // 2) * nb
                lhs = plane_ref[kh % 2, r0:r0 + ho * nb, :]        # contiguous bf16 slab
                acc = acc + jnp.dot(lhs, m_ref[kh],
                                    preferred_element_type=jnp.float32)
            return jnp.where(acc >= 0, acc, LEAKY_SLOPE * acc)     # LeakyReLU(0.1), f32

        src = x_ref                                    # (H*NB, W*Cin) f32 ref
        for i, cfg in enumerate(cfgs):
            fill_planes(plane_refs[i], src, cfg)
            src = conv_layer(plane_refs[i], m_refs[i], b_refs[i], cfg)
        o_ref[...] = src.astype(o_ref.dtype)           # lane-dense (Ho*NB, Wo*Co) store

    return kernel


# ---------------------------------------------------------------------------
# wrapper: NCHW in, NCHW out
# ---------------------------------------------------------------------------
@jax.jit
def pose_bottleneck(x_nchw, m_mats, b_rows):
    n, c_in, h, w = x_nchw.shape
    nb = _pick_nb(n)
    g = n // nb
    cfgs = _layer_cfgs(h, w, c_in)
    last = cfgs[-1]
    out_cols = last["wo"] * last["co"]

    # NCHW -> (G, H*NB, W*Cin): rows ordered (h, image-in-group), lanes (w, c).
    x = jnp.transpose(x_nchw, (0, 2, 3, 1)).reshape(g, nb, h, w * c_in)
    x = jnp.transpose(x, (0, 2, 1, 3)).reshape(g, h * nb, w * c_in).astype(jnp.float32)

    in_specs = [pl.BlockSpec((None, h * nb, w * c_in), lambda i: (i, 0, 0))]
    # resident operands: constant block index -> fetched once, reused every grid step
    in_specs += [pl.BlockSpec(m.shape, lambda i: (0, 0, 0)) for m in m_mats]
    in_specs += [pl.BlockSpec(b.shape, lambda i: (0, 0)) for b in b_rows]

    scratch_shapes = [pltpu.VMEM((2, (cfg["hp"] // 2) * nb, cfg["w"] * cfg["ci"]),
                                 jnp.bfloat16) for cfg in cfgs]

    # explicit VMEM budget: 2x weights (double-buffered specs) + scratches + I/O + slack
    weight_bytes = sum(2 * m.size for m in m_mats) + sum(4 * b.size for b in b_rows)
    scratch_bytes = sum(2 * (cfg["hp"] // 2) * nb * cfg["w"] * cfg["ci"] * 2
                        for cfg in cfgs)
    io_bytes = 2 * (h * nb * w * c_in * 4 + last["ho"] * nb * out_cols * 4)
    vmem_limit = int(min(max(2 * weight_bytes + scratch_bytes + io_bytes + (12 << 20),
                             16 << 20), 64 << 20))

    out = pl.pallas_call(
        _make_fused_kernel(cfgs, nb),
        out_shape=jax.ShapeDtypeStruct((g, last["ho"] * nb, out_cols), jnp.float32),
        grid_spec=pltpu.PrefetchScalarGridSpec(
            num_scalar_prefetch=0,
            grid=(g,),
            in_specs=in_specs,
            out_specs=pl.BlockSpec((None, last["ho"] * nb, out_cols),
                                   lambda i: (i, 0, 0)),
            scratch_shapes=scratch_shapes,
        ),
        compiler_params=pltpu.CompilerParams(
            dimension_semantics=("parallel",),
            vmem_limit_bytes=vmem_limit),
    )(x, *m_mats, *b_rows)

    # (G, Ho*NB, Wo*Co) rows (h, image) -> NCHW
    out = out.reshape(g, last["ho"], nb, last["wo"], last["co"])
    out = jnp.transpose(out, (0, 2, 4, 1, 3))
    return out.reshape(n, last["co"], last["ho"], last["wo"])


# ---------------------------------------------------------------------------
# parameter init (PyTorch Conv2d default: U(+-1/sqrt(fan_in))), HWIO layout
# ---------------------------------------------------------------------------
def init_pose_bottleneck_params(key, in_ch=6):
    params = []
    ci = in_ch
    for co, k in zip(CONV_PLANES, KERNEL_SIZES):
        key, k_w, k_b = jax.random.split(key, 3)
        bound = 1.0 / math.sqrt(k * k * ci)
        wt = jax.random.uniform(k_w, (k, k, ci, co), jnp.float32, -bound, bound)
        b = jax.random.uniform(k_b, (co,), jnp.float32, -bound, bound)
        params.append((wt, b))
        ci = co
    return params


# ---------------------------------------------------------------------------
# pure-JAX references (lax.conv) for correctness checking
# ---------------------------------------------------------------------------
def pose_bottleneck_ref(x_nchw, params, cast_bf16=False):
    x = jnp.transpose(x_nchw, (0, 2, 3, 1)).astype(jnp.float32)
    for wt, b in params:
        k = wt.shape[0]
        p = (k - 1) // 2
        lhs = x.astype(jnp.bfloat16) if cast_bf16 else x
        rhs = wt.astype(jnp.bfloat16) if cast_bf16 else wt
        y = jax.lax.conv_general_dilated(
            lhs, rhs, window_strides=(CONV_STRIDE, CONV_STRIDE),
            padding=((p, p), (p, p)),
            dimension_numbers=("NHWC", "HWIO", "NHWC"),
            preferred_element_type=jnp.float32)
        y = y + b
        x = jnp.where(y >= 0, y, LEAKY_SLOPE * y)
    return jnp.transpose(x, (0, 3, 1, 2))


if __name__ == "__main__":
    key = jax.random.PRNGKey(0)
    key, kx = jax.random.split(key)
    # NCHW like PyTorch; in_ch=6 (two stacked RGB frames).  N=16 -> NB=8, grid=(2,).
    x = jax.random.normal(kx, (16, 6, 32, 32), jnp.float32)
    params = init_pose_bottleneck_params(key, in_ch=6)

    # one-time weight preparation (cached across forward calls)
    m_mats, b_rows = prepare_pose_bottleneck_params(params, (32, 32), in_ch=6)

    out = pose_bottleneck(x, m_mats, b_rows)
    out = jax.block_until_ready(out)

    ref_match = pose_bottleneck_ref(x, params, cast_bf16=True)   # same bf16 numerics
    ref_f32 = pose_bottleneck_ref(x, params, cast_bf16=False)    # full-precision ref

    assert out.shape == ref_f32.shape == (16, 96, 2, 2), out.shape
    err_match = float(jnp.max(jnp.abs(out - ref_match)))
    err_f32 = float(jnp.max(jnp.abs(out - ref_f32)))
    assert jnp.allclose(out, ref_match, atol=1e-3, rtol=1e-3), err_match
    assert jnp.allclose(out, ref_f32, atol=5e-2, rtol=5e-2), err_f32

    print("KERNEL_OK")
</pallas_src>

<mosaic_0001>
module attributes {stable_mosaic.version = 11 : i64} {
  func.func @kernel(%arg0: i32, %arg1: memref<1x256x192xf32, #tpu.memory_space<vmem>>, %arg2: memref<7x192x256xbf16, #tpu.memory_space<vmem>>, %arg3: memref<5x256x256xbf16, #tpu.memory_space<vmem>>, %arg4: memref<3x256x256xbf16, #tpu.memory_space<vmem>>, %arg5: memref<3x256x192xbf16, #tpu.memory_space<vmem>>, %arg6: memref<1x256xf32, #tpu.memory_space<vmem>>, %arg7: memref<1x256xf32, #tpu.memory_space<vmem>>, %arg8: memref<1x256xf32, #tpu.memory_space<vmem>>, %arg9: memref<1x192xf32, #tpu.memory_space<vmem>>, %arg10: memref<1x16x192xf32, #tpu.memory_space<vmem>>, %arg11: memref<2x152x192xbf16, #tpu.memory_space<vmem>>, %arg12: memref<2x80x256xbf16, #tpu.memory_space<vmem>>, %arg13: memref<2x40x256xbf16, #tpu.memory_space<vmem>>, %arg14: memref<2x24x256xbf16, #tpu.memory_space<vmem>>) attributes {dimension_semantics = [#tpu.dimension_semantics<parallel>], iteration_bounds = array<i64: 2>, scalar_prefetch = 0 : i64, scratch_operands = 4 : i64, tpu.core_type = #tpu.core_type<tc>, window_params = [{transform_indices = @transform_0, window_bounds = array<i64: 1, 256, 192>}, {pipeline_mode = #tpu.pipeline_mode<synchronous>, transform_indices = @transform_1, window_bounds = array<i64: 7, 192, 256>}, {pipeline_mode = #tpu.pipeline_mode<synchronous>, transform_indices = @transform_2, window_bounds = array<i64: 5, 256, 256>}, {pipeline_mode = #tpu.pipeline_mode<synchronous>, transform_indices = @transform_3, window_bounds = array<i64: 3, 256, 256>}, {pipeline_mode = #tpu.pipeline_mode<synchronous>, transform_indices = @transform_4, window_bounds = array<i64: 3, 256, 192>}, {pipeline_mode = #tpu.pipeline_mode<synchronous>, transform_indices = @transform_5, window_bounds = array<i64: 1, 256>}, {pipeline_mode = #tpu.pipeline_mode<synchronous>, transform_indices = @transform_6, window_bounds = array<i64: 1, 256>}, {pipeline_mode = #tpu.pipeline_mode<synchronous>, transform_indices = @transform_7, window_bounds = array<i64: 1, 256>}, {pipeline_mode = #tpu.pipeline_mode<synchronous>, transform_indices = @transform_8, window_bounds = array<i64: 1, 192>}, {transform_indices = @transform_9, window_bounds = array<i64: 1, 16, 192>}]} {
    %cst = arith.constant 0.000000e+00 : bf16
    %0 = vector.broadcast %cst : bf16 to vector<16x192xbf16>
    %c0 = arith.constant 0 : index
    %c0_0 = arith.constant 0 : index
    %c0_1 = arith.constant 0 : index
    %1 = vector.load %arg11[%c0, %c0_0, %c0_1] : memref<2x152x192xbf16, #tpu.memory_space<vmem>>, vector<1x16x192xbf16>
    %2 = vector.shape_cast %1 : vector<1x16x192xbf16> to vector<16x192xbf16>
    %3 = vector.shape_cast %0 : vector<16x192xbf16> to vector<1x16x192xbf16>
    tpu.vector_store %arg11[%c0, %c0_0, %c0_1], %3 {strides = array<i32>} : memref<2x152x192xbf16, #tpu.memory_space<vmem>>, vector<1x16x192xbf16>,
    %cst_2 = arith.constant 0.000000e+00 : bf16
    %4 = vector.broadcast %cst_2 : bf16 to vector<8x192xbf16>
    %c0_3 = arith.constant 0 : index
    %c144 = arith.constant 144 : index
    %c0_4 = arith.constant 0 : index
    %5 = vector.load %arg11[%c0_3, %c144, %c0_4] : memref<2x152x192xbf16, #tpu.memory_space<vmem>>, vector<1x8x192xbf16>
    %6 = vector.shape_cast %5 : vector<1x8x192xbf16> to vector<8x192xbf16>
    %7 = vector.shape_cast %4 : vector<8x192xbf16> to vector<1x8x192xbf16>
    tpu.vector_store %arg11[%c0_3, %c144, %c0_4], %7 {strides = array<i32>} : memref<2x152x192xbf16, #tpu.memory_space<vmem>>, vector<1x8x192xbf16>,
    %c0_5 = arith.constant 0 : index
    %c8 = arith.constant 8 : index
    %c0_6 = arith.constant 0 : index
    %8 = vector.load %arg1[%c0_5, %c8, %c0_6] : memref<1x256x192xf32, #tpu.memory_space<vmem>>, vector<1x8x192xf32>
    %9 = vector.shape_cast %8 : vector<1x8x192xf32> to vector<8x192xf32>
    %10 = arith.truncf %9 : vector<8x192xf32> to vector<8x192xbf16>
    %c0_7 = arith.constant 0 : index
    %c16 = arith.constant 16 : index
    %c0_8 = arith.constant 0 : index
    %11 = vector.load %arg11[%c0_7, %c16, %c0_8] : memref<2x152x192xbf16, #tpu.memory_space<vmem>>, vector<1x8x192xbf16>
    %12 = vector.shape_cast %11 : vector<1x8x192xbf16> to vector<8x192xbf16>
    %13 = vector.shape_cast %10 : vector<8x192xbf16> to vector<1x8x192xbf16>
    tpu.vector_store %arg11[%c0_7, %c16, %c0_8], %13 {strides = array<i32>} : memref<2x152x192xbf16, #tpu.memory_space<vmem>>, vector<1x8x192xbf16>,
    %c0_9 = arith.constant 0 : index
    %c24 = arith.constant 24 : index
    %c0_10 = arith.constant 0 : index
    %14 = vector.load %arg1[%c0_9, %c24, %c0_10] : memref<1x256x192xf32, #tpu.memory_space<vmem>>, vector<1x8x192xf32>
    %15 = vector.shape_cast %14 : vector<1x8x192xf32> to vector<8x192xf32>
    %16 = arith.truncf %15 : vector<8x192xf32> to vector<8x192xbf16>
    %c0_11 = arith.constant 0 : index
    %c24_12 = arith.constant 24 : index
    %c0_13 = arith.constant 0 : index
    %17 = vector.load %arg11[%c0_11, %c24_12, %c0_13] : memref<2x152x192xbf16, #tpu.memory_space<vmem>>, vector<1x8x192xbf16>
    %18 = vector.shape_cast %17 : vector<1x8x192xbf16> to vector<8x192xbf16>
    %19 = vector.shape_cast %16 : vector<8x192xbf16> to vector<1x8x192xbf16>
    tpu.vector_store %arg11[%c0_11, %c24_12, %c0_13], %19 {strides = array<i32>} : memref<2x152x192xbf16, #tpu.memory_space<vmem>>, vector<1x8x192xbf16>,
    %c0_14 = arith.constant 0 : index
    %c40 = arith.constant 40 : index
    %c0_15 = arith.constant 0 : index
    %20 = vector.load %arg1[%c0_14, %c40, %c0_15] : memref<1x256x192xf32, #tpu.memory_space<vmem>>, vector<1x8x192xf32>
    %21 = vector.shape_cast %20 : vector<1x8x192xf32> to vector<8x192xf32>
    %22 = arith.truncf %21 : vector<8x192xf32> to vector<8x192xbf16>
    %c0_16 = arith.constant 0 : index
    %c32 = arith.constant 32 : index
    %c0_17 = arith.constant 0 : index
    %23 = vector.load %arg11[%c0_16, %c32, %c0_17] : memref<2x152x192xbf16, #tpu.memory_space<vmem>>, vector<1x8x192xbf16>
    %24 = vector.shape_cast %23 : vector<1x8x192xbf16> to vector<8x192xbf16>
    %25 = vector.shape_cast %22 : vector<8x192xbf16> to vector<1x8x192xbf16>
    tpu.vector_store %arg11[%c0_16, %c32, %c0_17], %25 {strides = array<i32>} : memref<2x152x192xbf16, #tpu.memory_space<vmem>>, vector<1x8x192xbf16>,
    %c0_18 = arith.constant 0 : index
    %c56 = arith.constant 56 : index
    %c0_19 = arith.constant 0 : index
    %26 = vector.load %arg1[%c0_18, %c56, %c0_19] : memref<1x256x192xf32, #tpu.memory_space<vmem>>, vector<1x8x192xf32>
    %27 = vector.shape_cast %26 : vector<1x8x192xf32> to vector<8x192xf32>
    %28 = arith.truncf %27 : vector<8x192xf32> to vector<8x192xbf16>
    %c0_20 = arith.constant 0 : index
    %c40_21 = arith.constant 40 : index
    %c0_22 = arith.constant 0 : index
    %29 = vector.load %arg11[%c0_20, %c40_21, %c0_22] : memref<2x152x192xbf16, #tpu.memory_space<vmem>>, vector<1x8x192xbf16>
    %30 = vector.shape_cast %29 : vector<1x8x192xbf16> to vector<8x192xbf16>
    %31 = vector.shape_cast %28 : vector<8x192xbf16> to vector<1x8x192xbf16>
    tpu.vector_store %arg11[%c0_20, %c40_21, %c0_22], %31 {strides = array<i32>} : memref<2x152x192xbf16, #tpu.memory_space<vmem>>, vector<1x8x192xbf16>,
    %c0_23 = arith.constant 0 : index
    %c72 = arith.constant 72 : index
    %c0_24 = arith.constant 0 : index
    %32 = vector.load %arg1[%c0_23, %c72, %c0_24] : memref<1x256x192xf32, #tpu.memory_space<vmem>>, vector<1x8x192xf32>
    %33 = vector.shape_cast %32 : vector<1x8x192xf32> to vector<8x192xf32>
    %34 = arith.truncf %33 : vector<8x192xf32> to vector<8x192xbf16>
    %c0_25 = arith.constant 0 : index
    %c48 = arith.constant 48 : index
    %c0_26 = arith.constant 0 : index
    %35 = vector.load %arg11[%c0_25, %c48, %c0_26] : memref<2x152x192xbf16, #tpu.memory_space<vmem>>, vector<1x8x192xbf16>
    %36 = vector.shape_cast %35 : vector<1x8x192xbf16> to vector<8x192xbf16>
    %37 = vector.shape_cast %34 : vector<8x192xbf16> to vector<1x8x192xbf16>
    tpu.vector_store %arg11[%c0_25, %c48, %c0_26], %37 {strides = array<i32>} : memref<2x152x192xbf16, #tpu.memory_space<vmem>>, vector<1x8x192xbf16>,
    %c0_27 = arith.constant 0 : index
    %c88 = arith.constant 88 : index
    %c0_28 = arith.constant 0 : index
    %38 = vector.load %arg1[%c0_27, %c88, %c0_28] : memref<1x256x192xf32, #tpu.memory_space<vmem>>, vector<1x8x192xf32>
    %39 = vector.shape_cast %38 : vector<1x8x192xf32> to vector<8x192xf32>
    %40 = arith.truncf %39 : vector<8x192xf32> to vector<8x192xbf16>
    %c0_29 = arith.constant 0 : index
    %c56_30 = arith.constant 56 : index
    %c0_31 = arith.constant 0 : index
    %41 = vector.load %arg11[%c0_29, %c56_30, %c0_31] : memref<2x152x192xbf16, #tpu.memory_space<vmem>>, vector<1x8x192xbf16>
    %42 = vector.shape_cast %41 : vector<1x8x192xbf16> to vector<8x192xbf16>
    %43 = vector.shape_cast %40 : vector<8x192xbf16> to vector<1x8x192xbf16>
    tpu.vector_store %arg11[%c0_29, %c56_30, %c0_31], %43 {strides = array<i32>} : memref<2x152x192xbf16, #tpu.memory_space<vmem>>, vector<1x8x192xbf16>,
    %c0_32 = arith.constant 0 : index
    %c104 = arith.constant 104 : index
    %c0_33 = arith.constant 0 : index
    %44 = vector.load %arg1[%c0_32, %c104, %c0_33] : memref<1x256x192xf32, #tpu.memory_space<vmem>>, vector<1x8x192xf32>
    %45 = vector.shape_cast %44 : vector<1x8x192xf32> to vector<8x192xf32>
    %46 = arith.truncf %45 : vector<8x192xf32> to vector<8x192xbf16>
    %c0_34 = arith.constant 0 : index
    %c64 = arith.constant 64 : index
    %c0_35 = arith.constant 0 : index
    %47 = vector.load %arg11[%c0_34, %c64, %c0_35] : memref<2x152x192xbf16, #tpu.memory_space<vmem>>, vector<1x8x192xbf16>
    %48 = vector.shape_cast %47 : vector<1x8x192xbf16> to vector<8x192xbf16>
    %49 = vector.shape_cast %46 : vector<8x192xbf16> to vector<1x8x192xbf16>
    tpu.vector_store %arg11[%c0_34, %c64, %c0_35], %49 {strides = array<i32>} : memref<2x152x192xbf16, #tpu.memory_space<vmem>>, vector<1x8x192xbf16>,
    %c0_36 = arith.constant 0 : index
    %c120 = arith.constant 120 : index
    %c0_37 = arith.constant 0 : index
    %50 = vector.load %arg1[%c0_36, %c120, %c0_37] : memref<1x256x192xf32, #tpu.memory_space<vmem>>, vector<1x8x192xf32>
    %51 = vector.shape_cast %50 : vector<1x8x192xf32> to vector<8x192xf32>
    %52 = arith.truncf %51 : vector<8x192xf32> to vector<8x192xbf16>
    %c0_38 = arith.constant 0 : index
    %c72_39 = arith.constant 72 : index
    %c0_40 = arith.constant 0 : index
    %53 = vector.load %arg11[%c0_38, %c72_39, %c0_40] : memref<2x152x192xbf16, #tpu.memory_space<vmem>>, vector<1x8x192xbf16>
    %54 = vector.shape_cast %53 : vector<1x8x192xbf16> to vector<8x192xbf16>
    %55 = vector.shape_cast %52 : vector<8x192xbf16> to vector<1x8x192xbf16>
    tpu.vector_store %arg11[%c0_38, %c72_39, %c0_40], %55 {strides = array<i32>} : memref<2x152x192xbf16, #tpu.memory_space<vmem>>, vector<1x8x192xbf16>,
    %c0_41 = arith.constant 0 : index
    %c136 = arith.constant 136 : index
    %c0_42 = arith.constant 0 : index
    %56 = vector.load %arg1[%c0_41, %c136, %c0_42] : memref<1x256x192xf32, #tpu.memory_space<vmem>>, vector<1x8x192xf32>
    %57 = vector.shape_cast %56 : vector<1x8x192xf32> to vector<8x192xf32>
    %58 = arith.truncf %57 : vector<8x192xf32> to vector<8x192xbf16>
    %c0_43 = arith.constant 0 : index
    %c80 = arith.constant 80 : index
    %c0_44 = arith.constant 0 : index
    %59 = vector.load %arg11[%c0_43, %c80, %c0_44] : memref<2x152x192xbf16, #tpu.memory_space<vmem>>, vector<1x8x192xbf16>
    %60 = vector.shape_cast %59 : vector<1x8x192xbf16> to vector<8x192xbf16>
    %61 = vector.shape_cast %58 : vector<8x192xbf16> to vector<1x8x192xbf16>
    tpu.vector_store %arg11[%c0_43, %c80, %c0_44], %61 {strides = array<i32>} : memref<2x152x192xbf16, #tpu.memory_space<vmem>>, vector<1x8x192xbf16>,
    %c0_45 = arith.constant 0 : index
    %c152 = arith.constant 152 : index
    %c0_46 = arith.constant 0 : index
    %62 = vector.load %arg1[%c0_45, %c152, %c0_46] : memref<1x256x192xf32, #tpu.memory_space<vmem>>, vector<1x8x192xf32>
    %63 = vector.shape_cast %62 : vector<1x8x192xf32> to vector<8x192xf32>
    %64 = arith.truncf %63 : vector<8x192xf32> to vector<8x192xbf16>
    %c0_47 = arith.constant 0 : index
    %c88_48 = arith.constant 88 : index
    %c0_49 = arith.constant 0 : index
    %65 = vector.load %arg11[%c0_47, %c88_48, %c0_49] : memref<2x152x192xbf16, #tpu.memory_space<vmem>>, vector<1x8x192xbf16>
    %66 = vector.shape_cast %65 : vector<1x8x192xbf16> to vector<8x192xbf16>
    %67 = vector.shape_cast %64 : vector<8x192xbf16> to vector<1x8x192xbf16>
    tpu.vector_store %arg11[%c0_47, %c88_48, %c0_49], %67 {strides = array<i32>} : memref<2x152x192xbf16, #tpu.memory_space<vmem>>, vector<1x8x192xbf16>,
    %c0_50 = arith.constant 0 : index
    %c168 = arith.constant 168 : index
    %c0_51 = arith.constant 0 : index
    %68 = vector.load %arg1[%c0_50, %c168, %c0_51] : memref<1x256x192xf32, #tpu.memory_space<vmem>>, vector<1x8x192xf32>
    %69 = vector.shape_cast %68 : vector<1x8x192xf32> to vector<8x192xf32>
    %70 = arith.truncf %69 : vector<8x192xf32> to vector<8x192xbf16>
    %c0_52 = arith.constant 0 : index
    %c96 = arith.constant 96 : index
    %c0_53 = arith.constant 0 : index
    %71 = vector.load %arg11[%c0_52, %c96, %c0_53] : memref<2x152x192xbf16, #tpu.memory_space<vmem>>, vector<1x8x192xbf16>
    %72 = vector.shape_cast %71 : vector<1x8x192xbf16> to vector<8x192xbf16>
    %73 = vector.shape_cast %70 : vector<8x192xbf16> to vector<1x8x192xbf16>
    tpu.vector_store %arg11[%c0_52, %c96, %c0_53], %73 {strides = array<i32>} : memref<2x152x192xbf16, #tpu.memory_space<vmem>>, vector<1x8x192xbf16>,
    %c0_54 = arith.constant 0 : index
    %c184 = arith.constant 184 : index
    %c0_55 = arith.constant 0 : index
    %74 = vector.load %arg1[%c0_54, %c184, %c0_55] : memref<1x256x192xf32, #tpu.memory_space<vmem>>, vector<1x8x192xf32>
    %75 = vector.shape_cast %74 : vector<1x8x192xf32> to vector<8x192xf32>
    %76 = arith.truncf %75 : vector<8x192xf32> to vector<8x192xbf16>
    %c0_56 = arith.constant 0 : index
    %c104_57 = arith.constant 104 : index
    %c0_58 = arith.constant 0 : index
    %77 = vector.load %arg11[%c0_56, %c104_57, %c0_58] : memref<2x152x192xbf16, #tpu.memory_space<vmem>>, vector<1x8x192xbf16>
    %78 = vector.shape_cast %77 : vector<1x8x192xbf16> to vector<8x192xbf16>
    %79 = vector.shape_cast %76 : vector<8x192xbf16> to vector<1x8x192xbf16>
    tpu.vector_store %arg11[%c0_56, %c104_57, %c0_58], %79 {strides = array<i32>} : memref<2x152x192xbf16, #tpu.memory_space<vmem>>, vector<1x8x192xbf16>,
    %c0_59 = arith.constant 0 : index
    %c200 = arith.constant 200 : index
    %c0_60 = arith.constant 0 : index
    %80 = vector.load %arg1[%c0_59, %c200, %c0_60] : memref<1x256x192xf32, #tpu.memory_space<vmem>>, vector<1x8x192xf32>
    %81 = vector.shape_cast %80 : vector<1x8x192xf32> to vector<8x192xf32>
    %82 = arith.truncf %81 : vector<8x192xf32> to vector<8x192xbf16>
    %c0_61 = arith.constant 0 : index
    %c112 = arith.constant 112 : index
    %c0_62 = arith.constant 0 : index
    %83 = vector.load %arg11[%c0_61, %c112, %c0_62] : memref<2x152x192xbf16, #tpu.memory_space<vmem>>, vector<1x8x192xbf16>
    %84 = vector.shape_cast %83 : vector<1x8x192xbf16> to vector<8x192xbf16>
    %85 = vector.shape_cast %82 : vector<8x192xbf16> to vector<1x8x192xbf16>
    tpu.vector_store %arg11[%c0_61, %c112, %c0_62], %85 {strides = array<i32>} : memref<2x152x192xbf16, #tpu.memory_space<vmem>>, vector<1x8x192xbf16>,
    %c0_63 = arith.constant 0 : index
    %c216 = arith.constant 216 : index
    %c0_64 = arith.constant 0 : index
    %86 = vector.load %arg1[%c0_63, %c216, %c0_64] : memref<1x256x192xf32, #tpu.memory_space<vmem>>, vector<1x8x192xf32>
    %87 = vector.shape_cast %86 : vector<1x8x192xf32> to vector<8x192xf32>
    %88 = arith.truncf %87 : vector<8x192xf32> to vector<8x192xbf16>
    %c0_65 = arith.constant 0 : index
    %c120_66 = arith.constant 120 : index
    %c0_67 = arith.constant 0 : index
    %89 = vector.load %arg11[%c0_65, %c120_66, %c0_67] : memref<2x152x192xbf16, #tpu.memory_space<vmem>>, vector<1x8x192xbf16>
    %90 = vector.shape_cast %89 : vector<1x8x192xbf16> to vector<8x192xbf16>
    %91 = vector.shape_cast %88 : vector<8x192xbf16> to vector<1x8x192xbf16>
    tpu.vector_store %arg11[%c0_65, %c120_66, %c0_67], %91 {strides = array<i32>} : memref<2x152x192xbf16, #tpu.memory_space<vmem>>, vector<1x8x192xbf16>,
    %c0_68 = arith.constant 0 : index
    %c232 = arith.constant 232 : index
    %c0_69 = arith.constant 0 : index
    %92 = vector.load %arg1[%c0_68, %c232, %c0_69] : memref<1x256x192xf32, #tpu.memory_space<vmem>>, vector<1x8x192xf32>
    %93 = vector.shape_cast %92 : vector<1x8x192xf32> to vector<8x192xf32>
    %94 = arith.truncf %93 : vector<8x192xf32> to vector<8x192xbf16>
    %c0_70 = arith.constant 0 : index
    %c128 = arith.constant 128 : index
    %c0_71 = arith.constant 0 : index
    %95 = vector.load %arg11[%c0_70, %c128, %c0_71] : memref<2x152x192xbf16, #tpu.memory_space<vmem>>, vector<1x8x192xbf16>
    %96 = vector.shape_cast %95 : vector<1x8x192xbf16> to vector<8x192xbf16>
    %97 = vector.shape_cast %94 : vector<8x192xbf16> to vector<1x8x192xbf16>
    tpu.vector_store %arg11[%c0_70, %c128, %c0_71], %97 {strides = array<i32>} : memref<2x152x192xbf16, #tpu.memory_space<vmem>>, vector<1x8x192xbf16>,
    %c0_72 = arith.constant 0 : index
    %c248 = arith.constant 248 : index
    %c0_73 = arith.constant 0 : index
    %98 = vector.load %arg1[%c0_72, %c248, %c0_73] : memref<1x256x192xf32, #tpu.memory_space<vmem>>, vector<1x8x192xf32>
    %99 = vector.shape_cast %98 : vector<1x8x192xf32> to vector<8x192xf32>
    %100 = arith.truncf %99 : vector<8x192xf32> to vector<8x192xbf16>
    %c0_74 = arith.constant 0 : index
    %c136_75 = arith.constant 136 : index
    %c0_76 = arith.constant 0 : index
    %101 = vector.load %arg11[%c0_74, %c136_75, %c0_76] : memref<2x152x192xbf16, #tpu.memory_space<vmem>>, vector<1x8x192xbf16>
    %102 = vector.shape_cast %101 : vector<1x8x192xbf16> to vector<8x192xbf16>
    %103 = vector.shape_cast %100 : vector<8x192xbf16> to vector<1x8x192xbf16>
    tpu.vector_store %arg11[%c0_74, %c136_75, %c0_76], %103 {strides = array<i32>} : memref<2x152x192xbf16, #tpu.memory_space<vmem>>, vector<1x8x192xbf16>,
    %cst_77 = arith.constant 0.000000e+00 : bf16
    %104 = vector.broadcast %cst_77 : bf16 to vector<8x192xbf16>
    %c1 = arith.constant 1 : index
    %c0_78 = arith.constant 0 : index
    %c0_79 = arith.constant 0 : index
    %105 = vector.load %arg11[%c1, %c0_78, %c0_79] : memref<2x152x192xbf16, #tpu.memory_space<vmem>>, vector<1x8x192xbf16>
    %106 = vector.shape_cast %105 : vector<1x8x192xbf16> to vector<8x192xbf16>
    %107 = vector.shape_cast %104 : vector<8x192xbf16> to vector<1x8x192xbf16>
    tpu.vector_store %arg11[%c1, %c0_78, %c0_79], %107 {strides = array<i32>} : memref<2x152x192xbf16, #tpu.memory_space<vmem>>, vector<1x8x192xbf16>,
    %cst_80 = arith.constant 0.000000e+00 : bf16
    %108 = vector.broadcast %cst_80 : bf16 to vector<16x192xbf16>
    %c1_81 = arith.constant 1 : index
    %c136_82 = arith.constant 136 : index
    %c0_83 = arith.constant 0 : index
    %109 = vector.load %arg11[%c1_81, %c136_82, %c0_83] : memref<2x152x192xbf16, #tpu.memory_space<vmem>>, vector<1x16x192xbf16>
    %110 = vector.shape_cast %109 : vector<1x16x192xbf16> to vector<16x192xbf16>
    %111 = vector.shape_cast %108 : vector<16x192xbf16> to vector<1x16x192xbf16>
    tpu.vector_store %arg11[%c1_81, %c136_82, %c0_83], %111 {strides = array<i32>} : memref<2x152x192xbf16, #tpu.memory_space<vmem>>, vector<1x16x192xbf16>,
    %c0_84 = arith.constant 0 : index
    %c0_85 = arith.constant 0 : index
    %c0_86 = arith.constant 0 : index
    %112 = vector.load %arg1[%c0_84, %c0_85, %c0_86] : memref<1x256x192xf32, #tpu.memory_space<vmem>>, vector<1x8x192xf32>
    %113 = vector.shape_cast %112 : vector<1x8x192xf32> to vector<8x192xf32>
    %114 = arith.truncf %113 : vector<8x192xf32> to vector<8x192xbf16>
    %c1_87 = arith.constant 1 : index
    %c8_88 = arith.constant 8 : index
    %c0_89 = arith.constant 0 : index
    %115 = vector.load %arg11[%c1_87, %c8_88, %c0_89] : memref<2x152x192xbf16, #tpu.memory_space<vmem>>, vector<1x8x192xbf16>
    %116 = vector.shape_cast %115 : vector<1x8x192xbf16> to vector<8x192xbf16>
    %117 = vector.shape_cast %114 : vector<8x192xbf16> to vector<1x8x192xbf16>
    tpu.vector_store %arg11[%c1_87, %c8_88, %c0_89], %117 {strides = array<i32>} : memref<2x152x192xbf16, #tpu.memory_space<vmem>>, vector<1x8x192xbf16>,
    %c0_90 = arith.constant 0 : index
    %c16_91 = arith.constant 16 : index
    %c0_92 = arith.constant 0 : index
    %118 = vector.load %arg1[%c0_90, %c16_91, %c0_92] : memref<1x256x192xf32, #tpu.memory_space<vmem>>, vector<1x8x192xf32>
    %119 = vector.shape_cast %118 : vector<1x8x192xf32> to vector<8x192xf32>
    %120 = arith.truncf %119 : vector<8x192xf32> to vector<8x192xbf16>
    %c1_93 = arith.constant 1 : index
    %c16_94 = arith.constant 16 : index
    %c0_95 = arith.constant 0 : index
    %121 = vector.load %arg11[%c1_93, %c16_94, %c0_95] : memref<2x152x192xbf16, #tpu.memory_space<vmem>>, vector<1x8x192xbf16>
    %122 = vector.shape_cast %121 : vector<1x8x192xbf16> to vector<8x192xbf16>
    %123 = vector.shape_cast %120 : vector<8x192xbf16> to vector<1x8x192xbf16>
    tpu.vector_store %arg11[%c1_93, %c16_94, %c0_95], %123 {strides = array<i32>} : memref<2x152x192xbf16, #tpu.memory_space<vmem>>, vector<1x8x192xbf16>,
    %c0_96 = arith.constant 0 : index
    %c32_97 = arith.constant 32 : index
    %c0_98 = arith.constant 0 : index
    %124 = vector.load %arg1[%c0_96, %c32_97, %c0_98] : memref<1x256x192xf32, #tpu.memory_space<vmem>>, vector<1x8x192xf32>
    %125 = vector.shape_cast %124 : vector<1x8x192xf32> to vector<8x192xf32>
    %126 = arith.truncf %125 : vector<8x192xf32> to vector<8x192xbf16>
    %c1_99 = arith.constant 1 : index
    %c24_100 = arith.constant 24 : index
    %c0_101 = arith.constant 0 : index
    %127 = vector.load %arg11[%c1_99, %c24_100, %c0_101] : memref<2x152x192xbf16, #tpu.memory_space<vmem>>, vector<1x8x192xbf16>
    %128 = vector.shape_cast %127 : vector<1x8x192xbf16> to vector<8x192xbf16>
    %129 = vector.shape_cast %126 : vector<8x192xbf16> to vector<1x8x192xbf16>
    tpu.vector_store %arg11[%c1_99, %c24_100, %c0_101], %129 {strides = array<i32>} : memref<2x152x192xbf16, #tpu.memory_space<vmem>>, vector<1x8x192xbf16>,
    %c0_102 = arith.constant 0 : index
    %c48_103 = arith.constant 48 : index
    %c0_104 = arith.constant 0 : index
    %130 = vector.load %arg1[%c0_102, %c48_103, %c0_104] : memref<1x256x192xf32, #tpu.memory_space<vmem>>, vector<1x8x192xf32>
    %131 = vector.shape_cast %130 : vector<1x8x192xf32> to vector<8x192xf32>
    %132 = arith.truncf %131 : vector<8x192xf32> to vector<8x192xbf16>
    %c1_105 = arith.constant 1 : index
    %c32_106 = arith.constant 32 : index
    %c0_107 = arith.constant 0 : index
    %133 = vector.load %arg11[%c1_105, %c32_106, %c0_107] : memref<2x152x192xbf16, #tpu.memory_space<vmem>>, vector<1x8x192xbf16>
    %134 = vector.shape_cast %133 : vector<1x8x192xbf16> to vector<8x192xbf16>
    %135 = vector.shape_cast %132 : vector<8x192xbf16> to vector<1x8x192xbf16>
    tpu.vector_store %arg11[%c1_105, %c32_106, %c0_107], %135 {strides = array<i32>} : memref<2x152x192xbf16, #tpu.memory_space<vmem>>, vector<1x8x192xbf16>,
    %c0_108 = arith.constant 0 : index
    %c64_109 = arith.constant 64 : index
    %c0_110 = arith.constant 0 : index
    %136 = vector.load %arg1[%c0_108, %c64_109, %c0_110] : memref<1x256x192xf32, #tpu.memory_space<vmem>>, vector<1x8x192xf32>
    %137 = vector.shape_cast %136 : vector<1x8x192xf32> to vector<8x192xf32>
    %138 = arith.truncf %137 : vector<8x192xf32> to vector<8x192xbf16>
    %c1_111 = arith.constant 1 : index
    %c40_112 = arith.constant 40 : index
    %c0_113 = arith.constant 0 : index
    %139 = vector.load %arg11[%c1_111, %c40_112, %c0_113] : memref<2x152x192xbf16, #tpu.memory_space<vmem>>, vector<1x8x192xbf16>
    %140 = vector.shape_cast %139 : vector<1x8x192xbf16> to vector<8x192xbf16>
    %141 = vector.shape_cast %138 : vector<8x192xbf16> to vector<1x8x192xbf16>
    tpu.vector_store %arg11[%c1_111, %c40_112, %c0_113], %141 {strides = array<i32>} : memref<2x152x192xbf16, #tpu.memory_space<vmem>>, vector<1x8x192xbf16>,
    %c0_114 = arith.constant 0 : index
    %c80_115 = arith.constant 80 : index
    %c0_116 = arith.constant 0 : index
    %142 = vector.load %arg1[%c0_114, %c80_115, %c0_116] : memref<1x256x192xf32, #tpu.memory_space<vmem>>, vector<1x8x192xf32>
    %143 = vector.shape_cast %142 : vector<1x8x192xf32> to vector<8x192xf32>
    %144 = arith.truncf %143 : vector<8x192xf32> to vector<8x192xbf16>
    %c1_117 = arith.constant 1 : index
    %c48_118 = arith.constant 48 : index
    %c0_119 = arith.constant 0 : index
    %145 = vector.load %arg11[%c1_117, %c48_118, %c0_119] : memref<2x152x192xbf16, #tpu.memory_space<vmem>>, vector<1x8x192xbf16>
    %146 = vector.shape_cast %145 : vector<1x8x192xbf16> to vector<8x192xbf16>
    %147 = vector.shape_cast %144 : vector<8x192xbf16> to vector<1x8x192xbf16>
    tpu.vector_store %arg11[%c1_117, %c48_118, %c0_119], %147 {strides = array<i32>} : memref<2x152x192xbf16, #tpu.memory_space<vmem>>, vector<1x8x192xbf16>,
    %c0_120 = arith.constant 0 : index
    %c96_121 = arith.constant 96 : index
    %c0_122 = arith.constant 0 : index
    %148 = vector.load %arg1[%c0_120, %c96_121, %c0_122] : memref<1x256x192xf32, #tpu.memory_space<vmem>>, vector<1x8x192xf32>
    %149 = vector.shape_cast %148 : vector<1x8x192xf32> to vector<8x192xf32>
    %150 = arith.truncf %149 : vector<8x192xf32> to vector<8x192xbf16>
    %c1_123 = arith.constant 1 : index
    %c56_124 = arith.constant 56 : index
    %c0_125 = arith.constant 0 : index
    %151 = vector.load %arg11[%c1_123, %c56_124, %c0_125] : memref<2x152x192xbf16, #tpu.memory_space<vmem>>, vector<1x8x192xbf16>
    %152 = vector.shape_cast %151 : vector<1x8x192xbf16> to vector<8x192xbf16>
    %153 = vector.shape_cast %150 : vector<8x192xbf16> to vector<1x8x192xbf16>
    tpu.vector_store %arg11[%c1_123, %c56_124, %c0_125], %153 {strides = array<i32>} : memref<2x152x192xbf16, #tpu.memory_space<vmem>>, vector<1x8x192xbf16>,
    %c0_126 = arith.constant 0 : index
    %c112_127 = arith.constant 112 : index
    %c0_128 = arith.constant 0 : index
    %154 = vector.load %arg1[%c0_126, %c112_127, %c0_128] : memref<1x256x192xf32, #tpu.memory_space<vmem>>, vector<1x8x192xf32>
    %155 = vector.shape_cast %154 : vector<1x8x192xf32> to vector<8x192xf32>
    %156 = arith.truncf %155 : vector<8x192xf32> to vector<8x192xbf16>
    %c1_129 = arith.constant 1 : index
    %c64_130 = arith.constant 64 : index
    %c0_131 = arith.constant 0 : index
    %157 = vector.load %arg11[%c1_129, %c64_130, %c0_131] : memref<2x152x192xbf16, #tpu.memory_space<vmem>>, vector<1x8x192xbf16>
    %158 = vector.shape_cast %157 : vector<1x8x192xbf16> to vector<8x192xbf16>
    %159 = vector.shape_cast %156 : vector<8x192xbf16> to vector<1x8x192xbf16>
    tpu.vector_store %arg11[%c1_129, %c64_130, %c0_131], %159 {strides = array<i32>} : memref<2x152x192xbf16, #tpu.memory_space<vmem>>, vector<1x8x192xbf16>,
    %c0_132 = arith.constant 0 : index
    %c128_133 = arith.constant 128 : index
    %c0_134 = arith.constant 0 : index
    %160 = vector.load %arg1[%c0_132, %c128_133, %c0_134] : memref<1x256x192xf32, #tpu.memory_space<vmem>>, vector<1x8x192xf32>
    %161 = vector.shape_cast %160 : vector<1x8x192xf32> to vector<8x192xf32>
    %162 = arith.truncf %161 : vector<8x192xf32> to vector<8x192xbf16>
    %c1_135 = arith.constant 1 : index
    %c72_136 = arith.constant 72 : index
    %c0_137 = arith.constant 0 : index
    %163 = vector.load %arg11[%c1_135, %c72_136, %c0_137] : memref<2x152x192xbf16, #tpu.memory_space<vmem>>, vector<1x8x192xbf16>
    %164 = vector.shape_cast %163 : vector<1x8x192xbf16> to vector<8x192xbf16>
    %165 = vector.shape_cast %162 : vector<8x192xbf16> to vector<1x8x192xbf16>
    tpu.vector_store %arg11[%c1_135, %c72_136, %c0_137], %165 {strides = array<i32>} : memref<2x152x192xbf16, #tpu.memory_space<vmem>>, vector<1x8x192xbf16>,
    %c0_138 = arith.constant 0 : index
    %c144_139 = arith.constant 144 : index
    %c0_140 = arith.constant 0 : index
    %166 = vector.load %arg1[%c0_138, %c144_139, %c0_140] : memref<1x256x192xf32, #tpu.memory_space<vmem>>, vector<1x8x192xf32>
    %167 = vector.shape_cast %166 : vector<1x8x192xf32> to vector<8x192xf32>
    %168 = arith.truncf %167 : vector<8x192xf32> to vector<8x192xbf16>
    %c1_141 = arith.constant 1 : index
    %c80_142 = arith.constant 80 : index
    %c0_143 = arith.constant 0 : index
    %169 = vector.load %arg11[%c1_141, %c80_142, %c0_143] : memref<2x152x192xbf16, #tpu.memory_space<vmem>>, vector<1x8x192xbf16>
    %170 = vector.shape_cast %169 : vector<1x8x192xbf16> to vector<8x192xbf16>
    %171 = vector.shape_cast %168 : vector<8x192xbf16> to vector<1x8x192xbf16>
    tpu.vector_store %arg11[%c1_141, %c80_142, %c0_143], %171 {strides = array<i32>} : memref<2x152x192xbf16, #tpu.memory_space<vmem>>, vector<1x8x192xbf16>,
    %c0_144 = arith.constant 0 : index
    %c160 = arith.constant 160 : index
    %c0_145 = arith.constant 0 : index
    %172 = vector.load %arg1[%c0_144, %c160, %c0_145] : memref<1x256x192xf32, #tpu.memory_space<vmem>>, vector<1x8x192xf32>
    %173 = vector.shape_cast %172 : vector<1x8x192xf32> to vector<8x192xf32>
    %174 = arith.truncf %173 : vector<8x192xf32> to vector<8x192xbf16>
    %c1_146 = arith.constant 1 : index
    %c88_147 = arith.constant 88 : index
    %c0_148 = arith.constant 0 : index
    %175 = vector.load %arg11[%c1_146, %c88_147, %c0_148] : memref<2x152x192xbf16, #tpu.memory_space<vmem>>, vector<1x8x192xbf16>
    %176 = vector.shape_cast %175 : vector<1x8x192xbf16> to vector<8x192xbf16>
    %177 = vector.shape_cast %174 : vector<8x192xbf16> to vector<1x8x192xbf16>
    tpu.vector_store %arg11[%c1_146, %c88_147, %c0_148], %177 {strides = array<i32>} : memref<2x152x192xbf16, #tpu.memory_space<vmem>>, vector<1x8x192xbf16>,
    %c0_149 = arith.constant 0 : index
    %c176 = arith.constant 176 : index
    %c0_150 = arith.constant 0 : index
    %178 = vector.load %arg1[%c0_149, %c176, %c0_150] : memref<1x256x192xf32, #tpu.memory_space<vmem>>, vector<1x8x192xf32>
    %179 = vector.shape_cast %178 : vector<1x8x192xf32> to vector<8x192xf32>
    %180 = arith.truncf %179 : vector<8x192xf32> to vector<8x192xbf16>
    %c1_151 = arith.constant 1 : index
    %c96_152 = arith.constant 96 : index
    %c0_153 = arith.constant 0 : index
    %181 = vector.load %arg11[%c1_151, %c96_152, %c0_153] : memref<2x152x192xbf16, #tpu.memory_space<vmem>>, vector<1x8x192xbf16>
    %182 = vector.shape_cast %181 : vector<1x8x192xbf16> to vector<8x192xbf16>
    %183 = vector.shape_cast %180 : vector<8x192xbf16> to vector<1x8x192xbf16>
    tpu.vector_store %arg11[%c1_151, %c96_152, %c0_153], %183 {strides = array<i32>} : memref<2x152x192xbf16, #tpu.memory_space<vmem>>, vector<1x8x192xbf16>,
    %c0_154 = arith.constant 0 : index
    %c192 = arith.constant 192 : index
    %c0_155 = arith.constant 0 : index
    %184 = vector.load %arg1[%c0_154, %c192, %c0_155] : memref<1x256x192xf32, #tpu.memory_space<vmem>>, vector<1x8x192xf32>
    %185 = vector.shape_cast %184 : vector<1x8x192xf32> to vector<8x192xf32>
    %186 = arith.truncf %185 : vector<8x192xf32> to vector<8x192xbf16>
    %c1_156 = arith.constant 1 : index
    %c104_157 = arith.constant 104 : index
    %c0_158 = arith.constant 0 : index
    %187 = vector.load %arg11[%c1_156, %c104_157, %c0_158] : memref<2x152x192xbf16, #tpu.memory_space<vmem>>, vector<1x8x192xbf16>
    %188 = vector.shape_cast %187 : vector<1x8x192xbf16> to vector<8x192xbf16>
    %189 = vector.shape_cast %186 : vector<8x192xbf16> to vector<1x8x192xbf16>
    tpu.vector_store %arg11[%c1_156, %c104_157, %c0_158], %189 {strides = array<i32>} : memref<2x152x192xbf16, #tpu.memory_space<vmem>>, vector<1x8x192xbf16>,
    %c0_159 = arith.constant 0 : index
    %c208 = arith.constant 208 : index
    %c0_160 = arith.constant 0 : index
    %190 = vector.load %arg1[%c0_159, %c208, %c0_160] : memref<1x256x192xf32, #tpu.memory_space<vmem>>, vector<1x8x192xf32>
    %191 = vector.shape_cast %190 : vector<1x8x192xf32> to vector<8x192xf32>
    %192 = arith.truncf %191 : vector<8x192xf32> to vector<8x192xbf16>
    %c1_161 = arith.constant 1 : index
    %c112_162 = arith.constant 112 : index
    %c0_163 = arith.constant 0 : index
    %193 = vector.load %arg11[%c1_161, %c112_162, %c0_163] : memref<2x152x192xbf16, #tpu.memory_space<vmem>>, vector<1x8x192xbf16>
    %194 = vector.shape_cast %193 : vector<1x8x192xbf16> to vector<8x192xbf16>
    %195 = vector.shape_cast %192 : vector<8x192xbf16> to vector<1x8x192xbf16>
    tpu.vector_store %arg11[%c1_161, %c112_162, %c0_163], %195 {strides = array<i32>} : memref<2x152x192xbf16, #tpu.memory_space<vmem>>, vector<1x8x192xbf16>,
    %c0_164 = arith.constant 0 : index
    %c224 = arith.constant 224 : index
    %c0_165 = arith.constant 0 : index
    %196 = vector.load %arg1[%c0_164, %c224, %c0_165] : memref<1x256x192xf32, #tpu.memory_space<vmem>>, vector<1x8x192xf32>
    %197 = vector.shape_cast %196 : vector<1x8x192xf32> to vector<8x192xf32>
    %198 = arith.truncf %197 : vector<8x192xf32> to vector<8x192xbf16>
    %c1_166 = arith.constant 1 : index
    %c120_167 = arith.constant 120 : index
    %c0_168 = arith.constant 0 : index
    %199 = vector.load %arg11[%c1_166, %c120_167, %c0_168] : memref<2x152x192xbf16, #tpu.memory_space<vmem>>, vector<1x8x192xbf16>
    %200 = vector.shape_cast %199 : vector<1x8x192xbf16> to vector<8x192xbf16>
    %201 = vector.shape_cast %198 : vector<8x192xbf16> to vector<1x8x192xbf16>
    tpu.vector_store %arg11[%c1_166, %c120_167, %c0_168], %201 {strides = array<i32>} : memref<2x152x192xbf16, #tpu.memory_space<vmem>>, vector<1x8x192xbf16>,
    %c0_169 = arith.constant 0 : index
    %c240 = arith.constant 240 : index
    %c0_170 = arith.constant 0 : index
    %202 = vector.load %arg1[%c0_169, %c240, %c0_170] : memref<1x256x192xf32, #tpu.memory_space<vmem>>, vector<1x8x192xf32>
    %203 = vector.shape_cast %202 : vector<1x8x192xf32> to vector<8x192xf32>
    %204 = arith.truncf %203 : vector<8x192xf32> to vector<8x192xbf16>
    %c1_171 = arith.constant 1 : index
    %c128_172 = arith.constant 128 : index
    %c0_173 = arith.constant 0 : index
    %205 = vector.load %arg11[%c1_171, %c128_172, %c0_173] : memref<2x152x192xbf16, #tpu.memory_space<vmem>>, vector<1x8x192xbf16>
    %206 = vector.shape_cast %205 : vector<1x8x192xbf16> to vector<8x192xbf16>
    %207 = vector.shape_cast %204 : vector<8x192xbf16> to vector<1x8x192xbf16>
    tpu.vector_store %arg11[%c1_171, %c128_172, %c0_173], %207 {strides = array<i32>} : memref<2x152x192xbf16, #tpu.memory_space<vmem>>, vector<1x8x192xbf16>,
    %c0_174 = arith.constant 0 : index
    %c0_175 = arith.constant 0 : index
    %208 = vector.load %arg6[%c0_174, %c0_175] : memref<1x256xf32, #tpu.memory_space<vmem>>, vector<1x256xf32>
    %209 = vector.shape_cast %208 : vector<1x256xf32> to vector<1x256xf32>
    %210 = vector.broadcast %209 : vector<1x256xf32> to vector<128x256xf32>
    %c0_176 = arith.constant 0 : index
    %c0_177 = arith.constant 0 : index
    %c0_178 = arith.constant 0 : index
    %211 = vector.load %arg11[%c0_176, %c0_177, %c0_178] : memref<2x152x192xbf16, #tpu.memory_space<vmem>>, vector<1x128x192xbf16>
    %212 = vector.shape_cast %211 : vector<1x128x192xbf16> to vector<128x192xbf16>
    %c0_179 = arith.constant 0 : index
    %c0_180 = arith.constant 0 : index
    %c0_181 = arith.constant 0 : index
    %213 = vector.load %arg2[%c0_179, %c0_180, %c0_181] : memref<7x192x256xbf16, #tpu.memory_space<vmem>>, vector<1x192x256xbf16>
    %214 = vector.shape_cast %213 : vector<1x192x256xbf16> to vector<192x256xbf16>
    %cst_182 = arith.constant dense<0.000000e+00> : vector<128x256xf32>
    %215 = tpu.matmul %212, %214, %cst_182 {dimension_numbers = #tpu.dot_dimension_numbers<[1], [0], [0], [1], [0, 0, 1, 1], [], []>} : vector<128x192xbf16>, vector<192x256xbf16>, vector<128x256xf32> -> vector<128x256xf32>
    %216 = arith.addf %210, %215 : vector<128x256xf32>
    %c1_183 = arith.constant 1 : index
    %c0_184 = arith.constant 0 : index
    %c0_185 = arith.constant 0 : index
    %217 = vector.load %arg11[%c1_183, %c0_184, %c0_185] : memref<2x152x192xbf16, #tpu.memory_space<vmem>>, vector<1x128x192xbf16>
    %218 = vector.shape_cast %217 : vector<1x128x192xbf16> to vector<128x192xbf16>
    %c1_186 = arith.constant 1 : index
    %c0_187 = arith.constant 0 : index
    %c0_188 = arith.constant 0 : index
    %219 = vector.load %arg2[%c1_186, %c0_187, %c0_188] : memref<7x192x256xbf16, #tpu.memory_space<vmem>>, vector<1x192x256xbf16>
    %220 = vector.shape_cast %219 : vector<1x192x256xbf16> to vector<192x256xbf16>
    %cst_189 = arith.constant dense<0.000000e+00> : vector<128x256xf32>
    %221 = tpu.matmul %218, %220, %cst_189 {dimension_numbers = #tpu.dot_dimension_numbers<[1], [0], [0], [1], [0, 0, 1, 1], [], []>} : vector<128x192xbf16>, vector<192x256xbf16>, vector<128x256xf32> -> vector<128x256xf32>
    %222 = arith.addf %216, %221 : vector<128x256xf32>
    %c0_190 = arith.constant 0 : index
    %c8_191 = arith.constant 8 : index
    %c0_192 = arith.constant 0 : index
    %223 = vector.load %arg11[%c0_190, %c8_191, %c0_192] : memref<2x152x192xbf16, #tpu.memory_space<vmem>>, vector<1x128x192xbf16>
    %224 = vector.shape_cast %223 : vector<1x128x192xbf16> to vector<128x192xbf16>
    %c2 = arith.constant 2 : index
    %c0_193 = arith.constant 0 : index
    %c0_194 = arith.constant 0 : index
    %225 = vector.load %arg2[%c2, %c0_193, %c0_194] : memref<7x192x256xbf16, #tpu.memory_space<vmem>>, vector<1x192x256xbf16>
    %226 = vector.shape_cast %225 : vector<1x192x256xbf16> to vector<192x256xbf16>
    %cst_195 = arith.constant dense<0.000000e+00> : vector<128x256xf32>
    %227 = tpu.matmul %224, %226, %cst_195 {dimension_numbers = #tpu.dot_dimension_numbers<[1], [0], [0], [1], [0, 0, 1, 1], [], []>} : vector<128x192xbf16>, vector<192x256xbf16>, vector<128x256xf32> -> vector<128x256xf32>
    %228 = arith.addf %222, %227 : vector<128x256xf32>
    %c1_196 = arith.constant 1 : index
    %c8_197 = arith.constant 8 : index
    %c0_198 = arith.constant 0 : index
    %229 = vector.load %arg11[%c1_196, %c8_197, %c0_198] : memref<2x152x192xbf16, #tpu.memory_space<vmem>>, vector<1x128x192xbf16>
    %230 = vector.shape_cast %229 : vector<1x128x192xbf16> to vector<128x192xbf16>
    %c3 = arith.constant 3 : index
    %c0_199 = arith.constant 0 : index
    %c0_200 = arith.constant 0 : index
    %231 = vector.load %arg2[%c3, %c0_199, %c0_200] : memref<7x192x256xbf16, #tpu.memory_space<vmem>>, vector<1x192x256xbf16>
    %232 = vector.shape_cast %231 : vector<1x192x256xbf16> to vector<192x256xbf16>
    %cst_201 = arith.constant dense<0.000000e+00> : vector<128x256xf32>
    %233 = tpu.matmul %230, %232, %cst_201 {dimension_numbers = #tpu.dot_dimension_numbers<[1], [0], [0], [1], [0, 0, 1, 1], [], []>} : vector<128x192xbf16>, vector<192x256xbf16>, vector<128x256xf32> -> vector<128x256xf32>
    %234 = arith.addf %228, %233 : vector<128x256xf32>
    %c0_202 = arith.constant 0 : index
    %c16_203 = arith.constant 16 : index
    %c0_204 = arith.constant 0 : index
    %235 = vector.load %arg11[%c0_202, %c16_203, %c0_204] : memref<2x152x192xbf16, #tpu.memory_space<vmem>>, vector<1x128x192xbf16>
    %236 = vector.shape_cast %235 : vector<1x128x192xbf16> to vector<128x192xbf16>
    %c4 = arith.constant 4 : index
    %c0_205 = arith.constant 0 : index
    %c0_206 = arith.constant 0 : index
    %237 = vector.load %arg2[%c4, %c0_205, %c0_206] : memref<7x192x256xbf16, #tpu.memory_space<vmem>>, vector<1x192x256xbf16>
    %238 = vector.shape_cast %237 : vector<1x192x256xbf16> to vector<192x256xbf16>
    %cst_207 = arith.constant dense<0.000000e+00> : vector<128x256xf32>
    %239 = tpu.matmul %236, %238, %cst_207 {dimension_numbers = #tpu.dot_dimension_numbers<[1], [0], [0], [1], [0, 0, 1, 1], [], []>} : vector<128x192xbf16>, vector<192x256xbf16>, vector<128x256xf32> -> vector<128x256xf32>
    %240 = arith.addf %234, %239 : vector<128x256xf32>
    %c1_208 = arith.constant 1 : index
    %c16_209 = arith.constant 16 : index
    %c0_210 = arith.constant 0 : index
    %241 = vector.load %arg11[%c1_208, %c16_209, %c0_210] : memref<2x152x192xbf16, #tpu.memory_space<vmem>>, vector<1x128x192xbf16>
    %242 = vector.shape_cast %241 : vector<1x128x192xbf16> to vector<128x192xbf16>
    %c5 = arith.constant 5 : index
    %c0_211 = arith.constant 0 : index
    %c0_212 = arith.constant 0 : index
    %243 = vector.load %arg2[%c5, %c0_211, %c0_212] : memref<7x192x256xbf16, #tpu.memory_space<vmem>>, vector<1x192x256xbf16>
    %244 = vector.shape_cast %243 : vector<1x192x256xbf16> to vector<192x256xbf16>
    %cst_213 = arith.constant dense<0.000000e+00> : vector<128x256xf32>
    %245 = tpu.matmul %242, %244, %cst_213 {dimension_numbers = #tpu.dot_dimension_numbers<[1], [0], [0], [1], [0, 0, 1, 1], [], []>} : vector<128x192xbf16>, vector<192x256xbf16>, vector<128x256xf32> -> vector<128x256xf32>
    %246 = arith.addf %240, %245 : vector<128x256xf32>
    %c0_214 = arith.constant 0 : index
    %c24_215 = arith.constant 24 : index
    %c0_216 = arith.constant 0 : index
    %247 = vector.load %arg11[%c0_214, %c24_215, %c0_216] : memref<2x152x192xbf16, #tpu.memory_space<vmem>>, vector<1x128x192xbf16>
    %248 = vector.shape_cast %247 : vector<1x128x192xbf16> to vector<128x192xbf16>
    %c6 = arith.constant 6 : index
    %c0_217 = arith.constant 0 : index
    %c0_218 = arith.constant 0 : index
    %249 = vector.load %arg2[%c6, %c0_217, %c0_218] : memref<7x192x256xbf16, #tpu.memory_space<vmem>>, vector<1x192x256xbf16>
    %250 = vector.shape_cast %249 : vector<1x192x256xbf16> to vector<192x256xbf16>
    %cst_219 = arith.constant dense<0.000000e+00> : vector<128x256xf32>
    %251 = tpu.matmul %248, %250, %cst_219 {dimension_numbers = #tpu.dot_dimension_numbers<[1], [0], [0], [1], [0, 0, 1, 1], [], []>} : vector<128x192xbf16>, vector<192x256xbf16>, vector<128x256xf32> -> vector<128x256xf32>
    %252 = arith.addf %246, %251 : vector<128x256xf32>
    %cst_220 = arith.constant 0.000000e+00 : f32
    %253 = vector.broadcast %cst_220 : f32 to vector<128x256xf32>
    %254 = arith.cmpf oge, %252, %253 : vector<128x256xf32>
    %cst_221 = arith.constant 1.000000e-01 : f32
    %255 = vector.broadcast %cst_221 : f32 to vector<128x256xf32>
    %256 = arith.mulf %255, %252 : vector<128x256xf32>
    %257 = arith.select %254, %252, %256 : vector<128x256xi1>, vector<128x256xf32>
    %cst_222 = arith.constant 0.000000e+00 : bf16
    %258 = vector.broadcast %cst_222 : bf16 to vector<8x256xbf16>
    %c0_223 = arith.constant 0 : index
    %c0_224 = arith.constant 0 : index
    %c0_225 = arith.constant 0 : index
    %259 = vector.load %arg12[%c0_223, %c0_224, %c0_225] : memref<2x80x256xbf16, #tpu.memory_space<vmem>>, vector<1x8x256xbf16>
    %260 = vector.shape_cast %259 : vector<1x8x256xbf16> to vector<8x256xbf16>
    %261 = vector.shape_cast %258 : vector<8x256xbf16> to vector<1x8x256xbf16>
    tpu.vector_store %arg12[%c0_223, %c0_224, %c0_225], %261 {strides = array<i32>} : memref<2x80x256xbf16, #tpu.memory_space<vmem>>, vector<1x8x256xbf16>,
    %cst_226 = arith.constant 0.000000e+00 : bf16
    %262 = vector.broadcast %cst_226 : bf16 to vector<8x256xbf16>
    %c0_227 = arith.constant 0 : index
    %c72_228 = arith.constant 72 : index
    %c0_229 = arith.constant 0 : index
    %263 = vector.load %arg12[%c0_227, %c72_228, %c0_229] : memref<2x80x256xbf16, #tpu.memory_space<vmem>>, vector<1x8x256xbf16>
    %264 = vector.shape_cast %263 : vector<1x8x256xbf16> to vector<8x256xbf16>
    %265 = vector.shape_cast %262 : vector<8x256xbf16> to vector<1x8x256xbf16>
    tpu.vector_store %arg12[%c0_227, %c72_228, %c0_229], %265 {strides = array<i32>} : memref<2x80x256xbf16, #tpu.memory_space<vmem>>, vector<1x8x256xbf16>,
    %266 = vector.extract_strided_slice %257 {offsets = [0, 0], sizes = [8, 256], strides = [1, 1]} : vector<128x256xf32> to vector<8x256xf32>
    %267 = arith.truncf %266 : vector<8x256xf32> to vector<8x256xbf16>
    %c0_230 = arith.constant 0 : index
    %c8_231 = arith.constant 8 : index
    %c0_232 = arith.constant 0 : index
    %268 = vector.load %arg12[%c0_230, %c8_231, %c0_232] : memref<2x80x256xbf16, #tpu.memory_space<vmem>>, vector<1x8x256xbf16>
    %269 = vector.shape_cast %268 : vector<1x8x256xbf16> to vector<8x256xbf16>
    %270 = vector.shape_cast %267 : vector<8x256xbf16> to vector<1x8x256xbf16>
    tpu.vector_store %arg12[%c0_230, %c8_231, %c0_232], %270 {strides = array<i32>} : memref<2x80x256xbf16, #tpu.memory_space<vmem>>, vector<1x8x256xbf16>,
    %271 = vector.extract_strided_slice %257 {offsets = [16, 0], sizes = [8, 256], strides = [1, 1]} : vector<128x256xf32> to vector<8x256xf32>
    %272 = arith.truncf %271 : vector<8x256xf32> to vector<8x256xbf16>
    %c0_233 = arith.constant 0 : index
    %c16_234 = arith.constant 16 : index
    %c0_235 = arith.constant 0 : index
    %273 = vector.load %arg12[%c0_233, %c16_234, %c0_235] : memref<2x80x256xbf16, #tpu.memory_space<vmem>>, vector<1x8x256xbf16>
    %274 = vector.shape_cast %273 : vector<1x8x256xbf16> to vector<8x256xbf16>
    %275 = vector.shape_cast %272 : vector<8x256xbf16> to vector<1x8x256xbf16>
    tpu.vector_store %arg12[%c0_233, %c16_234, %c0_235], %275 {strides = array<i32>} : memref<2x80x256xbf16, #tpu.memory_space<vmem>>, vector<1x8x256xbf16>,
    %276 = vector.extract_strided_slice %257 {offsets = [32, 0], sizes = [8, 256], strides = [1, 1]} : vector<128x256xf32> to vector<8x256xf32>
    %277 = arith.truncf %276 : vector<8x256xf32> to vector<8x256xbf16>
    %c0_236 = arith.constant 0 : index
    %c24_237 = arith.constant 24 : index
    %c0_238 = arith.constant 0 : index
    %278 = vector.load %arg12[%c0_236, %c24_237, %c0_238] : memref<2x80x256xbf16, #tpu.memory_space<vmem>>, vector<1x8x256xbf16>
    %279 = vector.shape_cast %278 : vector<1x8x256xbf16> to vector<8x256xbf16>
    %280 = vector.shape_cast %277 : vector<8x256xbf16> to vector<1x8x256xbf16>
    tpu.vector_store %arg12[%c0_236, %c24_237, %c0_238], %280 {strides = array<i32>} : memref<2x80x256xbf16, #tpu.memory_space<vmem>>, vector<1x8x256xbf16>,
    %281 = vector.extract_strided_slice %257 {offsets = [48, 0], sizes = [8, 256], strides = [1, 1]} : vector<128x256xf32> to vector<8x256xf32>
    %282 = arith.truncf %281 : vector<8x256xf32> to vector<8x256xbf16>
    %c0_239 = arith.constant 0 : index
    %c32_240 = arith.constant 32 : index
    %c0_241 = arith.constant 0 : index
    %283 = vector.load %arg12[%c0_239, %c32_240, %c0_241] : memref<2x80x256xbf16, #tpu.memory_space<vmem>>, vector<1x8x256xbf16>
    %284 = vector.shape_cast %283 : vector<1x8x256xbf16> to vector<8x256xbf16>
    %285 = vector.shape_cast %282 : vector<8x256xbf16> to vector<1x8x256xbf16>
    tpu.vector_store %arg12[%c0_239, %c32_240, %c0_241], %285 {strides = array<i32>} : memref<2x80x256xbf16, #tpu.memory_space<vmem>>, vector<1x8x256xbf16>,
    %286 = vector.extract_strided_slice %257 {offsets = [64, 0], sizes = [8, 256], strides = [1, 1]} : vector<128x256xf32> to vector<8x256xf32>
    %287 = arith.truncf %286 : vector<8x256xf32> to vector<8x256xbf16>
    %c0_242 = arith.constant 0 : index
    %c40_243 = arith.constant 40 : index
    %c0_244 = arith.constant 0 : index
    %288 = vector.load %arg12[%c0_242, %c40_243, %c0_244] : memref<2x80x256xbf16, #tpu.memory_space<vmem>>, vector<1x8x256xbf16>
    %289 = vector.shape_cast %288 : vector<1x8x256xbf16> to vector<8x256xbf16>
    %290 = vector.shape_cast %287 : vector<8x256xbf16> to vector<1x8x256xbf16>
    tpu.vector_store %arg12[%c0_242, %c40_243, %c0_244], %290 {strides = array<i32>} : memref<2x80x256xbf16, #tpu.memory_space<vmem>>, vector<1x8x256xbf16>,
    %291 = vector.extract_strided_slice %257 {offsets = [80, 0], sizes = [8, 256], strides = [1, 1]} : vector<128x256xf32> to vector<8x256xf32>
    %292 = arith.truncf %291 : vector<8x256xf32> to vector<8x256xbf16>
    %c0_245 = arith.constant 0 : index
    %c48_246 = arith.constant 48 : index
    %c0_247 = arith.constant 0 : index
    %293 = vector.load %arg12[%c0_245, %c48_246, %c0_247] : memref<2x80x256xbf16, #tpu.memory_space<vmem>>, vector<1x8x256xbf16>
    %294 = vector.shape_cast %293 : vector<1x8x256xbf16> to vector<8x256xbf16>
    %295 = vector.shape_cast %292 : vector<8x256xbf16> to vector<1x8x256xbf16>
    tpu.vector_store %arg12[%c0_245, %c48_246, %c0_247], %295 {strides = array<i32>} : memref<2x80x256xbf16, #tpu.memory_space<vmem>>, vector<1x8x256xbf16>,
    %296 = vector.extract_strided_slice %257 {offsets = [96, 0], sizes = [8, 256], strides = [1, 1]} : vector<128x256xf32> to vector<8x256xf32>
    %297 = arith.truncf %296 : vector<8x256xf32> to vector<8x256xbf16>
    %c0_248 = arith.constant 0 : index
    %c56_249 = arith.constant 56 : index
    %c0_250 = arith.constant 0 : index
    %298 = vector.load %arg12[%c0_248, %c56_249, %c0_250] : memref<2x80x256xbf16, #tpu.memory_space<vmem>>, vector<1x8x256xbf16>
    %299 = vector.shape_cast %298 : vector<1x8x256xbf16> to vector<8x256xbf16>
    %300 = vector.shape_cast %297 : vector<8x256xbf16> to vector<1x8x256xbf16>
    tpu.vector_store %arg12[%c0_248, %c56_249, %c0_250], %300 {strides = array<i32>} : memref<2x80x256xbf16, #tpu.memory_space<vmem>>, vector<1x8x256xbf16>,
    %301 = vector.extract_strided_slice %257 {offsets = [112, 0], sizes = [8, 256], strides = [1, 1]} : vector<128x256xf32> to vector<8x256xf32>
    %302 = arith.truncf %301 : vector<8x256xf32> to vector<8x256xbf16>
    %c0_251 = arith.constant 0 : index
    %c64_252 = arith.constant 64 : index
    %c0_253 = arith.constant 0 : index
    %303 = vector.load %arg12[%c0_251, %c64_252, %c0_253] : memref<2x80x256xbf16, #tpu.memory_space<vmem>>, vector<1x8x256xbf16>
    %304 = vector.shape_cast %303 : vector<1x8x256xbf16> to vector<8x256xbf16>
    %305 = vector.shape_cast %302 : vector<8x256xbf16> to vector<1x8x256xbf16>
    tpu.vector_store %arg12[%c0_251, %c64_252, %c0_253], %305 {strides = array<i32>} : memref<2x80x256xbf16, #tpu.memory_space<vmem>>, vector<1x8x256xbf16>,
    %cst_254 = arith.constant 0.000000e+00 : bf16
    %306 = vector.broadcast %cst_254 : bf16 to vector<8x256xbf16>
    %c1_255 = arith.constant 1 : index
    %c0_256 = arith.constant 0 : index
    %c0_257 = arith.constant 0 : index
    %307 = vector.load %arg12[%c1_255, %c0_256, %c0_257] : memref<2x80x256xbf16, #tpu.memory_space<vmem>>, vector<1x8x256xbf16>
    %308 = vector.shape_cast %307 : vector<1x8x256xbf16> to vector<8x256xbf16>
    %309 = vector.shape_cast %306 : vector<8x256xbf16> to vector<1x8x256xbf16>
    tpu.vector_store %arg12[%c1_255, %c0_256, %c0_257], %309 {strides = array<i32>} : memref<2x80x256xbf16, #tpu.memory_space<vmem>>, vector<1x8x256xbf16>,
    %cst_258 = arith.constant 0.000000e+00 : bf16
    %310 = vector.broadcast %cst_258 : bf16 to vector<8x256xbf16>
    %c1_259 = arith.constant 1 : index
    %c72_260 = arith.constant 72 : index
    %c0_261 = arith.constant 0 : index
    %311 = vector.load %arg12[%c1_259, %c72_260, %c0_261] : memref<2x80x256xbf16, #tpu.memory_space<vmem>>, vector<1x8x256xbf16>
    %312 = vector.shape_cast %311 : vector<1x8x256xbf16> to vector<8x256xbf16>
    %313 = vector.shape_cast %310 : vector<8x256xbf16> to vector<1x8x256xbf16>
    tpu.vector_store %arg12[%c1_259, %c72_260, %c0_261], %313 {strides = array<i32>} : memref<2x80x256xbf16, #tpu.memory_space<vmem>>, vector<1x8x256xbf16>,
    %314 = vector.extract_strided_slice %257 {offsets = [8, 0], sizes = [8, 256], strides = [1, 1]} : vector<128x256xf32> to vector<8x256xf32>
    %315 = arith.truncf %314 : vector<8x256xf32> to vector<8x256xbf16>
    %c1_262 = arith.constant 1 : index
    %c8_263 = arith.constant 8 : index
    %c0_264 = arith.constant 0 : index
    %316 = vector.load %arg12[%c1_262, %c8_263, %c0_264] : memref<2x80x256xbf16, #tpu.memory_space<vmem>>, vector<1x8x256xbf16>
    %317 = vector.shape_cast %316 : vector<1x8x256xbf16> to vector<8x256xbf16>
    %318 = vector.shape_cast %315 : vector<8x256xbf16> to vector<1x8x256xbf16>
    tpu.vector_store %arg12[%c1_262, %c8_263, %c0_264], %318 {strides = array<i32>} : memref<2x80x256xbf16, #tpu.memory_space<vmem>>, vector<1x8x256xbf16>,
    %319 = vector.extract_strided_slice %257 {offsets = [24, 0], sizes = [8, 256], strides = [1, 1]} : vector<128x256xf32> to vector<8x256xf32>
    %320 = arith.truncf %319 : vector<8x256xf32> to vector<8x256xbf16>
    %c1_265 = arith.constant 1 : index
    %c16_266 = arith.constant 16 : index
    %c0_267 = arith.constant 0 : index
    %321 = vector.load %arg12[%c1_265, %c16_266, %c0_267] : memref<2x80x256xbf16, #tpu.memory_space<vmem>>, vector<1x8x256xbf16>
    %322 = vector.shape_cast %321 : vector<1x8x256xbf16> to vector<8x256xbf16>
    %323 = vector.shape_cast %320 : vector<8x256xbf16> to vector<1x8x256xbf16>
    tpu.vector_store %arg12[%c1_265, %c16_266, %c0_267], %323 {strides = array<i32>} : memref<2x80x256xbf16, #tpu.memory_space<vmem>>, vector<1x8x256xbf16>,
    %324 = vector.extract_strided_slice %257 {offsets = [40, 0], sizes = [8, 256], strides = [1, 1]} : vector<128x256xf32> to vector<8x256xf32>
    %325 = arith.truncf %324 : vector<8x256xf32> to vector<8x256xbf16>
    %c1_268 = arith.constant 1 : index
    %c24_269 = arith.constant 24 : index
    %c0_270 = arith.constant 0 : index
    %326 = vector.load %arg12[%c1_268, %c24_269, %c0_270] : memref<2x80x256xbf16, #tpu.memory_space<vmem>>, vector<1x8x256xbf16>
    %327 = vector.shape_cast %326 : vector<1x8x256xbf16> to vector<8x256xbf16>
    %328 = vector.shape_cast %325 : vector<8x256xbf16> to vector<1x8x256xbf16>
    tpu.vector_store %arg12[%c1_268, %c24_269, %c0_270], %328 {strides = array<i32>} : memref<2x80x256xbf16, #tpu.memory_space<vmem>>, vector<1x8x256xbf16>,
    %329 = vector.extract_strided_slice %257 {offsets = [56, 0], sizes = [8, 256], strides = [1, 1]} : vector<128x256xf32> to vector<8x256xf32>
    %330 = arith.truncf %329 : vector<8x256xf32> to vector<8x256xbf16>
    %c1_271 = arith.constant 1 : index
    %c32_272 = arith.constant 32 : index
    %c0_273 = arith.constant 0 : index
    %331 = vector.load %arg12[%c1_271, %c32_272, %c0_273] : memref<2x80x256xbf16, #tpu.memory_space<vmem>>, vector<1x8x256xbf16>
    %332 = vector.shape_cast %331 : vector<1x8x256xbf16> to vector<8x256xbf16>
    %333 = vector.shape_cast %330 : vector<8x256xbf16> to vector<1x8x256xbf16>
    tpu.vector_store %arg12[%c1_271, %c32_272, %c0_273], %333 {strides = array<i32>} : memref<2x80x256xbf16, #tpu.memory_space<vmem>>, vector<1x8x256xbf16>,
    %334 = vector.extract_strided_slice %257 {offsets = [72, 0], sizes = [8, 256], strides = [1, 1]} : vector<128x256xf32> to vector<8x256xf32>
    %335 = arith.truncf %334 : vector<8x256xf32> to vector<8x256xbf16>
    %c1_274 = arith.constant 1 : index
    %c40_275 = arith.constant 40 : index
    %c0_276 = arith.constant 0 : index
    %336 = vector.load %arg12[%c1_274, %c40_275, %c0_276] : memref<2x80x256xbf16, #tpu.memory_space<vmem>>, vector<1x8x256xbf16>
    %337 = vector.shape_cast %336 : vector<1x8x256xbf16> to vector<8x256xbf16>
    %338 = vector.shape_cast %335 : vector<8x256xbf16> to vector<1x8x256xbf16>
    tpu.vector_store %arg12[%c1_274, %c40_275, %c0_276], %338 {strides = array<i32>} : memref<2x80x256xbf16, #tpu.memory_space<vmem>>, vector<1x8x256xbf16>,
    %339 = vector.extract_strided_slice %257 {offsets = [88, 0], sizes = [8, 256], strides = [1, 1]} : vector<128x256xf32> to vector<8x256xf32>
    %340 = arith.truncf %339 : vector<8x256xf32> to vector<8x256xbf16>
    %c1_277 = arith.constant 1 : index
    %c48_278 = arith.constant 48 : index
    %c0_279 = arith.constant 0 : index
    %341 = vector.load %arg12[%c1_277, %c48_278, %c0_279] : memref<2x80x256xbf16, #tpu.memory_space<vmem>>, vector<1x8x256xbf16>
    %342 = vector.shape_cast %341 : vector<1x8x256xbf16> to vector<8x256xbf16>
    %343 = vector.shape_cast %340 : vector<8x256xbf16> to vector<1x8x256xbf16>
    tpu.vector_store %arg12[%c1_277, %c48_278, %c0_279], %343 {strides = array<i32>} : memref<2x80x256xbf16, #tpu.memory_space<vmem>>, vector<1x8x256xbf16>,
    %344 = vector.extract_strided_slice %257 {offsets = [104, 0], sizes = [8, 256], strides = [1, 1]} : vector<128x256xf32> to vector<8x256xf32>
    %345 = arith.truncf %344 : vector<8x256xf32> to vector<8x256xbf16>
    %c1_280 = arith.constant 1 : index
    %c56_281 = arith.constant 56 : index
    %c0_282 = arith.constant 0 : index
    %346 = vector.load %arg12[%c1_280, %c56_281, %c0_282] : memref<2x80x256xbf16, #tpu.memory_space<vmem>>, vector<1x8x256xbf16>
    %347 = vector.shape_cast %346 : vector<1x8x256xbf16> to vector<8x256xbf16>
    %348 = vector.shape_cast %345 : vector<8x256xbf16> to vector<1x8x256xbf16>
    tpu.vector_store %arg12[%c1_280, %c56_281, %c0_282], %348 {strides = array<i32>} : memref<2x80x256xbf16, #tpu.memory_space<vmem>>, vector<1x8x256xbf16>,
    %349 = vector.extract_strided_slice %257 {offsets = [120, 0], sizes = [8, 256], strides = [1, 1]} : vector<128x256xf32> to vector<8x256xf32>
    %350 = arith.truncf %349 : vector<8x256xf32> to vector<8x256xbf16>
    %c1_283 = arith.constant 1 : index
    %c64_284 = arith.constant 64 : index
    %c0_285 = arith.constant 0 : index
    %351 = vector.load %arg12[%c1_283, %c64_284, %c0_285] : memref<2x80x256xbf16, #tpu.memory_space<vmem>>, vector<1x8x256xbf16>
    %352 = vector.shape_cast %351 : vector<1x8x256xbf16> to vector<8x256xbf16>
    %353 = vector.shape_cast %350 : vector<8x256xbf16> to vector<1x8x256xbf16>
    tpu.vector_store %arg12[%c1_283, %c64_284, %c0_285], %353 {strides = array<i32>} : memref<2x80x256xbf16, #tpu.memory_space<vmem>>, vector<1x8x256xbf16>,
    %c0_286 = arith.constant 0 : index
    %c0_287 = arith.constant 0 : index
    %354 = vector.load %arg7[%c0_286, %c0_287] : memref<1x256xf32, #tpu.memory_space<vmem>>, vector<1x256xf32>
    %355 = vector.shape_cast %354 : vector<1x256xf32> to vector<1x256xf32>
    %356 = vector.broadcast %355 : vector<1x256xf32> to vector<64x256xf32>
    %c0_288 = arith.constant 0 : index
    %c0_289 = arith.constant 0 : index
    %c0_290 = arith.constant 0 : index
    %357 = vector.load %arg12[%c0_288, %c0_289, %c0_290] : memref<2x80x256xbf16, #tpu.memory_space<vmem>>, vector<1x64x256xbf16>
    %358 = vector.shape_cast %357 : vector<1x64x256xbf16> to vector<64x256xbf16>
    %c0_291 = arith.constant 0 : index
    %c0_292 = arith.constant 0 : index
    %c0_293 = arith.constant 0 : index
    %359 = vector.load %arg3[%c0_291, %c0_292, %c0_293] : memref<5x256x256xbf16, #tpu.memory_space<vmem>>, vector<1x256x256xbf16>
    %360 = vector.shape_cast %359 : vector<1x256x256xbf16> to vector<256x256xbf16>
    %cst_294 = arith.constant dense<0.000000e+00> : vector<64x256xf32>
    %361 = tpu.matmul %358, %360, %cst_294 {dimension_numbers = #tpu.dot_dimension_numbers<[1], [0], [0], [1], [0, 0, 1, 1], [], []>} : vector<64x256xbf16>, vector<256x256xbf16>, vector<64x256xf32> -> vector<64x256xf32>
    %362 = arith.addf %356, %361 : vector<64x256xf32>
    %c1_295 = arith.constant 1 : index
    %c0_296 = arith.constant 0 : index
    %c0_297 = arith.constant 0 : index
    %363 = vector.load %arg12[%c1_295, %c0_296, %c0_297] : memref<2x80x256xbf16, #tpu.memory_space<vmem>>, vector<1x64x256xbf16>
    %364 = vector.shape_cast %363 : vector<1x64x256xbf16> to vector<64x256xbf16>
    %c1_298 = arith.constant 1 : index
    %c0_299 = arith.constant 0 : index
    %c0_300 = arith.constant 0 : index
    %365 = vector.load %arg3[%c1_298, %c0_299, %c0_300] : memref<5x256x256xbf16, #tpu.memory_space<vmem>>, vector<1x256x256xbf16>
    %366 = vector.shape_cast %365 : vector<1x256x256xbf16> to vector<256x256xbf16>
    %cst_301 = arith.constant dense<0.000000e+00> : vector<64x256xf32>
    %367 = tpu.matmul %364, %366, %cst_301 {dimension_numbers = #tpu.dot_dimension_numbers<[1], [0], [0], [1], [0, 0, 1, 1], [], []>} : vector<64x256xbf16>, vector<256x256xbf16>, vector<64x256xf32> -> vector<64x256xf32>
    %368 = arith.addf %362, %367 : vector<64x256xf32>
    %c0_302 = arith.constant 0 : index
    %c8_303 = arith.constant 8 : index
    %c0_304 = arith.constant 0 : index
    %369 = vector.load %arg12[%c0_302, %c8_303, %c0_304] : memref<2x80x256xbf16, #tpu.memory_space<vmem>>, vector<1x64x256xbf16>
    %370 = vector.shape_cast %369 : vector<1x64x256xbf16> to vector<64x256xbf16>
    %c2_305 = arith.constant 2 : index
    %c0_306 = arith.constant 0 : index
    %c0_307 = arith.constant 0 : index
    %371 = vector.load %arg3[%c2_305, %c0_306, %c0_307] : memref<5x256x256xbf16, #tpu.memory_space<vmem>>, vector<1x256x256xbf16>
    %372 = vector.shape_cast %371 : vector<1x256x256xbf16> to vector<256x256xbf16>
    %cst_308 = arith.constant dense<0.000000e+00> : vector<64x256xf32>
    %373 = tpu.matmul %370, %372, %cst_308 {dimension_numbers = #tpu.dot_dimension_numbers<[1], [0], [0], [1], [0, 0, 1, 1], [], []>} : vector<64x256xbf16>, vector<256x256xbf16>, vector<64x256xf32> -> vector<64x256xf32>
    %374 = arith.addf %368, %373 : vector<64x256xf32>
    %c1_309 = arith.constant 1 : index
    %c8_310 = arith.constant 8 : index
    %c0_311 = arith.constant 0 : index
    %375 = vector.load %arg12[%c1_309, %c8_310, %c0_311] : memref<2x80x256xbf16, #tpu.memory_space<vmem>>, vector<1x64x256xbf16>
    %376 = vector.shape_cast %375 : vector<1x64x256xbf16> to vector<64x256xbf16>
    %c3_312 = arith.constant 3 : index
    %c0_313 = arith.constant 0 : index
    %c0_314 = arith.constant 0 : index
    %377 = vector.load %arg3[%c3_312, %c0_313, %c0_314] : memref<5x256x256xbf16, #tpu.memory_space<vmem>>, vector<1x256x256xbf16>
    %378 = vector.shape_cast %377 : vector<1x256x256xbf16> to vector<256x256xbf16>
    %cst_315 = arith.constant dense<0.000000e+00> : vector<64x256xf32>
    %379 = tpu.matmul %376, %378, %cst_315 {dimension_numbers = #tpu.dot_dimension_numbers<[1], [0], [0], [1], [0, 0, 1, 1], [], []>} : vector<64x256xbf16>, vector<256x256xbf16>, vector<64x256xf32> -> vector<64x256xf32>
    %380 = arith.addf %374, %379 : vector<64x256xf32>
    %c0_316 = arith.constant 0 : index
    %c16_317 = arith.constant 16 : index
    %c0_318 = arith.constant 0 : index
    %381 = vector.load %arg12[%c0_316, %c16_317, %c0_318] : memref<2x80x256xbf16, #tpu.memory_space<vmem>>, vector<1x64x256xbf16>
    %382 = vector.shape_cast %381 : vector<1x64x256xbf16> to vector<64x256xbf16>
    %c4_319 = arith.constant 4 : index
    %c0_320 = arith.constant 0 : index
    %c0_321 = arith.constant 0 : index
    %383 = vector.load %arg3[%c4_319, %c0_320, %c0_321] : memref<5x256x256xbf16, #tpu.memory_space<vmem>>, vector<1x256x256xbf16>
    %384 = vector.shape_cast %383 : vector<1x256x256xbf16> to vector<256x256xbf16>
    %cst_322 = arith.constant dense<0.000000e+00> : vector<64x256xf32>
    %385 = tpu.matmul %382, %384, %cst_322 {dimension_numbers = #tpu.dot_dimension_numbers<[1], [0], [0], [1], [0, 0, 1, 1], [], []>} : vector<64x256xbf16>, vector<256x256xbf16>, vector<64x256xf32> -> vector<64x256xf32>
    %386 = arith.addf %380, %385 : vector<64x256xf32>
    %cst_323 = arith.constant 0.000000e+00 : f32
    %387 = vector.broadcast %cst_323 : f32 to vector<64x256xf32>
    %388 = arith.cmpf oge, %386, %387 : vector<64x256xf32>
    %cst_324 = arith.constant 1.000000e-01 : f32
    %389 = vector.broadcast %cst_324 : f32 to vector<64x256xf32>
    %390 = arith.mulf %389, %386 : vector<64x256xf32>
    %391 = arith.select %388, %386, %390 : vector<64x256xi1>, vector<64x256xf32>
    %cst_325 = arith.constant 0.000000e+00 : bf16
    %392 = vector.broadcast %cst_325 : bf16 to vector<8x256xbf16>
    %c0_326 = arith.constant 0 : index
    %c0_327 = arith.constant 0 : index
    %c0_328 = arith.constant 0 : index
    %393 = vector.load %arg13[%c0_326, %c0_327, %c0_328] : memref<2x40x256xbf16, #tpu.memory_space<vmem>>, vector<1x8x256xbf16>
    %394 = vector.shape_cast %393 : vector<1x8x256xbf16> to vector<8x256xbf16>
    %395 = vector.shape_cast %392 : vector<8x256xbf16> to vector<1x8x256xbf16>
    tpu.vector_store %arg13[%c0_326, %c0_327, %c0_328], %395 {strides = array<i32>} : memref<2x40x256xbf16, #tpu.memory_space<vmem>>, vector<1x8x256xbf16>,
    %396 = vector.extract_strided_slice %391 {offsets = [8, 0], sizes = [8, 256], strides = [1, 1]} : vector<64x256xf32> to vector<8x256xf32>
    %397 = arith.truncf %396 : vector<8x256xf32> to vector<8x256xbf16>
    %c0_329 = arith.constant 0 : index
    %c8_330 = arith.constant 8 : index
    %c0_331 = arith.constant 0 : index
    %398 = vector.load %arg13[%c0_329, %c8_330, %c0_331] : memref<2x40x256xbf16, #tpu.memory_space<vmem>>, vector<1x8x256xbf16>
    %399 = vector.shape_cast %398 : vector<1x8x256xbf16> to vector<8x256xbf16>
    %400 = vector.shape_cast %397 : vector<8x256xbf16> to vector<1x8x256xbf16>
    tpu.vector_store %arg13[%c0_329, %c8_330, %c0_331], %400 {strides = array<i32>} : memref<2x40x256xbf16, #tpu.memory_space<vmem>>, vector<1x8x256xbf16>,
    %401 = vector.extract_strided_slice %391 {offsets = [24, 0], sizes = [8, 256], strides = [1, 1]} : vector<64x256xf32> to vector<8x256xf32>
    %402 = arith.truncf %401 : vector<8x256xf32> to vector<8x256xbf16>
    %c0_332 = arith.constant 0 : index
    %c16_333 = arith.constant 16 : index
    %c0_334 = arith.constant 0 : index
    %403 = vector.load %arg13[%c0_332, %c16_333, %c0_334] : memref<2x40x256xbf16, #tpu.memory_space<vmem>>, vector<1x8x256xbf16>
    %404 = vector.shape_cast %403 : vector<1x8x256xbf16> to vector<8x256xbf16>
    %405 = vector.shape_cast %402 : vector<8x256xbf16> to vector<1x8x256xbf16>
    tpu.vector_store %arg13[%c0_332, %c16_333, %c0_334], %405 {strides = array<i32>} : memref<2x40x256xbf16, #tpu.memory_space<vmem>>, vector<1x8x256xbf16>,
    %406 = vector.extract_strided_slice %391 {offsets = [40, 0], sizes = [8, 256], strides = [1, 1]} : vector<64x256xf32> to vector<8x256xf32>
    %407 = arith.truncf %406 : vector<8x256xf32> to vector<8x256xbf16>
    %c0_335 = arith.constant 0 : index
    %c24_336 = arith.constant 24 : index
    %c0_337 = arith.constant 0 : index
    %408 = vector.load %arg13[%c0_335, %c24_336, %c0_337] : memref<2x40x256xbf16, #tpu.memory_space<vmem>>, vector<1x8x256xbf16>
    %409 = vector.shape_cast %408 : vector<1x8x256xbf16> to vector<8x256xbf16>
    %410 = vector.shape_cast %407 : vector<8x256xbf16> to vector<1x8x256xbf16>
    tpu.vector_store %arg13[%c0_335, %c24_336, %c0_337], %410 {strides = array<i32>} : memref<2x40x256xbf16, #tpu.memory_space<vmem>>, vector<1x8x256xbf16>,
    %411 = vector.extract_strided_slice %391 {offsets = [56, 0], sizes = [8, 256], strides = [1, 1]} : vector<64x256xf32> to vector<8x256xf32>
    %412 = arith.truncf %411 : vector<8x256xf32> to vector<8x256xbf16>
    %c0_338 = arith.constant 0 : index
    %c32_339 = arith.constant 32 : index
    %c0_340 = arith.constant 0 : index
    %413 = vector.load %arg13[%c0_338, %c32_339, %c0_340] : memref<2x40x256xbf16, #tpu.memory_space<vmem>>, vector<1x8x256xbf16>
    %414 = vector.shape_cast %413 : vector<1x8x256xbf16> to vector<8x256xbf16>
    %415 = vector.shape_cast %412 : vector<8x256xbf16> to vector<1x8x256xbf16>
    tpu.vector_store %arg13[%c0_338, %c32_339, %c0_340], %415 {strides = array<i32>} : memref<2x40x256xbf16, #tpu.memory_space<vmem>>, vector<1x8x256xbf16>,
    %cst_341 = arith.constant 0.000000e+00 : bf16
    %416 = vector.broadcast %cst_341 : bf16 to vector<8x256xbf16>
    %c1_342 = arith.constant 1 : index
    %c32_343 = arith.constant 32 : index
    %c0_344 = arith.constant 0 : index
    %417 = vector.load %arg13[%c1_342, %c32_343, %c0_344] : memref<2x40x256xbf16, #tpu.memory_space<vmem>>, vector<1x8x256xbf16>
    %418 = vector.shape_cast %417 : vector<1x8x256xbf16> to vector<8x256xbf16>
    %419 = vector.shape_cast %416 : vector<8x256xbf16> to vector<1x8x256xbf16>
    tpu.vector_store %arg13[%c1_342, %c32_343, %c0_344], %419 {strides = array<i32>} : memref<2x40x256xbf16, #tpu.memory_space<vmem>>, vector<1x8x256xbf16>,
    %420 = vector.extract_strided_slice %391 {offsets = [0, 0], sizes = [8, 256], strides = [1, 1]} : vector<64x256xf32> to vector<8x256xf32>
    %421 = arith.truncf %420 : vector<8x256xf32> to vector<8x256xbf16>
    %c1_345 = arith.constant 1 : index
    %c0_346 = arith.constant 0 : index
    %c0_347 = arith.constant 0 : index
    %422 = vector.load %arg13[%c1_345, %c0_346, %c0_347] : memref<2x40x256xbf16, #tpu.memory_space<vmem>>, vector<1x8x256xbf16>
    %423 = vector.shape_cast %422 : vector<1x8x256xbf16> to vector<8x256xbf16>
    %424 = vector.shape_cast %421 : vector<8x256xbf16> to vector<1x8x256xbf16>
    tpu.vector_store %arg13[%c1_345, %c0_346, %c0_347], %424 {strides = array<i32>} : memref<2x40x256xbf16, #tpu.memory_space<vmem>>, vector<1x8x256xbf16>,
    %425 = vector.extract_strided_slice %391 {offsets = [16, 0], sizes = [8, 256], strides = [1, 1]} : vector<64x256xf32> to vector<8x256xf32>
    %426 = arith.truncf %425 : vector<8x256xf32> to vector<8x256xbf16>
    %c1_348 = arith.constant 1 : index
    %c8_349 = arith.constant 8 : index
    %c0_350 = arith.constant 0 : index
    %427 = vector.load %arg13[%c1_348, %c8_349, %c0_350] : memref<2x40x256xbf16, #tpu.memory_space<vmem>>, vector<1x8x256xbf16>
    %428 = vector.shape_cast %427 : vector<1x8x256xbf16> to vector<8x256xbf16>
    %429 = vector.shape_cast %426 : vector<8x256xbf16> to vector<1x8x256xbf16>
    tpu.vector_store %arg13[%c1_348, %c8_349, %c0_350], %429 {strides = array<i32>} : memref<2x40x256xbf16, #tpu.memory_space<vmem>>, vector<1x8x256xbf16>,
    %430 = vector.extract_strided_slice %391 {offsets = [32, 0], sizes = [8, 256], strides = [1, 1]} : vector<64x256xf32> to vector<8x256xf32>
    %431 = arith.truncf %430 : vector<8x256xf32> to vector<8x256xbf16>
    %c1_351 = arith.constant 1 : index
    %c16_352 = arith.constant 16 : index
    %c0_353 = arith.constant 0 : index
    %432 = vector.load %arg13[%c1_351, %c16_352, %c0_353] : memref<2x40x256xbf16, #tpu.memory_space<vmem>>, vector<1x8x256xbf16>
    %433 = vector.shape_cast %432 : vector<1x8x256xbf16> to vector<8x256xbf16>
    %434 = vector.shape_cast %431 : vector<8x256xbf16> to vector<1x8x256xbf16>
    tpu.vector_store %arg13[%c1_351, %c16_352, %c0_353], %434 {strides = array<i32>} : memref<2x40x256xbf16, #tpu.memory_space<vmem>>, vector<1x8x256xbf16>,
    %435 = vector.extract_strided_slice %391 {offsets = [48, 0], sizes = [8, 256], strides = [1, 1]} : vector<64x256xf32> to vector<8x256xf32>
    %436 = arith.truncf %435 : vector<8x256xf32> to vector<8x256xbf16>
    %c1_354 = arith.constant 1 : index
    %c24_355 = arith.constant 24 : index
    %c0_356 = arith.constant 0 : index
    %437 = vector.load %arg13[%c1_354, %c24_355, %c0_356] : memref<2x40x256xbf16, #tpu.memory_space<vmem>>, vector<1x8x256xbf16>
    %438 = vector.shape_cast %437 : vector<1x8x256xbf16> to vector<8x256xbf16>
    %439 = vector.shape_cast %436 : vector<8x256xbf16> to vector<1x8x256xbf16>
    tpu.vector_store %arg13[%c1_354, %c24_355, %c0_356], %439 {strides = array<i32>} : memref<2x40x256xbf16, #tpu.memory_space<vmem>>, vector<1x8x256xbf16>,
    %c0_357 = arith.constant 0 : index
    %c0_358 = arith.constant 0 : index
    %440 = vector.load %arg8[%c0_357, %c0_358] : memref<1x256xf32, #tpu.memory_space<vmem>>, vector<1x256xf32>
    %441 = vector.shape_cast %440 : vector<1x256xf32> to vector<1x256xf32>
    %442 = vector.broadcast %441 : vector<1x256xf32> to vector<32x256xf32>
    %c0_359 = arith.constant 0 : index
    %c0_360 = arith.constant 0 : index
    %c0_361 = arith.constant 0 : index
    %443 = vector.load %arg13[%c0_359, %c0_360, %c0_361] : memref<2x40x256xbf16, #tpu.memory_space<vmem>>, vector<1x32x256xbf16>
    %444 = vector.shape_cast %443 : vector<1x32x256xbf16> to vector<32x256xbf16>
    %c0_362 = arith.constant 0 : index
    %c0_363 = arith.constant 0 : index
    %c0_364 = arith.constant 0 : index
    %445 = vector.load %arg4[%c0_362, %c0_363, %c0_364] : memref<3x256x256xbf16, #tpu.memory_space<vmem>>, vector<1x256x256xbf16>
    %446 = vector.shape_cast %445 : vector<1x256x256xbf16> to vector<256x256xbf16>
    %cst_365 = arith.constant dense<0.000000e+00> : vector<32x256xf32>
    %447 = tpu.matmul %444, %446, %cst_365 {dimension_numbers = #tpu.dot_dimension_numbers<[1], [0], [0], [1], [0, 0, 1, 1], [], []>} : vector<32x256xbf16>, vector<256x256xbf16>, vector<32x256xf32> -> vector<32x256xf32>
    %448 = arith.addf %442, %447 : vector<32x256xf32>
    %c1_366 = arith.constant 1 : index
    %c0_367 = arith.constant 0 : index
    %c0_368 = arith.constant 0 : index
    %449 = vector.load %arg13[%c1_366, %c0_367, %c0_368] : memref<2x40x256xbf16, #tpu.memory_space<vmem>>, vector<1x32x256xbf16>
    %450 = vector.shape_cast %449 : vector<1x32x256xbf16> to vector<32x256xbf16>
    %c1_369 = arith.constant 1 : index
    %c0_370 = arith.constant 0 : index
    %c0_371 = arith.constant 0 : index
    %451 = vector.load %arg4[%c1_369, %c0_370, %c0_371] : memref<3x256x256xbf16, #tpu.memory_space<vmem>>, vector<1x256x256xbf16>
    %452 = vector.shape_cast %451 : vector<1x256x256xbf16> to vector<256x256xbf16>
    %cst_372 = arith.constant dense<0.000000e+00> : vector<32x256xf32>
    %453 = tpu.matmul %450, %452, %cst_372 {dimension_numbers = #tpu.dot_dimension_numbers<[1], [0], [0], [1], [0, 0, 1, 1], [], []>} : vector<32x256xbf16>, vector<256x256xbf16>, vector<32x256xf32> -> vector<32x256xf32>
    %454 = arith.addf %448, %453 : vector<32x256xf32>
    %c0_373 = arith.constant 0 : index
    %c8_374 = arith.constant 8 : index
    %c0_375 = arith.constant 0 : index
    %455 = vector.load %arg13[%c0_373, %c8_374, %c0_375] : memref<2x40x256xbf16, #tpu.memory_space<vmem>>, vector<1x32x256xbf16>
    %456 = vector.shape_cast %455 : vector<1x32x256xbf16> to vector<32x256xbf16>
    %c2_376 = arith.constant 2 : index
    %c0_377 = arith.constant 0 : index
    %c0_378 = arith.constant 0 : index
    %457 = vector.load %arg4[%c2_376, %c0_377, %c0_378] : memref<3x256x256xbf16, #tpu.memory_space<vmem>>, vector<1x256x256xbf16>
    %458 = vector.shape_cast %457 : vector<1x256x256xbf16> to vector<256x256xbf16>
    %cst_379 = arith.constant dense<0.000000e+00> : vector<32x256xf32>
    %459 = tpu.matmul %456, %458, %cst_379 {dimension_numbers = #tpu.dot_dimension_numbers<[1], [0], [0], [1], [0, 0, 1, 1], [], []>} : vector<32x256xbf16>, vector<256x256xbf16>, vector<32x256xf32> -> vector<32x256xf32>
    %460 = arith.addf %454, %459 : vector<32x256xf32>
    %cst_380 = arith.constant 0.000000e+00 : f32
    %461 = vector.broadcast %cst_380 : f32 to vector<32x256xf32>
    %462 = arith.cmpf oge, %460, %461 : vector<32x256xf32>
    %cst_381 = arith.constant 1.000000e-01 : f32
    %463 = vector.broadcast %cst_381 : f32 to vector<32x256xf32>
    %464 = arith.mulf %463, %460 : vector<32x256xf32>
    %465 = arith.select %462, %460, %464 : vector<32x256xi1>, vector<32x256xf32>
    %cst_382 = arith.constant 0.000000e+00 : bf16
    %466 = vector.broadcast %cst_382 : bf16 to vector<8x256xbf16>
    %c0_383 = arith.constant 0 : index
    %c0_384 = arith.constant 0 : index
    %c0_385 = arith.constant 0 : index
    %467 = vector.load %arg14[%c0_383, %c0_384, %c0_385] : memref<2x24x256xbf16, #tpu.memory_space<vmem>>, vector<1x8x256xbf16>
    %468 = vector.shape_cast %467 : vector<1x8x256xbf16> to vector<8x256xbf16>
    %469 = vector.shape_cast %466 : vector<8x256xbf16> to vector<1x8x256xbf16>
    tpu.vector_store %arg14[%c0_383, %c0_384, %c0_385], %469 {strides = array<i32>} : memref<2x24x256xbf16, #tpu.memory_space<vmem>>, vector<1x8x256xbf16>,
    %470 = vector.extract_strided_slice %465 {offsets = [8, 0], sizes = [8, 256], strides = [1, 1]} : vector<32x256xf32> to vector<8x256xf32>
    %471 = arith.truncf %470 : vector<8x256xf32> to vector<8x256xbf16>
    %c0_386 = arith.constant 0 : index
    %c8_387 = arith.constant 8 : index
    %c0_388 = arith.constant 0 : index
    %472 = vector.load %arg14[%c0_386, %c8_387, %c0_388] : memref<2x24x256xbf16, #tpu.memory_space<vmem>>, vector<1x8x256xbf16>
    %473 = vector.shape_cast %472 : vector<1x8x256xbf16> to vector<8x256xbf16>
    %474 = vector.shape_cast %471 : vector<8x256xbf16> to vector<1x8x256xbf16>
    tpu.vector_store %arg14[%c0_386, %c8_387, %c0_388], %474 {strides = array<i32>} : memref<2x24x256xbf16, #tpu.memory_space<vmem>>, vector<1x8x256xbf16>,
    %475 = vector.extract_strided_slice %465 {offsets = [24, 0], sizes = [8, 256], strides = [1, 1]} : vector<32x256xf32> to vector<8x256xf32>
    %476 = arith.truncf %475 : vector<8x256xf32> to vector<8x256xbf16>
    %c0_389 = arith.constant 0 : index
    %c16_390 = arith.constant 16 : index
    %c0_391 = arith.constant 0 : index
    %477 = vector.load %arg14[%c0_389, %c16_390, %c0_391] : memref<2x24x256xbf16, #tpu.memory_space<vmem>>, vector<1x8x256xbf16>
    %478 = vector.shape_cast %477 : vector<1x8x256xbf16> to vector<8x256xbf16>
    %479 = vector.shape_cast %476 : vector<8x256xbf16> to vector<1x8x256xbf16>
    tpu.vector_store %arg14[%c0_389, %c16_390, %c0_391], %479 {strides = array<i32>} : memref<2x24x256xbf16, #tpu.memory_space<vmem>>, vector<1x8x256xbf16>,
    %cst_392 = arith.constant 0.000000e+00 : bf16
    %480 = vector.broadcast %cst_392 : bf16 to vector<8x256xbf16>
    %c1_393 = arith.constant 1 : index
    %c16_394 = arith.constant 16 : index
    %c0_395 = arith.constant 0 : index
    %481 = vector.load %arg14[%c1_393, %c16_394, %c0_395] : memref<2x24x256xbf16, #tpu.memory_space<vmem>>, vector<1x8x256xbf16>
    %482 = vector.shape_cast %481 : vector<1x8x256xbf16> to vector<8x256xbf16>
    %483 = vector.shape_cast %480 : vector<8x256xbf16> to vector<1x8x256xbf16>
    tpu.vector_store %arg14[%c1_393, %c16_394, %c0_395], %483 {strides = array<i32>} : memref<2x24x256xbf16, #tpu.memory_space<vmem>>, vector<1x8x256xbf16>,
    %484 = vector.extract_strided_slice %465 {offsets = [0, 0], sizes = [8, 256], strides = [1, 1]} : vector<32x256xf32> to vector<8x256xf32>
    %485 = arith.truncf %484 : vector<8x256xf32> to vector<8x256xbf16>
    %c1_396 = arith.constant 1 : index
    %c0_397 = arith.constant 0 : index
    %c0_398 = arith.constant 0 : index
    %486 = vector.load %arg14[%c1_396, %c0_397, %c0_398] : memref<2x24x256xbf16, #tpu.memory_space<vmem>>, vector<1x8x256xbf16>
    %487 = vector.shape_cast %486 : vector<1x8x256xbf16> to vector<8x256xbf16>
    %488 = vector.shape_cast %485 : vector<8x256xbf16> to vector<1x8x256xbf16>
    tpu.vector_store %arg14[%c1_396, %c0_397, %c0_398], %488 {strides = array<i32>} : memref<2x24x256xbf16, #tpu.memory_space<vmem>>, vector<1x8x256xbf16>,
    %489 = vector.extract_strided_slice %465 {offsets = [16, 0], sizes = [8, 256], strides = [1, 1]} : vector<32x256xf32> to vector<8x256xf32>
    %490 = arith.truncf %489 : vector<8x256xf32> to vector<8x256xbf16>
    %c1_399 = arith.constant 1 : index
    %c8_400 = arith.constant 8 : index
    %c0_401 = arith.constant 0 : index
    %491 = vector.load %arg14[%c1_399, %c8_400, %c0_401] : memref<2x24x256xbf16, #tpu.memory_space<vmem>>, vector<1x8x256xbf16>
    %492 = vector.shape_cast %491 : vector<1x8x256xbf16> to vector<8x256xbf16>
    %493 = vector.shape_cast %490 : vector<8x256xbf16> to vector<1x8x256xbf16>
    tpu.vector_store %arg14[%c1_399, %c8_400, %c0_401], %493 {strides = array<i32>} : memref<2x24x256xbf16, #tpu.memory_space<vmem>>, vector<1x8x256xbf16>,
    %c0_402 = arith.constant 0 : index
    %c0_403 = arith.constant 0 : index
    %494 = vector.load %arg9[%c0_402, %c0_403] : memref<1x192xf32, #tpu.memory_space<vmem>>, vector<1x192xf32>
    %495 = vector.shape_cast %494 : vector<1x192xf32> to vector<1x192xf32>
    %496 = vector.broadcast %495 : vector<1x192xf32> to vector<16x192xf32>
    %c0_404 = arith.constant 0 : index
    %c0_405 = arith.constant 0 : index
    %c0_406 = arith.constant 0 : index
    %497 = vector.load %arg14[%c0_404, %c0_405, %c0_406] : memref<2x24x256xbf16, #tpu.memory_space<vmem>>, vector<1x16x256xbf16>
    %498 = vector.shape_cast %497 : vector<1x16x256xbf16> to vector<16x256xbf16>
    %c0_407 = arith.constant 0 : index
    %c0_408 = arith.constant 0 : index
    %c0_409 = arith.constant 0 : index
    %499 = vector.load %arg5[%c0_407, %c0_408, %c0_409] : memref<3x256x192xbf16, #tpu.memory_space<vmem>>, vector<1x256x192xbf16>
    %500 = vector.shape_cast %499 : vector<1x256x192xbf16> to vector<256x192xbf16>
    %cst_410 = arith.constant dense<0.000000e+00> : vector<16x192xf32>
    %501 = tpu.matmul %498, %500, %cst_410 {dimension_numbers = #tpu.dot_dimension_numbers<[1], [0], [0], [1], [0, 0, 1, 1], [], []>} : vector<16x256xbf16>, vector<256x192xbf16>, vector<16x192xf32> -> vector<16x192xf32>
    %502 = arith.addf %496, %501 : vector<16x192xf32>
    %c1_411 = arith.constant 1 : index
    %c0_412 = arith.constant 0 : index
    %c0_413 = arith.constant 0 : index
    %503 = vector.load %arg14[%c1_411, %c0_412, %c0_413] : memref<2x24x256xbf16, #tpu.memory_space<vmem>>, vector<1x16x256xbf16>
    %504 = vector.shape_cast %503 : vector<1x16x256xbf16> to vector<16x256xbf16>
    %c1_414 = arith.constant 1 : index
    %c0_415 = arith.constant 0 : index
    %c0_416 = arith.constant 0 : index
    %505 = vector.load %arg5[%c1_414, %c0_415, %c0_416] : memref<3x256x192xbf16, #tpu.memory_space<vmem>>, vector<1x256x192xbf16>
    %506 = vector.shape_cast %505 : vector<1x256x192xbf16> to vector<256x192xbf16>
    %cst_417 = arith.constant dense<0.000000e+00> : vector<16x192xf32>
    %507 = tpu.matmul %504, %506, %cst_417 {dimension_numbers = #tpu.dot_dimension_numbers<[1], [0], [0], [1], [0, 0, 1, 1], [], []>} : vector<16x256xbf16>, vector<256x192xbf16>, vector<16x192xf32> -> vector<16x192xf32>
    %508 = arith.addf %502, %507 : vector<16x192xf32>
    %c0_418 = arith.constant 0 : index
    %c8_419 = arith.constant 8 : index
    %c0_420 = arith.constant 0 : index
    %509 = vector.load %arg14[%c0_418, %c8_419, %c0_420] : memref<2x24x256xbf16, #tpu.memory_space<vmem>>, vector<1x16x256xbf16>
    %510 = vector.shape_cast %509 : vector<1x16x256xbf16> to vector<16x256xbf16>
    %c2_421 = arith.constant 2 : index
    %c0_422 = arith.constant 0 : index
    %c0_423 = arith.constant 0 : index
    %511 = vector.load %arg5[%c2_421, %c0_422, %c0_423] : memref<3x256x192xbf16, #tpu.memory_space<vmem>>, vector<1x256x192xbf16>
    %512 = vector.shape_cast %511 : vector<1x256x192xbf16> to vector<256x192xbf16>
    %cst_424 = arith.constant dense<0.000000e+00> : vector<16x192xf32>
    %513 = tpu.matmul %510, %512, %cst_424 {dimension_numbers = #tpu.dot_dimension_numbers<[1], [0], [0], [1], [0, 0, 1, 1], [], []>} : vector<16x256xbf16>, vector<256x192xbf16>, vector<16x192xf32> -> vector<16x192xf32>
    %514 = arith.addf %508, %513 : vector<16x192xf32>
    %cst_425 = arith.constant 0.000000e+00 : f32
    %515 = vector.broadcast %cst_425 : f32 to vector<16x192xf32>
    %516 = arith.cmpf oge, %514, %515 : vector<16x192xf32>
    %cst_426 = arith.constant 1.000000e-01 : f32
    %517 = vector.broadcast %cst_426 : f32 to vector<16x192xf32>
    %518 = arith.mulf %517, %514 : vector<16x192xf32>
    %519 = arith.select %516, %514, %518 : vector<16x192xi1>, vector<16x192xf32>
    %c0_427 = arith.constant 0 : index
    %c0_428 = arith.constant 0 : index
    %c0_429 = arith.constant 0 : index
    %520 = vector.load %arg10[%c0_427, %c0_428, %c0_429] : memref<1x16x192xf32, #tpu.memory_space<vmem>>, vector<1x16x192xf32>
    %521 = vector.shape_cast %520 : vector<1x16x192xf32> to vector<16x192xf32>
    %522 = vector.shape_cast %519 : vector<16x192xf32> to vector<1x16x192xf32>
    tpu.vector_store %arg10[%c0_427, %c0_428, %c0_429], %522 {strides = array<i32>} : memref<1x16x192xf32, #tpu.memory_space<vmem>>, vector<1x16x192xf32>,
    return
  }
  func.func @transform_0(%arg0: i32) -> (i32, i32, i32) {
    %c0_i32 = arith.constant 0 : i32
    %c0_i32_0 = arith.constant 0 : i32
    %c0_i32_1 = arith.constant 0 : i32
    return %arg0, %c0_i32, %c0_i32_0 : i32, i32, i32
  }
  func.func @transform_1(%arg0: i32) -> (i32, i32, i32) {
    %c0_i32 = arith.constant 0 : i32
    %c0_i32_0 = arith.constant 0 : i32
    %c0_i32_1 = arith.constant 0 : i32
    %c0_i32_2 = arith.constant 0 : i32
    return %c0_i32, %c0_i32_0, %c0_i32_1 : i32, i32, i32
  }
  func.func @transform_2(%arg0: i32) -> (i32, i32, i32) {
    %c0_i32 = arith.constant 0 : i32
    %c0_i32_0 = arith.constant 0 : i32
    %c0_i32_1 = arith.constant 0 : i32
    %c0_i32_2 = arith.constant 0 : i32
    return %c0_i32, %c0_i32_0, %c0_i32_1 : i32, i32, i32
  }
  func.func @transform_3(%arg0: i32) -> (i32, i32, i32) {
    %c0_i32 = arith.constant 0 : i32
    %c0_i32_0 = arith.constant 0 : i32
    %c0_i32_1 = arith.constant 0 : i32
    %c0_i32_2 = arith.constant 0 : i32
    return %c0_i32, %c0_i32_0, %c0_i32_1 : i32, i32, i32
  }
  func.func @transform_4(%arg0: i32) -> (i32, i32, i32) {
    %c0_i32 = arith.constant 0 : i32
    %c0_i32_0 = arith.constant 0 : i32
    %c0_i32_1 = arith.constant 0 : i32
    %c0_i32_2 = arith.constant 0 : i32
    return %c0_i32, %c0_i32_0, %c0_i32_1 : i32, i32, i32
  }
  func.func @transform_5(%arg0: i32) -> (i32, i32) {
    %c0_i32 = arith.constant 0 : i32
    %c0_i32_0 = arith.constant 0 : i32
    %c0_i32_1 = arith.constant 0 : i32
    return %c0_i32, %c0_i32_0 : i32, i32
  }
  func.func @transform_6(%arg0: i32) -> (i32, i32) {
    %c0_i32 = arith.constant 0 : i32
    %c0_i32_0 = arith.constant 0 : i32
    %c0_i32_1 = arith.constant 0 : i32
    return %c0_i32, %c0_i32_0 : i32, i32
  }
  func.func @transform_7(%arg0: i32) -> (i32, i32) {
    %c0_i32 = arith.constant 0 : i32
    %c0_i32_0 = arith.constant 0 : i32
    %c0_i32_1 = arith.constant 0 : i32
    return %c0_i32, %c0_i32_0 : i32, i32
  }
  func.func @transform_8(%arg0: i32) -> (i32, i32) {
    %c0_i32 = arith.constant 0 : i32
    %c0_i32_0 = arith.constant 0 : i32
    %c0_i32_1 = arith.constant 0 : i32
    return %c0_i32, %c0_i32_0 : i32, i32
  }
  func.func @transform_9(%arg0: i32) -> (i32, i32, i32) {
    %c0_i32 = arith.constant 0 : i32
    %c0_i32_0 = arith.constant 0 : i32
    %c0_i32_1 = arith.constant 0 : i32
    return %arg0, %c0_i32, %c0_i32_0 : i32, i32, i32
  }
}

</mosaic_0001>

<llo_original>
// kernel: pose_bottleneck.1
$region0: #{pose_bottleneck.1}
  #allocation0 [shape = 'u32[]', space=smem, size = 0x4, offset = 0x4, fixed_abs, tag = 'smem constant byte address 0x4 - core index']
  #allocation1 [shape = 'u32[72,128]{1,0:T(1,128)}', space=vmem, size = 0x9000, scoped, tag = 'internal scratch']
  #allocation2 [shape = 'bf16[2,152,192]{2,1,0:T(8,128)(2,1)}', space=vmem, size = 0x26000, scoped, tag = 'scratch operand']
  #allocation3 [shape = 'bf16[2,80,256]{2,1,0:T(8,128)(2,1)}', space=vmem, size = 0x14000, scoped, tag = 'scratch operand']
  #allocation4 [shape = 'bf16[2,40,256]{2,1,0:T(8,128)(2,1)}', space=vmem, size = 0xa000, scoped, tag = 'scratch operand']
  #allocation5 [shape = 'bf16[2,24,256]{2,1,0:T(8,128)(2,1)}', space=vmem, size = 0x6000, scoped, tag = 'scratch operand']
  %s0 = inlined_call_operand.vmem [shape: f32[2,256,192], index: 0, kind: input, shape index: {}]
  %s1 = inlined_call_operand.vmem [shape: bf16[7,192,256], index: 1, kind: input, shape index: {}]
  %s2 = inlined_call_operand.vmem [shape: bf16[5,256,256], index: 2, kind: input, shape index: {}]
  %s3 = inlined_call_operand.vmem [shape: bf16[3,256,256], index: 3, kind: input, shape index: {}]
  %s4 = inlined_call_operand.vmem [shape: bf16[3,256,192], index: 4, kind: input, shape index: {}]
  %s5 = inlined_call_operand.vmem [shape: f32[1,256], index: 5, kind: input, shape index: {}]
  %s6 = inlined_call_operand.vmem [shape: f32[1,256], index: 6, kind: input, shape index: {}]
  %s7 = inlined_call_operand.vmem [shape: f32[1,256], index: 7, kind: input, shape index: {}]
  %s8 = inlined_call_operand.vmem [shape: f32[1,192], index: 8, kind: input, shape index: {}]
  %s9 = inlined_call_operand.vmem [shape: f32[2,16,192], index: 9, kind: output, shape index: {}]
  %s10 = sld [smem:[#allocation0]]
  $region69: #{pose_bottleneck.1} parent=0
    _
  %s12 = ssub.s32 1, %s10
  %s13 = scalar_select 0, %s12, %s10
  loop: start=0, step=1, limit=4
  $region2: #{pose_bottleneck.1} parent=0 // loop_pre_header
    _
  $region3: #{pose_bottleneck.1} parent=0 // loop_header
    %s15 = sphi 0, %s19
    %p16 = scmp.ge.s32.totalorder %s15, 4
    %s25 = sphi 0, %s27
    %s28 = sphi 0, %s25
    %s29 = sphi 0, %s28
    %s45 = sphi 0, %s29
    %s49 = sphi 0, %s49
    %s51 = sphi 0, %s49
    %s52 = sphi 0, %s51
    %s66 = sphi 0, %s52
    %s70 = sphi 0, %s70
    %s72 = sphi 0, %s70
    %s73 = sphi 0, %s72
    %s87 = sphi 0, %s73
    %s91 = sphi 0, %s91
    %s93 = sphi 0, %s91
    %s94 = sphi 0, %s93
    %s108 = sphi 0, %s94
    %s112 = sphi 0, %s112
    %s114 = sphi 0, %s112
    %s115 = sphi 0, %s114
    %s129 = sphi 0, %s115
    %s133 = sphi 0, %s133
    %s135 = sphi 0, %s133
    %s136 = sphi 0, %s135
    %s150 = sphi 0, %s136
    %s154 = sphi 0, %s154
    %s156 = sphi 0, %s154
    %s157 = sphi 0, %s156
    %s171 = sphi 0, %s157
    %s175 = sphi 0, %s175
    %s177 = sphi 0, %s175
    %s178 = sphi 0, %s177
    %s192 = sphi 0, %s178
    %s196 = sphi 0, %s196
    %s198 = sphi 0, %s196
    %s199 = sphi 0, %s198
    %s213 = sphi 0, %s199
    %s219 = sphi 0, %s221
    %s222 = sphi 0, %s219
    %s223 = sphi 0, %s222
    %s239 = sphi 0, %s223
  $region4: #{pose_bottleneck.1} parent=0 // loop_header_branch
    %18 = sbr.rel (%p16) target = $region8
  $region5: #{pose_bottleneck.1} parent=0 // loop_body
    %s20 = ssub.s32 %s15, 1
    %s21 = ssub.s32 %s15, 2
    %s22 = sadd.s32 %s15, 1
    %s23 = ssub.s32 %s15, %s22
    %p24 = scmp.eq.s32.totalorder %s23, 0
    %s26 = sadd.s32 %s25, 1
    %s27 = scalar_select %p24, %s25, %s26
    %p30 = pneg %p24
    %p31 = scmp.eq.s32.totalorder %s15, 1
    %p32 = por %p30, %p31
    %p33 = scmp.ne.s32.totalorder %s25, %s28
    %p34 = scmp.eq.s32.totalorder %s15, 0
    %p35 = por %p33, %p34
    %p36 = scmp.ne.s32.totalorder %s25, %s28
    %p37 = scmp.eq.s32.totalorder %s20, 1
    %p38 = por %p36, %p37
    %p39 = scmp.ne.s32.totalorder %s28, %s29
    %p40 = scmp.eq.s32.totalorder %s20, 0
    %p41 = por %p39, %p40
    %p42 = scmp.ne.s32.totalorder %s28, %s29
    %p43 = scmp.eq.s32.totalorder %s21, 1
    %p44 = por %p42, %p43
    %p46 = scmp.ne.s32.totalorder %s29, %s45
    %p47 = scmp.eq.s32.totalorder %s21, 0
    %p48 = por %p46, %p47
    %s50 = sadd.s32 %s49, 1
    %p53 = scmp.eq.s32.totalorder %s15, 1
    %p54 = scmp.ne.s32.totalorder %s49, %s51
    %p55 = scmp.eq.s32.totalorder %s15, 0
    %p56 = por %p54, %p55
    %p57 = scmp.ne.s32.totalorder %s49, %s51
    %p58 = scmp.eq.s32.totalorder %s20, 1
    %p59 = por %p57, %p58
    %p60 = scmp.ne.s32.totalorder %s51, %s52
    %p61 = scmp.eq.s32.totalorder %s20, 0
    %p62 = por %p60, %p61
    %p63 = scmp.ne.s32.totalorder %s51, %s52
    %p64 = scmp.eq.s32.totalorder %s21, 1
    %p65 = por %p63, %p64
    %p67 = scmp.ne.s32.totalorder %s52, %s66
    %p68 = scmp.eq.s32.totalorder %s21, 0
    %p69 = por %p67, %p68
    %s71 = sadd.s32 %s70, 1
    %p74 = scmp.eq.s32.totalorder %s15, 1
    %p75 = scmp.ne.s32.totalorder %s70, %s72
    %p76 = scmp.eq.s32.totalorder %s15, 0
    %p77 = por %p75, %p76
    %p78 = scmp.ne.s32.totalorder %s70, %s72
    %p79 = scmp.eq.s32.totalorder %s20, 1
    %p80 = por %p78, %p79
    %p81 = scmp.ne.s32.totalorder %s72, %s73
    %p82 = scmp.eq.s32.totalorder %s20, 0
    %p83 = por %p81, %p82
    %p84 = scmp.ne.s32.totalorder %s72, %s73
    %p85 = scmp.eq.s32.totalorder %s21, 1
    %p86 = por %p84, %p85
    %p88 = scmp.ne.s32.totalorder %s73, %s87
    %p89 = scmp.eq.s32.totalorder %s21, 0
    %p90 = por %p88, %p89
    %s92 = sadd.s32 %s91, 1
    %p95 = scmp.eq.s32.totalorder %s15, 1
    %p96 = scmp.ne.s32.totalorder %s91, %s93
    %p97 = scmp.eq.s32.totalorder %s15, 0
    %p98 = por %p96, %p97
    %p99 = scmp.ne.s32.totalorder %s91, %s93
    %p100 = scmp.eq.s32.totalorder %s20, 1
    %p101 = por %p99, %p100
    %p102 = scmp.ne.s32.totalorder %s93, %s94
    %p103 = scmp.eq.s32.totalorder %s20, 0
    %p104 = por %p102, %p103
    %p105 = scmp.ne.s32.totalorder %s93, %s94
    %p106 = scmp.eq.s32.totalorder %s21, 1
    %p107 = por %p105, %p106
    %p109 = scmp.ne.s32.totalorder %s94, %s108
    %p110 = scmp.eq.s32.totalorder %s21, 0
    %p111 = por %p109, %p110
    %s113 = sadd.s32 %s112, 1
    %p116 = scmp.eq.s32.totalorder %s15, 1
    %p117 = scmp.ne.s32.totalorder %s112, %s114
    %p118 = scmp.eq.s32.totalorder %s15, 0
    %p119 = por %p117, %p118
    %p120 = scmp.ne.s32.totalorder %s112, %s114
    %p121 = scmp.eq.s32.totalorder %s20, 1
    %p122 = por %p120, %p121
    %p123 = scmp.ne.s32.totalorder %s114, %s115
    %p124 = scmp.eq.s32.totalorder %s20, 0
    %p125 = por %p123, %p124
    %p126 = scmp.ne.s32.totalorder %s114, %s115
    %p127 = scmp.eq.s32.totalorder %s21, 1
    %p128 = por %p126, %p127
    %p130 = scmp.ne.s32.totalorder %s115, %s129
    %p131 = scmp.eq.s32.totalorder %s21, 0
    %p132 = por %p130, %p131
    %s134 = sadd.s32 %s133, 1
    %p137 = scmp.eq.s32.totalorder %s15, 1
    %p138 = scmp.ne.s32.totalorder %s133, %s135
    %p139 = scmp.eq.s32.totalorder %s15, 0
    %p140 = por %p138, %p139
    %p141 = scmp.ne.s32.totalorder %s133, %s135
    %p142 = scmp.eq.s32.totalorder %s20, 1
    %p143 = por %p141, %p142
    %p144 = scmp.ne.s32.totalorder %s135, %s136
    %p145 = scmp.eq.s32.totalorder %s20, 0
    %p146 = por %p144, %p145
    %p147 = scmp.ne.s32.totalorder %s135, %s136
    %p148 = scmp.eq.s32.totalorder %s21, 1
    %p149 = por %p147, %p148
    %p151 = scmp.ne.s32.totalorder %s136, %s150
    %p152 = scmp.eq.s32.totalorder %s21, 0
    %p153 = por %p151, %p152
    %s155 = sadd.s32 %s154, 1
    %p158 = scmp.eq.s32.totalorder %s15, 1
    %p159 = scmp.ne.s32.totalorder %s154, %s156
    %p160 = scmp.eq.s32.totalorder %s15, 0
    %p161 = por %p159, %p160
    %p162 = scmp.ne.s32.totalorder %s154, %s156
    %p163 = scmp.eq.s32.totalorder %s20, 1
    %p164 = por %p162, %p163
    %p165 = scmp.ne.s32.totalorder %s156, %s157
    %p166 = scmp.eq.s32.totalorder %s20, 0
    %p167 = por %p165, %p166
    %p168 = scmp.ne.s32.totalorder %s156, %s157
    %p169 = scmp.eq.s32.totalorder %s21, 1
    %p170 = por %p168, %p169
    %p172 = scmp.ne.s32.totalorder %s157, %s171
    %p173 = scmp.eq.s32.totalorder %s21, 0
    %p174 = por %p172, %p173
    %s176 = sadd.s32 %s175, 1
    %p179 = scmp.eq.s32.totalorder %s15, 1
    %p180 = scmp.ne.s32.totalorder %s175, %s177
    %p181 = scmp.eq.s32.totalorder %s15, 0
    %p182 = por %p180, %p181
    %p183 = scmp.ne.s32.totalorder %s175, %s177
    %p184 = scmp.eq.s32.totalorder %s20, 1
    %p185 = por %p183, %p184
    %p186 = scmp.ne.s32.totalorder %s177, %s178
    %p187 = scmp.eq.s32.totalorder %s20, 0
    %p188 = por %p186, %p187
    %p189 = scmp.ne.s32.totalorder %s177, %s178
    %p190 = scmp.eq.s32.totalorder %s21, 1
    %p191 = por %p189, %p190
    %p193 = scmp.ne.s32.totalorder %s178, %s192
    %p194 = scmp.eq.s32.totalorder %s21, 0
    %p195 = por %p193, %p194
    %s197 = sadd.s32 %s196, 1
    %p200 = scmp.eq.s32.totalorder %s15, 1
    %p201 = scmp.ne.s32.totalorder %s196, %s198
    %p202 = scmp.eq.s32.totalorder %s15, 0
    %p203 = por %p201, %p202
    %p204 = scmp.ne.s32.totalorder %s196, %s198
    %p205 = scmp.eq.s32.totalorder %s20, 1
    %p206 = por %p204, %p205
    %p207 = scmp.ne.s32.totalorder %s198, %s199
    %p208 = scmp.eq.s32.totalorder %s20, 0
    %p209 = por %p207, %p208
    %p210 = scmp.ne.s32.totalorder %s198, %s199
    %p211 = scmp.eq.s32.totalorder %s21, 1
    %p212 = por %p210, %p211
    %p214 = scmp.ne.s32.totalorder %s199, %s213
    %p215 = scmp.eq.s32.totalorder %s21, 0
    %p216 = por %p214, %p215
    %s217 = ssub.s32 %s15, %s22
    %p218 = scmp.eq.s32.totalorder %s217, 0
    %s220 = sadd.s32 %s219, 1
    %s221 = scalar_select %p218, %s219, %s220
    %p224 = pneg %p218
    %p225 = scmp.eq.s32.totalorder %s15, 1
    %p226 = por %p224, %p225
    %p227 = scmp.ne.s32.totalorder %s219, %s222
    %p228 = scmp.eq.s32.totalorder %s15, 0
    %p229 = por %p227, %p228
    %p230 = scmp.ne.s32.totalorder %s219, %s222
    %p231 = scmp.eq.s32.totalorder %s20, 1
    %p232 = por %p230, %p231
    %p233 = scmp.ne.s32.totalorder %s222, %s223
    %p234 = scmp.eq.s32.totalorder %s20, 0
    %p235 = por %p233, %p234
    %p236 = scmp.ne.s32.totalorder %s222, %s223
    %p237 = scmp.eq.s32.totalorder %s21, 1
    %p238 = por %p236, %p237
    %p240 = scmp.ne.s32.totalorder %s223, %s239
    %p241 = scmp.eq.s32.totalorder %s21, 0
    %p242 = por %p240, %p241
    %p243 = scmp.le.s32.totalorder 1, %s15
    %p244 = scmp.lt.s32.totalorder %s15, 3
    %p245 = pnand %p243, %p244
    %p246 = pneg %p245
    // Predicated region
    $region9: #{pose_bottleneck.1} parent=5 // pred_check
      _
    $region10: #{pose_bottleneck.1} parent=5 // pred_check_branch
      %248 = sbr.rel (%p245) target = $region12
    $region11: #{pose_bottleneck.1} parent=5 // pred_region
      %s249 = ssub.s32 %s15, 1
      // Predicated region
      $region13: #{pose_bottleneck.1} parent=11 // pred_check
        %p250 = pneg %p62
      $region14: #{pose_bottleneck.1} parent=11 // pred_check_branch
        %252 = sbr.rel (%p250) target = $region16
      $region15: #{pose_bottleneck.1} parent=11 // pred_region
        _
      $region16: #{pose_bottleneck.1} parent=11 // pred_fallthru
        _
      // Predicated region
      $region17: #{pose_bottleneck.1} parent=11 // pred_check
        %p253 = pneg %p83
      $region18: #{pose_bottleneck.1} parent=11 // pred_check_branch
        %255 = sbr.rel (%p253) target = $region20
      $region19: #{pose_bottleneck.1} parent=11 // pred_region
        _
      $region20: #{pose_bottleneck.1} parent=11 // pred_fallthru
        _
      // Predicated region
      $region21: #{pose_bottleneck.1} parent=11 // pred_check
        %p256 = pneg %p104
      $region22: #{pose_bottleneck.1} parent=11 // pred_check_branch
        %258 = sbr.rel (%p256) target = $region24
      $region23: #{pose_bottleneck.1} parent=11 // pred_region
        _
      $region24: #{pose_bottleneck.1} parent=11 // pred_fallthru
        _
      // Predicated region
      $region25: #{pose_bottleneck.1} parent=11 // pred_check
        %p259 = pneg %p125
      $region26: #{pose_bottleneck.1} parent=11 // pred_check_branch
        %261 = sbr.rel (%p259) target = $region28
      $region27: #{pose_bottleneck.1} parent=11 // pred_region
        _
      $region28: #{pose_bottleneck.1} parent=11 // pred_fallthru
        _
      // Predicated region
      $region29: #{pose_bottleneck.1} parent=11 // pred_check
        %p262 = pneg %p146
      $region30: #{pose_bottleneck.1} parent=11 // pred_check_branch
        %264 = sbr.rel (%p262) target = $region32
      $region31: #{pose_bottleneck.1} parent=11 // pred_region
        _
      $region32: #{pose_bottleneck.1} parent=11 // pred_fallthru
        _
      // Predicated region
      $region33: #{pose_bottleneck.1} parent=11 // pred_check
        %p265 = pneg %p167
      $region34: #{pose_bottleneck.1} parent=11 // pred_check_branch
        %267 = sbr.rel (%p265) target = $region36
      $region35: #{pose_bottleneck.1} parent=11 // pred_region
        _
      $region36: #{pose_bottleneck.1} parent=11 // pred_fallthru
        _
      // Predicated region
      $region37: #{pose_bottleneck.1} parent=11 // pred_check
        %p268 = pneg %p188
      $region38: #{pose_bottleneck.1} parent=11 // pred_check_branch
        %270 = sbr.rel (%p268) target = $region40
      $region39: #{pose_bottleneck.1} parent=11 // pred_region
        _
      $region40: #{pose_bottleneck.1} parent=11 // pred_fallthru
        _
      // Predicated region
      $region41: #{pose_bottleneck.1} parent=11 // pred_check
        %p271 = pneg %p209
      $region42: #{pose_bottleneck.1} parent=11 // pred_check_branch
        %273 = sbr.rel (%p271) target = $region44
      $region43: #{pose_bottleneck.1} parent=11 // pred_region
        _
      $region44: #{pose_bottleneck.1} parent=11 // pred_fallthru
        _
    $region12: #{pose_bottleneck.1} parent=5 // pred_fallthru
      _
    %p274 = scmp.lt.s32.totalorder %s15, 2
    // Predicated region
    $region45: #{pose_bottleneck.1} parent=5 // pred_check
      %p275 = pneg %p274
    $region46: #{pose_bottleneck.1} parent=5 // pred_check_branch
      %277 = sbr.rel (%p275) target = $region48
    $region47: #{pose_bottleneck.1} parent=5 // pred_region
      // Predicated region
      $region49: #{pose_bottleneck.1} parent=47 // pred_check
        %p278 = pneg %p35
      $region50: #{pose_bottleneck.1} parent=47 // pred_check_branch
        %280 = sbr.rel (%p278) target = $region52
      $region51: #{pose_bottleneck.1} parent=47 // pred_region
        %p281 = scmp.lt.s32.totalorder %s15, 1
        %s282 = scalar_select %p281, %s15, 1
        %s283 = smul.addr %s282, 64
        %s284 = smul.addr %s283, 8
        %s285 = scalar_lea.vmem %s0, %s284
      $region52: #{pose_bottleneck.1} parent=47 // pred_fallthru
        _
    $region48: #{pose_bottleneck.1} parent=5 // pred_fallthru
      _
    %p286 = scmp.le.s32.totalorder 1, %s15
    %p287 = scmp.lt.s32.totalorder %s15, 3
    %p288 = pnand %p286, %p287
    %p289 = pneg %p288
    // Predicated region
    $region53: #{pose_bottleneck.1} parent=5 // pred_check
      _
    $region54: #{pose_bottleneck.1} parent=5 // pred_check_branch
      %291 = sbr.rel (%p288) target = $region56
    $region55: #{pose_bottleneck.1} parent=5 // pred_region
      %s292 = ssub.s32 %s15, 1
      %p293 = scmp.lt.s32.totalorder %s20, 1
      %s294 = scalar_select %p293, %s20, 1
      %s295 = smul.addr %s294, 64
      %s296 = smul.addr %s295, 8
      %s297 = scalar_lea.vmem %s0, %s296
      %p298 = pneg %p41
      %p299 = pneg %p38
      %p300 = pneg %p62
      %p301 = pneg %p59
      %p302 = pneg %p83
      %p303 = pneg %p80
      %p304 = pneg %p104
      %p305 = pneg %p101
      %p306 = pneg %p125
      %p307 = pneg %p122
      %p308 = pneg %p146
      %p309 = pneg %p143
      %p310 = pneg %p167
      %p311 = pneg %p164
      %p312 = pneg %p188
      %p313 = pneg %p185
      %p314 = pneg %p209
      %p315 = pneg %p206
      %p316 = pneg %p235
      %p317 = pneg %p232
      %p318 = scmp.lt.s32.totalorder %s20, 1
      %s319 = scalar_select %p318, %s20, 1
      %s320 = smul.addr %s319, 4
      %s321 = smul.addr %s320, 8
      %s322 = scalar_lea.vmem %s9, %s321
      %p323 = scmp.lt.s32.totalorder %s20, 1
      %s324 = scalar_select %p323, %s20, 1
      %s325 = smul.addr %s324, 64
      %s326 = smul.addr %s325, 8
      %s327 = scalar_lea.vmem %s0, %s326
      %p328 = scmp.lt.s32.totalorder %s20, 1
      %s329 = scalar_select %p328, %s20, 1
      %s330 = smul.addr %s329, 4
      %s331 = smul.addr %s330, 8
      %s332 = scalar_lea.vmem %s9, %s331
      %vm334 = vcmask 1043456
      %vm335 = vcmask 523268
      %vm336 = vmor %vm335, %vm334
      %337 = vst.msk [vmem:[#allocation2] sm:$0xff] %vm336, 0
      %338 = vst.msk [vmem:[#allocation2 + $0x8] sm:$0xff] %vm336, 0
      %339 = vst.msk [vmem:[#allocation2 + $0x90] sm:$0xff] %vm336, 0
      %v340 = vld [vmem:[%s327 + $0x10] sm:$0xff]
      %v341 = vld [vmem:[%s327 + $0x18] sm:$0xff]
      %v342 = vpack.c.bf16 %v341, %v340
      %343 = vst.msk [vmem:[#allocation2 + $0x10] sm:$0xff] %vm336, %v342
      %v344 = vld [vmem:[%s327 + $0x30] sm:$0xff]
      %v345 = vld [vmem:[%s327 + $0x38] sm:$0xff]
      %v346 = vpack.c.bf16 %v345, %v344
      %347 = vst.msk [vmem:[#allocation2 + $0x18] sm:$0xff] %vm336, %v346
      %v348 = vld [vmem:[%s327 + $0x50] sm:$0xff]
      %v349 = vld [vmem:[%s327 + $0x58] sm:$0xff]
      %v350 = vpack.c.bf16 %v349, %v348
      %351 = vst.msk [vmem:[#allocation2 + $0x20] sm:$0xff] %vm336, %v350
      %v352 = vld [vmem:[%s327 + $0x70] sm:$0xff]
      %v353 = vld [vmem:[%s327 + $0x78] sm:$0xff]
      %v354 = vpack.c.bf16 %v353, %v352
      %355 = vst.msk [vmem:[#allocation2 + $0x28] sm:$0xff] %vm336, %v354
      %v356 = vld [vmem:[%s327 + $0x90] sm:$0xff]
      %v357 = vld [vmem:[%s327 + $0x98] sm:$0xff]
      %v358 = vpack.c.bf16 %v357, %v356
      %359 = vst.msk [vmem:[#allocation2 + $0x30] sm:$0xff] %vm336, %v358
      %v360 = vld [vmem:[%s327 + $0xb0] sm:$0xff]
      %v361 = vld [vmem:[%s327 + $0xb8] sm:$0xff]
      %v362 = vpack.c.bf16 %v361, %v360
      %363 = vst.msk [vmem:[#allocation2 + $0x38] sm:$0xff] %vm336, %v362
      %v364 = vld [vmem:[%s327 + $0xd0] sm:$0xff]
      %v365 = vld [vmem:[%s327 + $0xd8] sm:$0xff]
      %v366 = vpack.c.bf16 %v365, %v364
      %367 = vst.msk [vmem:[#allocation2 + $0x40] sm:$0xff] %vm336, %v366
      %v368 = vld [vmem:[%s327 + $0xf0] sm:$0xff]
      %v369 = vld [vmem:[%s327 + $0xf8] sm:$0xff]
      %v370 = vpack.c.bf16 %v369, %v368
      %371 = vst.msk [vmem:[#allocation2 + $0x48] sm:$0xff] %vm336, %v370
      %v372 = vld [vmem:[%s327 + $0x110] sm:$0xff]
      %v373 = vld [vmem:[%s327 + $0x118] sm:$0xff]
      %v374 = vpack.c.bf16 %v373, %v372
      %375 = vst.msk [vmem:[#allocation2 + $0x50] sm:$0xff] %vm336, %v374
      %v376 = vld [vmem:[%s327 + $0x130] sm:$0xff]
      %v377 = vld [vmem:[%s327 + $0x138] sm:$0xff]
      %v378 = vpack.c.bf16 %v377, %v376
      %379 = vst.msk [vmem:[#allocation2 + $0x58] sm:$0xff] %vm336, %v378
      %v380 = vld [vmem:[%s327 + $0x150] sm:$0xff]
      %v381 = vld [vmem:[%s327 + $0x158] sm:$0xff]
      %v382 = vpack.c.bf16 %v381, %v380
      %383 = vst.msk [vmem:[#allocation2 + $0x60] sm:$0xff] %vm336, %v382
      %v384 = vld [vmem:[%s327 + $0x170] sm:$0xff]
      %v385 = vld [vmem:[%s327 + $0x178] sm:$0xff]
      %v386 = vpack.c.bf16 %v385, %v384
      %387 = vst.msk [vmem:[#allocation2 + $0x68] sm:$0xff] %vm336, %v386
      %v388 = vld [vmem:[%s327 + $0x190] sm:$0xff]
      %v389 = vld [vmem:[%s327 + $0x198] sm:$0xff]
      %v390 = vpack.c.bf16 %v389, %v388
      %391 = vst.msk [vmem:[#allocation2 + $0x70] sm:$0xff] %vm336, %v390
      %v392 = vld [vmem:[%s327 + $0x1b0] sm:$0xff]
      %v393 = vld [vmem:[%s327 + $0x1b8] sm:$0xff]
      %v394 = vpack.c.bf16 %v393, %v392
      %395 = vst.msk [vmem:[#allocation2 + $0x78] sm:$0xff] %vm336, %v394
      %v396 = vld [vmem:[%s327 + $0x1d0] sm:$0xff]
      %v397 = vld [vmem:[%s327 + $0x1d8] sm:$0xff]
      %v398 = vpack.c.bf16 %v397, %v396
      %399 = vst.msk [vmem:[#allocation2 + $0x80] sm:$0xff] %vm336, %v398
      %v400 = vld [vmem:[%s327 + $0x1f0] sm:$0xff]
      %v401 = vld [vmem:[%s327 + $0x1f8] sm:$0xff]
      %v402 = vpack.c.bf16 %v401, %v400
      %403 = vst.msk [vmem:[#allocation2 + $0x88] sm:$0xff] %vm336, %v402
      %s404 = scalar_lea.vmem [#allocation2], 152
      %405 = vst.msk [vmem:[%s404] sm:$0xff] %vm336, 0
      %406 = vst.msk [vmem:[%s404 + $0x88] sm:$0xff] %vm336, 0
      %407 = vst.msk [vmem:[%s404 + $0x90] sm:$0xff] %vm336, 0
      %v408 = vld [vmem:[%s327] sm:$0xff]
      %v409 = vld [vmem:[%s327 + $0x8] sm:$0xff]
      %v410 = vpack.c.bf16 %v409, %v408
      %411 = vst.msk [vmem:[%s404 + $0x8] sm:$0xff] %vm336, %v410
      %v412 = vld [vmem:[%s327 + $0x20] sm:$0xff]
      %v413 = vld [vmem:[%s327 + $0x28] sm:$0xff]
      %v414 = vpack.c.bf16 %v413, %v412
      %415 = vst.msk [vmem:[%s404 + $0x10] sm:$0xff] %vm336, %v414
      %v416 = vld [vmem:[%s327 + $0x40] sm:$0xff]
      %v417 = vld [vmem:[%s327 + $0x48] sm:$0xff]
      %v418 = vpack.c.bf16 %v417, %v416
      %419 = vst.msk [vmem:[%s404 + $0x18] sm:$0xff] %vm336, %v418
      %v420 = vld [vmem:[%s327 + $0x60] sm:$0xff]
      %v421 = vld [vmem:[%s327 + $0x68] sm:$0xff]
      %v422 = vpack.c.bf16 %v421, %v420
      %423 = vst.msk [vmem:[%s404 + $0x20] sm:$0xff] %vm336, %v422
      %v424 = vld [vmem:[%s327 + $0x80] sm:$0xff]
      %v425 = vld [vmem:[%s327 + $0x88] sm:$0xff]
      %v426 = vpack.c.bf16 %v425, %v424
      %427 = vst.msk [vmem:[%s404 + $0x28] sm:$0xff] %vm336, %v426
      %v428 = vld [vmem:[%s327 + $0xa0] sm:$0xff]
      %v429 = vld [vmem:[%s327 + $0xa8] sm:$0xff]
      %v430 = vpack.c.bf16 %v429, %v428
      %431 = vst.msk [vmem:[%s404 + $0x30] sm:$0xff] %vm336, %v430
      %v432 = vld [vmem:[%s327 + $0xc0] sm:$0xff]
      %v433 = vld [vmem:[%s327 + $0xc8] sm:$0xff]
      %v434 = vpack.c.bf16 %v433, %v432
      %435 = vst.msk [vmem:[%s404 + $0x38] sm:$0xff] %vm336, %v434
      %v436 = vld [vmem:[%s327 + $0xe0] sm:$0xff]
      %v437 = vld [vmem:[%s327 + $0xe8] sm:$0xff]
      %v438 = vpack.c.bf16 %v437, %v436
      %439 = vst.msk [vmem:[%s404 + $0x40] sm:$0xff] %vm336, %v438
      %v440 = vld [vmem:[%s327 + $0x100] sm:$0xff]
      %v441 = vld [vmem:[%s327 + $0x108] sm:$0xff]
      %v442 = vpack.c.bf16 %v441, %v440
      %443 = vst.msk [vmem:[%s404 + $0x48] sm:$0xff] %vm336, %v442
      %v444 = vld [vmem:[%s327 + $0x120] sm:$0xff]
      %v445 = vld [vmem:[%s327 + $0x128] sm:$0xff]
      %v446 = vpack.c.bf16 %v445, %v444
      %447 = vst.msk [vmem:[%s404 + $0x50] sm:$0xff] %vm336, %v446
      %v448 = vld [vmem:[%s327 + $0x140] sm:$0xff]
      %v449 = vld [vmem:[%s327 + $0x148] sm:$0xff]
      %v450 = vpack.c.bf16 %v449, %v448
      %451 = vst.msk [vmem:[%s404 + $0x58] sm:$0xff] %vm336, %v450
      %v452 = vld [vmem:[%s327 + $0x160] sm:$0xff]
      %v453 = vld [vmem:[%s327 + $0x168] sm:$0xff]
      %v454 = vpack.c.bf16 %v453, %v452
      %455 = vst.msk [vmem:[%s404 + $0x60] sm:$0xff] %vm336, %v454
      %v456 = vld [vmem:[%s327 + $0x180] sm:$0xff]
      %v457 = vld [vmem:[%s327 + $0x188] sm:$0xff]
      %v458 = vpack.c.bf16 %v457, %v456
      %459 = vst.msk [vmem:[%s404 + $0x68] sm:$0xff] %vm336, %v458
      %v460 = vld [vmem:[%s327 + $0x1a0] sm:$0xff]
      %v461 = vld [vmem:[%s327 + $0x1a8] sm:$0xff]
      %v462 = vpack.c.bf16 %v461, %v460
      %463 = vst.msk [vmem:[%s404 + $0x70] sm:$0xff] %vm336, %v462
      %v464 = vld [vmem:[%s327 + $0x1c0] sm:$0xff]
      %v465 = vld [vmem:[%s327 + $0x1c8] sm:$0xff]
      %v466 = vpack.c.bf16 %v465, %v464
      %467 = vst.msk [vmem:[%s404 + $0x78] sm:$0xff] %vm336, %v466
      %v468 = vld [vmem:[%s327 + $0x1e0] sm:$0xff]
      %v469 = vld [vmem:[%s327 + $0x1e8] sm:$0xff]
      %v470 = vpack.c.bf16 %v469, %v468
      %471 = vst.msk [vmem:[%s404 + $0x80] sm:$0xff] %vm336, %v470
      %v472 = vld [vmem:[%s5] sm:$0x3]
      %v474 = vperm.slane %v472, 0
      %v475 = vperm.slane %v472, 1
      %v478 = vld [vmem:[#allocation2] sm:$0xff]
      %v479 = vld [vmem:[#allocation2 + $0x8] sm:$0xff]
      %v480 = vld [vmem:[#allocation2 + $0x10] sm:$0xff]
      %v481 = vld [vmem:[#allocation2 + $0x18] sm:$0xff]
      %v482 = vld [vmem:[#allocation2 + $0x20] sm:$0xff]
      %v483 = vld [vmem:[#allocation2 + $0x28] sm:$0xff]
      %v484 = vld [vmem:[#allocation2 + $0x30] sm:$0xff]
      %v485 = vld [vmem:[#allocation2 + $0x38] sm:$0xff]
      %v486 = vld [vmem:[#allocation2 + $0x40] sm:$0xff]
      %v487 = vld [vmem:[#allocation2 + $0x48] sm:$0xff]
      %v488 = vld [vmem:[#allocation2 + $0x50] sm:$0xff]
      %v489 = vld [vmem:[#allocation2 + $0x58] sm:$0xff]
      %v490 = vld [vmem:[#allocation2 + $0x60] sm:$0xff]
      %v491 = vld [vmem:[#allocation2 + $0x68] sm:$0xff]
      %v492 = vld [vmem:[#allocation2 + $0x70] sm:$0xff]
      %v493 = vld [vmem:[#allocation2 + $0x78] sm:$0xff]
      %v494 = vld [vmem:[%s1] sm:$0xff]
      %v495 = vld [vmem:[%s1 + $0x8] sm:$0xff]
      %v496 = vld [vmem:[%s1 + $0x10] sm:$0xff]
      %v497 = vld [vmem:[%s1 + $0x18] sm:$0xff]
      %v498 = vld [vmem:[%s1 + $0x20] sm:$0xff]
      %v499 = vld [vmem:[%s1 + $0x28] sm:$0xff]
      %v500 = vld [vmem:[%s1 + $0x30] sm:$0xff]
      %v501 = vld [vmem:[%s1 + $0x38] sm:$0xff]
      %v502 = vld [vmem:[%s1 + $0x40] sm:$0xff]
      %v503 = vld [vmem:[%s1 + $0x48] sm:$0xff]
      %v504 = vld [vmem:[%s1 + $0x50] sm:$0xff]
      %v505 = vld [vmem:[%s1 + $0x58] sm:$0xff]
      %v506 = vld [vmem:[%s1 + $0x60] sm:$0xff]
      %v507 = vld [vmem:[%s1 + $0x68] sm:$0xff]
      %v508 = vld [vmem:[%s1 + $0x70] sm:$0xff]
      %v509 = vld [vmem:[%s1 + $0x78] sm:$0xff]
      %v510 = vld [vmem:[%s1 + $0x80] sm:$0xff]
      %v511 = vld [vmem:[%s1 + $0x88] sm:$0xff]
      %v512 = vld [vmem:[%s1 + $0x90] sm:$0xff]
      %v513 = vld [vmem:[%s1 + $0x98] sm:$0xff]
      %v514 = vld [vmem:[%s1 + $0xa0] sm:$0xff]
      %v515 = vld [vmem:[%s1 + $0xa8] sm:$0xff]
      %v516 = vld [vmem:[%s1 + $0xb0] sm:$0xff]
      %v517 = vld [vmem:[%s1 + $0xb8] sm:$0xff]
      %v534 = vunpack.c.l.b16 %v478
      %v535 = vunpack.c.h.b16 %v478
      %v536 = vunpack.c.l.b16 %v479
      %v537 = vunpack.c.h.b16 %v479
      %v538 = vunpack.c.l.b16 %v480
      %v539 = vunpack.c.h.b16 %v480
      %v540 = vunpack.c.l.b16 %v481
      %v541 = vunpack.c.h.b16 %v481
      %v542 = vunpack.c.l.b16 %v482
      %v543 = vunpack.c.h.b16 %v482
      %v544 = vunpack.c.l.b16 %v483
      %v545 = vunpack.c.h.b16 %v483
      %v546 = vunpack.c.l.b16 %v484
      %v547 = vunpack.c.h.b16 %v484
      %v548 = vunpack.c.l.b16 %v485
      %v549 = vunpack.c.h.b16 %v485
      %v550 = vunpack.c.l.b16 %v486
      %v551 = vunpack.c.h.b16 %v486
      %v552 = vunpack.c.l.b16 %v487
      %v553 = vunpack.c.h.b16 %v487
      %v554 = vunpack.c.l.b16 %v488
      %v555 = vunpack.c.h.b16 %v488
      %v556 = vunpack.c.l.b16 %v489
      %v557 = vunpack.c.h.b16 %v489
      %v558 = vunpack.c.l.b16 %v490
      %v559 = vunpack.c.h.b16 %v490
      %v560 = vunpack.c.l.b16 %v491
      %v561 = vunpack.c.h.b16 %v491
      %v562 = vunpack.c.l.b16 %v492
      %v563 = vunpack.c.h.b16 %v492
      %v564 = vunpack.c.l.b16 %v493
      %v565 = vunpack.c.h.b16 %v493
      %v566 = vpack.c.b16 %v536, %v534
      %v567 = vpack.c.b16 %v537, %v535
      %v568 = vpack.c.b16 %v540, %v538
      %v569 = vpack.c.b16 %v541, %v539
      %v570 = vpack.c.b16 %v544, %v542
      %v571 = vpack.c.b16 %v545, %v543
      %v572 = vpack.c.b16 %v548, %v546
      %v573 = vpack.c.b16 %v549, %v547
      %v574 = vpack.c.b16 %v552, %v550
      %v575 = vpack.c.b16 %v553, %v551
      %v576 = vpack.c.b16 %v556, %v554
      %v577 = vpack.c.b16 %v557, %v555
      %v578 = vpack.c.b16 %v560, %v558
      %v579 = vpack.c.b16 %v561, %v559
      %v580 = vpack.c.b16 %v564, %v562
      %v581 = vpack.c.b16 %v565, %v563
      %v614 = vunpack.c.l.b16 %v494
      %v615 = vunpack.c.h.b16 %v494
      %v616 = vunpack.c.l.b16 %v495
      %v617 = vunpack.c.h.b16 %v495
      %v618 = vunpack.c.l.b16 %v496
      %v619 = vunpack.c.h.b16 %v496
      %v620 = vunpack.c.l.b16 %v497
      %v621 = vunpack.c.h.b16 %v497
      %v622 = vunpack.c.l.b16 %v498
      %v623 = vunpack.c.h.b16 %v498
      %v624 = vunpack.c.l.b16 %v499
      %v625 = vunpack.c.h.b16 %v499
      %v626 = vunpack.c.l.b16 %v500
      %v627 = vunpack.c.h.b16 %v500
      %v628 = vunpack.c.l.b16 %v501
      %v629 = vunpack.c.h.b16 %v501
      %v630 = vunpack.c.l.b16 %v502
      %v631 = vunpack.c.h.b16 %v502
      %v632 = vunpack.c.l.b16 %v503
      %v633 = vunpack.c.h.b16 %v503
      %v634 = vunpack.c.l.b16 %v504
      %v635 = vunpack.c.h.b16 %v504
      %v636 = vunpack.c.l.b16 %v505
      %v637 = vunpack.c.h.b16 %v505
      %v638 = vunpack.c.l.b16 %v506
      %v639 = vunpack.c.h.b16 %v506
      %v640 = vunpack.c.l.b16 %v507
      %v641 = vunpack.c.h.b16 %v507
      %v642 = vunpack.c.l.b16 %v508
      %v643 = vunpack.c.h.b16 %v508
      %v644 = vunpack.c.l.b16 %v509
      %v645 = vunpack.c.h.b16 %v509
      %v646 = vunpack.c.l.b16 %v510
      %v647 = vunpack.c.h.b16 %v510
      %v648 = vunpack.c.l.b16 %v511
      %v649 = vunpack.c.h.b16 %v511
      %v650 = vunpack.c.l.b16 %v512
      %v651 = vunpack.c.h.b16 %v512
      %v652 = vunpack.c.l.b16 %v513
      %v653 = vunpack.c.h.b16 %v513
      %v654 = vunpack.c.l.b16 %v514
      %v655 = vunpack.c.h.b16 %v514
      %v656 = vunpack.c.l.b16 %v515
      %v657 = vunpack.c.h.b16 %v515
      %v658 = vunpack.c.l.b16 %v516
      %v659 = vunpack.c.h.b16 %v516
      %v660 = vunpack.c.l.b16 %v517
      %v661 = vunpack.c.h.b16 %v517
      %v662 = vpack.c.b16 %v616, %v614
      %v663 = vpack.c.b16 %v617, %v615
      %v664 = vpack.c.b16 %v620, %v618
      %v665 = vpack.c.b16 %v621, %v619
      %v666 = vpack.c.b16 %v624, %v622
      %v667 = vpack.c.b16 %v625, %v623
      %v668 = vpack.c.b16 %v628, %v626
      %v669 = vpack.c.b16 %v629, %v627
      %v670 = vpack.c.b16 %v632, %v630
      %v671 = vpack.c.b16 %v633, %v631
      %v672 = vpack.c.b16 %v636, %v634
      %v673 = vpack.c.b16 %v637, %v635
      %v674 = vpack.c.b16 %v640, %v638
      %v675 = vpack.c.b16 %v641, %v639
      %v676 = vpack.c.b16 %v644, %v642
      %v677 = vpack.c.b16 %v645, %v643
      %v678 = vpack.c.b16 %v648, %v646
      %v679 = vpack.c.b16 %v649, %v647
      %v680 = vpack.c.b16 %v652, %v650
      %v681 = vpack.c.b16 %v653, %v651
      %v682 = vpack.c.b16 %v656, %v654
      %v683 = vpack.c.b16 %v657, %v655
      %v684 = vpack.c.b16 %v660, %v658
      %v685 = vpack.c.b16 %v661, %v659
      %vm710 = vcmask 523264
      %v712 = vsel %vm710, %v567, 0
      %v715 = vsel %vm710, %v569, 0
      %v718 = vsel %vm710, %v571, 0
      %v721 = vsel %vm710, %v573, 0
      %v724 = vsel %vm710, %v575, 0
      %v727 = vsel %vm710, %v577, 0
      %v730 = vsel %vm710, %v579, 0
      %v733 = vsel %vm710, %v581, 0
      %735 = vmatpush.bf16.msra.mxu0 %v676
      %736 = vmatpush.bf16.msra.mxu0 %v674
      %737 = vmatpush.bf16.msra.mxu0 %v672
      %738 = vmatpush.bf16.msra.mxu0 %v670
      %739 = vmatpush.bf16.msra.mxu0 %v668
      %740 = vmatpush.bf16.msra.mxu0 %v666
      %741 = vmatpush.bf16.msra.mxu0 %v664
      %742 = vmatpush.bf16.msra.mxu0 %v662
      %743 = vmatmul.bf16.gmra.mxu0 %v566
      %v744 = vpop.f32.mrf.mxu0
      %v745 = vadd.f32 0.0, %v744
      %v746 = vpop.f32.mrf.mxu0
      %v747 = vadd.f32 0.0, %v746
      %748 = vmatmul.bf16.gmra.mxu0 %v568
      %v749 = vpop.f32.mrf.mxu0
      %v750 = vadd.f32 0.0, %v749
      %v751 = vpop.f32.mrf.mxu0
      %v752 = vadd.f32 0.0, %v751
      %753 = vmatmul.bf16.gmra.mxu0 %v570
      %v754 = vpop.f32.mrf.mxu0
      %v755 = vadd.f32 0.0, %v754
      %v756 = vpop.f32.mrf.mxu0
      %v757 = vadd.f32 0.0, %v756
      %758 = vmatmul.bf16.gmra.mxu0 %v572
      %v759 = vpop.f32.mrf.mxu0
      %v760 = vadd.f32 0.0, %v759
      %v761 = vpop.f32.mrf.mxu0
      %v762 = vadd.f32 0.0, %v761
      %763 = vmatmul.bf16.gmra.mxu0 %v574
      %v764 = vpop.f32.mrf.mxu0
      %v765 = vadd.f32 0.0, %v764
      %v766 = vpop.f32.mrf.mxu0
      %v767 = vadd.f32 0.0, %v766
      %768 = vmatmul.bf16.gmra.mxu0 %v576
      %v769 = vpop.f32.mrf.mxu0
      %v770 = vadd.f32 0.0, %v769
      %v771 = vpop.f32.mrf.mxu0
      %v772 = vadd.f32 0.0, %v771
      %773 = vmatmul.bf16.gmra.mxu0 %v578
      %v774 = vpop.f32.mrf.mxu0
      %v775 = vadd.f32 0.0, %v774
      %v776 = vpop.f32.mrf.mxu0
      %v777 = vadd.f32 0.0, %v776
      %778 = vmatmul.bf16.gmra.mxu0 %v580
      %v779 = vpop.f32.mrf.mxu0
      %v780 = vadd.f32 0.0, %v779
      %v781 = vpop.f32.mrf.mxu0
      %v782 = vadd.f32 0.0, %v781
      %783 = vdwg.mxu0
      %784 = vmatpush.bf16.msra.mxu0 0
      %785 = vmatpush.bf16.msra.mxu0 0
      %786 = vmatpush.bf16.msra.mxu0 0
      %787 = vmatpush.bf16.msra.mxu0 0
      %788 = vmatpush.bf16.msra.mxu0 %v684
      %789 = vmatpush.bf16.msra.mxu0 %v682
      %790 = vmatpush.bf16.msra.mxu0 %v680
      %791 = vmatpush.bf16.msra.mxu0 %v678
      %792 = vmatmul.bf16.gmra.mxu0 %v712
      %v793 = vpop.f32.mrf.mxu0
      %v794 = vadd.f32 %v745, %v793
      %v795 = vpop.f32.mrf.mxu0
      %v796 = vadd.f32 %v747, %v795
      %797 = vmatmul.bf16.gmra.mxu0 %v715
      %v798 = vpop.f32.mrf.mxu0
      %v799 = vadd.f32 %v750, %v798
      %v800 = vpop.f32.mrf.mxu0
      %v801 = vadd.f32 %v752, %v800
      %802 = vmatmul.bf16.gmra.mxu0 %v718
      %v803 = vpop.f32.mrf.mxu0
      %v804 = vadd.f32 %v755, %v803
      %v805 = vpop.f32.mrf.mxu0
      %v806 = vadd.f32 %v757, %v805
      %807 = vmatmul.bf16.gmra.mxu0 %v721
      %v808 = vpop.f32.mrf.mxu0
      %v809 = vadd.f32 %v760, %v808
      %v810 = vpop.f32.mrf.mxu0
      %v811 = vadd.f32 %v762, %v810
      %812 = vmatmul.bf16.gmra.mxu0 %v724
      %v813 = vpop.f32.mrf.mxu0
      %v814 = vadd.f32 %v765, %v813
      %v815 = vpop.f32.mrf.mxu0
      %v816 = vadd.f32 %v767, %v815
      %817 = vmatmul.bf16.gmra.mxu0 %v727
      %v818 = vpop.f32.mrf.mxu0
      %v819 = vadd.f32 %v770, %v818
      %v820 = vpop.f32.mrf.mxu0
      %v821 = vadd.f32 %v772, %v820
      %822 = vmatmul.bf16.gmra.mxu0 %v730
      %v823 = vpop.f32.mrf.mxu0
      %v824 = vadd.f32 %v775, %v823
      %v825 = vpop.f32.mrf.mxu0
      %v826 = vadd.f32 %v777, %v825
      %827 = vmatmul.bf16.gmra.mxu0 %v733
      %v828 = vpop.f32.mrf.mxu0
      %v829 = vadd.f32 %v780, %v828
      %v830 = vpop.f32.mrf.mxu0
      %v831 = vadd.f32 %v782, %v830
      %832 = vdwg.mxu0
      %833 = vmatpush.bf16.msra.mxu0 %v677
      %834 = vmatpush.bf16.msra.mxu0 %v675
      %835 = vmatpush.bf16.msra.mxu0 %v673
      %836 = vmatpush.bf16.msra.mxu0 %v671
      %837 = vmatpush.bf16.msra.mxu0 %v669
      %838 = vmatpush.bf16.msra.mxu0 %v667
      %839 = vmatpush.bf16.msra.mxu0 %v665
      %840 = vmatpush.bf16.msra.mxu0 %v663
      %841 = vmatmul.bf16.gmra.mxu0 %v566
      %v842 = vpop.f32.mrf.mxu0
      %v843 = vadd.f32 0.0, %v842
      %v844 = vpop.f32.mrf.mxu0
      %v845 = vadd.f32 0.0, %v844
      %846 = vmatmul.bf16.gmra.mxu0 %v568
      %v847 = vpop.f32.mrf.mxu0
      %v848 = vadd.f32 0.0, %v847
      %v849 = vpop.f32.mrf.mxu0
      %v850 = vadd.f32 0.0, %v849
      %851 = vmatmul.bf16.gmra.mxu0 %v570
      %v852 = vpop.f32.mrf.mxu0
      %v853 = vadd.f32 0.0, %v852
      %v854 = vpop.f32.mrf.mxu0
      %v855 = vadd.f32 0.0, %v854
      %856 = vmatmul.bf16.gmra.mxu0 %v572
      %v857 = vpop.f32.mrf.mxu0
      %v858 = vadd.f32 0.0, %v857
      %v859 = vpop.f32.mrf.mxu0
      %v860 = vadd.f32 0.0, %v859
      %861 = vmatmul.bf16.gmra.mxu0 %v574
      %v862 = vpop.f32.mrf.mxu0
      %v863 = vadd.f32 0.0, %v862
      %v864 = vpop.f32.mrf.mxu0
      %v865 = vadd.f32 0.0, %v864
      %866 = vmatmul.bf16.gmra.mxu0 %v576
      %v867 = vpop.f32.mrf.mxu0
      %v868 = vadd.f32 0.0, %v867
      %v869 = vpop.f32.mrf.mxu0
      %v870 = vadd.f32 0.0, %v869
      %871 = vmatmul.bf16.gmra.mxu0 %v578
      %v872 = vpop.f32.mrf.mxu0
      %v873 = vadd.f32 0.0, %v872
      %v874 = vpop.f32.mrf.mxu0
      %v875 = vadd.f32 0.0, %v874
      %876 = vmatmul.bf16.gmra.mxu0 %v580
      %v877 = vpop.f32.mrf.mxu0
      %v878 = vadd.f32 0.0, %v877
      %v879 = vpop.f32.mrf.mxu0
      %v880 = vadd.f32 0.0, %v879
      %881 = vdwg.mxu0
      %882 = vmatpush.bf16.msra.mxu0 0
      %883 = vmatpush.bf16.msra.mxu0 0
      %884 = vmatpush.bf16.msra.mxu0 0
      %885 = vmatpush.bf16.msra.mxu0 0
      %886 = vmatpush.bf16.msra.mxu0 %v685
      %887 = vmatpush.bf16.msra.mxu0 %v683
      %888 = vmatpush.bf16.msra.mxu0 %v681
      %889 = vmatpush.bf16.msra.mxu0 %v679
      %890 = vmatmul.bf16.gmra.mxu0 %v712
      %v891 = vpop.f32.mrf.mxu0
      %v892 = vadd.f32 %v843, %v891
      %v893 = vpop.f32.mrf.mxu0
      %v894 = vadd.f32 %v845, %v893
      %895 = vmatmul.bf16.gmra.mxu0 %v715
      %v896 = vpop.f32.mrf.mxu0
      %v897 = vadd.f32 %v848, %v896
      %v898 = vpop.f32.mrf.mxu0
      %v899 = vadd.f32 %v850, %v898
      %900 = vmatmul.bf16.gmra.mxu0 %v718
      %v901 = vpop.f32.mrf.mxu0
      %v902 = vadd.f32 %v853, %v901
      %v903 = vpop.f32.mrf.mxu0
      %v904 = vadd.f32 %v855, %v903
      %905 = vmatmul.bf16.gmra.mxu0 %v721
      %v906 = vpop.f32.mrf.mxu0
      %v907 = vadd.f32 %v858, %v906
      %v908 = vpop.f32.mrf.mxu0
      %v909 = vadd.f32 %v860, %v908
      %910 = vmatmul.bf16.gmra.mxu0 %v724
      %v911 = vpop.f32.mrf.mxu0
      %v912 = vadd.f32 %v863, %v911
      %v913 = vpop.f32.mrf.mxu0
      %v914 = vadd.f32 %v865, %v913
      %915 = vmatmul.bf16.gmra.mxu0 %v727
      %v916 = vpop.f32.mrf.mxu0
      %v917 = vadd.f32 %v868, %v916
      %v918 = vpop.f32.mrf.mxu0
      %v919 = vadd.f32 %v870, %v918
      %920 = vmatmul.bf16.gmra.mxu0 %v730
      %v921 = vpop.f32.mrf.mxu0
      %v922 = vadd.f32 %v873, %v921
      %v923 = vpop.f32.mrf.mxu0
      %v924 = vadd.f32 %v875, %v923
      %925 = vmatmul.bf16.gmra.mxu0 %v733
      %v926 = vpop.f32.mrf.mxu0
      %v927 = vadd.f32 %v878, %v926
      %v928 = vpop.f32.mrf.mxu0
      %v929 = vadd.f32 %v880, %v928
      %930 = vdwg.mxu0
      %v931 = vadd.f32 %v474, %v794
      %v932 = vadd.f32 %v475, %v892
      %v933 = vadd.f32 %v474, %v796
      %v934 = vadd.f32 %v475, %v894
      %v935 = vadd.f32 %v474, %v799
      %v936 = vadd.f32 %v475, %v897
      %v937 = vadd.f32 %v474, %v801
      %v938 = vadd.f32 %v475, %v899
      %v939 = vadd.f32 %v474, %v804
      %v940 = vadd.f32 %v475, %v902
      %v941 = vadd.f32 %v474, %v806
      %v942 = vadd.f32 %v475, %v904
      %v943 = vadd.f32 %v474, %v809
      %v944 = vadd.f32 %v475, %v907
      %v945 = vadd.f32 %v474, %v811
      %v946 = vadd.f32 %v475, %v909
      %v947 = vadd.f32 %v474, %v814
      %v948 = vadd.f32 %v475, %v912
      %v949 = vadd.f32 %v474, %v816
      %v950 = vadd.f32 %v475, %v914
      %v951 = vadd.f32 %v474, %v819
      %v952 = vadd.f32 %v475, %v917
      %v953 = vadd.f32 %v474, %v821
      %v954 = vadd.f32 %v475, %v919
      %v955 = vadd.f32 %v474, %v824
      %v956 = vadd.f32 %v475, %v922
      %v957 = vadd.f32 %v474, %v826
      %v958 = vadd.f32 %v475, %v924
      %v959 = vadd.f32 %v474, %v829
      %v960 = vadd.f32 %v475, %v927
      %v961 = vadd.f32 %v474, %v831
      %v962 = vadd.f32 %v475, %v929
      %v963 = vld [vmem:[%s404] sm:$0xff]
      %v964 = vld [vmem:[%s404 + $0x8] sm:$0xff]
      %v965 = vld [vmem:[%s404 + $0x10] sm:$0xff]
      %v966 = vld [vmem:[%s404 + $0x18] sm:$0xff]
      %v967 = vld [vmem:[%s404 + $0x20] sm:$0xff]
      %v968 = vld [vmem:[%s404 + $0x28] sm:$0xff]
      %v969 = vld [vmem:[%s404 + $0x30] sm:$0xff]
      %v970 = vld [vmem:[%s404 + $0x38] sm:$0xff]
      %v971 = vld [vmem:[%s404 + $0x40] sm:$0xff]
      %v972 = vld [vmem:[%s404 + $0x48] sm:$0xff]
      %v973 = vld [vmem:[%s404 + $0x50] sm:$0xff]
      %v974 = vld [vmem:[%s404 + $0x58] sm:$0xff]
      %v975 = vld [vmem:[%s404 + $0x60] sm:$0xff]
      %v976 = vld [vmem:[%s404 + $0x68] sm:$0xff]
      %v977 = vld [vmem:[%s404 + $0x70] sm:$0xff]
      %v978 = vld [vmem:[%s404 + $0x78] sm:$0xff]
      %s979 = scalar_lea.vmem %s1, 192
      %v980 = vld [vmem:[%s979] sm:$0xff]
      %v981 = vld [vmem:[%s979 + $0x8] sm:$0xff]
      %v982 = vld [vmem:[%s979 + $0x10] sm:$0xff]
      %v983 = vld [vmem:[%s979 + $0x18] sm:$0xff]
      %v984 = vld [vmem:[%s979 + $0x20] sm:$0xff]
      %v985 = vld [vmem:[%s979 + $0x28] sm:$0xff]
      %v986 = vld [vmem:[%s979 + $0x30] sm:$0xff]
      %v987 = vld [vmem:[%s979 + $0x38] sm:$0xff]
      %v988 = vld [vmem:[%s979 + $0x40] sm:$0xff]
      %v989 = vld [vmem:[%s979 + $0x48] sm:$0xff]
      %v990 = vld [vmem:[%s979 + $0x50] sm:$0xff]
      %v991 = vld [vmem:[%s979 + $0x58] sm:$0xff]
      %v992 = vld [vmem:[%s979 + $0x60] sm:$0xff]
      %v993 = vld [vmem:[%s979 + $0x68] sm:$0xff]
      %v994 = vld [vmem:[%s979 + $0x70] sm:$0xff]
      %v995 = vld [vmem:[%s979 + $0x78] sm:$0xff]
      %v996 = vld [vmem:[%s979 + $0x80] sm:$0xff]
      %v997 = vld [vmem:[%s979 + $0x88] sm:$0xff]
      %v998 = vld [vmem:[%s979 + $0x90] sm:$0xff]
      %v999 = vld [vmem:[%s979 + $0x98] sm:$0xff]
      %v1000 = vld [vmem:[%s979 + $0xa0] sm:$0xff]
      %v1001 = vld [vmem:[%s979 + $0xa8] sm:$0xff]
      %v1002 = vld [vmem:[%s979 + $0xb0] sm:$0xff]
      %v1003 = vld [vmem:[%s979 + $0xb8] sm:$0xff]
      %v1020 = vunpack.c.l.b16 %v963
      %v1021 = vunpack.c.h.b16 %v963
      %v1022 = vunpack.c.l.b16 %v964
      %v1023 = vunpack.c.h.b16 %v964
      %v1024 = vunpack.c.l.b16 %v965
      %v1025 = vunpack.c.h.b16 %v965
      %v1026 = vunpack.c.l.b16 %v966
      %v1027 = vunpack.c.h.b16 %v966
      %v1028 = vunpack.c.l.b16 %v967
      %v1029 = vunpack.c.h.b16 %v967
      %v1030 = vunpack.c.l.b16 %v968
      %v1031 = vunpack.c.h.b16 %v968
      %v1032 = vunpack.c.l.b16 %v969
      %v1033 = vunpack.c.h.b16 %v969
      %v1034 = vunpack.c.l.b16 %v970
      %v1035 = vunpack.c.h.b16 %v970
      %v1036 = vunpack.c.l.b16 %v971
      %v1037 = vunpack.c.h.b16 %v971
      %v1038 = vunpack.c.l.b16 %v972
      %v1039 = vunpack.c.h.b16 %v972
      %v1040 = vunpack.c.l.b16 %v973
      %v1041 = vunpack.c.h.b16 %v973
      %v1042 = vunpack.c.l.b16 %v974
      %v1043 = vunpack.c.h.b16 %v974
      %v1044 = vunpack.c.l.b16 %v975
      %v1045 = vunpack.c.h.b16 %v975
      %v1046 = vunpack.c.l.b16 %v976
      %v1047 = vunpack.c.h.b16 %v976
      %v1048 = vunpack.c.l.b16 %v977
      %v1049 = vunpack.c.h.b16 %v977
      %v1050 = vunpack.c.l.b16 %v978
      %v1051 = vunpack.c.h.b16 %v978
      %v1052 = vpack.c.b16 %v1022, %v1020
      %v1053 = vpack.c.b16 %v1023, %v1021
      %v1054 = vpack.c.b16 %v1026, %v1024
      %v1055 = vpack.c.b16 %v1027, %v1025
      %v1056 = vpack.c.b16 %v1030, %v1028
      %v1057 = vpack.c.b16 %v1031, %v1029
      %v1058 = vpack.c.b16 %v1034, %v1032
      %v1059 = vpack.c.b16 %v1035, %v1033
      %v1060 = vpack.c.b16 %v1038, %v1036
      %v1061 = vpack.c.b16 %v1039, %v1037
      %v1062 = vpack.c.b16 %v1042, %v1040
      %v1063 = vpack.c.b16 %v1043, %v1041
      %v1064 = vpack.c.b16 %v1046, %v1044
      %v1065 = vpack.c.b16 %v1047, %v1045
      %v1066 = vpack.c.b16 %v1050, %v1048
      %v1067 = vpack.c.b16 %v1051, %v1049
      %v1100 = vunpack.c.l.b16 %v980
      %v1101 = vunpack.c.h.b16 %v980
      %v1102 = vunpack.c.l.b16 %v981
      %v1103 = vunpack.c.h.b16 %v981
      %v1104 = vunpack.c.l.b16 %v982
      %v1105 = vunpack.c.h.b16 %v982
      %v1106 = vunpack.c.l.b16 %v983
      %v1107 = vunpack.c.h.b16 %v983
      %v1108 = vunpack.c.l.b16 %v984
      %v1109 = vunpack.c.h.b16 %v984
      %v1110 = vunpack.c.l.b16 %v985
      %v1111 = vunpack.c.h.b16 %v985
      %v1112 = vunpack.c.l.b16 %v986
      %v1113 = vunpack.c.h.b16 %v986
      %v1114 = vunpack.c.l.b16 %v987
      %v1115 = vunpack.c.h.b16 %v987
      %v1116 = vunpack.c.l.b16 %v988
      %v1117 = vunpack.c.h.b16 %v988
      %v1118 = vunpack.c.l.b16 %v989
      %v1119 = vunpack.c.h.b16 %v989
      %v1120 = vunpack.c.l.b16 %v990
      %v1121 = vunpack.c.h.b16 %v990
      %v1122 = vunpack.c.l.b16 %v991
      %v1123 = vunpack.c.h.b16 %v991
      %v1124 = vunpack.c.l.b16 %v992
      %v1125 = vunpack.c.h.b16 %v992
      %v1126 = vunpack.c.l.b16 %v993
      %v1127 = vunpack.c.h.b16 %v993
      %v1128 = vunpack.c.l.b16 %v994
      %v1129 = vunpack.c.h.b16 %v994
      %v1130 = vunpack.c.l.b16 %v995
      %v1131 = vunpack.c.h.b16 %v995
      %v1132 = vunpack.c.l.b16 %v996
      %v1133 = vunpack.c.h.b16 %v996
      %v1134 = vunpack.c.l.b16 %v997
      %v1135 = vunpack.c.h.b16 %v997
      %v1136 = vunpack.c.l.b16 %v998
      %v1137 = vunpack.c.h.b16 %v998
      %v1138 = vunpack.c.l.b16 %v999
      %v1139 = vunpack.c.h.b16 %v999
      %v1140 = vunpack.c.l.b16 %v1000
      %v1141 = vunpack.c.h.b16 %v1000
      %v1142 = vunpack.c.l.b16 %v1001
      %v1143 = vunpack.c.h.b16 %v1001
      %v1144 = vunpack.c.l.b16 %v1002
      %v1145 = vunpack.c.h.b16 %v1002
      %v1146 = vunpack.c.l.b16 %v1003
      %v1147 = vunpack.c.h.b16 %v1003
      %v1148 = vpack.c.b16 %v1102, %v1100
      %v1149 = vpack.c.b16 %v1103, %v1101
      %v1150 = vpack.c.b16 %v1106, %v1104
      %v1151 = vpack.c.b16 %v1107, %v1105
      %v1152 = vpack.c.b16 %v1110, %v1108
      %v1153 = vpack.c.b16 %v1111, %v1109
      %v1154 = vpack.c.b16 %v1114, %v1112
      %v1155 = vpack.c.b16 %v1115, %v1113
      %v1156 = vpack.c.b16 %v1118, %v1116
      %v1157 = vpack.c.b16 %v1119, %v1117
      %v1158 = vpack.c.b16 %v1122, %v1120
      %v1159 = vpack.c.b16 %v1123, %v1121
      %v1160 = vpack.c.b16 %v1126, %v1124
      %v1161 = vpack.c.b16 %v1127, %v1125
      %v1162 = vpack.c.b16 %v1130, %v1128
      %v1163 = vpack.c.b16 %v1131, %v1129
      %v1164 = vpack.c.b16 %v1134, %v1132
      %v1165 = vpack.c.b16 %v1135, %v1133
      %v1166 = vpack.c.b16 %v1138, %v1136
      %v1167 = vpack.c.b16 %v1139, %v1137
      %v1168 = vpack.c.b16 %v1142, %v1140
      %v1169 = vpack.c.b16 %v1143, %v1141
      %v1170 = vpack.c.b16 %v1146, %v1144
      %v1171 = vpack.c.b16 %v1147, %v1145
      %v1197 = vsel %vm710, %v1053, 0
      %v1200 = vsel %vm710, %v1055, 0
      %v1203 = vsel %vm710, %v1057, 0
      %v1206 = vsel %vm710, %v1059, 0
      %v1209 = vsel %vm710, %v1061, 0
      %v1212 = vsel %vm710, %v1063, 0
      %v1215 = vsel %vm710, %v1065, 0
      %v1218 = vsel %vm710, %v1067, 0
      %1220 = vmatpush.bf16.msra.mxu0 %v1162
      %1221 = vmatpush.bf16.msra.mxu0 %v1160
      %1222 = vmatpush.bf16.msra.mxu0 %v1158
      %1223 = vmatpush.bf16.msra.mxu0 %v1156
      %1224 = vmatpush.bf16.msra.mxu0 %v1154
      %1225 = vmatpush.bf16.msra.mxu0 %v1152
      %1226 = vmatpush.bf16.msra.mxu0 %v1150
      %1227 = vmatpush.bf16.msra.mxu0 %v1148
      %1228 = vmatmul.bf16.gmra.mxu0 %v1052
      %v1229 = vpop.f32.mrf.mxu0
      %v1230 = vadd.f32 0.0, %v1229
      %v1231 = vpop.f32.mrf.mxu0
      %v1232 = vadd.f32 0.0, %v1231
      %1233 = vmatmul.bf16.gmra.mxu0 %v1054
      %v1234 = vpop.f32.mrf.mxu0
      %v1235 = vadd.f32 0.0, %v1234
      %v1236 = vpop.f32.mrf.mxu0
      %v1237 = vadd.f32 0.0, %v1236
      %1238 = vmatmul.bf16.gmra.mxu0 %v1056
      %v1239 = vpop.f32.mrf.mxu0
      %v1240 = vadd.f32 0.0, %v1239
      %v1241 = vpop.f32.mrf.mxu0
      %v1242 = vadd.f32 0.0, %v1241
      %1243 = vmatmul.bf16.gmra.mxu0 %v1058
      %v1244 = vpop.f32.mrf.mxu0
      %v1245 = vadd.f32 0.0, %v1244
      %v1246 = vpop.f32.mrf.mxu0
      %v1247 = vadd.f32 0.0, %v1246
      %1248 = vmatmul.bf16.gmra.mxu0 %v1060
      %v1249 = vpop.f32.mrf.mxu0
      %v1250 = vadd.f32 0.0, %v1249
      %v1251 = vpop.f32.mrf.mxu0
      %v1252 = vadd.f32 0.0, %v1251
      %1253 = vmatmul.bf16.gmra.mxu0 %v1062
      %v1254 = vpop.f32.mrf.mxu0
      %v1255 = vadd.f32 0.0, %v1254
      %v1256 = vpop.f32.mrf.mxu0
      %v1257 = vadd.f32 0.0, %v1256
      %1258 = vmatmul.bf16.gmra.mxu0 %v1064
      %v1259 = vpop.f32.mrf.mxu0
      %v1260 = vadd.f32 0.0, %v1259
      %v1261 = vpop.f32.mrf.mxu0
      %v1262 = vadd.f32 0.0, %v1261
      %1263 = vmatmul.bf16.gmra.mxu0 %v1066
      %v1264 = vpop.f32.mrf.mxu0
      %v1265 = vadd.f32 0.0, %v1264
      %v1266 = vpop.f32.mrf.mxu0
      %v1267 = vadd.f32 0.0, %v1266
      %1268 = vdwg.mxu0
      %1269 = vmatpush.bf16.msra.mxu0 0
      %1270 = vmatpush.bf16.msra.mxu0 0
      %1271 = vmatpush.bf16.msra.mxu0 0
      %1272 = vmatpush.bf16.msra.mxu0 0
      %1273 = vmatpush.bf16.msra.mxu0 %v1170
      %1274 = vmatpush.bf16.msra.mxu0 %v1168
      %1275 = vmatpush.bf16.msra.mxu0 %v1166
      %1276 = vmatpush.bf16.msra.mxu0 %v1164
      %1277 = vmatmul.bf16.gmra.mxu0 %v1197
      %v1278 = vpop.f32.mrf.mxu0
      %v1279 = vadd.f32 %v1230, %v1278
      %v1280 = vpop.f32.mrf.mxu0
      %v1281 = vadd.f32 %v1232, %v1280
      %1282 = vmatmul.bf16.gmra.mxu0 %v1200
      %v1283 = vpop.f32.mrf.mxu0
      %v1284 = vadd.f32 %v1235, %v1283
      %v1285 = vpop.f32.mrf.mxu0
      %v1286 = vadd.f32 %v1237, %v1285
      %1287 = vmatmul.bf16.gmra.mxu0 %v1203
      %v1288 = vpop.f32.mrf.mxu0
      %v1289 = vadd.f32 %v1240, %v1288
      %v1290 = vpop.f32.mrf.mxu0
      %v1291 = vadd.f32 %v1242, %v1290
      %1292 = vmatmul.bf16.gmra.mxu0 %v1206
      %v1293 = vpop.f32.mrf.mxu0
      %v1294 = vadd.f32 %v1245, %v1293
      %v1295 = vpop.f32.mrf.mxu0
      %v1296 = vadd.f32 %v1247, %v1295
      %1297 = vmatmul.bf16.gmra.mxu0 %v1209
      %v1298 = vpop.f32.mrf.mxu0
      %v1299 = vadd.f32 %v1250, %v1298
      %v1300 = vpop.f32.mrf.mxu0
      %v1301 = vadd.f32 %v1252, %v1300
      %1302 = vmatmul.bf16.gmra.mxu0 %v1212
      %v1303 = vpop.f32.mrf.mxu0
      %v1304 = vadd.f32 %v1255, %v1303
      %v1305 = vpop.f32.mrf.mxu0
      %v1306 = vadd.f32 %v1257, %v1305
      %1307 = vmatmul.bf16.gmra.mxu0 %v1215
      %v1308 = vpop.f32.mrf.mxu0
      %v1309 = vadd.f32 %v1260, %v1308
      %v1310 = vpop.f32.mrf.mxu0
      %v1311 = vadd.f32 %v1262, %v1310
      %1312 = vmatmul.bf16.gmra.mxu0 %v1218
      %v1313 = vpop.f32.mrf.mxu0
      %v1314 = vadd.f32 %v1265, %v1313
      %v1315 = vpop.f32.mrf.mxu0
      %v1316 = vadd.f32 %v1267, %v1315
      %1317 = vdwg.mxu0
      %1318 = vmatpush.bf16.msra.mxu0 %v1163
      %1319 = vmatpush.bf16.msra.mxu0 %v1161
      %1320 = vmatpush.bf16.msra.mxu0 %v1159
      %1321 = vmatpush.bf16.msra.mxu0 %v1157
      %1322 = vmatpush.bf16.msra.mxu0 %v1155
      %1323 = vmatpush.bf16.msra.mxu0 %v1153
      %1324 = vmatpush.bf16.msra.mxu0 %v1151
      %1325 = vmatpush.bf16.msra.mxu0 %v1149
      %1326 = vmatmul.bf16.gmra.mxu0 %v1052
      %v1327 = vpop.f32.mrf.mxu0
      %v1328 = vadd.f32 0.0, %v1327
      %v1329 = vpop.f32.mrf.mxu0
      %v1330 = vadd.f32 0.0, %v1329
      %1331 = vmatmul.bf16.gmra.mxu0 %v1054
      %v1332 = vpop.f32.mrf.mxu0
      %v1333 = vadd.f32 0.0, %v1332
      %v1334 = vpop.f32.mrf.mxu0
      %v1335 = vadd.f32 0.0, %v1334
      %1336 = vmatmul.bf16.gmra.mxu0 %v1056
      %v1337 = vpop.f32.mrf.mxu0
      %v1338 = vadd.f32 0.0, %v1337
      %v1339 = vpop.f32.mrf.mxu0
      %v1340 = vadd.f32 0.0, %v1339
      %1341 = vmatmul.bf16.gmra.mxu0 %v1058
      %v1342 = vpop.f32.mrf.mxu0
      %v1343 = vadd.f32 0.0, %v1342
      %v1344 = vpop.f32.mrf.mxu0
      %v1345 = vadd.f32 0.0, %v1344
      %1346 = vmatmul.bf16.gmra.mxu0 %v1060
      %v1347 = vpop.f32.mrf.mxu0
      %v1348 = vadd.f32 0.0, %v1347
      %v1349 = vpop.f32.mrf.mxu0
      %v1350 = vadd.f32 0.0, %v1349
      %1351 = vmatmul.bf16.gmra.mxu0 %v1062
      %v1352 = vpop.f32.mrf.mxu0
      %v1353 = vadd.f32 0.0, %v1352
      %v1354 = vpop.f32.mrf.mxu0
      %v1355 = vadd.f32 0.0, %v1354
      %1356 = vmatmul.bf16.gmra.mxu0 %v1064
      %v1357 = vpop.f32.mrf.mxu0
      %v1358 = vadd.f32 0.0, %v1357
      %v1359 = vpop.f32.mrf.mxu0
      %v1360 = vadd.f32 0.0, %v1359
      %1361 = vmatmul.bf16.gmra.mxu0 %v1066
      %v1362 = vpop.f32.mrf.mxu0
      %v1363 = vadd.f32 0.0, %v1362
      %v1364 = vpop.f32.mrf.mxu0
      %v1365 = vadd.f32 0.0, %v1364
      %1366 = vdwg.mxu0
      %1367 = vmatpush.bf16.msra.mxu0 0
      %1368 = vmatpush.bf16.msra.mxu0 0
      %1369 = vmatpush.bf16.msra.mxu0 0
      %1370 = vmatpush.bf16.msra.mxu0 0
      %1371 = vmatpush.bf16.msra.mxu0 %v1171
      %1372 = vmatpush.bf16.msra.mxu0 %v1169
      %1373 = vmatpush.bf16.msra.mxu0 %v1167
      %1374 = vmatpush.bf16.msra.mxu0 %v1165
      %1375 = vmatmul.bf16.gmra.mxu0 %v1197
      %v1376 = vpop.f32.mrf.mxu0
      %v1377 = vadd.f32 %v1328, %v1376
      %v1378 = vpop.f32.mrf.mxu0
      %v1379 = vadd.f32 %v1330, %v1378
      %1380 = vmatmul.bf16.gmra.mxu0 %v1200
      %v1381 = vpop.f32.mrf.mxu0
      %v1382 = vadd.f32 %v1333, %v1381
      %v1383 = vpop.f32.mrf.mxu0
      %v1384 = vadd.f32 %v1335, %v1383
      %1385 = vmatmul.bf16.gmra.mxu0 %v1203
      %v1386 = vpop.f32.mrf.mxu0
      %v1387 = vadd.f32 %v1338, %v1386
      %v1388 = vpop.f32.mrf.mxu0
      %v1389 = vadd.f32 %v1340, %v1388
      %1390 = vmatmul.bf16.gmra.mxu0 %v1206
      %v1391 = vpop.f32.mrf.mxu0
      %v1392 = vadd.f32 %v1343, %v1391
      %v1393 = vpop.f32.mrf.mxu0
      %v1394 = vadd.f32 %v1345, %v1393
      %1395 = vmatmul.bf16.gmra.mxu0 %v1209
      %v1396 = vpop.f32.mrf.mxu0
      %v1397 = vadd.f32 %v1348, %v1396
      %v1398 = vpop.f32.mrf.mxu0
      %v1399 = vadd.f32 %v1350, %v1398
      %1400 = vmatmul.bf16.gmra.mxu0 %v1212
      %v1401 = vpop.f32.mrf.mxu0
      %v1402 = vadd.f32 %v1353, %v1401
      %v1403 = vpop.f32.mrf.mxu0
      %v1404 = vadd.f32 %v1355, %v1403
      %1405 = vmatmul.bf16.gmra.mxu0 %v1215
      %v1406 = vpop.f32.mrf.mxu0
      %v1407 = vadd.f32 %v1358, %v1406
      %v1408 = vpop.f32.mrf.mxu0
      %v1409 = vadd.f32 %v1360, %v1408
      %1410 = vmatmul.bf16.gmra.mxu0 %v1218
      %v1411 = vpop.f32.mrf.mxu0
      %v1412 = vadd.f32 %v1363, %v1411
      %v1413 = vpop.f32.mrf.mxu0
      %v1414 = vadd.f32 %v1365, %v1413
      %1415 = vdwg.mxu0
      %v1416 = vadd.f32 %v931, %v1279
      %v1417 = vadd.f32 %v932, %v1377
      %v1418 = vadd.f32 %v933, %v1281
      %v1419 = vadd.f32 %v934, %v1379
      %v1420 = vadd.f32 %v935, %v1284
      %v1421 = vadd.f32 %v936, %v1382
      %v1422 = vadd.f32 %v937, %v1286
      %v1423 = vadd.f32 %v938, %v1384
      %v1424 = vadd.f32 %v939, %v1289
      %v1425 = vadd.f32 %v940, %v1387
      %v1426 = vadd.f32 %v941, %v1291
      %v1427 = vadd.f32 %v942, %v1389
      %v1428 = vadd.f32 %v943, %v1294
      %v1429 = vadd.f32 %v944, %v1392
      %v1430 = vadd.f32 %v945, %v1296
      %v1431 = vadd.f32 %v946, %v1394
      %v1432 = vadd.f32 %v947, %v1299
      %v1433 = vadd.f32 %v948, %v1397
      %v1434 = vadd.f32 %v949, %v1301
      %v1435 = vadd.f32 %v950, %v1399
      %v1436 = vadd.f32 %v951, %v1304
      %v1437 = vadd.f32 %v952, %v1402
      %v1438 = vadd.f32 %v953, %v1306
      %v1439 = vadd.f32 %v954, %v1404
      %v1440 = vadd.f32 %v955, %v1309
      %v1441 = vadd.f32 %v956, %v1407
      %v1442 = vadd.f32 %v957, %v1311
      %v1443 = vadd.f32 %v958, %v1409
      %v1444 = vadd.f32 %v959, %v1314
      %v1445 = vadd.f32 %v960, %v1412
      %v1446 = vadd.f32 %v961, %v1316
      %v1447 = vadd.f32 %v962, %v1414
      %v1448 = vld [vmem:[#allocation2 + $0x8] sm:$0xff]
      %v1449 = vld [vmem:[#allocation2 + $0x10] sm:$0xff]
      %v1450 = vld [vmem:[#allocation2 + $0x18] sm:$0xff]
      %v1451 = vld [vmem:[#allocation2 + $0x20] sm:$0xff]
      %v1452 = vld [vmem:[#allocation2 + $0x28] sm:$0xff]
      %v1453 = vld [vmem:[#allocation2 + $0x30] sm:$0xff]
      %v1454 = vld [vmem:[#allocation2 + $0x38] sm:$0xff]
      %v1455 = vld [vmem:[#allocation2 + $0x40] sm:$0xff]
      %v1456 = vld [vmem:[#allocation2 + $0x48] sm:$0xff]
      %v1457 = vld [vmem:[#allocation2 + $0x50] sm:$0xff]
      %v1458 = vld [vmem:[#allocation2 + $0x58] sm:$0xff]
      %v1459 = vld [vmem:[#allocation2 + $0x60] sm:$0xff]
      %v1460 = vld [vmem:[#allocation2 + $0x68] sm:$0xff]
      %v1461 = vld [vmem:[#allocation2 + $0x70] sm:$0xff]
      %v1462 = vld [vmem:[#allocation2 + $0x78] sm:$0xff]
      %v1463 = vld [vmem:[#allocation2 + $0x80] sm:$0xff]
      %s1464 = scalar_lea.vmem %s1, 384
      %v1465 = vld [vmem:[%s1464] sm:$0xff]
      %v1466 = vld [vmem:[%s1464 + $0x8] sm:$0xff]
      %v1467 = vld [vmem:[%s1464 + $0x10] sm:$0xff]
      %v1468 = vld [vmem:[%s1464 + $0x18] sm:$0xff]
      %v1469 = vld [vmem:[%s1464 + $0x20] sm:$0xff]
      %v1470 = vld [vmem:[%s1464 + $0x28] sm:$0xff]
      %v1471 = vld [vmem:[%s1464 + $0x30] sm:$0xff]
      %v1472 = vld [vmem:[%s1464 + $0x38] sm:$0xff]
      %v1473 = vld [vmem:[%s1464 + $0x40] sm:$0xff]
      %v1474 = vld [vmem:[%s1464 + $0x48] sm:$0xff]
      %v1475 = vld [vmem:[%s1464 + $0x50] sm:$0xff]
      %v1476 = vld [vmem:[%s1464 + $0x58] sm:$0xff]
      %v1477 = vld [vmem:[%s1464 + $0x60] sm:$0xff]
      %v1478 = vld [vmem:[%s1464 + $0x68] sm:$0xff]
      %v1479 = vld [vmem:[%s1464 + $0x70] sm:$0xff]
      %v1480 = vld [vmem:[%s1464 + $0x78] sm:$0xff]
      %v1481 = vld [vmem:[%s1464 + $0x80] sm:$0xff]
      %v1482 = vld [vmem:[%s1464 + $0x88] sm:$0xff]
      %v1483 = vld [vmem:[%s1464 + $0x90] sm:$0xff]
      %v1484 = vld [vmem:[%s1464 + $0x98] sm:$0xff]
      %v1485 = vld [vmem:[%s1464 + $0xa0] sm:$0xff]
      %v1486 = vld [vmem:[%s1464 + $0xa8] sm:$0xff]
      %v1487 = vld [vmem:[%s1464 + $0xb0] sm:$0xff]
      %v1488 = vld [vmem:[%s1464 + $0xb8] sm:$0xff]
      %v1505 = vunpack.c.l.b16 %v1448
      %v1506 = vunpack.c.h.b16 %v1448
      %v1507 = vunpack.c.l.b16 %v1449
      %v1508 = vunpack.c.h.b16 %v1449
      %v1509 = vunpack.c.l.b16 %v1450
      %v1510 = vunpack.c.h.b16 %v1450
      %v1511 = vunpack.c.l.b16 %v1451
      %v1512 = vunpack.c.h.b16 %v1451
      %v1513 = vunpack.c.l.b16 %v1452
      %v1514 = vunpack.c.h.b16 %v1452
      %v1515 = vunpack.c.l.b16 %v1453
      %v1516 = vunpack.c.h.b16 %v1453
      %v1517 = vunpack.c.l.b16 %v1454
      %v1518 = vunpack.c.h.b16 %v1454
      %v1519 = vunpack.c.l.b16 %v1455
      %v1520 = vunpack.c.h.b16 %v1455
      %v1521 = vunpack.c.l.b16 %v1456
      %v1522 = vunpack.c.h.b16 %v1456
      %v1523 = vunpack.c.l.b16 %v1457
      %v1524 = vunpack.c.h.b16 %v1457
      %v1525 = vunpack.c.l.b16 %v1458
      %v1526 = vunpack.c.h.b16 %v1458
      %v1527 = vunpack.c.l.b16 %v1459
      %v1528 = vunpack.c.h.b16 %v1459
      %v1529 = vunpack.c.l.b16 %v1460
      %v1530 = vunpack.c.h.b16 %v1460
      %v1531 = vunpack.c.l.b16 %v1461
      %v1532 = vunpack.c.h.b16 %v1461
      %v1533 = vunpack.c.l.b16 %v1462
      %v1534 = vunpack.c.h.b16 %v1462
      %v1535 = vunpack.c.l.b16 %v1463
      %v1536 = vunpack.c.h.b16 %v1463
      %v1537 = vpack.c.b16 %v1507, %v1505
      %v1538 = vpack.c.b16 %v1508, %v1506
      %v1539 = vpack.c.b16 %v1511, %v1509
      %v1540 = vpack.c.b16 %v1512, %v1510
      %v1541 = vpack.c.b16 %v1515, %v1513
      %v1542 = vpack.c.b16 %v1516, %v1514
      %v1543 = vpack.c.b16 %v1519, %v1517
      %v1544 = vpack.c.b16 %v1520, %v1518
      %v1545 = vpack.c.b16 %v1523, %v1521
      %v1546 = vpack.c.b16 %v1524, %v1522
      %v1547 = vpack.c.b16 %v1527, %v1525
      %v1548 = vpack.c.b16 %v1528, %v1526
      %v1549 = vpack.c.b16 %v1531, %v1529
      %v1550 = vpack.c.b16 %v1532, %v1530
      %v1551 = vpack.c.b16 %v1535, %v1533
      %v1552 = vpack.c.b16 %v1536, %v1534
      %v1585 = vunpack.c.l.b16 %v1465
      %v1586 = vunpack.c.h.b16 %v1465
      %v1587 = vunpack.c.l.b16 %v1466
      %v1588 = vunpack.c.h.b16 %v1466
      %v1589 = vunpack.c.l.b16 %v1467
      %v1590 = vunpack.c.h.b16 %v1467
      %v1591 = vunpack.c.l.b16 %v1468
      %v1592 = vunpack.c.h.b16 %v1468
      %v1593 = vunpack.c.l.b16 %v1469
      %v1594 = vunpack.c.h.b16 %v1469
      %v1595 = vunpack.c.l.b16 %v1470
      %v1596 = vunpack.c.h.b16 %v1470
      %v1597 = vunpack.c.l.b16 %v1471
      %v1598 = vunpack.c.h.b16 %v1471
      %v1599 = vunpack.c.l.b16 %v1472
      %v1600 = vunpack.c.h.b16 %v1472
      %v1601 = vunpack.c.l.b16 %v1473
      %v1602 = vunpack.c.h.b16 %v1473
      %v1603 = vunpack.c.l.b16 %v1474
      %v1604 = vunpack.c.h.b16 %v1474
      %v1605 = vunpack.c.l.b16 %v1475
      %v1606 = vunpack.c.h.b16 %v1475
      %v1607 = vunpack.c.l.b16 %v1476
      %v1608 = vunpack.c.h.b16 %v1476
      %v1609 = vunpack.c.l.b16 %v1477
      %v1610 = vunpack.c.h.b16 %v1477
      %v1611 = vunpack.c.l.b16 %v1478
      %v1612 = vunpack.c.h.b16 %v1478
      %v1613 = vunpack.c.l.b16 %v1479
      %v1614 = vunpack.c.h.b16 %v1479
      %v1615 = vunpack.c.l.b16 %v1480
      %v1616 = vunpack.c.h.b16 %v1480
      %v1617 = vunpack.c.l.b16 %v1481
      %v1618 = vunpack.c.h.b16 %v1481
      %v1619 = vunpack.c.l.b16 %v1482
      %v1620 = vunpack.c.h.b16 %v1482
      %v1621 = vunpack.c.l.b16 %v1483
      %v1622 = vunpack.c.h.b16 %v1483
      %v1623 = vunpack.c.l.b16 %v1484
      %v1624 = vunpack.c.h.b16 %v1484
      %v1625 = vunpack.c.l.b16 %v1485
      %v1626 = vunpack.c.h.b16 %v1485
      %v1627 = vunpack.c.l.b16 %v1486
      %v1628 = vunpack.c.h.b16 %v1486
      %v1629 = vunpack.c.l.b16 %v1487
      %v1630 = vunpack.c.h.b16 %v1487
      %v1631 = vunpack.c.l.b16 %v1488
      %v1632 = vunpack.c.h.b16 %v1488
      %v1633 = vpack.c.b16 %v1587, %v1585
      %v1634 = vpack.c.b16 %v1588, %v1586
      %v1635 = vpack.c.b16 %v1591, %v1589
      %v1636 = vpack.c.b16 %v1592, %v1590
      %v1637 = vpack.c.b16 %v1595, %v1593
      %v1638 = vpack.c.b16 %v1596, %v1594
      %v1639 = vpack.c.b16 %v1599, %v1597
      %v1640 = vpack.c.b16 %v1600, %v1598
      %v1641 = vpack.c.b16 %v1603, %v1601
      %v1642 = vpack.c.b16 %v1604, %v1602
      %v1643 = vpack.c.b16 %v1607, %v1605
      %v1644 = vpack.c.b16 %v1608, %v1606
      %v1645 = vpack.c.b16 %v1611, %v1609
      %v1646 = vpack.c.b16 %v1612, %v1610
      %v1647 = vpack.c.b16 %v1615, %v1613
      %v1648 = vpack.c.b16 %v1616, %v1614
      %v1649 = vpack.c.b16 %v1619, %v1617
      %v1650 = vpack.c.b16 %v1620, %v1618
      %v1651 = vpack.c.b16 %v1623, %v1621
      %v1652 = vpack.c.b16 %v1624, %v1622
      %v1653 = vpack.c.b16 %v1627, %v1625
      %v1654 = vpack.c.b16 %v1628, %v1626
      %v1655 = vpack.c.b16 %v1631, %v1629
      %v1656 = vpack.c.b16 %v1632, %v1630
      %v1682 = vsel %vm710, %v1538, 0
      %v1685 = vsel %vm710, %v1540, 0
      %v1688 = vsel %vm710, %v1542, 0
      %v1691 = vsel %vm710, %v1544, 0
      %v1694 = vsel %vm710, %v1546, 0
      %v1697 = vsel %vm710, %v1548, 0
      %v1700 = vsel %vm710, %v1550, 0
      %v1703 = vsel %vm710, %v1552, 0
      %1705 = vmatpush.bf16.msra.mxu0 %v1647
      %1706 = vmatpush.bf16.msra.mxu0 %v1645
      %1707 = vmatpush.bf16.msra.mxu0 %v1643
      %1708 = vmatpush.bf16.msra.mxu0 %v1641
      %1709 = vmatpush.bf16.msra.mxu0 %v1639
      %1710 = vmatpush.bf16.msra.mxu0 %v1637
      %1711 = vmatpush.bf16.msra.mxu0 %v1635
      %1712 = vmatpush.bf16.msra.mxu0 %v1633
      %1713 = vmatmul.bf16.gmra.mxu0 %v1537
      %v1714 = vpop.f32.mrf.mxu0
      %v1715 = vadd.f32 0.0, %v1714
      %v1716 = vpop.f32.mrf.mxu0
      %v1717 = vadd.f32 0.0, %v1716
      %1718 = vmatmul.bf16.gmra.mxu0 %v1539
      %v1719 = vpop.f32.mrf.mxu0
      %v1720 = vadd.f32 0.0, %v1719
      %v1721 = vpop.f32.mrf.mxu0
      %v1722 = vadd.f32 0.0, %v1721
      %1723 = vmatmul.bf16.gmra.mxu0 %v1541
      %v1724 = vpop.f32.mrf.mxu0
      %v1725 = vadd.f32 0.0, %v1724
      %v1726 = vpop.f32.mrf.mxu0
      %v1727 = vadd.f32 0.0, %v1726
      %1728 = vmatmul.bf16.gmra.mxu0 %v1543
      %v1729 = vpop.f32.mrf.mxu0
      %v1730 = vadd.f32 0.0, %v1729
      %v1731 = vpop.f32.mrf.mxu0
      %v1732 = vadd.f32 0.0, %v1731
      %1733 = vmatmul.bf16.gmra.mxu0 %v1545
      %v1734 = vpop.f32.mrf.mxu0
      %v1735 = vadd.f32 0.0, %v1734
      %v1736 = vpop.f32.mrf.mxu0
      %v1737 = vadd.f32 0.0, %v1736
      %1738 = vmatmul.bf16.gmra.mxu0 %v1547
      %v1739 = vpop.f32.mrf.mxu0
      %v1740 = vadd.f32 0.0, %v1739
      %v1741 = vpop.f32.mrf.mxu0
      %v1742 = vadd.f32 0.0, %v1741
      %1743 = vmatmul.bf16.gmra.mxu0 %v1549
      %v1744 = vpop.f32.mrf.mxu0
      %v1745 = vadd.f32 0.0, %v1744
      %v1746 = vpop.f32.mrf.mxu0
      %v1747 = vadd.f32 0.0, %v1746
      %1748 = vmatmul.bf16.gmra.mxu0 %v1551
      %v1749 = vpop.f32.mrf.mxu0
      %v1750 = vadd.f32 0.0, %v1749
      %v1751 = vpop.f32.mrf.mxu0
      %v1752 = vadd.f32 0.0, %v1751
      %1753 = vdwg.mxu0
      %1754 = vmatpush.bf16.msra.mxu0 0
      %1755 = vmatpush.bf16.msra.mxu0 0
      %1756 = vmatpush.bf16.msra.mxu0 0
      %1757 = vmatpush.bf16.msra.mxu0 0
      %1758 = vmatpush.bf16.msra.mxu0 %v1655
      %1759 = vmatpush.bf16.msra.mxu0 %v1653
      %1760 = vmatpush.bf16.msra.mxu0 %v1651
      %1761 = vmatpush.bf16.msra.mxu0 %v1649
      %1762 = vmatmul.bf16.gmra.mxu0 %v1682
      %v1763 = vpop.f32.mrf.mxu0
      %v1764 = vadd.f32 %v1715, %v1763
      %v1765 = vpop.f32.mrf.mxu0
      %v1766 = vadd.f32 %v1717, %v1765
      %1767 = vmatmul.bf16.gmra.mxu0 %v1685
      %v1768 = vpop.f32.mrf.mxu0
      %v1769 = vadd.f32 %v1720, %v1768
      %v1770 = vpop.f32.mrf.mxu0
      %v1771 = vadd.f32 %v1722, %v1770
      %1772 = vmatmul.bf16.gmra.mxu0 %v1688
      %v1773 = vpop.f32.mrf.mxu0
      %v1774 = vadd.f32 %v1725, %v1773
      %v1775 = vpop.f32.mrf.mxu0
      %v1776 = vadd.f32 %v1727, %v1775
      %1777 = vmatmul.bf16.gmra.mxu0 %v1691
      %v1778 = vpop.f32.mrf.mxu0
      %v1779 = vadd.f32 %v1730, %v1778
      %v1780 = vpop.f32.mrf.mxu0
      %v1781 = vadd.f32 %v1732, %v1780
      %1782 = vmatmul.bf16.gmra.mxu0 %v1694
      %v1783 = vpop.f32.mrf.mxu0
      %v1784 = vadd.f32 %v1735, %v1783
      %v1785 = vpop.f32.mrf.mxu0
      %v1786 = vadd.f32 %v1737, %v1785
      %1787 = vmatmul.bf16.gmra.mxu0 %v1697
      %v1788 = vpop.f32.mrf.mxu0
      %v1789 = vadd.f32 %v1740, %v1788
      %v1790 = vpop.f32.mrf.mxu0
      %v1791 = vadd.f32 %v1742, %v1790
      %1792 = vmatmul.bf16.gmra.mxu0 %v1700
      %v1793 = vpop.f32.mrf.mxu0
      %v1794 = vadd.f32 %v1745, %v1793
      %v1795 = vpop.f32.mrf.mxu0
      %v1796 = vadd.f32 %v1747, %v1795
      %1797 = vmatmul.bf16.gmra.mxu0 %v1703
      %v1798 = vpop.f32.mrf.mxu0
      %v1799 = vadd.f32 %v1750, %v1798
      %v1800 = vpop.f32.mrf.mxu0
      %v1801 = vadd.f32 %v1752, %v1800
      %1802 = vdwg.mxu0
      %1803 = vmatpush.bf16.msra.mxu0 %v1648
      %1804 = vmatpush.bf16.msra.mxu0 %v1646
      %1805 = vmatpush.bf16.msra.mxu0 %v1644
      %1806 = vmatpush.bf16.msra.mxu0 %v1642
      %1807 = vmatpush.bf16.msra.mxu0 %v1640
      %1808 = vmatpush.bf16.msra.mxu0 %v1638
      %1809 = vmatpush.bf16.msra.mxu0 %v1636
      %1810 = vmatpush.bf16.msra.mxu0 %v1634
      %1811 = vmatmul.bf16.gmra.mxu0 %v1537
      %v1812 = vpop.f32.mrf.mxu0
      %v1813 = vadd.f32 0.0, %v1812
      %v1814 = vpop.f32.mrf.mxu0
      %v1815 = vadd.f32 0.0, %v1814
      %1816 = vmatmul.bf16.gmra.mxu0 %v1539
      %v1817 = vpop.f32.mrf.mxu0
      %v1818 = vadd.f32 0.0, %v1817
      %v1819 = vpop.f32.mrf.mxu0
      %v1820 = vadd.f32 0.0, %v1819
      %1821 = vmatmul.bf16.gmra.mxu0 %v1541
      %v1822 = vpop.f32.mrf.mxu0
      %v1823 = vadd.f32 0.0, %v1822
      %v1824 = vpop.f32.mrf.mxu0
      %v1825 = vadd.f32 0.0, %v1824
      %1826 = vmatmul.bf16.gmra.mxu0 %v1543
      %v1827 = vpop.f32.mrf.mxu0
      %v1828 = vadd.f32 0.0, %v1827
      %v1829 = vpop.f32.mrf.mxu0
      %v1830 = vadd.f32 0.0, %v1829
      %1831 = vmatmul.bf16.gmra.mxu0 %v1545
      %v1832 = vpop.f32.mrf.mxu0
      %v1833 = vadd.f32 0.0, %v1832
      %v1834 = vpop.f32.mrf.mxu0
      %v1835 = vadd.f32 0.0, %v1834
      %1836 = vmatmul.bf16.gmra.mxu0 %v1547
      %v1837 = vpop.f32.mrf.mxu0
      %v1838 = vadd.f32 0.0, %v1837
      %v1839 = vpop.f32.mrf.mxu0
      %v1840 = vadd.f32 0.0, %v1839
      %1841 = vmatmul.bf16.gmra.mxu0 %v1549
      %v1842 = vpop.f32.mrf.mxu0
      %v1843 = vadd.f32 0.0, %v1842
      %v1844 = vpop.f32.mrf.mxu0
      %v1845 = vadd.f32 0.0, %v1844
      %1846 = vmatmul.bf16.gmra.mxu0 %v1551
      %v1847 = vpop.f32.mrf.mxu0
      %v1848 = vadd.f32 0.0, %v1847
      %v1849 = vpop.f32.mrf.mxu0
      %v1850 = vadd.f32 0.0, %v1849
      %1851 = vdwg.mxu0
      %1852 = vmatpush.bf16.msra.mxu0 0
      %1853 = vmatpush.bf16.msra.mxu0 0
      %1854 = vmatpush.bf16.msra.mxu0 0
      %1855 = vmatpush.bf16.msra.mxu0 0
      %1856 = vmatpush.bf16.msra.mxu0 %v1656
      %1857 = vmatpush.bf16.msra.mxu0 %v1654
      %1858 = vmatpush.bf16.msra.mxu0 %v1652
      %1859 = vmatpush.bf16.msra.mxu0 %v1650
      %1860 = vmatmul.bf16.gmra.mxu0 %v1682
      %v1861 = vpop.f32.mrf.mxu0
      %v1862 = vadd.f32 %v1813, %v1861
      %v1863 = vpop.f32.mrf.mxu0
      %v1864 = vadd.f32 %v1815, %v1863
      %1865 = vmatmul.bf16.gmra.mxu0 %v1685
      %v1866 = vpop.f32.mrf.mxu0
      %v1867 = vadd.f32 %v1818, %v1866
      %v1868 = vpop.f32.mrf.mxu0
      %v1869 = vadd.f32 %v1820, %v1868
      %1870 = vmatmul.bf16.gmra.mxu0 %v1688
      %v1871 = vpop.f32.mrf.mxu0
      %v1872 = vadd.f32 %v1823, %v1871
      %v1873 = vpop.f32.mrf.mxu0
      %v1874 = vadd.f32 %v1825, %v1873
      %1875 = vmatmul.bf16.gmra.mxu0 %v1691
      %v1876 = vpop.f32.mrf.mxu0
      %v1877 = vadd.f32 %v1828, %v1876
      %v1878 = vpop.f32.mrf.mxu0
      %v1879 = vadd.f32 %v1830, %v1878
      %1880 = vmatmul.bf16.gmra.mxu0 %v1694
      %v1881 = vpop.f32.mrf.mxu0
      %v1882 = vadd.f32 %v1833, %v1881
      %v1883 = vpop.f32.mrf.mxu0
      %v1884 = vadd.f32 %v1835, %v1883
      %1885 = vmatmul.bf16.gmra.mxu0 %v1697
      %v1886 = vpop.f32.mrf.mxu0
      %v1887 = vadd.f32 %v1838, %v1886
      %v1888 = vpop.f32.mrf.mxu0
      %v1889 = vadd.f32 %v1840, %v1888
      %1890 = vmatmul.bf16.gmra.mxu0 %v1700
      %v1891 = vpop.f32.mrf.mxu0
      %v1892 = vadd.f32 %v1843, %v1891
      %v1893 = vpop.f32.mrf.mxu0
      %v1894 = vadd.f32 %v1845, %v1893
      %1895 = vmatmul.bf16.gmra.mxu0 %v1703
      %v1896 = vpop.f32.mrf.mxu0
      %v1897 = vadd.f32 %v1848, %v1896
      %v1898 = vpop.f32.mrf.mxu0
      %v1899 = vadd.f32 %v1850, %v1898
      %1900 = vdwg.mxu0
      %v1901 = vadd.f32 %v1416, %v1764
      %v1902 = vadd.f32 %v1417, %v1862
      %v1903 = vadd.f32 %v1418, %v1766
      %v1904 = vadd.f32 %v1419, %v1864
      %v1905 = vadd.f32 %v1420, %v1769
      %v1906 = vadd.f32 %v1421, %v1867
      %v1907 = vadd.f32 %v1422, %v1771
      %v1908 = vadd.f32 %v1423, %v1869
      %v1909 = vadd.f32 %v1424, %v1774
      %v1910 = vadd.f32 %v1425, %v1872
      %v1911 = vadd.f32 %v1426, %v1776
      %v1912 = vadd.f32 %v1427, %v1874
      %v1913 = vadd.f32 %v1428, %v1779
      %v1914 = vadd.f32 %v1429, %v1877
      %v1915 = vadd.f32 %v1430, %v1781
      %v1916 = vadd.f32 %v1431, %v1879
      %v1917 = vadd.f32 %v1432, %v1784
      %v1918 = vadd.f32 %v1433, %v1882
      %v1919 = vadd.f32 %v1434, %v1786
      %v1920 = vadd.f32 %v1435, %v1884
      %v1921 = vadd.f32 %v1436, %v1789
      %v1922 = vadd.f32 %v1437, %v1887
      %v1923 = vadd.f32 %v1438, %v1791
      %v1924 = vadd.f32 %v1439, %v1889
      %v1925 = vadd.f32 %v1440, %v1794
      %v1926 = vadd.f32 %v1441, %v1892
      %v1927 = vadd.f32 %v1442, %v1796
      %v1928 = vadd.f32 %v1443, %v1894
      %v1929 = vadd.f32 %v1444, %v1799
      %v1930 = vadd.f32 %v1445, %v1897
      %v1931 = vadd.f32 %v1446, %v1801
      %v1932 = vadd.f32 %v1447, %v1899
      %v1933 = vld [vmem:[%s404 + $0x8] sm:$0xff]
      %v1934 = vld [vmem:[%s404 + $0x10] sm:$0xff]
      %v1935 = vld [vmem:[%s404 + $0x18] sm:$0xff]
      %v1936 = vld [vmem:[%s404 + $0x20] sm:$0xff]
      %v1937 = vld [vmem:[%s404 + $0x28] sm:$0xff]
      %v1938 = vld [vmem:[%s404 + $0x30] sm:$0xff]
      %v1939 = vld [vmem:[%s404 + $0x38] sm:$0xff]
      %v1940 = vld [vmem:[%s404 + $0x40] sm:$0xff]
      %v1941 = vld [vmem:[%s404 + $0x48] sm:$0xff]
      %v1942 = vld [vmem:[%s404 + $0x50] sm:$0xff]
      %v1943 = vld [vmem:[%s404 + $0x58] sm:$0xff]
      %v1944 = vld [vmem:[%s404 + $0x60] sm:$0xff]
      %v1945 = vld [vmem:[%s404 + $0x68] sm:$0xff]
      %v1946 = vld [vmem:[%s404 + $0x70] sm:$0xff]
      %v1947 = vld [vmem:[%s404 + $0x78] sm:$0xff]
      %v1948 = vld [vmem:[%s404 + $0x80] sm:$0xff]
      %s1949 = scalar_lea.vmem %s1, 576
      %v1950 = vld [vmem:[%s1949] sm:$0xff]
      %v1951 = vld [vmem:[%s1949 + $0x8] sm:$0xff]
      %v1952 = vld [vmem:[%s1949 + $0x10] sm:$0xff]
      %v1953 = vld [vmem:[%s1949 + $0x18] sm:$0xff]
      %v1954 = vld [vmem:[%s1949 + $0x20] sm:$0xff]
      %v1955 = vld [vmem:[%s1949 + $0x28] sm:$0xff]
      %v1956 = vld [vmem:[%s1949 + $0x30] sm:$0xff]
      %v1957 = vld [vmem:[%s1949 + $0x38] sm:$0xff]
      %v1958 = vld [vmem:[%s1949 + $0x40] sm:$0xff]
      %v1959 = vld [vmem:[%s1949 + $0x48] sm:$0xff]
      %v1960 = vld [vmem:[%s1949 + $0x50] sm:$0xff]
      %v1961 = vld [vmem:[%s1949 + $0x58] sm:$0xff]
      %v1962 = vld [vmem:[%s1949 + $0x60] sm:$0xff]
      %v1963 = vld [vmem:[%s1949 + $0x68] sm:$0xff]
      %v1964 = vld [vmem:[%s1949 + $0x70] sm:$0xff]
      %v1965 = vld [vmem:[%s1949 + $0x78] sm:$0xff]
      %v1966 = vld [vmem:[%s1949 + $0x80] sm:$0xff]
      %v1967 = vld [vmem:[%s1949 + $0x88] sm:$0xff]
      %v1968 = vld [vmem:[%s1949 + $0x90] sm:$0xff]
      %v1969 = vld [vmem:[%s1949 + $0x98] sm:$0xff]
      %v1970 = vld [vmem:[%s1949 + $0xa0] sm:$0xff]
      %v1971 = vld [vmem:[%s1949 + $0xa8] sm:$0xff]
      %v1972 = vld [vmem:[%s1949 + $0xb0] sm:$0xff]
      %v1973 = vld [vmem:[%s1949 + $0xb8] sm:$0xff]
      %v1990 = vunpack.c.l.b16 %v1933
      %v1991 = vunpack.c.h.b16 %v1933
      %v1992 = vunpack.c.l.b16 %v1934
      %v1993 = vunpack.c.h.b16 %v1934
      %v1994 = vunpack.c.l.b16 %v1935
      %v1995 = vunpack.c.h.b16 %v1935
      %v1996 = vunpack.c.l.b16 %v1936
      %v1997 = vunpack.c.h.b16 %v1936
      %v1998 = vunpack.c.l.b16 %v1937
      %v1999 = vunpack.c.h.b16 %v1937
      %v2000 = vunpack.c.l.b16 %v1938
      %v2001 = vunpack.c.h.b16 %v1938
      %v2002 = vunpack.c.l.b16 %v1939
      %v2003 = vunpack.c.h.b16 %v1939
      %v2004 = vunpack.c.l.b16 %v1940
      %v2005 = vunpack.c.h.b16 %v1940
      %v2006 = vunpack.c.l.b16 %v1941
      %v2007 = vunpack.c.h.b16 %v1941
      %v2008 = vunpack.c.l.b16 %v1942
      %v2009 = vunpack.c.h.b16 %v1942
      %v2010 = vunpack.c.l.b16 %v1943
      %v2011 = vunpack.c.h.b16 %v1943
      %v2012 = vunpack.c.l.b16 %v1944
      %v2013 = vunpack.c.h.b16 %v1944
      %v2014 = vunpack.c.l.b16 %v1945
      %v2015 = vunpack.c.h.b16 %v1945
      %v2016 = vunpack.c.l.b16 %v1946
      %v2017 = vunpack.c.h.b16 %v1946
      %v2018 = vunpack.c.l.b16 %v1947
      %v2019 = vunpack.c.h.b16 %v1947
      %v2020 = vunpack.c.l.b16 %v1948
      %v2021 = vunpack.c.h.b16 %v1948
      %v2022 = vpack.c.b16 %v1992, %v1990
      %v2023 = vpack.c.b16 %v1993, %v1991
      %v2024 = vpack.c.b16 %v1996, %v1994
      %v2025 = vpack.c.b16 %v1997, %v1995
      %v2026 = vpack.c.b16 %v2000, %v1998
      %v2027 = vpack.c.b16 %v2001, %v1999
      %v2028 = vpack.c.b16 %v2004, %v2002
      %v2029 = vpack.c.b16 %v2005, %v2003
      %v2030 = vpack.c.b16 %v2008, %v2006
      %v2031 = vpack.c.b16 %v2009, %v2007
      %v2032 = vpack.c.b16 %v2012, %v2010
      %v2033 = vpack.c.b16 %v2013, %v2011
      %v2034 = vpack.c.b16 %v2016, %v2014
      %v2035 = vpack.c.b16 %v2017, %v2015
      %v2036 = vpack.c.b16 %v2020, %v2018
      %v2037 = vpack.c.b16 %v2021, %v2019
      %v2070 = vunpack.c.l.b16 %v1950
      %v2071 = vunpack.c.h.b16 %v1950
      %v2072 = vunpack.c.l.b16 %v1951
      %v2073 = vunpack.c.h.b16 %v1951
      %v2074 = vunpack.c.l.b16 %v1952
      %v2075 = vunpack.c.h.b16 %v1952
      %v2076 = vunpack.c.l.b16 %v1953
      %v2077 = vunpack.c.h.b16 %v1953
      %v2078 = vunpack.c.l.b16 %v1954
      %v2079 = vunpack.c.h.b16 %v1954
      %v2080 = vunpack.c.l.b16 %v1955
      %v2081 = vunpack.c.h.b16 %v1955
      %v2082 = vunpack.c.l.b16 %v1956
      %v2083 = vunpack.c.h.b16 %v1956
      %v2084 = vunpack.c.l.b16 %v1957
      %v2085 = vunpack.c.h.b16 %v1957
      %v2086 = vunpack.c.l.b16 %v1958
      %v2087 = vunpack.c.h.b16 %v1958
      %v2088 = vunpack.c.l.b16 %v1959
      %v2089 = vunpack.c.h.b16 %v1959
      %v2090 = vunpack.c.l.b16 %v1960
      %v2091 = vunpack.c.h.b16 %v1960
      %v2092 = vunpack.c.l.b16 %v1961
      %v2093 = vunpack.c.h.b16 %v1961
      %v2094 = vunpack.c.l.b16 %v1962
      %v2095 = vunpack.c.h.b16 %v1962
      %v2096 = vunpack.c.l.b16 %v1963
      %v2097 = vunpack.c.h.b16 %v1963
      %v2098 = vunpack.c.l.b16 %v1964
      %v2099 = vunpack.c.h.b16 %v1964
      %v2100 = vunpack.c.l.b16 %v1965
      %v2101 = vunpack.c.h.b16 %v1965
      %v2102 = vunpack.c.l.b16 %v1966
      %v2103 = vunpack.c.h.b16 %v1966
      %v2104 = vunpack.c.l.b16 %v1967
      %v2105 = vunpack.c.h.b16 %v1967
      %v2106 = vunpack.c.l.b16 %v1968
      %v2107 = vunpack.c.h.b16 %v1968
      %v2108 = vunpack.c.l.b16 %v1969
      %v2109 = vunpack.c.h.b16 %v1969
      %v2110 = vunpack.c.l.b16 %v1970
      %v2111 = vunpack.c.h.b16 %v1970
      %v2112 = vunpack.c.l.b16 %v1971
      %v2113 = vunpack.c.h.b16 %v1971
      %v2114 = vunpack.c.l.b16 %v1972
      %v2115 = vunpack.c.h.b16 %v1972
      %v2116 = vunpack.c.l.b16 %v1973
      %v2117 = vunpack.c.h.b16 %v1973
      %v2118 = vpack.c.b16 %v2072, %v2070
      %v2119 = vpack.c.b16 %v2073, %v2071
      %v2120 = vpack.c.b16 %v2076, %v2074
      %v2121 = vpack.c.b16 %v2077, %v2075
      %v2122 = vpack.c.b16 %v2080, %v2078
      %v2123 = vpack.c.b16 %v2081, %v2079
      %v2124 = vpack.c.b16 %v2084, %v2082
      %v2125 = vpack.c.b16 %v2085, %v2083
      %v2126 = vpack.c.b16 %v2088, %v2086
      %v2127 = vpack.c.b16 %v2089, %v2087
      %v2128 = vpack.c.b16 %v2092, %v2090
      %v2129 = vpack.c.b16 %v2093, %v2091
      %v2130 = vpack.c.b16 %v2096, %v2094
      %v2131 = vpack.c.b16 %v2097, %v2095
      %v2132 = vpack.c.b16 %v2100, %v2098
      %v2133 = vpack.c.b16 %v2101, %v2099
      %v2134 = vpack.c.b16 %v2104, %v2102
      %v2135 = vpack.c.b16 %v2105, %v2103
      %v2136 = vpack.c.b16 %v2108, %v2106
      %v2137 = vpack.c.b16 %v2109, %v2107
      %v2138 = vpack.c.b16 %v2112, %v2110
      %v2139 = vpack.c.b16 %v2113, %v2111
      %v2140 = vpack.c.b16 %v2116, %v2114
      %v2141 = vpack.c.b16 %v2117, %v2115
      %v2167 = vsel %vm710, %v2023, 0
      %v2170 = vsel %vm710, %v2025, 0
      %v2173 = vsel %vm710, %v2027, 0
      %v2176 = vsel %vm710, %v2029, 0
      %v2179 = vsel %vm710, %v2031, 0
      %v2182 = vsel %vm710, %v2033, 0
      %v2185 = vsel %vm710, %v2035, 0
      %v2188 = vsel %vm710, %v2037, 0
      %2190 = vmatpush.bf16.msra.mxu0 %v2132
      %2191 = vmatpush.bf16.msra.mxu0 %v2130
      %2192 = vmatpush.bf16.msra.mxu0 %v2128
      %2193 = vmatpush.bf16.msra.mxu0 %v2126
      %2194 = vmatpush.bf16.msra.mxu0 %v2124
      %2195 = vmatpush.bf16.msra.mxu0 %v2122
      %2196 = vmatpush.bf16.msra.mxu0 %v2120
      %2197 = vmatpush.bf16.msra.mxu0 %v2118
      %2198 = vmatmul.bf16.gmra.mxu0 %v2022
      %v2199 = vpop.f32.mrf.mxu0
      %v2200 = vadd.f32 0.0, %v2199
      %v2201 = vpop.f32.mrf.mxu0
      %v2202 = vadd.f32 0.0, %v2201
      %2203 = vmatmul.bf16.gmra.mxu0 %v2024
      %v2204 = vpop.f32.mrf.mxu0
      %v2205 = vadd.f32 0.0, %v2204
      %v2206 = vpop.f32.mrf.mxu0
      %v2207 = vadd.f32 0.0, %v2206
      %2208 = vmatmul.bf16.gmra.mxu0 %v2026
      %v2209 = vpop.f32.mrf.mxu0
      %v2210 = vadd.f32 0.0, %v2209
      %v2211 = vpop.f32.mrf.mxu0
      %v2212 = vadd.f32 0.0, %v2211
      %2213 = vmatmul.bf16.gmra.mxu0 %v2028
      %v2214 = vpop.f32.mrf.mxu0
      %v2215 = vadd.f32 0.0, %v2214
      %v2216 = vpop.f32.mrf.mxu0
      %v2217 = vadd.f32 0.0, %v2216
      %2218 = vmatmul.bf16.gmra.mxu0 %v2030
      %v2219 = vpop.f32.mrf.mxu0
      %v2220 = vadd.f32 0.0, %v2219
      %v2221 = vpop.f32.mrf.mxu0
      %v2222 = vadd.f32 0.0, %v2221
      %2223 = vmatmul.bf16.gmra.mxu0 %v2032
      %v2224 = vpop.f32.mrf.mxu0
      %v2225 = vadd.f32 0.0, %v2224
      %v2226 = vpop.f32.mrf.mxu0
      %v2227 = vadd.f32 0.0, %v2226
      %2228 = vmatmul.bf16.gmra.mxu0 %v2034
      %v2229 = vpop.f32.mrf.mxu0
      %v2230 = vadd.f32 0.0, %v2229
      %v2231 = vpop.f32.mrf.mxu0
      %v2232 = vadd.f32 0.0, %v2231
      %2233 = vmatmul.bf16.gmra.mxu0 %v2036
      %v2234 = vpop.f32.mrf.mxu0
      %v2235 = vadd.f32 0.0, %v2234
      %v2236 = vpop.f32.mrf.mxu0
      %v2237 = vadd.f32 0.0, %v2236
      %2238 = vdwg.mxu0
      %2239 = vmatpush.bf16.msra.mxu0 0
      %2240 = vmatpush.bf16.msra.mxu0 0
      %2241 = vmatpush.bf16.msra.mxu0 0
      %2242 = vmatpush.bf16.msra.mxu0 0
      %2243 = vmatpush.bf16.msra.mxu0 %v2140
      %2244 = vmatpush.bf16.msra.mxu0 %v2138
      %2245 = vmatpush.bf16.msra.mxu0 %v2136
      %2246 = vmatpush.bf16.msra.mxu0 %v2134
      %2247 = vmatmul.bf16.gmra.mxu0 %v2167
      %v2248 = vpop.f32.mrf.mxu0
      %v2249 = vadd.f32 %v2200, %v2248
      %v2250 = vpop.f32.mrf.mxu0
      %v2251 = vadd.f32 %v2202, %v2250
      %2252 = vmatmul.bf16.gmra.mxu0 %v2170
      %v2253 = vpop.f32.mrf.mxu0
      %v2254 = vadd.f32 %v2205, %v2253
      %v2255 = vpop.f32.mrf.mxu0
      %v2256 = vadd.f32 %v2207, %v2255
      %2257 = vmatmul.bf16.gmra.mxu0 %v2173
      %v2258 = vpop.f32.mrf.mxu0
      %v2259 = vadd.f32 %v2210, %v2258
      %v2260 = vpop.f32.mrf.mxu0
      %v2261 = vadd.f32 %v2212, %v2260
      %2262 = vmatmul.bf16.gmra.mxu0 %v2176
      %v2263 = vpop.f32.mrf.mxu0
      %v2264 = vadd.f32 %v2215, %v2263
      %v2265 = vpop.f32.mrf.mxu0
      %v2266 = vadd.f32 %v2217, %v2265
      %2267 = vmatmul.bf16.gmra.mxu0 %v2179
      %v2268 = vpop.f32.mrf.mxu0
      %v2269 = vadd.f32 %v2220, %v2268
      %v2270 = vpop.f32.mrf.mxu0
      %v2271 = vadd.f32 %v2222, %v2270
      %2272 = vmatmul.bf16.gmra.mxu0 %v2182
      %v2273 = vpop.f32.mrf.mxu0
      %v2274 = vadd.f32 %v2225, %v2273
      %v2275 = vpop.f32.mrf.mxu0
      %v2276 = vadd.f32 %v2227, %v2275
      %2277 = vmatmul.bf16.gmra.mxu0 %v2185
      %v2278 = vpop.f32.mrf.mxu0
      %v2279 = vadd.f32 %v2230, %v2278
      %v2280 = vpop.f32.mrf.mxu0
      %v2281 = vadd.f32 %v2232, %v2280
      %2282 = vmatmul.bf16.gmra.mxu0 %v2188
      %v2283 = vpop.f32.mrf.mxu0
      %v2284 = vadd.f32 %v2235, %v2283
      %v2285 = vpop.f32.mrf.mxu0
      %v2286 = vadd.f32 %v2237, %v2285
      %2287 = vdwg.mxu0
      %2288 = vmatpush.bf16.msra.mxu0 %v2133
      %2289 = vmatpush.bf16.msra.mxu0 %v2131
      %2290 = vmatpush.bf16.msra.mxu0 %v2129
      %2291 = vmatpush.bf16.msra.mxu0 %v2127
      %2292 = vmatpush.bf16.msra.mxu0 %v2125
      %2293 = vmatpush.bf16.msra.mxu0 %v2123
      %2294 = vmatpush.bf16.msra.mxu0 %v2121
      %2295 = vmatpush.bf16.msra.mxu0 %v2119
      %2296 = vmatmul.bf16.gmra.mxu0 %v2022
      %v2297 = vpop.f32.mrf.mxu0
      %v2298 = vadd.f32 0.0, %v2297
      %v2299 = vpop.f32.mrf.mxu0
      %v2300 = vadd.f32 0.0, %v2299
      %2301 = vmatmul.bf16.gmra.mxu0 %v2024
      %v2302 = vpop.f32.mrf.mxu0
      %v2303 = vadd.f32 0.0, %v2302
      %v2304 = vpop.f32.mrf.mxu0
      %v2305 = vadd.f32 0.0, %v2304
      %2306 = vmatmul.bf16.gmra.mxu0 %v2026
      %v2307 = vpop.f32.mrf.mxu0
      %v2308 = vadd.f32 0.0, %v2307
      %v2309 = vpop.f32.mrf.mxu0
      %v2310 = vadd.f32 0.0, %v2309
      %2311 = vmatmul.bf16.gmra.mxu0 %v2028
      %v2312 = vpop.f32.mrf.mxu0
      %v2313 = vadd.f32 0.0, %v2312
      %v2314 = vpop.f32.mrf.mxu0
      %v2315 = vadd.f32 0.0, %v2314
      %2316 = vmatmul.bf16.gmra.mxu0 %v2030
      %v2317 = vpop.f32.mrf.mxu0
      %v2318 = vadd.f32 0.0, %v2317
      %v2319 = vpop.f32.mrf.mxu0
      %v2320 = vadd.f32 0.0, %v2319
      %2321 = vmatmul.bf16.gmra.mxu0 %v2032
      %v2322 = vpop.f32.mrf.mxu0
      %v2323 = vadd.f32 0.0, %v2322
      %v2324 = vpop.f32.mrf.mxu0
      %v2325 = vadd.f32 0.0, %v2324
      %2326 = vmatmul.bf16.gmra.mxu0 %v2034
      %v2327 = vpop.f32.mrf.mxu0
      %v2328 = vadd.f32 0.0, %v2327
      %v2329 = vpop.f32.mrf.mxu0
      %v2330 = vadd.f32 0.0, %v2329
      %2331 = vmatmul.bf16.gmra.mxu0 %v2036
      %v2332 = vpop.f32.mrf.mxu0
      %v2333 = vadd.f32 0.0, %v2332
      %v2334 = vpop.f32.mrf.mxu0
      %v2335 = vadd.f32 0.0, %v2334
      %2336 = vdwg.mxu0
      %2337 = vmatpush.bf16.msra.mxu0 0
      %2338 = vmatpush.bf16.msra.mxu0 0
      %2339 = vmatpush.bf16.msra.mxu0 0
      %2340 = vmatpush.bf16.msra.mxu0 0
      %2341 = vmatpush.bf16.msra.mxu0 %v2141
      %2342 = vmatpush.bf16.msra.mxu0 %v2139
      %2343 = vmatpush.bf16.msra.mxu0 %v2137
      %2344 = vmatpush.bf16.msra.mxu0 %v2135
      %2345 = vmatmul.bf16.gmra.mxu0 %v2167
      %v2346 = vpop.f32.mrf.mxu0
      %v2347 = vadd.f32 %v2298, %v2346
      %v2348 = vpop.f32.mrf.mxu0
      %v2349 = vadd.f32 %v2300, %v2348
      %2350 = vmatmul.bf16.gmra.mxu0 %v2170
      %v2351 = vpop.f32.mrf.mxu0
      %v2352 = vadd.f32 %v2303, %v2351
      %v2353 = vpop.f32.mrf.mxu0
      %v2354 = vadd.f32 %v2305, %v2353
      %2355 = vmatmul.bf16.gmra.mxu0 %v2173
      %v2356 = vpop.f32.mrf.mxu0
      %v2357 = vadd.f32 %v2308, %v2356
      %v2358 = vpop.f32.mrf.mxu0
      %v2359 = vadd.f32 %v2310, %v2358
      %2360 = vmatmul.bf16.gmra.mxu0 %v2176
      %v2361 = vpop.f32.mrf.mxu0
      %v2362 = vadd.f32 %v2313, %v2361
      %v2363 = vpop.f32.mrf.mxu0
      %v2364 = vadd.f32 %v2315, %v2363
      %2365 = vmatmul.bf16.gmra.mxu0 %v2179
      %v2366 = vpop.f32.mrf.mxu0
      %v2367 = vadd.f32 %v2318, %v2366
      %v2368 = vpop.f32.mrf.mxu0
      %v2369 = vadd.f32 %v2320, %v2368
      %2370 = vmatmul.bf16.gmra.mxu0 %v2182
      %v2371 = vpop.f32.mrf.mxu0
      %v2372 = vadd.f32 %v2323, %v2371
      %v2373 = vpop.f32.mrf.mxu0
      %v2374 = vadd.f32 %v2325, %v2373
      %2375 = vmatmul.bf16.gmra.mxu0 %v2185
      %v2376 = vpop.f32.mrf.mxu0
      %v2377 = vadd.f32 %v2328, %v2376
      %v2378 = vpop.f32.mrf.mxu0
      %v2379 = vadd.f32 %v2330, %v2378
      %2380 = vmatmul.bf16.gmra.mxu0 %v2188
      %v2381 = vpop.f32.mrf.mxu0
      %v2382 = vadd.f32 %v2333, %v2381
      %v2383 = vpop.f32.mrf.mxu0
      %v2384 = vadd.f32 %v2335, %v2383
      %2385 = vdwg.mxu0
      %v2386 = vadd.f32 %v1901, %v2249
      %v2387 = vadd.f32 %v1902, %v2347
      %v2388 = vadd.f32 %v1903, %v2251
      %v2389 = vadd.f32 %v1904, %v2349
      %v2390 = vadd.f32 %v1905, %v2254
      %v2391 = vadd.f32 %v1906, %v2352
      %v2392 = vadd.f32 %v1907, %v2256
      %v2393 = vadd.f32 %v1908, %v2354
      %v2394 = vadd.f32 %v1909, %v2259
      %v2395 = vadd.f32 %v1910, %v2357
      %v2396 = vadd.f32 %v1911, %v2261
      %v2397 = vadd.f32 %v1912, %v2359
      %v2398 = vadd.f32 %v1913, %v2264
      %v2399 = vadd.f32 %v1914, %v2362
      %v2400 = vadd.f32 %v1915, %v2266
      %v2401 = vadd.f32 %v1916, %v2364
      %v2402 = vadd.f32 %v1917, %v2269
      %v2403 = vadd.f32 %v1918, %v2367
      %v2404 = vadd.f32 %v1919, %v2271
      %v2405 = vadd.f32 %v1920, %v2369
      %v2406 = vadd.f32 %v1921, %v2274
      %v2407 = vadd.f32 %v1922, %v2372
      %v2408 = vadd.f32 %v1923, %v2276
      %v2409 = vadd.f32 %v1924, %v2374
      %v2410 = vadd.f32 %v1925, %v2279
      %v2411 = vadd.f32 %v1926, %v2377
      %v2412 = vadd.f32 %v1927, %v2281
      %v2413 = vadd.f32 %v1928, %v2379
      %v2414 = vadd.f32 %v1929, %v2284
      %v2415 = vadd.f32 %v1930, %v2382
      %v2416 = vadd.f32 %v1931, %v2286
      %v2417 = vadd.f32 %v1932, %v2384
      %v2418 = vld [vmem:[#allocation2 + $0x10] sm:$0xff]
      %v2419 = vld [vmem:[#allocation2 + $0x18] sm:$0xff]
      %v2420 = vld [vmem:[#allocation2 + $0x20] sm:$0xff]
      %v2421 = vld [vmem:[#allocation2 + $0x28] sm:$0xff]
      %v2422 = vld [vmem:[#allocation2 + $0x30] sm:$0xff]
      %v2423 = vld [vmem:[#allocation2 + $0x38] sm:$0xff]
      %v2424 = vld [vmem:[#allocation2 + $0x40] sm:$0xff]
      %v2425 = vld [vmem:[#allocation2 + $0x48] sm:$0xff]
      %v2426 = vld [vmem:[#allocation2 + $0x50] sm:$0xff]
      %v2427 = vld [vmem:[#allocation2 + $0x58] sm:$0xff]
      %v2428 = vld [vmem:[#allocation2 + $0x60] sm:$0xff]
      %v2429 = vld [vmem:[#allocation2 + $0x68] sm:$0xff]
      %v2430 = vld [vmem:[#allocation2 + $0x70] sm:$0xff]
      %v2431 = vld [vmem:[#allocation2 + $0x78] sm:$0xff]
      %v2432 = vld [vmem:[#allocation2 + $0x80] sm:$0xff]
      %v2433 = vld [vmem:[#allocation2 + $0x88] sm:$0xff]
      %s2434 = scalar_lea.vmem %s1, 768
      %v2435 = vld [vmem:[%s2434] sm:$0xff]
      %v2436 = vld [vmem:[%s2434 + $0x8] sm:$0xff]
      %v2437 = vld [vmem:[%s2434 + $0x10] sm:$0xff]
      %v2438 = vld [vmem:[%s2434 + $0x18] sm:$0xff]
      %v2439 = vld [vmem:[%s2434 + $0x20] sm:$0xff]
      %v2440 = vld [vmem:[%s2434 + $0x28] sm:$0xff]
      %v2441 = vld [vmem:[%s2434 + $0x30] sm:$0xff]
      %v2442 = vld [vmem:[%s2434 + $0x38] sm:$0xff]
      %v2443 = vld [vmem:[%s2434 + $0x40] sm:$0xff]
      %v2444 = vld [vmem:[%s2434 + $0x48] sm:$0xff]
      %v2445 = vld [vmem:[%s2434 + $0x50] sm:$0xff]
      %v2446 = vld [vmem:[%s2434 + $0x58] sm:$0xff]
      %v2447 = vld [vmem:[%s2434 + $0x60] sm:$0xff]
      %v2448 = vld [vmem:[%s2434 + $0x68] sm:$0xff]
      %v2449 = vld [vmem:[%s2434 + $0x70] sm:$0xff]
      %v2450 = vld [vmem:[%s2434 + $0x78] sm:$0xff]
      %v2451 = vld [vmem:[%s2434 + $0x80] sm:$0xff]
      %v2452 = vld [vmem:[%s2434 + $0x88] sm:$0xff]
      %v2453 = vld [vmem:[%s2434 + $0x90] sm:$0xff]
      %v2454 = vld [vmem:[%s2434 + $0x98] sm:$0xff]
      %v2455 = vld [vmem:[%s2434 + $0xa0] sm:$0xff]
      %v2456 = vld [vmem:[%s2434 + $0xa8] sm:$0xff]
      %v2457 = vld [vmem:[%s2434 + $0xb0] sm:$0xff]
      %v2458 = vld [vmem:[%s2434 + $0xb8] sm:$0xff]
      %v2475 = vunpack.c.l.b16 %v2418
      %v2476 = vunpack.c.h.b16 %v2418
      %v2477 = vunpack.c.l.b16 %v2419
      %v2478 = vunpack.c.h.b16 %v2419
      %v2479 = vunpack.c.l.b16 %v2420
      %v2480 = vunpack.c.h.b16 %v2420
      %v2481 = vunpack.c.l.b16 %v2421
      %v2482 = vunpack.c.h.b16 %v2421
      %v2483 = vunpack.c.l.b16 %v2422
      %v2484 = vunpack.c.h.b16 %v2422
      %v2485 = vunpack.c.l.b16 %v2423
      %v2486 = vunpack.c.h.b16 %v2423
      %v2487 = vunpack.c.l.b16 %v2424
      %v2488 = vunpack.c.h.b16 %v2424
      %v2489 = vunpack.c.l.b16 %v2425
      %v2490 = vunpack.c.h.b16 %v2425
      %v2491 = vunpack.c.l.b16 %v2426
      %v2492 = vunpack.c.h.b16 %v2426
      %v2493 = vunpack.c.l.b16 %v2427
      %v2494 = vunpack.c.h.b16 %v2427
      %v2495 = vunpack.c.l.b16 %v2428
      %v2496 = vunpack.c.h.b16 %v2428
      %v2497 = vunpack.c.l.b16 %v2429
      %v2498 = vunpack.c.h.b16 %v2429
      %v2499 = vunpack.c.l.b16 %v2430
      %v2500 = vunpack.c.h.b16 %v2430
      %v2501 = vunpack.c.l.b16 %v2431
      %v2502 = vunpack.c.h.b16 %v2431
      %v2503 = vunpack.c.l.b16 %v2432
      %v2504 = vunpack.c.h.b16 %v2432
      %v2505 = vunpack.c.l.b16 %v2433
      %v2506 = vunpack.c.h.b16 %v2433
      %v2507 = vpack.c.b16 %v2477, %v2475
      %v2508 = vpack.c.b16 %v2478, %v2476
      %v2509 = vpack.c.b16 %v2481, %v2479
      %v2510 = vpack.c.b16 %v2482, %v2480
      %v2511 = vpack.c.b16 %v2485, %v2483
      %v2512 = vpack.c.b16 %v2486, %v2484
      %v2513 = vpack.c.b16 %v2489, %v2487
      %v2514 = vpack.c.b16 %v2490, %v2488
      %v2515 = vpack.c.b16 %v2493, %v2491
      %v2516 = vpack.c.b16 %v2494, %v2492
      %v2517 = vpack.c.b16 %v2497, %v2495
      %v2518 = vpack.c.b16 %v2498, %v2496
      %v2519 = vpack.c.b16 %v2501, %v2499
      %v2520 = vpack.c.b16 %v2502, %v2500
      %v2521 = vpack.c.b16 %v2505, %v2503
      %v2522 = vpack.c.b16 %v2506, %v2504
      %v2555 = vunpack.c.l.b16 %v2435
      %v2556 = vunpack.c.h.b16 %v2435
      %v2557 = vunpack.c.l.b16 %v2436
      %v2558 = vunpack.c.h.b16 %v2436
      %v2559 = vunpack.c.l.b16 %v2437
      %v2560 = vunpack.c.h.b16 %v2437
      %v2561 = vunpack.c.l.b16 %v2438
      %v2562 = vunpack.c.h.b16 %v2438
      %v2563 = vunpack.c.l.b16 %v2439
      %v2564 = vunpack.c.h.b16 %v2439
      %v2565 = vunpack.c.l.b16 %v2440
      %v2566 = vunpack.c.h.b16 %v2440
      %v2567 = vunpack.c.l.b16 %v2441
      %v2568 = vunpack.c.h.b16 %v2441
      %v2569 = vunpack.c.l.b16 %v2442
      %v2570 = vunpack.c.h.b16 %v2442
      %v2571 = vunpack.c.l.b16 %v2443
      %v2572 = vunpack.c.h.b16 %v2443
      %v2573 = vunpack.c.l.b16 %v2444
      %v2574 = vunpack.c.h.b16 %v2444
      %v2575 = vunpack.c.l.b16 %v2445
      %v2576 = vunpack.c.h.b16 %v2445
      %v2577 = vunpack.c.l.b16 %v2446
      %v2578 = vunpack.c.h.b16 %v2446
      %v2579 = vunpack.c.l.b16 %v2447
      %v2580 = vunpack.c.h.b16 %v2447
      %v2581 = vunpack.c.l.b16 %v2448
      %v2582 = vunpack.c.h.b16 %v2448
      %v2583 = vunpack.c.l.b16 %v2449
      %v2584 = vunpack.c.h.b16 %v2449
      %v2585 = vunpack.c.l.b16 %v2450
      %v2586 = vunpack.c.h.b16 %v2450
      %v2587 = vunpack.c.l.b16 %v2451
      %v2588 = vunpack.c.h.b16 %v2451
      %v2589 = vunpack.c.l.b16 %v2452
      %v2590 = vunpack.c.h.b16 %v2452
      %v2591 = vunpack.c.l.b16 %v2453
      %v2592 = vunpack.c.h.b16 %v2453
      %v2593 = vunpack.c.l.b16 %v2454
      %v2594 = vunpack.c.h.b16 %v2454
      %v2595 = vunpack.c.l.b16 %v2455
      %v2596 = vunpack.c.h.b16 %v2455
      %v2597 = vunpack.c.l.b16 %v2456
      %v2598 = vunpack.c.h.b16 %v2456
      %v2599 = vunpack.c.l.b16 %v2457
      %v2600 = vunpack.c.h.b16 %v2457
      %v2601 = vunpack.c.l.b16 %v2458
      %v2602 = vunpack.c.h.b16 %v2458
      %v2603 = vpack.c.b16 %v2557, %v2555
      %v2604 = vpack.c.b16 %v2558, %v2556
      %v2605 = vpack.c.b16 %v2561, %v2559
      %v2606 = vpack.c.b16 %v2562, %v2560
      %v2607 = vpack.c.b16 %v2565, %v2563
      %v2608 = vpack.c.b16 %v2566, %v2564
      %v2609 = vpack.c.b16 %v2569, %v2567
      %v2610 = vpack.c.b16 %v2570, %v2568
      %v2611 = vpack.c.b16 %v2573, %v2571
      %v2612 = vpack.c.b16 %v2574, %v2572
      %v2613 = vpack.c.b16 %v2577, %v2575
      %v2614 = vpack.c.b16 %v2578, %v2576
      %v2615 = vpack.c.b16 %v2581, %v2579
      %v2616 = vpack.c.b16 %v2582, %v2580
      %v2617 = vpack.c.b16 %v2585, %v2583
      %v2618 = vpack.c.b16 %v2586, %v2584
      %v2619 = vpack.c.b16 %v2589, %v2587
      %v2620 = vpack.c.b16 %v2590, %v2588
      %v2621 = vpack.c.b16 %v2593, %v2591
      %v2622 = vpack.c.b16 %v2594, %v2592
      %v2623 = vpack.c.b16 %v2597, %v2595
      %v2624 = vpack.c.b16 %v2598, %v2596
      %v2625 = vpack.c.b16 %v2601, %v2599
      %v2626 = vpack.c.b16 %v2602, %v2600
      %v2652 = vsel %vm710, %v2508, 0
      %v2655 = vsel %vm710, %v2510, 0
      %v2658 = vsel %vm710, %v2512, 0
      %v2661 = vsel %vm710, %v2514, 0
      %v2664 = vsel %vm710, %v2516, 0
      %v2667 = vsel %vm710, %v2518, 0
      %v2670 = vsel %vm710, %v2520, 0
      %v2673 = vsel %vm710, %v2522, 0
      %2675 = vmatpush.bf16.msra.mxu0 %v2617
      %2676 = vmatpush.bf16.msra.mxu0 %v2615
      %2677 = vmatpush.bf16.msra.mxu0 %v2613
      %2678 = vmatpush.bf16.msra.mxu0 %v2611
      %2679 = vmatpush.bf16.msra.mxu0 %v2609
      %2680 = vmatpush.bf16.msra.mxu0 %v2607
      %2681 = vmatpush.bf16.msra.mxu0 %v2605
      %2682 = vmatpush.bf16.msra.mxu0 %v2603
      %2683 = vmatmul.bf16.gmra.mxu0 %v2507
      %v2684 = vpop.f32.mrf.mxu0
      %v2685 = vadd.f32 0.0, %v2684
      %v2686 = vpop.f32.mrf.mxu0
      %v2687 = vadd.f32 0.0, %v2686
      %2688 = vmatmul.bf16.gmra.mxu0 %v2509
      %v2689 = vpop.f32.mrf.mxu0
      %v2690 = vadd.f32 0.0, %v2689
      %v2691 = vpop.f32.mrf.mxu0
      %v2692 = vadd.f32 0.0, %v2691
      %2693 = vmatmul.bf16.gmra.mxu0 %v2511
      %v2694 = vpop.f32.mrf.mxu0
      %v2695 = vadd.f32 0.0, %v2694
      %v2696 = vpop.f32.mrf.mxu0
      %v2697 = vadd.f32 0.0, %v2696
      %2698 = vmatmul.bf16.gmra.mxu0 %v2513
      %v2699 = vpop.f32.mrf.mxu0
      %v2700 = vadd.f32 0.0, %v2699
      %v2701 = vpop.f32.mrf.mxu0
      %v2702 = vadd.f32 0.0, %v2701
      %2703 = vmatmul.bf16.gmra.mxu0 %v2515
      %v2704 = vpop.f32.mrf.mxu0
      %v2705 = vadd.f32 0.0, %v2704
      %v2706 = vpop.f32.mrf.mxu0
      %v2707 = vadd.f32 0.0, %v2706
      %2708 = vmatmul.bf16.gmra.mxu0 %v2517
      %v2709 = vpop.f32.mrf.mxu0
      %v2710 = vadd.f32 0.0, %v2709
      %v2711 = vpop.f32.mrf.mxu0
      %v2712 = vadd.f32 0.0, %v2711
      %2713 = vmatmul.bf16.gmra.mxu0 %v2519
      %v2714 = vpop.f32.mrf.mxu0
      %v2715 = vadd.f32 0.0, %v2714
      %v2716 = vpop.f32.mrf.mxu0
      %v2717 = vadd.f32 0.0, %v2716
      %2718 = vmatmul.bf16.gmra.mxu0 %v2521
      %v2719 = vpop.f32.mrf.mxu0
      %v2720 = vadd.f32 0.0, %v2719
      %v2721 = vpop.f32.mrf.mxu0
      %v2722 = vadd.f32 0.0, %v2721
      %2723 = vdwg.mxu0
      %2724 = vmatpush.bf16.msra.mxu0 0
      %2725 = vmatpush.bf16.msra.mxu0 0
      %2726 = vmatpush.bf16.msra.mxu0 0
      %2727 = vmatpush.bf16.msra.mxu0 0
      %2728 = vmatpush.bf16.msra.mxu0 %v2625
      %2729 = vmatpush.bf16.msra.mxu0 %v2623
      %2730 = vmatpush.bf16.msra.mxu0 %v2621
      %2731 = vmatpush.bf16.msra.mxu0 %v2619
      %2732 = vmatmul.bf16.gmra.mxu0 %v2652
      %v2733 = vpop.f32.mrf.mxu0
      %v2734 = vadd.f32 %v2685, %v2733
      %v2735 = vpop.f32.mrf.mxu0
      %v2736 = vadd.f32 %v2687, %v2735
      %2737 = vmatmul.bf16.gmra.mxu0 %v2655
      %v2738 = vpop.f32.mrf.mxu0
      %v2739 = vadd.f32 %v2690, %v2738
      %v2740 = vpop.f32.mrf.mxu0
      %v2741 = vadd.f32 %v2692, %v2740
      %2742 = vmatmul.bf16.gmra.mxu0 %v2658
      %v2743 = vpop.f32.mrf.mxu0
      %v2744 = vadd.f32 %v2695, %v2743
      %v2745 = vpop.f32.mrf.mxu0
      %v2746 = vadd.f32 %v2697, %v2745
      %2747 = vmatmul.bf16.gmra.mxu0 %v2661
      %v2748 = vpop.f32.mrf.mxu0
      %v2749 = vadd.f32 %v2700, %v2748
      %v2750 = vpop.f32.mrf.mxu0
      %v2751 = vadd.f32 %v2702, %v2750
      %2752 = vmatmul.bf16.gmra.mxu0 %v2664
      %v2753 = vpop.f32.mrf.mxu0
      %v2754 = vadd.f32 %v2705, %v2753
      %v2755 = vpop.f32.mrf.mxu0
      %v2756 = vadd.f32 %v2707, %v2755
      %2757 = vmatmul.bf16.gmra.mxu0 %v2667
      %v2758 = vpop.f32.mrf.mxu0
      %v2759 = vadd.f32 %v2710, %v2758
      %v2760 = vpop.f32.mrf.mxu0
      %v2761 = vadd.f32 %v2712, %v2760
      %2762 = vmatmul.bf16.gmra.mxu0 %v2670
      %v2763 = vpop.f32.mrf.mxu0
      %v2764 = vadd.f32 %v2715, %v2763
      %v2765 = vpop.f32.mrf.mxu0
      %v2766 = vadd.f32 %v2717, %v2765
      %2767 = vmatmul.bf16.gmra.mxu0 %v2673
      %v2768 = vpop.f32.mrf.mxu0
      %v2769 = vadd.f32 %v2720, %v2768
      %v2770 = vpop.f32.mrf.mxu0
      %v2771 = vadd.f32 %v2722, %v2770
      %2772 = vdwg.mxu0
      %2773 = vmatpush.bf16.msra.mxu0 %v2618
      %2774 = vmatpush.bf16.msra.mxu0 %v2616
      %2775 = vmatpush.bf16.msra.mxu0 %v2614
      %2776 = vmatpush.bf16.msra.mxu0 %v2612
      %2777 = vmatpush.bf16.msra.mxu0 %v2610
      %2778 = vmatpush.bf16.msra.mxu0 %v2608
      %2779 = vmatpush.bf16.msra.mxu0 %v2606
      %2780 = vmatpush.bf16.msra.mxu0 %v2604
      %2781 = vmatmul.bf16.gmra.mxu0 %v2507
      %v2782 = vpop.f32.mrf.mxu0
      %v2783 = vadd.f32 0.0, %v2782
      %v2784 = vpop.f32.mrf.mxu0
      %v2785 = vadd.f32 0.0, %v2784
      %2786 = vmatmul.bf16.gmra.mxu0 %v2509
      %v2787 = vpop.f32.mrf.mxu0
      %v2788 = vadd.f32 0.0, %v2787
      %v2789 = vpop.f32.mrf.mxu0
      %v2790 = vadd.f32 0.0, %v2789
      %2791 = vmatmul.bf16.gmra.mxu0 %v2511
      %v2792 = vpop.f32.mrf.mxu0
      %v2793 = vadd.f32 0.0, %v2792
      %v2794 = vpop.f32.mrf.mxu0
      %v2795 = vadd.f32 0.0, %v2794
      %2796 = vmatmul.bf16.gmra.mxu0 %v2513
      %v2797 = vpop.f32.mrf.mxu0
      %v2798 = vadd.f32 0.0, %v2797
      %v2799 = vpop.f32.mrf.mxu0
      %v2800 = vadd.f32 0.0, %v2799
      %2801 = vmatmul.bf16.gmra.mxu0 %v2515
      %v2802 = vpop.f32.mrf.mxu0
      %v2803 = vadd.f32 0.0, %v2802
      %v2804 = vpop.f32.mrf.mxu0
      %v2805 = vadd.f32 0.0, %v2804
      %2806 = vmatmul.bf16.gmra.mxu0 %v2517
      %v2807 = vpop.f32.mrf.mxu0
      %v2808 = vadd.f32 0.0, %v2807
      %v2809 = vpop.f32.mrf.mxu0
      %v2810 = vadd.f32 0.0, %v2809
      %2811 = vmatmul.bf16.gmra.mxu0 %v2519
      %v2812 = vpop.f32.mrf.mxu0
      %v2813 = vadd.f32 0.0, %v2812
      %v2814 = vpop.f32.mrf.mxu0
      %v2815 = vadd.f32 0.0, %v2814
      %2816 = vmatmul.bf16.gmra.mxu0 %v2521
      %v2817 = vpop.f32.mrf.mxu0
      %v2818 = vadd.f32 0.0, %v2817
      %v2819 = vpop.f32.mrf.mxu0
      %v2820 = vadd.f32 0.0, %v2819
      %2821 = vdwg.mxu0
      %2822 = vmatpush.bf16.msra.mxu0 0
      %2823 = vmatpush.bf16.msra.mxu0 0
      %2824 = vmatpush.bf16.msra.mxu0 0
      %2825 = vmatpush.bf16.msra.mxu0 0
      %2826 = vmatpush.bf16.msra.mxu0 %v2626
      %2827 = vmatpush.bf16.msra.mxu0 %v2624
      %2828 = vmatpush.bf16.msra.mxu0 %v2622
      %2829 = vmatpush.bf16.msra.mxu0 %v2620
      %2830 = vmatmul.bf16.gmra.mxu0 %v2652
      %v2831 = vpop.f32.mrf.mxu0
      %v2832 = vadd.f32 %v2783, %v2831
      %v2833 = vpop.f32.mrf.mxu0
      %v2834 = vadd.f32 %v2785, %v2833
      %2835 = vmatmul.bf16.gmra.mxu0 %v2655
      %v2836 = vpop.f32.mrf.mxu0
      %v2837 = vadd.f32 %v2788, %v2836
      %v2838 = vpop.f32.mrf.mxu0
      %v2839 = vadd.f32 %v2790, %v2838
      %2840 = vmatmul.bf16.gmra.mxu0 %v2658
      %v2841 = vpop.f32.mrf.mxu0
      %v2842 = vadd.f32 %v2793, %v2841
      %v2843 = vpop.f32.mrf.mxu0
      %v2844 = vadd.f32 %v2795, %v2843
      %2845 = vmatmul.bf16.gmra.mxu0 %v2661
      %v2846 = vpop.f32.mrf.mxu0
      %v2847 = vadd.f32 %v2798, %v2846
      %v2848 = vpop.f32.mrf.mxu0
      %v2849 = vadd.f32 %v2800, %v2848
      %2850 = vmatmul.bf16.gmra.mxu0 %v2664
      %v2851 = vpop.f32.mrf.mxu0
      %v2852 = vadd.f32 %v2803, %v2851
      %v2853 = vpop.f32.mrf.mxu0
      %v2854 = vadd.f32 %v2805, %v2853
      %2855 = vmatmul.bf16.gmra.mxu0 %v2667
      %v2856 = vpop.f32.mrf.mxu0
      %v2857 = vadd.f32 %v2808, %v2856
      %v2858 = vpop.f32.mrf.mxu0
      %v2859 = vadd.f32 %v2810, %v2858
      %2860 = vmatmul.bf16.gmra.mxu0 %v2670
      %v2861 = vpop.f32.mrf.mxu0
      %v2862 = vadd.f32 %v2813, %v2861
      %v2863 = vpop.f32.mrf.mxu0
      %v2864 = vadd.f32 %v2815, %v2863
      %2865 = vmatmul.bf16.gmra.mxu0 %v2673
      %v2866 = vpop.f32.mrf.mxu0
      %v2867 = vadd.f32 %v2818, %v2866
      %v2868 = vpop.f32.mrf.mxu0
      %v2869 = vadd.f32 %v2820, %v2868
      %2870 = vdwg.mxu0
      %v2871 = vadd.f32 %v2386, %v2734
      %v2872 = vadd.f32 %v2387, %v2832
      %v2873 = vadd.f32 %v2388, %v2736
      %v2874 = vadd.f32 %v2389, %v2834
      %v2875 = vadd.f32 %v2390, %v2739
      %v2876 = vadd.f32 %v2391, %v2837
      %v2877 = vadd.f32 %v2392, %v2741
      %v2878 = vadd.f32 %v2393, %v2839
      %v2879 = vadd.f32 %v2394, %v2744
      %v2880 = vadd.f32 %v2395, %v2842
      %v2881 = vadd.f32 %v2396, %v2746
      %v2882 = vadd.f32 %v2397, %v2844
      %v2883 = vadd.f32 %v2398, %v2749
      %v2884 = vadd.f32 %v2399, %v2847
      %v2885 = vadd.f32 %v2400, %v2751
      %v2886 = vadd.f32 %v2401, %v2849
      %v2887 = vadd.f32 %v2402, %v2754
      %v2888 = vadd.f32 %v2403, %v2852
      %v2889 = vadd.f32 %v2404, %v2756
      %v2890 = vadd.f32 %v2405, %v2854
      %v2891 = vadd.f32 %v2406, %v2759
      %v2892 = vadd.f32 %v2407, %v2857
      %v2893 = vadd.f32 %v2408, %v2761
      %v2894 = vadd.f32 %v2409, %v2859
      %v2895 = vadd.f32 %v2410, %v2764
      %v2896 = vadd.f32 %v2411, %v2862
      %v2897 = vadd.f32 %v2412, %v2766
      %v2898 = vadd.f32 %v2413, %v2864
      %v2899 = vadd.f32 %v2414, %v2769
      %v2900 = vadd.f32 %v2415, %v2867
      %v2901 = vadd.f32 %v2416, %v2771
      %v2902 = vadd.f32 %v2417, %v2869
      %v2903 = vld [vmem:[%s404 + $0x10] sm:$0xff]
      %v2904 = vld [vmem:[%s404 + $0x18] sm:$0xff]
      %v2905 = vld [vmem:[%s404 + $0x20] sm:$0xff]
      %v2906 = vld [vmem:[%s404 + $0x28] sm:$0xff]
      %v2907 = vld [vmem:[%s404 + $0x30] sm:$0xff]
      %v2908 = vld [vmem:[%s404 + $0x38] sm:$0xff]
      %v2909 = vld [vmem:[%s404 + $0x40] sm:$0xff]
      %v2910 = vld [vmem:[%s404 + $0x48] sm:$0xff]
      %v2911 = vld [vmem:[%s404 + $0x50] sm:$0xff]
      %v2912 = vld [vmem:[%s404 + $0x58] sm:$0xff]
      %v2913 = vld [vmem:[%s404 + $0x60] sm:$0xff]
      %v2914 = vld [vmem:[%s404 + $0x68] sm:$0xff]
      %v2915 = vld [vmem:[%s404 + $0x70] sm:$0xff]
      %v2916 = vld [vmem:[%s404 + $0x78] sm:$0xff]
      %v2917 = vld [vmem:[%s404 + $0x80] sm:$0xff]
      %v2918 = vld [vmem:[%s404 + $0x88] sm:$0xff]
      %s2919 = scalar_lea.vmem %s1, 960
      %v2920 = vld [vmem:[%s2919] sm:$0xff]
      %v2921 = vld [vmem:[%s2919 + $0x8] sm:$0xff]
      %v2922 = vld [vmem:[%s2919 + $0x10] sm:$0xff]
      %v2923 = vld [vmem:[%s2919 + $0x18] sm:$0xff]
      %v2924 = vld [vmem:[%s2919 + $0x20] sm:$0xff]
      %v2925 = vld [vmem:[%s2919 + $0x28] sm:$0xff]
      %v2926 = vld [vmem:[%s2919 + $0x30] sm:$0xff]
      %v2927 = vld [vmem:[%s2919 + $0x38] sm:$0xff]
      %v2928 = vld [vmem:[%s2919 + $0x40] sm:$0xff]
      %v2929 = vld [vmem:[%s2919 + $0x48] sm:$0xff]
      %v2930 = vld [vmem:[%s2919 + $0x50] sm:$0xff]
      %v2931 = vld [vmem:[%s2919 + $0x58] sm:$0xff]
      %v2932 = vld [vmem:[%s2919 + $0x60] sm:$0xff]
      %v2933 = vld [vmem:[%s2919 + $0x68] sm:$0xff]
      %v2934 = vld [vmem:[%s2919 + $0x70] sm:$0xff]
      %v2935 = vld [vmem:[%s2919 + $0x78] sm:$0xff]
      %v2936 = vld [vmem:[%s2919 + $0x80] sm:$0xff]
      %v2937 = vld [vmem:[%s2919 + $0x88] sm:$0xff]
      %v2938 = vld [vmem:[%s2919 + $0x90] sm:$0xff]
      %v2939 = vld [vmem:[%s2919 + $0x98] sm:$0xff]
      %v2940 = vld [vmem:[%s2919 + $0xa0] sm:$0xff]
      %v2941 = vld [vmem:[%s2919 + $0xa8] sm:$0xff]
      %v2942 = vld [vmem:[%s2919 + $0xb0] sm:$0xff]
      %v2943 = vld [vmem:[%s2919 + $0xb8] sm:$0xff]
      %v2960 = vunpack.c.l.b16 %v2903
      %v2961 = vunpack.c.h.b16 %v2903
      %v2962 = vunpack.c.l.b16 %v2904
      %v2963 = vunpack.c.h.b16 %v2904
      %v2964 = vunpack.c.l.b16 %v2905
      %v2965 = vunpack.c.h.b16 %v2905
      %v2966 = vunpack.c.l.b16 %v2906
      %v2967 = vunpack.c.h.b16 %v2906
      %v2968 = vunpack.c.l.b16 %v2907
      %v2969 = vunpack.c.h.b16 %v2907
      %v2970 = vunpack.c.l.b16 %v2908
      %v2971 = vunpack.c.h.b16 %v2908
      %v2972 = vunpack.c.l.b16 %v2909
      %v2973 = vunpack.c.h.b16 %v2909
      %v2974 = vunpack.c.l.b16 %v2910
      %v2975 = vunpack.c.h.b16 %v2910
      %v2976 = vunpack.c.l.b16 %v2911
      %v2977 = vunpack.c.h.b16 %v2911
      %v2978 = vunpack.c.l.b16 %v2912
      %v2979 = vunpack.c.h.b16 %v2912
      %v2980 = vunpack.c.l.b16 %v2913
      %v2981 = vunpack.c.h.b16 %v2913
      %v2982 = vunpack.c.l.b16 %v2914
      %v2983 = vunpack.c.h.b16 %v2914
      %v2984 = vunpack.c.l.b16 %v2915
      %v2985 = vunpack.c.h.b16 %v2915
      %v2986 = vunpack.c.l.b16 %v2916
      %v2987 = vunpack.c.h.b16 %v2916
      %v2988 = vunpack.c.l.b16 %v2917
      %v2989 = vunpack.c.h.b16 %v2917
      %v2990 = vunpack.c.l.b16 %v2918
      %v2991 = vunpack.c.h.b16 %v2918
      %v2992 = vpack.c.b16 %v2962, %v2960
      %v2993 = vpack.c.b16 %v2963, %v2961
      %v2994 = vpack.c.b16 %v2966, %v2964
      %v2995 = vpack.c.b16 %v2967, %v2965
      %v2996 = vpack.c.b16 %v2970, %v2968
      %v2997 = vpack.c.b16 %v2971, %v2969
      %v2998 = vpack.c.b16 %v2974, %v2972
      %v2999 = vpack.c.b16 %v2975, %v2973
      %v3000 = vpack.c.b16 %v2978, %v2976
      %v3001 = vpack.c.b16 %v2979, %v2977
      %v3002 = vpack.c.b16 %v2982, %v2980
      %v3003 = vpack.c.b16 %v2983, %v2981
      %v3004 = vpack.c.b16 %v2986, %v2984
      %v3005 = vpack.c.b16 %v2987, %v2985
      %v3006 = vpack.c.b16 %v2990, %v2988
      %v3007 = vpack.c.b16 %v2991, %v2989
      %v3040 = vunpack.c.l.b16 %v2920
      %v3041 = vunpack.c.h.b16 %v2920
      %v3042 = vunpack.c.l.b16 %v2921
      %v3043 = vunpack.c.h.b16 %v2921
      %v3044 = vunpack.c.l.b16 %v2922
      %v3045 = vunpack.c.h.b16 %v2922
      %v3046 = vunpack.c.l.b16 %v2923
      %v3047 = vunpack.c.h.b16 %v2923
      %v3048 = vunpack.c.l.b16 %v2924
      %v3049 = vunpack.c.h.b16 %v2924
      %v3050 = vunpack.c.l.b16 %v2925
      %v3051 = vunpack.c.h.b16 %v2925
      %v3052 = vunpack.c.l.b16 %v2926
      %v3053 = vunpack.c.h.b16 %v2926
      %v3054 = vunpack.c.l.b16 %v2927
      %v3055 = vunpack.c.h.b16 %v2927
      %v3056 = vunpack.c.l.b16 %v2928
      %v3057 = vunpack.c.h.b16 %v2928
      %v3058 = vunpack.c.l.b16 %v2929
      %v3059 = vunpack.c.h.b16 %v2929
      %v3060 = vunpack.c.l.b16 %v2930
      %v3061 = vunpack.c.h.b16 %v2930
      %v3062 = vunpack.c.l.b16 %v2931
      %v3063 = vunpack.c.h.b16 %v2931
      %v3064 = vunpack.c.l.b16 %v2932
      %v3065 = vunpack.c.h.b16 %v2932
      %v3066 = vunpack.c.l.b16 %v2933
      %v3067 = vunpack.c.h.b16 %v2933
      %v3068 = vunpack.c.l.b16 %v2934
      %v3069 = vunpack.c.h.b16 %v2934
      %v3070 = vunpack.c.l.b16 %v2935
      %v3071 = vunpack.c.h.b16 %v2935
      %v3072 = vunpack.c.l.b16 %v2936
      %v3073 = vunpack.c.h.b16 %v2936
      %v3074 = vunpack.c.l.b16 %v2937
      %v3075 = vunpack.c.h.b16 %v2937
      %v3076 = vunpack.c.l.b16 %v2938
      %v3077 = vunpack.c.h.b16 %v2938
      %v3078 = vunpack.c.l.b16 %v2939
      %v3079 = vunpack.c.h.b16 %v2939
      %v3080 = vunpack.c.l.b16 %v2940
      %v3081 = vunpack.c.h.b16 %v2940
      %v3082 = vunpack.c.l.b16 %v2941
      %v3083 = vunpack.c.h.b16 %v2941
      %v3084 = vunpack.c.l.b16 %v2942
      %v3085 = vunpack.c.h.b16 %v2942
      %v3086 = vunpack.c.l.b16 %v2943
      %v3087 = vunpack.c.h.b16 %v2943
      %v3088 = vpack.c.b16 %v3042, %v3040
      %v3089 = vpack.c.b16 %v3043, %v3041
      %v3090 = vpack.c.b16 %v3046, %v3044
      %v3091 = vpack.c.b16 %v3047, %v3045
      %v3092 = vpack.c.b16 %v3050, %v3048
      %v3093 = vpack.c.b16 %v3051, %v3049
      %v3094 = vpack.c.b16 %v3054, %v3052
      %v3095 = vpack.c.b16 %v3055, %v3053
      %v3096 = vpack.c.b16 %v3058, %v3056
      %v3097 = vpack.c.b16 %v3059, %v3057
      %v3098 = vpack.c.b16 %v3062, %v3060
      %v3099 = vpack.c.b16 %v3063, %v3061
      %v3100 = vpack.c.b16 %v3066, %v3064
      %v3101 = vpack.c.b16 %v3067, %v3065
      %v3102 = vpack.c.b16 %v3070, %v3068
      %v3103 = vpack.c.b16 %v3071, %v3069
      %v3104 = vpack.c.b16 %v3074, %v3072
      %v3105 = vpack.c.b16 %v3075, %v3073
      %v3106 = vpack.c.b16 %v3078, %v3076
      %v3107 = vpack.c.b16 %v3079, %v3077
      %v3108 = vpack.c.b16 %v3082, %v3080
      %v3109 = vpack.c.b16 %v3083, %v3081
      %v3110 = vpack.c.b16 %v3086, %v3084
      %v3111 = vpack.c.b16 %v3087, %v3085
      %v3137 = vsel %vm710, %v2993, 0
      %v3140 = vsel %vm710, %v2995, 0
      %v3143 = vsel %vm710, %v2997, 0
      %v3146 = vsel %vm710, %v2999, 0
      %v3149 = vsel %vm710, %v3001, 0
      %v3152 = vsel %vm710, %v3003, 0
      %v3155 = vsel %vm710, %v3005, 0
      %v3158 = vsel %vm710, %v3007, 0
      %3160 = vmatpush.bf16.msra.mxu0 %v3102
      %3161 = vmatpush.bf16.msra.mxu0 %v3100
      %3162 = vmatpush.bf16.msra.mxu0 %v3098
      %3163 = vmatpush.bf16.msra.mxu0 %v3096
      %3164 = vmatpush.bf16.msra.mxu0 %v3094
      %3165 = vmatpush.bf16.msra.mxu0 %v3092
      %3166 = vmatpush.bf16.msra.mxu0 %v3090
      %3167 = vmatpush.bf16.msra.mxu0 %v3088
      %3168 = vmatmul.bf16.gmra.mxu0 %v2992
      %v3169 = vpop.f32.mrf.mxu0
      %v3170 = vadd.f32 0.0, %v3169
      %v3171 = vpop.f32.mrf.mxu0
      %v3172 = vadd.f32 0.0, %v3171
      %3173 = vmatmul.bf16.gmra.mxu0 %v2994
      %v3174 = vpop.f32.mrf.mxu0
      %v3175 = vadd.f32 0.0, %v3174
      %v3176 = vpop.f32.mrf.mxu0
      %v3177 = vadd.f32 0.0, %v3176
      %3178 = vmatmul.bf16.gmra.mxu0 %v2996
      %v3179 = vpop.f32.mrf.mxu0
      %v3180 = vadd.f32 0.0, %v3179
      %v3181 = vpop.f32.mrf.mxu0
      %v3182 = vadd.f32 0.0, %v3181
      %3183 = vmatmul.bf16.gmra.mxu0 %v2998
      %v3184 = vpop.f32.mrf.mxu0
      %v3185 = vadd.f32 0.0, %v3184
      %v3186 = vpop.f32.mrf.mxu0
      %v3187 = vadd.f32 0.0, %v3186
      %3188 = vmatmul.bf16.gmra.mxu0 %v3000
      %v3189 = vpop.f32.mrf.mxu0
      %v3190 = vadd.f32 0.0, %v3189
      %v3191 = vpop.f32.mrf.mxu0
      %v3192 = vadd.f32 0.0, %v3191
      %3193 = vmatmul.bf16.gmra.mxu0 %v3002
      %v3194 = vpop.f32.mrf.mxu0
      %v3195 = vadd.f32 0.0, %v3194
      %v3196 = vpop.f32.mrf.mxu0
      %v3197 = vadd.f32 0.0, %v3196
      %3198 = vmatmul.bf16.gmra.mxu0 %v3004
      %v3199 = vpop.f32.mrf.mxu0
      %v3200 = vadd.f32 0.0, %v3199
      %v3201 = vpop.f32.mrf.mxu0
      %v3202 = vadd.f32 0.0, %v3201
      %3203 = vmatmul.bf16.gmra.mxu0 %v3006
      %v3204 = vpop.f32.mrf.mxu0
      %v3205 = vadd.f32 0.0, %v3204
      %v3206 = vpop.f32.mrf.mxu0
      %v3207 = vadd.f32 0.0, %v3206
      %3208 = vdwg.mxu0
      %3209 = vmatpush.bf16.msra.mxu0 0
      %3210 = vmatpush.bf16.msra.mxu0 0
      %3211 = vmatpush.bf16.msra.mxu0 0
      %3212 = vmatpush.bf16.msra.mxu0 0
      %3213 = vmatpush.bf16.msra.mxu0 %v3110
      %3214 = vmatpush.bf16.msra.mxu0 %v3108
      %3215 = vmatpush.bf16.msra.mxu0 %v3106
      %3216 = vmatpush.bf16.msra.mxu0 %v3104
      %3217 = vmatmul.bf16.gmra.mxu0 %v3137
      %v3218 = vpop.f32.mrf.mxu0
      %v3219 = vadd.f32 %v3170, %v3218
      %v3220 = vpop.f32.mrf.mxu0
      %v3221 = vadd.f32 %v3172, %v3220
      %3222 = vmatmul.bf16.gmra.mxu0 %v3140
      %v3223 = vpop.f32.mrf.mxu0
      %v3224 = vadd.f32 %v3175, %v3223
      %v3225 = vpop.f32.mrf.mxu0
      %v3226 = vadd.f32 %v3177, %v3225
      %3227 = vmatmul.bf16.gmra.mxu0 %v3143
      %v3228 = vpop.f32.mrf.mxu0
      %v3229 = vadd.f32 %v3180, %v3228
      %v3230 = vpop.f32.mrf.mxu0
      %v3231 = vadd.f32 %v3182, %v3230
      %3232 = vmatmul.bf16.gmra.mxu0 %v3146
      %v3233 = vpop.f32.mrf.mxu0
      %v3234 = vadd.f32 %v3185, %v3233
      %v3235 = vpop.f32.mrf.mxu0
      %v3236 = vadd.f32 %v3187, %v3235
      %3237 = vmatmul.bf16.gmra.mxu0 %v3149
      %v3238 = vpop.f32.mrf.mxu0
      %v3239 = vadd.f32 %v3190, %v3238
      %v3240 = vpop.f32.mrf.mxu0
      %v3241 = vadd.f32 %v3192, %v3240
      %3242 = vmatmul.bf16.gmra.mxu0 %v3152
      %v3243 = vpop.f32.mrf.mxu0
      %v3244 = vadd.f32 %v3195, %v3243
      %v3245 = vpop.f32.mrf.mxu0
      %v3246 = vadd.f32 %v3197, %v3245
      %3247 = vmatmul.bf16.gmra.mxu0 %v3155
      %v3248 = vpop.f32.mrf.mxu0
      %v3249 = vadd.f32 %v3200, %v3248
      %v3250 = vpop.f32.mrf.mxu0
      %v3251 = vadd.f32 %v3202, %v3250
      %3252 = vmatmul.bf16.gmra.mxu0 %v3158
      %v3253 = vpop.f32.mrf.mxu0
      %v3254 = vadd.f32 %v3205, %v3253
      %v3255 = vpop.f32.mrf.mxu0
      %v3256 = vadd.f32 %v3207, %v3255
      %3257 = vdwg.mxu0
      %3258 = vmatpush.bf16.msra.mxu0 %v3103
      %3259 = vmatpush.bf16.msra.mxu0 %v3101
      %3260 = vmatpush.bf16.msra.mxu0 %v3099
      %3261 = vmatpush.bf16.msra.mxu0 %v3097
      %3262 = vmatpush.bf16.msra.mxu0 %v3095
      %3263 = vmatpush.bf16.msra.mxu0 %v3093
      %3264 = vmatpush.bf16.msra.mxu0 %v3091
      %3265 = vmatpush.bf16.msra.mxu0 %v3089
      %3266 = vmatmul.bf16.gmra.mxu0 %v2992
      %v3267 = vpop.f32.mrf.mxu0
      %v3268 = vadd.f32 0.0, %v3267
      %v3269 = vpop.f32.mrf.mxu0
      %v3270 = vadd.f32 0.0, %v3269
      %3271 = vmatmul.bf16.gmra.mxu0 %v2994
      %v3272 = vpop.f32.mrf.mxu0
      %v3273 = vadd.f32 0.0, %v3272
      %v3274 = vpop.f32.mrf.mxu0
      %v3275 = vadd.f32 0.0, %v3274
      %3276 = vmatmul.bf16.gmra.mxu0 %v2996
      %v3277 = vpop.f32.mrf.mxu0
      %v3278 = vadd.f32 0.0, %v3277
      %v3279 = vpop.f32.mrf.mxu0
      %v3280 = vadd.f32 0.0, %v3279
      %3281 = vmatmul.bf16.gmra.mxu0 %v2998
      %v3282 = vpop.f32.mrf.mxu0
      %v3283 = vadd.f32 0.0, %v3282
      %v3284 = vpop.f32.mrf.mxu0
      %v3285 = vadd.f32 0.0, %v3284
      %3286 = vmatmul.bf16.gmra.mxu0 %v3000
      %v3287 = vpop.f32.mrf.mxu0
      %v3288 = vadd.f32 0.0, %v3287
      %v3289 = vpop.f32.mrf.mxu0
      %v3290 = vadd.f32 0.0, %v3289
      %3291 = vmatmul.bf16.gmra.mxu0 %v3002
      %v3292 = vpop.f32.mrf.mxu0
      %v3293 = vadd.f32 0.0, %v3292
      %v3294 = vpop.f32.mrf.mxu0
      %v3295 = vadd.f32 0.0, %v3294
      %3296 = vmatmul.bf16.gmra.mxu0 %v3004
      %v3297 = vpop.f32.mrf.mxu0
      %v3298 = vadd.f32 0.0, %v3297
      %v3299 = vpop.f32.mrf.mxu0
      %v3300 = vadd.f32 0.0, %v3299
      %3301 = vmatmul.bf16.gmra.mxu0 %v3006
      %v3302 = vpop.f32.mrf.mxu0
      %v3303 = vadd.f32 0.0, %v3302
      %v3304 = vpop.f32.mrf.mxu0
      %v3305 = vadd.f32 0.0, %v3304
      %3306 = vdwg.mxu0
      %3307 = vmatpush.bf16.msra.mxu0 0
      %3308 = vmatpush.bf16.msra.mxu0 0
      %3309 = vmatpush.bf16.msra.mxu0 0
      %3310 = vmatpush.bf16.msra.mxu0 0
      %3311 = vmatpush.bf16.msra.mxu0 %v3111
      %3312 = vmatpush.bf16.msra.mxu0 %v3109
      %3313 = vmatpush.bf16.msra.mxu0 %v3107
      %3314 = vmatpush.bf16.msra.mxu0 %v3105
      %3315 = vmatmul.bf16.gmra.mxu0 %v3137
      %v3316 = vpop.f32.mrf.mxu0
      %v3317 = vadd.f32 %v3268, %v3316
      %v3318 = vpop.f32.mrf.mxu0
      %v3319 = vadd.f32 %v3270, %v3318
      %3320 = vmatmul.bf16.gmra.mxu0 %v3140
      %v3321 = vpop.f32.mrf.mxu0
      %v3322 = vadd.f32 %v3273, %v3321
      %v3323 = vpop.f32.mrf.mxu0
      %v3324 = vadd.f32 %v3275, %v3323
      %3325 = vmatmul.bf16.gmra.mxu0 %v3143
      %v3326 = vpop.f32.mrf.mxu0
      %v3327 = vadd.f32 %v3278, %v3326
      %v3328 = vpop.f32.mrf.mxu0
      %v3329 = vadd.f32 %v3280, %v3328
      %3330 = vmatmul.bf16.gmra.mxu0 %v3146
      %v3331 = vpop.f32.mrf.mxu0
      %v3332 = vadd.f32 %v3283, %v3331
      %v3333 = vpop.f32.mrf.mxu0
      %v3334 = vadd.f32 %v3285, %v3333
      %3335 = vmatmul.bf16.gmra.mxu0 %v3149
      %v3336 = vpop.f32.mrf.mxu0
      %v3337 = vadd.f32 %v3288, %v3336
      %v3338 = vpop.f32.mrf.mxu0
      %v3339 = vadd.f32 %v3290, %v3338
      %3340 = vmatmul.bf16.gmra.mxu0 %v3152
      %v3341 = vpop.f32.mrf.mxu0
      %v3342 = vadd.f32 %v3293, %v3341
      %v3343 = vpop.f32.mrf.mxu0
      %v3344 = vadd.f32 %v3295, %v3343
      %3345 = vmatmul.bf16.gmra.mxu0 %v3155
      %v3346 = vpop.f32.mrf.mxu0
      %v3347 = vadd.f32 %v3298, %v3346
      %v3348 = vpop.f32.mrf.mxu0
      %v3349 = vadd.f32 %v3300, %v3348
      %3350 = vmatmul.bf16.gmra.mxu0 %v3158
      %v3351 = vpop.f32.mrf.mxu0
      %v3352 = vadd.f32 %v3303, %v3351
      %v3353 = vpop.f32.mrf.mxu0
      %v3354 = vadd.f32 %v3305, %v3353
      %3355 = vdwg.mxu0
      %v3356 = vadd.f32 %v2871, %v3219
      %v3357 = vadd.f32 %v2872, %v3317
      %v3358 = vadd.f32 %v2873, %v3221
      %v3359 = vadd.f32 %v2874, %v3319
      %v3360 = vadd.f32 %v2875, %v3224
      %v3361 = vadd.f32 %v2876, %v3322
      %v3362 = vadd.f32 %v2877, %v3226
      %v3363 = vadd.f32 %v2878, %v3324
      %v3364 = vadd.f32 %v2879, %v3229
      %v3365 = vadd.f32 %v2880, %v3327
      %v3366 = vadd.f32 %v2881, %v3231
      %v3367 = vadd.f32 %v2882, %v3329
      %v3368 = vadd.f32 %v2883, %v3234
      %v3369 = vadd.f32 %v2884, %v3332
      %v3370 = vadd.f32 %v2885, %v3236
      %v3371 = vadd.f32 %v2886, %v3334
      %v3372 = vadd.f32 %v2887, %v3239
      %v3373 = vadd.f32 %v2888, %v3337
      %v3374 = vadd.f32 %v2889, %v3241
      %v3375 = vadd.f32 %v2890, %v3339
      %v3376 = vadd.f32 %v2891, %v3244
      %v3377 = vadd.f32 %v2892, %v3342
      %v3378 = vadd.f32 %v2893, %v3246
      %v3379 = vadd.f32 %v2894, %v3344
      %v3380 = vadd.f32 %v2895, %v3249
      %v3381 = vadd.f32 %v2896, %v3347
      %v3382 = vadd.f32 %v2897, %v3251
      %v3383 = vadd.f32 %v2898, %v3349
      %v3384 = vadd.f32 %v2899, %v3254
      %v3385 = vadd.f32 %v2900, %v3352
      %v3386 = vadd.f32 %v2901, %v3256
      %v3387 = vadd.f32 %v2902, %v3354
      %v3388 = vld [vmem:[#allocation2 + $0x18] sm:$0xff]
      %v3389 = vld [vmem:[#allocation2 + $0x20] sm:$0xff]
      %v3390 = vld [vmem:[#allocation2 + $0x28] sm:$0xff]
      %v3391 = vld [vmem:[#allocation2 + $0x30] sm:$0xff]
      %v3392 = vld [vmem:[#allocation2 + $0x38] sm:$0xff]
      %v3393 = vld [vmem:[#allocation2 + $0x40] sm:$0xff]
      %v3394 = vld [vmem:[#allocation2 + $0x48] sm:$0xff]
      %v3395 = vld [vmem:[#allocation2 + $0x50] sm:$0xff]
      %v3396 = vld [vmem:[#allocation2 + $0x58] sm:$0xff]
      %v3397 = vld [vmem:[#allocation2 + $0x60] sm:$0xff]
      %v3398 = vld [vmem:[#allocation2 + $0x68] sm:$0xff]
      %v3399 = vld [vmem:[#allocation2 + $0x70] sm:$0xff]
      %v3400 = vld [vmem:[#allocation2 + $0x78] sm:$0xff]
      %v3401 = vld [vmem:[#allocation2 + $0x80] sm:$0xff]
      %v3402 = vld [vmem:[#allocation2 + $0x88] sm:$0xff]
      %v3403 = vld [vmem:[#allocation2 + $0x90] sm:$0xff]
      %s3404 = scalar_lea.vmem %s1, 1152
      %v3405 = vld [vmem:[%s3404] sm:$0xff]
      %v3406 = vld [vmem:[%s3404 + $0x8] sm:$0xff]
      %v3407 = vld [vmem:[%s3404 + $0x10] sm:$0xff]
      %v3408 = vld [vmem:[%s3404 + $0x18] sm:$0xff]
      %v3409 = vld [vmem:[%s3404 + $0x20] sm:$0xff]
      %v3410 = vld [vmem:[%s3404 + $0x28] sm:$0xff]
      %v3411 = vld [vmem:[%s3404 + $0x30] sm:$0xff]
      %v3412 = vld [vmem:[%s3404 + $0x38] sm:$0xff]
      %v3413 = vld [vmem:[%s3404 + $0x40] sm:$0xff]
      %v3414 = vld [vmem:[%s3404 + $0x48] sm:$0xff]
      %v3415 = vld [vmem:[%s3404 + $0x50] sm:$0xff]
      %v3416 = vld [vmem:[%s3404 + $0x58] sm:$0xff]
      %v3417 = vld [vmem:[%s3404 + $0x60] sm:$0xff]
      %v3418 = vld [vmem:[%s3404 + $0x68] sm:$0xff]
      %v3419 = vld [vmem:[%s3404 + $0x70] sm:$0xff]
      %v3420 = vld [vmem:[%s3404 + $0x78] sm:$0xff]
      %v3421 = vld [vmem:[%s3404 + $0x80] sm:$0xff]
      %v3422 = vld [vmem:[%s3404 + $0x88] sm:$0xff]
      %v3423 = vld [vmem:[%s3404 + $0x90] sm:$0xff]
      %v3424 = vld [vmem:[%s3404 + $0x98] sm:$0xff]
      %v3425 = vld [vmem:[%s3404 + $0xa0] sm:$0xff]
      %v3426 = vld [vmem:[%s3404 + $0xa8] sm:$0xff]
      %v3427 = vld [vmem:[%s3404 + $0xb0] sm:$0xff]
      %v3428 = vld [vmem:[%s3404 + $0xb8] sm:$0xff]
      %v3445 = vunpack.c.l.b16 %v3388
      %v3446 = vunpack.c.h.b16 %v3388
      %v3447 = vunpack.c.l.b16 %v3389
      %v3448 = vunpack.c.h.b16 %v3389
      %v3449 = vunpack.c.l.b16 %v3390
      %v3450 = vunpack.c.h.b16 %v3390
      %v3451 = vunpack.c.l.b16 %v3391
      %v3452 = vunpack.c.h.b16 %v3391
      %v3453 = vunpack.c.l.b16 %v3392
      %v3454 = vunpack.c.h.b16 %v3392
      %v3455 = vunpack.c.l.b16 %v3393
      %v3456 = vunpack.c.h.b16 %v3393
      %v3457 = vunpack.c.l.b16 %v3394
      %v3458 = vunpack.c.h.b16 %v3394
      %v3459 = vunpack.c.l.b16 %v3395
      %v3460 = vunpack.c.h.b16 %v3395
      %v3461 = vunpack.c.l.b16 %v3396
      %v3462 = vunpack.c.h.b16 %v3396
      %v3463 = vunpack.c.l.b16 %v3397
      %v3464 = vunpack.c.h.b16 %v3397
      %v3465 = vunpack.c.l.b16 %v3398
      %v3466 = vunpack.c.h.b16 %v3398
      %v3467 = vunpack.c.l.b16 %v3399
      %v3468 = vunpack.c.h.b16 %v3399
      %v3469 = vunpack.c.l.b16 %v3400
      %v3470 = vunpack.c.h.b16 %v3400
      %v3471 = vunpack.c.l.b16 %v3401
      %v3472 = vunpack.c.h.b16 %v3401
      %v3473 = vunpack.c.l.b16 %v3402
      %v3474 = vunpack.c.h.b16 %v3402
      %v3475 = vunpack.c.l.b16 %v3403
      %v3476 = vunpack.c.h.b16 %v3403
      %v3477 = vpack.c.b16 %v3447, %v3445
      %v3478 = vpack.c.b16 %v3448, %v3446
      %v3479 = vpack.c.b16 %v3451, %v3449
      %v3480 = vpack.c.b16 %v3452, %v3450
      %v3481 = vpack.c.b16 %v3455, %v3453
      %v3482 = vpack.c.b16 %v3456, %v3454
      %v3483 = vpack.c.b16 %v3459, %v3457
      %v3484 = vpack.c.b16 %v3460, %v3458
      %v3485 = vpack.c.b16 %v3463, %v3461
      %v3486 = vpack.c.b16 %v3464, %v3462
      %v3487 = vpack.c.b16 %v3467, %v3465
      %v3488 = vpack.c.b16 %v3468, %v3466
      %v3489 = vpack.c.b16 %v3471, %v3469
      %v3490 = vpack.c.b16 %v3472, %v3470
      %v3491 = vpack.c.b16 %v3475, %v3473
      %v3492 = vpack.c.b16 %v3476, %v3474
      %v3525 = vunpack.c.l.b16 %v3405
      %v3526 = vunpack.c.h.b16 %v3405
      %v3527 = vunpack.c.l.b16 %v3406
      %v3528 = vunpack.c.h.b16 %v3406
      %v3529 = vunpack.c.l.b16 %v3407
      %v3530 = vunpack.c.h.b16 %v3407
      %v3531 = vunpack.c.l.b16 %v3408
      %v3532 = vunpack.c.h.b16 %v3408
      %v3533 = vunpack.c.l.b16 %v3409
      %v3534 = vunpack.c.h.b16 %v3409
      %v3535 = vunpack.c.l.b16 %v3410
      %v3536 = vunpack.c.h.b16 %v3410
      %v3537 = vunpack.c.l.b16 %v3411
      %v3538 = vunpack.c.h.b16 %v3411
      %v3539 = vunpack.c.l.b16 %v3412
      %v3540 = vunpack.c.h.b16 %v3412
      %v3541 = vunpack.c.l.b16 %v3413
      %v3542 = vunpack.c.h.b16 %v3413
      %v3543 = vunpack.c.l.b16 %v3414
      %v3544 = vunpack.c.h.b16 %v3414
      %v3545 = vunpack.c.l.b16 %v3415
      %v3546 = vunpack.c.h.b16 %v3415
      %v3547 = vunpack.c.l.b16 %v3416
      %v3548 = vunpack.c.h.b16 %v3416
      %v3549 = vunpack.c.l.b16 %v3417
      %v3550 = vunpack.c.h.b16 %v3417
      %v3551 = vunpack.c.l.b16 %v3418
      %v3552 = vunpack.c.h.b16 %v3418
      %v3553 = vunpack.c.l.b16 %v3419
      %v3554 = vunpack.c.h.b16 %v3419
      %v3555 = vunpack.c.l.b16 %v3420
      %v3556 = vunpack.c.h.b16 %v3420
      %v3557 = vunpack.c.l.b16 %v3421
      %v3558 = vunpack.c.h.b16 %v3421
      %v3559 = vunpack.c.l.b16 %v3422
      %v3560 = vunpack.c.h.b16 %v3422
      %v3561 = vunpack.c.l.b16 %v3423
      %v3562 = vunpack.c.h.b16 %v3423
      %v3563 = vunpack.c.l.b16 %v3424
      %v3564 = vunpack.c.h.b16 %v3424
      %v3565 = vunpack.c.l.b16 %v3425
      %v3566 = vunpack.c.h.b16 %v3425
      %v3567 = vunpack.c.l.b16 %v3426
      %v3568 = vunpack.c.h.b16 %v3426
      %v3569 = vunpack.c.l.b16 %v3427
      %v3570 = vunpack.c.h.b16 %v3427
      %v3571 = vunpack.c.l.b16 %v3428
      %v3572 = vunpack.c.h.b16 %v3428
      %v3573 = vpack.c.b16 %v3527, %v3525
      %v3574 = vpack.c.b16 %v3528, %v3526
      %v3575 = vpack.c.b16 %v3531, %v3529
      %v3576 = vpack.c.b16 %v3532, %v3530
      %v3577 = vpack.c.b16 %v3535, %v3533
      %v3578 = vpack.c.b16 %v3536, %v3534
      %v3579 = vpack.c.b16 %v3539, %v3537
      %v3580 = vpack.c.b16 %v3540, %v3538
      %v3581 = vpack.c.b16 %v3543, %v3541
      %v3582 = vpack.c.b16 %v3544, %v3542
      %v3583 = vpack.c.b16 %v3547, %v3545
      %v3584 = vpack.c.b16 %v3548, %v3546
      %v3585 = vpack.c.b16 %v3551, %v3549
      %v3586 = vpack.c.b16 %v3552, %v3550
      %v3587 = vpack.c.b16 %v3555, %v3553
      %v3588 = vpack.c.b16 %v3556, %v3554
      %v3589 = vpack.c.b16 %v3559, %v3557
      %v3590 = vpack.c.b16 %v3560, %v3558
      %v3591 = vpack.c.b16 %v3563, %v3561
      %v3592 = vpack.c.b16 %v3564, %v3562
      %v3593 = vpack.c.b16 %v3567, %v3565
      %v3594 = vpack.c.b16 %v3568, %v3566
      %v3595 = vpack.c.b16 %v3571, %v3569
      %v3596 = vpack.c.b16 %v3572, %v3570
      %v3622 = vsel %vm710, %v3478, 0
      %v3625 = vsel %vm710, %v3480, 0
      %v3628 = vsel %vm710, %v3482, 0
      %v3631 = vsel %vm710, %v3484, 0
      %v3634 = vsel %vm710, %v3486, 0
      %v3637 = vsel %vm710, %v3488, 0
      %v3640 = vsel %vm710, %v3490, 0
      %v3643 = vsel %vm710, %v3492, 0
      %3645 = vmatpush.bf16.msra.mxu0 %v3587
      %3646 = vmatpush.bf16.msra.mxu0 %v3585
      %3647 = vmatpush.bf16.msra.mxu0 %v3583
      %3648 = vmatpush.bf16.msra.mxu0 %v3581
      %3649 = vmatpush.bf16.msra.mxu0 %v3579
      %3650 = vmatpush.bf16.msra.mxu0 %v3577
      %3651 = vmatpush.bf16.msra.mxu0 %v3575
      %3652 = vmatpush.bf16.msra.mxu0 %v3573
      %3653 = vmatmul.bf16.gmra.mxu0 %v3477
      %v3654 = vpop.f32.mrf.mxu0
      %v3655 = vadd.f32 0.0, %v3654
      %v3656 = vpop.f32.mrf.mxu0
      %v3657 = vadd.f32 0.0, %v3656
      %3658 = vmatmul.bf16.gmra.mxu0 %v3479
      %v3659 = vpop.f32.mrf.mxu0
      %v3660 = vadd.f32 0.0, %v3659
      %v3661 = vpop.f32.mrf.mxu0
      %v3662 = vadd.f32 0.0, %v3661
      %3663 = vmatmul.bf16.gmra.mxu0 %v3481
      %v3664 = vpop.f32.mrf.mxu0
      %v3665 = vadd.f32 0.0, %v3664
      %v3666 = vpop.f32.mrf.mxu0
      %v3667 = vadd.f32 0.0, %v3666
      %3668 = vmatmul.bf16.gmra.mxu0 %v3483
      %v3669 = vpop.f32.mrf.mxu0
      %v3670 = vadd.f32 0.0, %v3669
      %v3671 = vpop.f32.mrf.mxu0
      %v3672 = vadd.f32 0.0, %v3671
      %3673 = vmatmul.bf16.gmra.mxu0 %v3485
      %v3674 = vpop.f32.mrf.mxu0
      %v3675 = vadd.f32 0.0, %v3674
      %v3676 = vpop.f32.mrf.mxu0
      %v3677 = vadd.f32 0.0, %v3676
      %3678 = vmatmul.bf16.gmra.mxu0 %v3487
      %v3679 = vpop.f32.mrf.mxu0
      %v3680 = vadd.f32 0.0, %v3679
      %v3681 = vpop.f32.mrf.mxu0
      %v3682 = vadd.f32 0.0, %v3681
      %3683 = vmatmul.bf16.gmra.mxu0 %v3489
      %v3684 = vpop.f32.mrf.mxu0
      %v3685 = vadd.f32 0.0, %v3684
      %v3686 = vpop.f32.mrf.mxu0
      %v3687 = vadd.f32 0.0, %v3686
      %3688 = vmatmul.bf16.gmra.mxu0 %v3491
      %v3689 = vpop.f32.mrf.mxu0
      %v3690 = vadd.f32 0.0, %v3689
      %v3691 = vpop.f32.mrf.mxu0
      %v3692 = vadd.f32 0.0, %v3691
      %3693 = vdwg.mxu0
      %3694 = vmatpush.bf16.msra.mxu0 0
      %3695 = vmatpush.bf16.msra.mxu0 0
      %3696 = vmatpush.bf16.msra.mxu0 0
      %3697 = vmatpush.bf16.msra.mxu0 0
      %3698 = vmatpush.bf16.msra.mxu0 %v3595
      %3699 = vmatpush.bf16.msra.mxu0 %v3593
      %3700 = vmatpush.bf16.msra.mxu0 %v3591
      %3701 = vmatpush.bf16.msra.mxu0 %v3589
      %3702 = vmatmul.bf16.gmra.mxu0 %v3622
      %v3703 = vpop.f32.mrf.mxu0
      %v3704 = vadd.f32 %v3655, %v3703
      %v3705 = vpop.f32.mrf.mxu0
      %v3706 = vadd.f32 %v3657, %v3705
      %3707 = vmatmul.bf16.gmra.mxu0 %v3625
      %v3708 = vpop.f32.mrf.mxu0
      %v3709 = vadd.f32 %v3660, %v3708
      %v3710 = vpop.f32.mrf.mxu0
      %v3711 = vadd.f32 %v3662, %v3710
      %3712 = vmatmul.bf16.gmra.mxu0 %v3628
      %v3713 = vpop.f32.mrf.mxu0
      %v3714 = vadd.f32 %v3665, %v3713
      %v3715 = vpop.f32.mrf.mxu0
      %v3716 = vadd.f32 %v3667, %v3715
      %3717 = vmatmul.bf16.gmra.mxu0 %v3631
      %v3718 = vpop.f32.mrf.mxu0
      %v3719 = vadd.f32 %v3670, %v3718
      %v3720 = vpop.f32.mrf.mxu0
      %v3721 = vadd.f32 %v3672, %v3720
      %3722 = vmatmul.bf16.gmra.mxu0 %v3634
      %v3723 = vpop.f32.mrf.mxu0
      %v3724 = vadd.f32 %v3675, %v3723
      %v3725 = vpop.f32.mrf.mxu0
      %v3726 = vadd.f32 %v3677, %v3725
      %3727 = vmatmul.bf16.gmra.mxu0 %v3637
      %v3728 = vpop.f32.mrf.mxu0
      %v3729 = vadd.f32 %v3680, %v3728
      %v3730 = vpop.f32.mrf.mxu0
      %v3731 = vadd.f32 %v3682, %v3730
      %3732 = vmatmul.bf16.gmra.mxu0 %v3640
      %v3733 = vpop.f32.mrf.mxu0
      %v3734 = vadd.f32 %v3685, %v3733
      %v3735 = vpop.f32.mrf.mxu0
      %v3736 = vadd.f32 %v3687, %v3735
      %3737 = vmatmul.bf16.gmra.mxu0 %v3643
      %v3738 = vpop.f32.mrf.mxu0
      %v3739 = vadd.f32 %v3690, %v3738
      %v3740 = vpop.f32.mrf.mxu0
      %v3741 = vadd.f32 %v3692, %v3740
      %3742 = vdwg.mxu0
      %3743 = vmatpush.bf16.msra.mxu0 %v3588
      %3744 = vmatpush.bf16.msra.mxu0 %v3586
      %3745 = vmatpush.bf16.msra.mxu0 %v3584
      %3746 = vmatpush.bf16.msra.mxu0 %v3582
      %3747 = vmatpush.bf16.msra.mxu0 %v3580
      %3748 = vmatpush.bf16.msra.mxu0 %v3578
      %3749 = vmatpush.bf16.msra.mxu0 %v3576
      %3750 = vmatpush.bf16.msra.mxu0 %v3574
      %3751 = vmatmul.bf16.gmra.mxu0 %v3477
      %v3752 = vpop.f32.mrf.mxu0
      %v3753 = vadd.f32 0.0, %v3752
      %v3754 = vpop.f32.mrf.mxu0
      %v3755 = vadd.f32 0.0, %v3754
      %3756 = vmatmul.bf16.gmra.mxu0 %v3479
      %v3757 = vpop.f32.mrf.mxu0
      %v3758 = vadd.f32 0.0, %v3757
      %v3759 = vpop.f32.mrf.mxu0
      %v3760 = vadd.f32 0.0, %v3759
      %3761 = vmatmul.bf16.gmra.mxu0 %v3481
      %v3762 = vpop.f32.mrf.mxu0
      %v3763 = vadd.f32 0.0, %v3762
      %v3764 = vpop.f32.mrf.mxu0
      %v3765 = vadd.f32 0.0, %v3764
      %3766 = vmatmul.bf16.gmra.mxu0 %v3483
      %v3767 = vpop.f32.mrf.mxu0
      %v3768 = vadd.f32 0.0, %v3767
      %v3769 = vpop.f32.mrf.mxu0
      %v3770 = vadd.f32 0.0, %v3769
      %3771 = vmatmul.bf16.gmra.mxu0 %v3485
      %v3772 = vpop.f32.mrf.mxu0
      %v3773 = vadd.f32 0.0, %v3772
      %v3774 = vpop.f32.mrf.mxu0
      %v3775 = vadd.f32 0.0, %v3774
      %3776 = vmatmul.bf16.gmra.mxu0 %v3487
      %v3777 = vpop.f32.mrf.mxu0
      %v3778 = vadd.f32 0.0, %v3777
      %v3779 = vpop.f32.mrf.mxu0
      %v3780 = vadd.f32 0.0, %v3779
      %3781 = vmatmul.bf16.gmra.mxu0 %v3489
      %v3782 = vpop.f32.mrf.mxu0
      %v3783 = vadd.f32 0.0, %v3782
      %v3784 = vpop.f32.mrf.mxu0
      %v3785 = vadd.f32 0.0, %v3784
      %3786 = vmatmul.bf16.gmra.mxu0 %v3491
      %v3787 = vpop.f32.mrf.mxu0
      %v3788 = vadd.f32 0.0, %v3787
      %v3789 = vpop.f32.mrf.mxu0
      %v3790 = vadd.f32 0.0, %v3789
      %3791 = vdwg.mxu0
      %3792 = vmatpush.bf16.msra.mxu0 0
      %3793 = vmatpush.bf16.msra.mxu0 0
      %3794 = vmatpush.bf16.msra.mxu0 0
      %3795 = vmatpush.bf16.msra.mxu0 0
      %3796 = vmatpush.bf16.msra.mxu0 %v3596
      %3797 = vmatpush.bf16.msra.mxu0 %v3594
      %3798 = vmatpush.bf16.msra.mxu0 %v3592
      %3799 = vmatpush.bf16.msra.mxu0 %v3590
      %3800 = vmatmul.bf16.gmra.mxu0 %v3622
      %v3801 = vpop.f32.mrf.mxu0
      %v3802 = vadd.f32 %v3753, %v3801
      %v3803 = vpop.f32.mrf.mxu0
      %v3804 = vadd.f32 %v3755, %v3803
      %3805 = vmatmul.bf16.gmra.mxu0 %v3625
      %v3806 = vpop.f32.mrf.mxu0
      %v3807 = vadd.f32 %v3758, %v3806
      %v3808 = vpop.f32.mrf.mxu0
      %v3809 = vadd.f32 %v3760, %v3808
      %3810 = vmatmul.bf16.gmra.mxu0 %v3628
      %v3811 = vpop.f32.mrf.mxu0
      %v3812 = vadd.f32 %v3763, %v3811
      %v3813 = vpop.f32.mrf.mxu0
      %v3814 = vadd.f32 %v3765, %v3813
      %3815 = vmatmul.bf16.gmra.mxu0 %v3631
      %v3816 = vpop.f32.mrf.mxu0
      %v3817 = vadd.f32 %v3768, %v3816
      %v3818 = vpop.f32.mrf.mxu0
      %v3819 = vadd.f32 %v3770, %v3818
      %3820 = vmatmul.bf16.gmra.mxu0 %v3634
      %v3821 = vpop.f32.mrf.mxu0
      %v3822 = vadd.f32 %v3773, %v3821
      %v3823 = vpop.f32.mrf.mxu0
      %v3824 = vadd.f32 %v3775, %v3823
      %3825 = vmatmul.bf16.gmra.mxu0 %v3637
      %v3826 = vpop.f32.mrf.mxu0
      %v3827 = vadd.f32 %v3778, %v3826
      %v3828 = vpop.f32.mrf.mxu0
      %v3829 = vadd.f32 %v3780, %v3828
      %3830 = vmatmul.bf16.gmra.mxu0 %v3640
      %v3831 = vpop.f32.mrf.mxu0
      %v3832 = vadd.f32 %v3783, %v3831
      %v3833 = vpop.f32.mrf.mxu0
      %v3834 = vadd.f32 %v3785, %v3833
      %3835 = vmatmul.bf16.gmra.mxu0 %v3643
      %v3836 = vpop.f32.mrf.mxu0
      %v3837 = vadd.f32 %v3788, %v3836
      %v3838 = vpop.f32.mrf.mxu0
      %v3839 = vadd.f32 %v3790, %v3838
      %3840 = vdwg.mxu0
      %v3841 = vadd.f32 %v3356, %v3704
      %v3842 = vadd.f32 %v3357, %v3802
      %v3843 = vadd.f32 %v3358, %v3706
      %v3844 = vadd.f32 %v3359, %v3804
      %v3845 = vadd.f32 %v3360, %v3709
      %v3846 = vadd.f32 %v3361, %v3807
      %v3847 = vadd.f32 %v3362, %v3711
      %v3848 = vadd.f32 %v3363, %v3809
      %v3849 = vadd.f32 %v3364, %v3714
      %v3850 = vadd.f32 %v3365, %v3812
      %v3851 = vadd.f32 %v3366, %v3716
      %v3852 = vadd.f32 %v3367, %v3814
      %v3853 = vadd.f32 %v3368, %v3719
      %v3854 = vadd.f32 %v3369, %v3817
      %v3855 = vadd.f32 %v3370, %v3721
      %v3856 = vadd.f32 %v3371, %v3819
      %v3857 = vadd.f32 %v3372, %v3724
      %v3858 = vadd.f32 %v3373, %v3822
      %v3859 = vadd.f32 %v3374, %v3726
      %v3860 = vadd.f32 %v3375, %v3824
      %v3861 = vadd.f32 %v3376, %v3729
      %v3862 = vadd.f32 %v3377, %v3827
      %v3863 = vadd.f32 %v3378, %v3731
      %v3864 = vadd.f32 %v3379, %v3829
      %v3865 = vadd.f32 %v3380, %v3734
      %v3866 = vadd.f32 %v3381, %v3832
      %v3867 = vadd.f32 %v3382, %v3736
      %v3868 = vadd.f32 %v3383, %v3834
      %v3869 = vadd.f32 %v3384, %v3739
      %v3870 = vadd.f32 %v3385, %v3837
      %v3871 = vadd.f32 %v3386, %v3741
      %v3872 = vadd.f32 %v3387, %v3839
      %vm3873 = vcmp.ge.f32.partialorder %v3841, 0.0
      %vm3874 = vcmp.ge.f32.partialorder %v3842, 0.0
      %vm3875 = vcmp.ge.f32.partialorder %v3843, 0.0
      %vm3876 = vcmp.ge.f32.partialorder %v3844, 0.0
      %vm3877 = vcmp.ge.f32.partialorder %v3845, 0.0
      %vm3878 = vcmp.ge.f32.partialorder %v3846, 0.0
      %vm3879 = vcmp.ge.f32.partialorder %v3847, 0.0
      %vm3880 = vcmp.ge.f32.partialorder %v3848, 0.0
      %vm3881 = vcmp.ge.f32.partialorder %v3849, 0.0
      %vm3882 = vcmp.ge.f32.partialorder %v3850, 0.0
      %vm3883 = vcmp.ge.f32.partialorder %v3851, 0.0
      %vm3884 = vcmp.ge.f32.partialorder %v3852, 0.0
      %vm3885 = vcmp.ge.f32.partialorder %v3853, 0.0
      %vm3886 = vcmp.ge.f32.partialorder %v3854, 0.0
      %vm3887 = vcmp.ge.f32.partialorder %v3855, 0.0
      %vm3888 = vcmp.ge.f32.partialorder %v3856, 0.0
      %vm3889 = vcmp.ge.f32.partialorder %v3857, 0.0
      %vm3890 = vcmp.ge.f32.partialorder %v3858, 0.0
      %vm3891 = vcmp.ge.f32.partialorder %v3859, 0.0
      %vm3892 = vcmp.ge.f32.partialorder %v3860, 0.0
      %vm3893 = vcmp.ge.f32.partialorder %v3861, 0.0
      %vm3894 = vcmp.ge.f32.partialorder %v3862, 0.0
      %vm3895 = vcmp.ge.f32.partialorder %v3863, 0.0
      %vm3896 = vcmp.ge.f32.partialorder %v3864, 0.0
      %vm3897 = vcmp.ge.f32.partialorder %v3865, 0.0
      %vm3898 = vcmp.ge.f32.partialorder %v3866, 0.0
      %vm3899 = vcmp.ge.f32.partialorder %v3867, 0.0
      %vm3900 = vcmp.ge.f32.partialorder %v3868, 0.0
      %vm3901 = vcmp.ge.f32.partialorder %v3869, 0.0
      %vm3902 = vcmp.ge.f32.partialorder %v3870, 0.0
      %vm3903 = vcmp.ge.f32.partialorder %v3871, 0.0
      %vm3904 = vcmp.ge.f32.partialorder %v3872, 0.0
      %v3905 = vmul.f32 %v3841, 0.1
      %v3906 = vmul.f32 %v3842, 0.1
      %v3907 = vmul.f32 %v3843, 0.1
      %v3908 = vmul.f32 %v3844, 0.1
      %v3909 = vmul.f32 %v3845, 0.1
      %v3910 = vmul.f32 %v3846, 0.1
      %v3911 = vmul.f32 %v3847, 0.1
      %v3912 = vmul.f32 %v3848, 0.1
      %v3913 = vmul.f32 %v3849, 0.1
      %v3914 = vmul.f32 %v3850, 0.1
      %v3915 = vmul.f32 %v3851, 0.1
      %v3916 = vmul.f32 %v3852, 0.1
      %v3917 = vmul.f32 %v3853, 0.1
      %v3918 = vmul.f32 %v3854, 0.1
      %v3919 = vmul.f32 %v3855, 0.1
      %v3920 = vmul.f32 %v3856, 0.1
      %v3921 = vmul.f32 %v3857, 0.1
      %v3922 = vmul.f32 %v3858, 0.1
      %v3923 = vmul.f32 %v3859, 0.1
      %v3924 = vmul.f32 %v3860, 0.1
      %v3925 = vmul.f32 %v3861, 0.1
      %v3926 = vmul.f32 %v3862, 0.1
      %v3927 = vmul.f32 %v3863, 0.1
      %v3928 = vmul.f32 %v3864, 0.1
      %v3929 = vmul.f32 %v3865, 0.1
      %v3930 = vmul.f32 %v3866, 0.1
      %v3931 = vmul.f32 %v3867, 0.1
      %v3932 = vmul.f32 %v3868, 0.1
      %v3933 = vmul.f32 %v3869, 0.1
      %v3934 = vmul.f32 %v3870, 0.1
      %v3935 = vmul.f32 %v3871, 0.1
      %v3936 = vmul.f32 %v3872, 0.1
      %v3937 = vsel %vm3873, %v3841, %v3905
      %v3938 = vsel %vm3874, %v3842, %v3906
      %v3939 = vsel %vm3875, %v3843, %v3907
      %v3940 = vsel %vm3876, %v3844, %v3908
      %v3941 = vsel %vm3877, %v3845, %v3909
      %v3942 = vsel %vm3878, %v3846, %v3910
      %v3943 = vsel %vm3879, %v3847, %v3911
      %v3944 = vsel %vm3880, %v3848, %v3912
      %v3945 = vsel %vm3881, %v3849, %v3913
      %v3946 = vsel %vm3882, %v3850, %v3914
      %v3947 = vsel %vm3883, %v3851, %v3915
      %v3948 = vsel %vm3884, %v3852, %v3916
      %v3949 = vsel %vm3885, %v3853, %v3917
      %v3950 = vsel %vm3886, %v3854, %v3918
      %v3951 = vsel %vm3887, %v3855, %v3919
      %v3952 = vsel %vm3888, %v3856, %v3920
      %v3953 = vsel %vm3889, %v3857, %v3921
      %v3954 = vsel %vm3890, %v3858, %v3922
      %v3955 = vsel %vm3891, %v3859, %v3923
      %v3956 = vsel %vm3892, %v3860, %v3924
      %v3957 = vsel %vm3893, %v3861, %v3925
      %v3958 = vsel %vm3894, %v3862, %v3926
      %v3959 = vsel %vm3895, %v3863, %v3927
      %v3960 = vsel %vm3896, %v3864, %v3928
      %v3961 = vsel %vm3897, %v3865, %v3929
      %v3962 = vsel %vm3898, %v3866, %v3930
      %v3963 = vsel %vm3899, %v3867, %v3931
      %v3964 = vsel %vm3900, %v3868, %v3932
      %v3965 = vsel %vm3901, %v3869, %v3933
      %v3966 = vsel %vm3902, %v3870, %v3934
      %v3967 = vsel %vm3903, %v3871, %v3935
      %v3968 = vsel %vm3904, %v3872, %v3936
      %3969 = vst [vmem:[#allocation3] sm:$0xff] 0
      %3970 = vst [vmem:[#allocation3 + $0x48] sm:$0xff] 0
      %v3971 = vpack.c.bf16 %v3938, %v3937
      %3972 = vst [vmem:[#allocation3 + $0x8] sm:$0xff] %v3971
      %v3973 = vpack.c.bf16 %v3942, %v3941
      %3974 = vst [vmem:[#allocation3 + $0x10] sm:$0xff] %v3973
      %v3975 = vpack.c.bf16 %v3946, %v3945
      %3976 = vst [vmem:[#allocation3 + $0x18] sm:$0xff] %v3975
      %v3977 = vpack.c.bf16 %v3950, %v3949
      %3978 = vst [vmem:[#allocation3 + $0x20] sm:$0xff] %v3977
      %v3979 = vpack.c.bf16 %v3954, %v3953
      %3980 = vst [vmem:[#allocation3 + $0x28] sm:$0xff] %v3979
      %v3981 = vpack.c.bf16 %v3958, %v3957
      %3982 = vst [vmem:[#allocation3 + $0x30] sm:$0xff] %v3981
      %v3983 = vpack.c.bf16 %v3962, %v3961
      %3984 = vst [vmem:[#allocation3 + $0x38] sm:$0xff] %v3983
      %v3985 = vpack.c.bf16 %v3966, %v3965
      %3986 = vst [vmem:[#allocation3 + $0x40] sm:$0xff] %v3985
      %s3987 = scalar_lea.vmem [#allocation3], 80
      %3988 = vst [vmem:[%s3987] sm:$0xff] 0
      %3989 = vst [vmem:[%s3987 + $0x48] sm:$0xff] 0
      %v3990 = vpack.c.bf16 %v3940, %v3939
      %3991 = vst [vmem:[%s3987 + $0x8] sm:$0xff] %v3990
      %v3992 = vpack.c.bf16 %v3944, %v3943
      %3993 = vst [vmem:[%s3987 + $0x10] sm:$0xff] %v3992
      %v3994 = vpack.c.bf16 %v3948, %v3947
      %3995 = vst [vmem:[%s3987 + $0x18] sm:$0xff] %v3994
      %v3996 = vpack.c.bf16 %v3952, %v3951
      %3997 = vst [vmem:[%s3987 + $0x20] sm:$0xff] %v3996
      %v3998 = vpack.c.bf16 %v3956, %v3955
      %3999 = vst [vmem:[%s3987 + $0x28] sm:$0xff] %v3998
      %v4000 = vpack.c.bf16 %v3960, %v3959
      %4001 = vst [vmem:[%s3987 + $0x30] sm:$0xff] %v4000
      %v4002 = vpack.c.bf16 %v3964, %v3963
      %4003 = vst [vmem:[%s3987 + $0x38] sm:$0xff] %v4002
      %v4004 = vpack.c.bf16 %v3968, %v3967
      %4005 = vst [vmem:[%s3987 + $0x40] sm:$0xff] %v4004
      %v4006 = vld [vmem:[%s6] sm:$0x3]
      %v4008 = vperm.slane %v4006, 0
      %v4009 = vperm.slane %v4006, 1
      %v4012 = vld [vmem:[#allocation3] sm:$0xff]
      %v4013 = vld [vmem:[#allocation3 + $0x8] sm:$0xff]
      %v4014 = vld [vmem:[#allocation3 + $0x10] sm:$0xff]
      %v4015 = vld [vmem:[#allocation3 + $0x18] sm:$0xff]
      %v4016 = vld [vmem:[#allocation3 + $0x20] sm:$0xff]
      %v4017 = vld [vmem:[#allocation3 + $0x28] sm:$0xff]
      %v4018 = vld [vmem:[#allocation3 + $0x30] sm:$0xff]
      %v4019 = vld [vmem:[#allocation3 + $0x38] sm:$0xff]
      %v4020 = vld [vmem:[%s2] sm:$0xff]
      %v4021 = vld [vmem:[%s2 + $0x8] sm:$0xff]
      %v4022 = vld [vmem:[%s2 + $0x10] sm:$0xff]
      %v4023 = vld [vmem:[%s2 + $0x18] sm:$0xff]
      %v4024 = vld [vmem:[%s2 + $0x20] sm:$0xff]
      %v4025 = vld [vmem:[%s2 + $0x28] sm:$0xff]
      %v4026 = vld [vmem:[%s2 + $0x30] sm:$0xff]
      %v4027 = vld [vmem:[%s2 + $0x38] sm:$0xff]
      %v4028 = vld [vmem:[%s2 + $0x40] sm:$0xff]
      %v4029 = vld [vmem:[%s2 + $0x48] sm:$0xff]
      %v4030 = vld [vmem:[%s2 + $0x50] sm:$0xff]
      %v4031 = vld [vmem:[%s2 + $0x58] sm:$0xff]
      %v4032 = vld [vmem:[%s2 + $0x60] sm:$0xff]
      %v4033 = vld [vmem:[%s2 + $0x68] sm:$0xff]
      %v4034 = vld [vmem:[%s2 + $0x70] sm:$0xff]
      %v4035 = vld [vmem:[%s2 + $0x78] sm:$0xff]
      %v4036 = vld [vmem:[%s2 + $0x80] sm:$0xff]
      %v4037 = vld [vmem:[%s2 + $0x88] sm:$0xff]
      %v4038 = vld [vmem:[%s2 + $0x90] sm:$0xff]
      %v4039 = vld [vmem:[%s2 + $0x98] sm:$0xff]
      %v4040 = vld [vmem:[%s2 + $0xa0] sm:$0xff]
      %v4041 = vld [vmem:[%s2 + $0xa8] sm:$0xff]
      %v4042 = vld [vmem:[%s2 + $0xb0] sm:$0xff]
      %v4043 = vld [vmem:[%s2 + $0xb8] sm:$0xff]
      %v4044 = vld [vmem:[%s2 + $0xc0] sm:$0xff]
      %v4045 = vld [vmem:[%s2 + $0xc8] sm:$0xff]
      %v4046 = vld [vmem:[%s2 + $0xd0] sm:$0xff]
      %v4047 = vld [vmem:[%s2 + $0xd8] sm:$0xff]
      %v4048 = vld [vmem:[%s2 + $0xe0] sm:$0xff]
      %v4049 = vld [vmem:[%s2 + $0xe8] sm:$0xff]
      %v4050 = vld [vmem:[%s2 + $0xf0] sm:$0xff]
      %v4051 = vld [vmem:[%s2 + $0xf8] sm:$0xff]
      %v4060 = vunpack.c.l.b16 %v4012
      %v4061 = vunpack.c.h.b16 %v4012
      %v4062 = vunpack.c.l.b16 %v4013
      %v4063 = vunpack.c.h.b16 %v4013
      %v4064 = vunpack.c.l.b16 %v4014
      %v4065 = vunpack.c.h.b16 %v4014
      %v4066 = vunpack.c.l.b16 %v4015
      %v4067 = vunpack.c.h.b16 %v4015
      %v4068 = vunpack.c.l.b16 %v4016
      %v4069 = vunpack.c.h.b16 %v4016
      %v4070 = vunpack.c.l.b16 %v4017
      %v4071 = vunpack.c.h.b16 %v4017
      %v4072 = vunpack.c.l.b16 %v4018
      %v4073 = vunpack.c.h.b16 %v4018
      %v4074 = vunpack.c.l.b16 %v4019
      %v4075 = vunpack.c.h.b16 %v4019
      %v4076 = vpack.c.b16 %v4062, %v4060
      %v4077 = vpack.c.b16 %v4063, %v4061
      %v4078 = vpack.c.b16 %v4066, %v4064
      %v4079 = vpack.c.b16 %v4067, %v4065
      %v4080 = vpack.c.b16 %v4070, %v4068
      %v4081 = vpack.c.b16 %v4071, %v4069
      %v4082 = vpack.c.b16 %v4074, %v4072
      %v4083 = vpack.c.b16 %v4075, %v4073
      %v4124 = vunpack.c.l.b16 %v4020
      %v4125 = vunpack.c.h.b16 %v4020
      %v4126 = vunpack.c.l.b16 %v4021
      %v4127 = vunpack.c.h.b16 %v4021
      %v4128 = vunpack.c.l.b16 %v4022
      %v4129 = vunpack.c.h.b16 %v4022
      %v4130 = vunpack.c.l.b16 %v4023
      %v4131 = vunpack.c.h.b16 %v4023
      %v4132 = vunpack.c.l.b16 %v4024
      %v4133 = vunpack.c.h.b16 %v4024
      %v4134 = vunpack.c.l.b16 %v4025
      %v4135 = vunpack.c.h.b16 %v4025
      %v4136 = vunpack.c.l.b16 %v4026
      %v4137 = vunpack.c.h.b16 %v4026
      %v4138 = vunpack.c.l.b16 %v4027
      %v4139 = vunpack.c.h.b16 %v4027
      %v4140 = vunpack.c.l.b16 %v4028
      %v4141 = vunpack.c.h.b16 %v4028
      %v4142 = vunpack.c.l.b16 %v4029
      %v4143 = vunpack.c.h.b16 %v4029
      %v4144 = vunpack.c.l.b16 %v4030
      %v4145 = vunpack.c.h.b16 %v4030
      %v4146 = vunpack.c.l.b16 %v4031
      %v4147 = vunpack.c.h.b16 %v4031
      %v4148 = vunpack.c.l.b16 %v4032
      %v4149 = vunpack.c.h.b16 %v4032
      %v4150 = vunpack.c.l.b16 %v4033
      %v4151 = vunpack.c.h.b16 %v4033
      %v4152 = vunpack.c.l.b16 %v4034
      %v4153 = vunpack.c.h.b16 %v4034
      %v4154 = vunpack.c.l.b16 %v4035
      %v4155 = vunpack.c.h.b16 %v4035
      %v4156 = vunpack.c.l.b16 %v4036
      %v4157 = vunpack.c.h.b16 %v4036
      %v4158 = vunpack.c.l.b16 %v4037
      %v4159 = vunpack.c.h.b16 %v4037
      %v4160 = vunpack.c.l.b16 %v4038
      %v4161 = vunpack.c.h.b16 %v4038
      %v4162 = vunpack.c.l.b16 %v4039
      %v4163 = vunpack.c.h.b16 %v4039
      %v4164 = vunpack.c.l.b16 %v4040
      %v4165 = vunpack.c.h.b16 %v4040
      %v4166 = vunpack.c.l.b16 %v4041
      %v4167 = vunpack.c.h.b16 %v4041
      %v4168 = vunpack.c.l.b16 %v4042
      %v4169 = vunpack.c.h.b16 %v4042
      %v4170 = vunpack.c.l.b16 %v4043
      %v4171 = vunpack.c.h.b16 %v4043
      %v4172 = vunpack.c.l.b16 %v4044
      %v4173 = vunpack.c.h.b16 %v4044
      %v4174 = vunpack.c.l.b16 %v4045
      %v4175 = vunpack.c.h.b16 %v4045
      %v4176 = vunpack.c.l.b16 %v4046
      %v4177 = vunpack.c.h.b16 %v4046
      %v4178 = vunpack.c.l.b16 %v4047
      %v4179 = vunpack.c.h.b16 %v4047
      %v4180 = vunpack.c.l.b16 %v4048
      %v4181 = vunpack.c.h.b16 %v4048
      %v4182 = vunpack.c.l.b16 %v4049
      %v4183 = vunpack.c.h.b16 %v4049
      %v4184 = vunpack.c.l.b16 %v4050
      %v4185 = vunpack.c.h.b16 %v4050
      %v4186 = vunpack.c.l.b16 %v4051
      %v4187 = vunpack.c.h.b16 %v4051
      %v4188 = vpack.c.b16 %v4126, %v4124
      %v4189 = vpack.c.b16 %v4127, %v4125
      %v4190 = vpack.c.b16 %v4130, %v4128
      %v4191 = vpack.c.b16 %v4131, %v4129
      %v4192 = vpack.c.b16 %v4134, %v4132
      %v4193 = vpack.c.b16 %v4135, %v4133
      %v4194 = vpack.c.b16 %v4138, %v4136
      %v4195 = vpack.c.b16 %v4139, %v4137
      %v4196 = vpack.c.b16 %v4142, %v4140
      %v4197 = vpack.c.b16 %v4143, %v4141
      %v4198 = vpack.c.b16 %v4146, %v4144
      %v4199 = vpack.c.b16 %v4147, %v4145
      %v4200 = vpack.c.b16 %v4150, %v4148
      %v4201 = vpack.c.b16 %v4151, %v4149
      %v4202 = vpack.c.b16 %v4154, %v4152
      %v4203 = vpack.c.b16 %v4155, %v4153
      %v4204 = vpack.c.b16 %v4158, %v4156
      %v4205 = vpack.c.b16 %v4159, %v4157
      %v4206 = vpack.c.b16 %v4162, %v4160
      %v4207 = vpack.c.b16 %v4163, %v4161
      %v4208 = vpack.c.b16 %v4166, %v4164
      %v4209 = vpack.c.b16 %v4167, %v4165
      %v4210 = vpack.c.b16 %v4170, %v4168
      %v4211 = vpack.c.b16 %v4171, %v4169
      %v4212 = vpack.c.b16 %v4174, %v4172
      %v4213 = vpack.c.b16 %v4175, %v4173
      %v4214 = vpack.c.b16 %v4178, %v4176
      %v4215 = vpack.c.b16 %v4179, %v4177
      %v4216 = vpack.c.b16 %v4182, %v4180
      %v4217 = vpack.c.b16 %v4183, %v4181
      %v4218 = vpack.c.b16 %v4186, %v4184
      %v4219 = vpack.c.b16 %v4187, %v4185
      %4252 = vmatpush.bf16.msra.mxu0 %v4202
      %4253 = vmatpush.bf16.msra.mxu0 %v4200
      %4254 = vmatpush.bf16.msra.mxu0 %v4198
      %4255 = vmatpush.bf16.msra.mxu0 %v4196
      %4256 = vmatpush.bf16.msra.mxu0 %v4194
      %4257 = vmatpush.bf16.msra.mxu0 %v4192
      %4258 = vmatpush.bf16.msra.mxu0 %v4190
      %4259 = vmatpush.bf16.msra.mxu0 %v4188
      %4260 = vmatmul.bf16.gmra.mxu0 %v4076
      %v4261 = vpop.f32.mrf.mxu0
      %v4262 = vadd.f32 0.0, %v4261
      %v4263 = vpop.f32.mrf.mxu0
      %v4264 = vadd.f32 0.0, %v4263
      %4265 = vmatmul.bf16.gmra.mxu0 %v4078
      %v4266 = vpop.f32.mrf.mxu0
      %v4267 = vadd.f32 0.0, %v4266
      %v4268 = vpop.f32.mrf.mxu0
      %v4269 = vadd.f32 0.0, %v4268
      %4270 = vmatmul.bf16.gmra.mxu0 %v4080
      %v4271 = vpop.f32.mrf.mxu0
      %v4272 = vadd.f32 0.0, %v4271
      %v4273 = vpop.f32.mrf.mxu0
      %v4274 = vadd.f32 0.0, %v4273
      %4275 = vmatmul.bf16.gmra.mxu0 %v4082
      %v4276 = vpop.f32.mrf.mxu0
      %v4277 = vadd.f32 0.0, %v4276
      %v4278 = vpop.f32.mrf.mxu0
      %v4279 = vadd.f32 0.0, %v4278
      %4280 = vdwg.mxu0
      %4281 = vmatpush.bf16.msra.mxu0 %v4218
      %4282 = vmatpush.bf16.msra.mxu0 %v4216
      %4283 = vmatpush.bf16.msra.mxu0 %v4214
      %4284 = vmatpush.bf16.msra.mxu0 %v4212
      %4285 = vmatpush.bf16.msra.mxu0 %v4210
      %4286 = vmatpush.bf16.msra.mxu0 %v4208
      %4287 = vmatpush.bf16.msra.mxu0 %v4206
      %4288 = vmatpush.bf16.msra.mxu0 %v4204
      %4289 = vmatmul.bf16.gmra.mxu0 %v4077
      %v4290 = vpop.f32.mrf.mxu0
      %v4291 = vadd.f32 %v4262, %v4290
      %v4292 = vpop.f32.mrf.mxu0
      %v4293 = vadd.f32 %v4264, %v4292
      %4294 = vmatmul.bf16.gmra.mxu0 %v4079
      %v4295 = vpop.f32.mrf.mxu0
      %v4296 = vadd.f32 %v4267, %v4295
      %v4297 = vpop.f32.mrf.mxu0
      %v4298 = vadd.f32 %v4269, %v4297
      %4299 = vmatmul.bf16.gmra.mxu0 %v4081
      %v4300 = vpop.f32.mrf.mxu0
      %v4301 = vadd.f32 %v4272, %v4300
      %v4302 = vpop.f32.mrf.mxu0
      %v4303 = vadd.f32 %v4274, %v4302
      %4304 = vmatmul.bf16.gmra.mxu0 %v4083
      %v4305 = vpop.f32.mrf.mxu0
      %v4306 = vadd.f32 %v4277, %v4305
      %v4307 = vpop.f32.mrf.mxu0
      %v4308 = vadd.f32 %v4279, %v4307
      %4309 = vdwg.mxu0
      %4310 = vmatpush.bf16.msra.mxu0 %v4203
      %4311 = vmatpush.bf16.msra.mxu0 %v4201
      %4312 = vmatpush.bf16.msra.mxu0 %v4199
      %4313 = vmatpush.bf16.msra.mxu0 %v4197
      %4314 = vmatpush.bf16.msra.mxu0 %v4195
      %4315 = vmatpush.bf16.msra.mxu0 %v4193
      %4316 = vmatpush.bf16.msra.mxu0 %v4191
      %4317 = vmatpush.bf16.msra.mxu0 %v4189
      %4318 = vmatmul.bf16.gmra.mxu0 %v4076
      %v4319 = vpop.f32.mrf.mxu0
      %v4320 = vadd.f32 0.0, %v4319
      %v4321 = vpop.f32.mrf.mxu0
      %v4322 = vadd.f32 0.0, %v4321
      %4323 = vmatmul.bf16.gmra.mxu0 %v4078
      %v4324 = vpop.f32.mrf.mxu0
      %v4325 = vadd.f32 0.0, %v4324
      %v4326 = vpop.f32.mrf.mxu0
      %v4327 = vadd.f32 0.0, %v4326
      %4328 = vmatmul.bf16.gmra.mxu0 %v4080
      %v4329 = vpop.f32.mrf.mxu0
      %v4330 = vadd.f32 0.0, %v4329
      %v4331 = vpop.f32.mrf.mxu0
      %v4332 = vadd.f32 0.0, %v4331
      %4333 = vmatmul.bf16.gmra.mxu0 %v4082
      %v4334 = vpop.f32.mrf.mxu0
      %v4335 = vadd.f32 0.0, %v4334
      %v4336 = vpop.f32.mrf.mxu0
      %v4337 = vadd.f32 0.0, %v4336
      %4338 = vdwg.mxu0
      %4339 = vmatpush.bf16.msra.mxu0 %v4219
      %4340 = vmatpush.bf16.msra.mxu0 %v4217
      %4341 = vmatpush.bf16.msra.mxu0 %v4215
      %4342 = vmatpush.bf16.msra.mxu0 %v4213
      %4343 = vmatpush.bf16.msra.mxu0 %v4211
      %4344 = vmatpush.bf16.msra.mxu0 %v4209
      %4345 = vmatpush.bf16.msra.mxu0 %v4207
      %4346 = vmatpush.bf16.msra.mxu0 %v4205
      %4347 = vmatmul.bf16.gmra.mxu0 %v4077
      %v4348 = vpop.f32.mrf.mxu0
      %v4349 = vadd.f32 %v4320, %v4348
      %v4350 = vpop.f32.mrf.mxu0
      %v4351 = vadd.f32 %v4322, %v4350
      %4352 = vmatmul.bf16.gmra.mxu0 %v4079
      %v4353 = vpop.f32.mrf.mxu0
      %v4354 = vadd.f32 %v4325, %v4353
      %v4355 = vpop.f32.mrf.mxu0
      %v4356 = vadd.f32 %v4327, %v4355
      %4357 = vmatmul.bf16.gmra.mxu0 %v4081
      %v4358 = vpop.f32.mrf.mxu0
      %v4359 = vadd.f32 %v4330, %v4358
      %v4360 = vpop.f32.mrf.mxu0
      %v4361 = vadd.f32 %v4332, %v4360
      %4362 = vmatmul.bf16.gmra.mxu0 %v4083
      %v4363 = vpop.f32.mrf.mxu0
      %v4364 = vadd.f32 %v4335, %v4363
      %v4365 = vpop.f32.mrf.mxu0
      %v4366 = vadd.f32 %v4337, %v4365
      %4367 = vdwg.mxu0
      %v4368 = vadd.f32 %v4008, %v4291
      %v4369 = vadd.f32 %v4009, %v4349
      %v4370 = vadd.f32 %v4008, %v4293
      %v4371 = vadd.f32 %v4009, %v4351
      %v4372 = vadd.f32 %v4008, %v4296
      %v4373 = vadd.f32 %v4009, %v4354
      %v4374 = vadd.f32 %v4008, %v4298
      %v4375 = vadd.f32 %v4009, %v4356
      %v4376 = vadd.f32 %v4008, %v4301
      %v4377 = vadd.f32 %v4009, %v4359
      %v4378 = vadd.f32 %v4008, %v4303
      %v4379 = vadd.f32 %v4009, %v4361
      %v4380 = vadd.f32 %v4008, %v4306
      %v4381 = vadd.f32 %v4009, %v4364
      %v4382 = vadd.f32 %v4008, %v4308
      %v4383 = vadd.f32 %v4009, %v4366
      %v4384 = vld [vmem:[%s3987] sm:$0xff]
      %v4385 = vld [vmem:[%s3987 + $0x8] sm:$0xff]
      %v4386 = vld [vmem:[%s3987 + $0x10] sm:$0xff]
      %v4387 = vld [vmem:[%s3987 + $0x18] sm:$0xff]
      %v4388 = vld [vmem:[%s3987 + $0x20] sm:$0xff]
      %v4389 = vld [vmem:[%s3987 + $0x28] sm:$0xff]
      %v4390 = vld [vmem:[%s3987 + $0x30] sm:$0xff]
      %v4391 = vld [vmem:[%s3987 + $0x38] sm:$0xff]
      %s4392 = scalar_lea.vmem %s2, 256
      %v4393 = vld [vmem:[%s4392] sm:$0xff]
      %v4394 = vld [vmem:[%s4392 + $0x8] sm:$0xff]
      %v4395 = vld [vmem:[%s4392 + $0x10] sm:$0xff]
      %v4396 = vld [vmem:[%s4392 + $0x18] sm:$0xff]
      %v4397 = vld [vmem:[%s4392 + $0x20] sm:$0xff]
      %v4398 = vld [vmem:[%s4392 + $0x28] sm:$0xff]
      %v4399 = vld [vmem:[%s4392 + $0x30] sm:$0xff]
      %v4400 = vld [vmem:[%s4392 + $0x38] sm:$0xff]
      %v4401 = vld [vmem:[%s4392 + $0x40] sm:$0xff]
      %v4402 = vld [vmem:[%s4392 + $0x48] sm:$0xff]
      %v4403 = vld [vmem:[%s4392 + $0x50] sm:$0xff]
      %v4404 = vld [vmem:[%s4392 + $0x58] sm:$0xff]
      %v4405 = vld [vmem:[%s4392 + $0x60] sm:$0xff]
      %v4406 = vld [vmem:[%s4392 + $0x68] sm:$0xff]
      %v4407 = vld [vmem:[%s4392 + $0x70] sm:$0xff]
      %v4408 = vld [vmem:[%s4392 + $0x78] sm:$0xff]
      %v4409 = vld [vmem:[%s4392 + $0x80] sm:$0xff]
      %v4410 = vld [vmem:[%s4392 + $0x88] sm:$0xff]
      %v4411 = vld [vmem:[%s4392 + $0x90] sm:$0xff]
      %v4412 = vld [vmem:[%s4392 + $0x98] sm:$0xff]
      %v4413 = vld [vmem:[%s4392 + $0xa0] sm:$0xff]
      %v4414 = vld [vmem:[%s4392 + $0xa8] sm:$0xff]
      %v4415 = vld [vmem:[%s4392 + $0xb0] sm:$0xff]
      %v4416 = vld [vmem:[%s4392 + $0xb8] sm:$0xff]
      %v4417 = vld [vmem:[%s4392 + $0xc0] sm:$0xff]
      %v4418 = vld [vmem:[%s4392 + $0xc8] sm:$0xff]
      %v4419 = vld [vmem:[%s4392 + $0xd0] sm:$0xff]
      %v4420 = vld [vmem:[%s4392 + $0xd8] sm:$0xff]
      %v4421 = vld [vmem:[%s4392 + $0xe0] sm:$0xff]
      %v4422 = vld [vmem:[%s4392 + $0xe8] sm:$0xff]
      %v4423 = vld [vmem:[%s4392 + $0xf0] sm:$0xff]
      %v4424 = vld [vmem:[%s4392 + $0xf8] sm:$0xff]
      %v4433 = vunpack.c.l.b16 %v4384
      %v4434 = vunpack.c.h.b16 %v4384
      %v4435 = vunpack.c.l.b16 %v4385
      %v4436 = vunpack.c.h.b16 %v4385
      %v4437 = vunpack.c.l.b16 %v4386
      %v4438 = vunpack.c.h.b16 %v4386
      %v4439 = vunpack.c.l.b16 %v4387
      %v4440 = vunpack.c.h.b16 %v4387
      %v4441 = vunpack.c.l.b16 %v4388
      %v4442 = vunpack.c.h.b16 %v4388
      %v4443 = vunpack.c.l.b16 %v4389
      %v4444 = vunpack.c.h.b16 %v4389
      %v4445 = vunpack.c.l.b16 %v4390
      %v4446 = vunpack.c.h.b16 %v4390
      %v4447 = vunpack.c.l.b16 %v4391
      %v4448 = vunpack.c.h.b16 %v4391
      %v4449 = vpack.c.b16 %v4435, %v4433
      %v4450 = vpack.c.b16 %v4436, %v4434
      %v4451 = vpack.c.b16 %v4439, %v4437
      %v4452 = vpack.c.b16 %v4440, %v4438
      %v4453 = vpack.c.b16 %v4443, %v4441
      %v4454 = vpack.c.b16 %v4444, %v4442
      %v4455 = vpack.c.b16 %v4447, %v4445
      %v4456 = vpack.c.b16 %v4448, %v4446
      %v4497 = vunpack.c.l.b16 %v4393
      %v4498 = vunpack.c.h.b16 %v4393
      %v4499 = vunpack.c.l.b16 %v4394
      %v4500 = vunpack.c.h.b16 %v4394
      %v4501 = vunpack.c.l.b16 %v4395
      %v4502 = vunpack.c.h.b16 %v4395
      %v4503 = vunpack.c.l.b16 %v4396
      %v4504 = vunpack.c.h.b16 %v4396
      %v4505 = vunpack.c.l.b16 %v4397
      %v4506 = vunpack.c.h.b16 %v4397
      %v4507 = vunpack.c.l.b16 %v4398
      %v4508 = vunpack.c.h.b16 %v4398
      %v4509 = vunpack.c.l.b16 %v4399
      %v4510 = vunpack.c.h.b16 %v4399
      %v4511 = vunpack.c.l.b16 %v4400
      %v4512 = vunpack.c.h.b16 %v4400
      %v4513 = vunpack.c.l.b16 %v4401
      %v4514 = vunpack.c.h.b16 %v4401
      %v4515 = vunpack.c.l.b16 %v4402
      %v4516 = vunpack.c.h.b16 %v4402
      %v4517 = vunpack.c.l.b16 %v4403
      %v4518 = vunpack.c.h.b16 %v4403
      %v4519 = vunpack.c.l.b16 %v4404
      %v4520 = vunpack.c.h.b16 %v4404
      %v4521 = vunpack.c.l.b16 %v4405
      %v4522 = vunpack.c.h.b16 %v4405
      %v4523 = vunpack.c.l.b16 %v4406
      %v4524 = vunpack.c.h.b16 %v4406
      %v4525 = vunpack.c.l.b16 %v4407
      %v4526 = vunpack.c.h.b16 %v4407
      %v4527 = vunpack.c.l.b16 %v4408
      %v4528 = vunpack.c.h.b16 %v4408
      %v4529 = vunpack.c.l.b16 %v4409
      %v4530 = vunpack.c.h.b16 %v4409
      %v4531 = vunpack.c.l.b16 %v4410
      %v4532 = vunpack.c.h.b16 %v4410
      %v4533 = vunpack.c.l.b16 %v4411
      %v4534 = vunpack.c.h.b16 %v4411
      %v4535 = vunpack.c.l.b16 %v4412
      %v4536 = vunpack.c.h.b16 %v4412
      %v4537 = vunpack.c.l.b16 %v4413
      %v4538 = vunpack.c.h.b16 %v4413
      %v4539 = vunpack.c.l.b16 %v4414
      %v4540 = vunpack.c.h.b16 %v4414
      %v4541 = vunpack.c.l.b16 %v4415
      %v4542 = vunpack.c.h.b16 %v4415
      %v4543 = vunpack.c.l.b16 %v4416
      %v4544 = vunpack.c.h.b16 %v4416
      %v4545 = vunpack.c.l.b16 %v4417
      %v4546 = vunpack.c.h.b16 %v4417
      %v4547 = vunpack.c.l.b16 %v4418
      %v4548 = vunpack.c.h.b16 %v4418
      %v4549 = vunpack.c.l.b16 %v4419
      %v4550 = vunpack.c.h.b16 %v4419
      %v4551 = vunpack.c.l.b16 %v4420
      %v4552 = vunpack.c.h.b16 %v4420
      %v4553 = vunpack.c.l.b16 %v4421
      %v4554 = vunpack.c.h.b16 %v4421
      %v4555 = vunpack.c.l.b16 %v4422
      %v4556 = vunpack.c.h.b16 %v4422
      %v4557 = vunpack.c.l.b16 %v4423
      %v4558 = vunpack.c.h.b16 %v4423
      %v4559 = vunpack.c.l.b16 %v4424
      %v4560 = vunpack.c.h.b16 %v4424
      %v4561 = vpack.c.b16 %v4499, %v4497
      %v4562 = vpack.c.b16 %v4500, %v4498
      %v4563 = vpack.c.b16 %v4503, %v4501
      %v4564 = vpack.c.b16 %v4504, %v4502
      %v4565 = vpack.c.b16 %v4507, %v4505
      %v4566 = vpack.c.b16 %v4508, %v4506
      %v4567 = vpack.c.b16 %v4511, %v4509
      %v4568 = vpack.c.b16 %v4512, %v4510
      %v4569 = vpack.c.b16 %v4515, %v4513
      %v4570 = vpack.c.b16 %v4516, %v4514
      %v4571 = vpack.c.b16 %v4519, %v4517
      %v4572 = vpack.c.b16 %v4520, %v4518
      %v4573 = vpack.c.b16 %v4523, %v4521
      %v4574 = vpack.c.b16 %v4524, %v4522
      %v4575 = vpack.c.b16 %v4527, %v4525
      %v4576 = vpack.c.b16 %v4528, %v4526
      %v4577 = vpack.c.b16 %v4531, %v4529
      %v4578 = vpack.c.b16 %v4532, %v4530
      %v4579 = vpack.c.b16 %v4535, %v4533
      %v4580 = vpack.c.b16 %v4536, %v4534
      %v4581 = vpack.c.b16 %v4539, %v4537
      %v4582 = vpack.c.b16 %v4540, %v4538
      %v4583 = vpack.c.b16 %v4543, %v4541
      %v4584 = vpack.c.b16 %v4544, %v4542
      %v4585 = vpack.c.b16 %v4547, %v4545
      %v4586 = vpack.c.b16 %v4548, %v4546
      %v4587 = vpack.c.b16 %v4551, %v4549
      %v4588 = vpack.c.b16 %v4552, %v4550
      %v4589 = vpack.c.b16 %v4555, %v4553
      %v4590 = vpack.c.b16 %v4556, %v4554
      %v4591 = vpack.c.b16 %v4559, %v4557
      %v4592 = vpack.c.b16 %v4560, %v4558
      %4625 = vmatpush.bf16.msra.mxu0 %v4575
      %4626 = vmatpush.bf16.msra.mxu0 %v4573
      %4627 = vmatpush.bf16.msra.mxu0 %v4571
      %4628 = vmatpush.bf16.msra.mxu0 %v4569
      %4629 = vmatpush.bf16.msra.mxu0 %v4567
      %4630 = vmatpush.bf16.msra.mxu0 %v4565
      %4631 = vmatpush.bf16.msra.mxu0 %v4563
      %4632 = vmatpush.bf16.msra.mxu0 %v4561
      %4633 = vmatmul.bf16.gmra.mxu0 %v4449
      %v4634 = vpop.f32.mrf.mxu0
      %v4635 = vadd.f32 0.0, %v4634
      %v4636 = vpop.f32.mrf.mxu0
      %v4637 = vadd.f32 0.0, %v4636
      %4638 = vmatmul.bf16.gmra.mxu0 %v4451
      %v4639 = vpop.f32.mrf.mxu0
      %v4640 = vadd.f32 0.0, %v4639
      %v4641 = vpop.f32.mrf.mxu0
      %v4642 = vadd.f32 0.0, %v4641
      %4643 = vmatmul.bf16.gmra.mxu0 %v4453
      %v4644 = vpop.f32.mrf.mxu0
      %v4645 = vadd.f32 0.0, %v4644
      %v4646 = vpop.f32.mrf.mxu0
      %v4647 = vadd.f32 0.0, %v4646
      %4648 = vmatmul.bf16.gmra.mxu0 %v4455
      %v4649 = vpop.f32.mrf.mxu0
      %v4650 = vadd.f32 0.0, %v4649
      %v4651 = vpop.f32.mrf.mxu0
      %v4652 = vadd.f32 0.0, %v4651
      %4653 = vdwg.mxu0
      %4654 = vmatpush.bf16.msra.mxu0 %v4591
      %4655 = vmatpush.bf16.msra.mxu0 %v4589
      %4656 = vmatpush.bf16.msra.mxu0 %v4587
      %4657 = vmatpush.bf16.msra.mxu0 %v4585
      %4658 = vmatpush.bf16.msra.mxu0 %v4583
      %4659 = vmatpush.bf16.msra.mxu0 %v4581
      %4660 = vmatpush.bf16.msra.mxu0 %v4579
      %4661 = vmatpush.bf16.msra.mxu0 %v4577
      %4662 = vmatmul.bf16.gmra.mxu0 %v4450
      %v4663 = vpop.f32.mrf.mxu0
      %v4664 = vadd.f32 %v4635, %v4663
      %v4665 = vpop.f32.mrf.mxu0
      %v4666 = vadd.f32 %v4637, %v4665
      %4667 = vmatmul.bf16.gmra.mxu0 %v4452
      %v4668 = vpop.f32.mrf.mxu0
      %v4669 = vadd.f32 %v4640, %v4668
      %v4670 = vpop.f32.mrf.mxu0
      %v4671 = vadd.f32 %v4642, %v4670
      %4672 = vmatmul.bf16.gmra.mxu0 %v4454
      %v4673 = vpop.f32.mrf.mxu0
      %v4674 = vadd.f32 %v4645, %v4673
      %v4675 = vpop.f32.mrf.mxu0
      %v4676 = vadd.f32 %v4647, %v4675
      %4677 = vmatmul.bf16.gmra.mxu0 %v4456
      %v4678 = vpop.f32.mrf.mxu0
      %v4679 = vadd.f32 %v4650, %v4678
      %v4680 = vpop.f32.mrf.mxu0
      %v4681 = vadd.f32 %v4652, %v4680
      %4682 = vdwg.mxu0
      %4683 = vmatpush.bf16.msra.mxu0 %v4576
      %4684 = vmatpush.bf16.msra.mxu0 %v4574
      %4685 = vmatpush.bf16.msra.mxu0 %v4572
      %4686 = vmatpush.bf16.msra.mxu0 %v4570
      %4687 = vmatpush.bf16.msra.mxu0 %v4568
      %4688 = vmatpush.bf16.msra.mxu0 %v4566
      %4689 = vmatpush.bf16.msra.mxu0 %v4564
      %4690 = vmatpush.bf16.msra.mxu0 %v4562
      %4691 = vmatmul.bf16.gmra.mxu0 %v4449
      %v4692 = vpop.f32.mrf.mxu0
      %v4693 = vadd.f32 0.0, %v4692
      %v4694 = vpop.f32.mrf.mxu0
      %v4695 = vadd.f32 0.0, %v4694
      %4696 = vmatmul.bf16.gmra.mxu0 %v4451
      %v4697 = vpop.f32.mrf.mxu0
      %v4698 = vadd.f32 0.0, %v4697
      %v4699 = vpop.f32.mrf.mxu0
      %v4700 = vadd.f32 0.0, %v4699
      %4701 = vmatmul.bf16.gmra.mxu0 %v4453
      %v4702 = vpop.f32.mrf.mxu0
      %v4703 = vadd.f32 0.0, %v4702
      %v4704 = vpop.f32.mrf.mxu0
      %v4705 = vadd.f32 0.0, %v4704
      %4706 = vmatmul.bf16.gmra.mxu0 %v4455
      %v4707 = vpop.f32.mrf.mxu0
      %v4708 = vadd.f32 0.0, %v4707
      %v4709 = vpop.f32.mrf.mxu0
      %v4710 = vadd.f32 0.0, %v4709
      %4711 = vdwg.mxu0
      %4712 = vmatpush.bf16.msra.mxu0 %v4592
      %4713 = vmatpush.bf16.msra.mxu0 %v4590
      %4714 = vmatpush.bf16.msra.mxu0 %v4588
      %4715 = vmatpush.bf16.msra.mxu0 %v4586
      %4716 = vmatpush.bf16.msra.mxu0 %v4584
      %4717 = vmatpush.bf16.msra.mxu0 %v4582
      %4718 = vmatpush.bf16.msra.mxu0 %v4580
      %4719 = vmatpush.bf16.msra.mxu0 %v4578
      %4720 = vmatmul.bf16.gmra.mxu0 %v4450
      %v4721 = vpop.f32.mrf.mxu0
      %v4722 = vadd.f32 %v4693, %v4721
      %v4723 = vpop.f32.mrf.mxu0
      %v4724 = vadd.f32 %v4695, %v4723
      %4725 = vmatmul.bf16.gmra.mxu0 %v4452
      %v4726 = vpop.f32.mrf.mxu0
      %v4727 = vadd.f32 %v4698, %v4726
      %v4728 = vpop.f32.mrf.mxu0
      %v4729 = vadd.f32 %v4700, %v4728
      %4730 = vmatmul.bf16.gmra.mxu0 %v4454
      %v4731 = vpop.f32.mrf.mxu0
      %v4732 = vadd.f32 %v4703, %v4731
      %v4733 = vpop.f32.mrf.mxu0
      %v4734 = vadd.f32 %v4705, %v4733
      %4735 = vmatmul.bf16.gmra.mxu0 %v4456
      %v4736 = vpop.f32.mrf.mxu0
      %v4737 = vadd.f32 %v4708, %v4736
      %v4738 = vpop.f32.mrf.mxu0
      %v4739 = vadd.f32 %v4710, %v4738
      %4740 = vdwg.mxu0
      %v4741 = vadd.f32 %v4368, %v4664
      %v4742 = vadd.f32 %v4369, %v4722
      %v4743 = vadd.f32 %v4370, %v4666
      %v4744 = vadd.f32 %v4371, %v4724
      %v4745 = vadd.f32 %v4372, %v4669
      %v4746 = vadd.f32 %v4373, %v4727
      %v4747 = vadd.f32 %v4374, %v4671
      %v4748 = vadd.f32 %v4375, %v4729
      %v4749 = vadd.f32 %v4376, %v4674
      %v4750 = vadd.f32 %v4377, %v4732
      %v4751 = vadd.f32 %v4378, %v4676
      %v4752 = vadd.f32 %v4379, %v4734
      %v4753 = vadd.f32 %v4380, %v4679
      %v4754 = vadd.f32 %v4381, %v4737
      %v4755 = vadd.f32 %v4382, %v4681
      %v4756 = vadd.f32 %v4383, %v4739
      %v4757 = vld [vmem:[#allocation3 + $0x8] sm:$0xff]
      %v4758 = vld [vmem:[#allocation3 + $0x10] sm:$0xff]
      %v4759 = vld [vmem:[#allocation3 + $0x18] sm:$0xff]
      %v4760 = vld [vmem:[#allocation3 + $0x20] sm:$0xff]
      %v4761 = vld [vmem:[#allocation3 + $0x28] sm:$0xff]
      %v4762 = vld [vmem:[#allocation3 + $0x30] sm:$0xff]
      %v4763 = vld [vmem:[#allocation3 + $0x38] sm:$0xff]
      %v4764 = vld [vmem:[#allocation3 + $0x40] sm:$0xff]
      %s4765 = scalar_lea.vmem %s2, 512
      %v4766 = vld [vmem:[%s4765] sm:$0xff]
      %v4767 = vld [vmem:[%s4765 + $0x8] sm:$0xff]
      %v4768 = vld [vmem:[%s4765 + $0x10] sm:$0xff]
      %v4769 = vld [vmem:[%s4765 + $0x18] sm:$0xff]
      %v4770 = vld [vmem:[%s4765 + $0x20] sm:$0xff]
      %v4771 = vld [vmem:[%s4765 + $0x28] sm:$0xff]
      %v4772 = vld [vmem:[%s4765 + $0x30] sm:$0xff]
      %v4773 = vld [vmem:[%s4765 + $0x38] sm:$0xff]
      %v4774 = vld [vmem:[%s4765 + $0x40] sm:$0xff]
      %v4775 = vld [vmem:[%s4765 + $0x48] sm:$0xff]
      %v4776 = vld [vmem:[%s4765 + $0x50] sm:$0xff]
      %v4777 = vld [vmem:[%s4765 + $0x58] sm:$0xff]
      %v4778 = vld [vmem:[%s4765 + $0x60] sm:$0xff]
      %v4779 = vld [vmem:[%s4765 + $0x68] sm:$0xff]
      %v4780 = vld [vmem:[%s4765 + $0x70] sm:$0xff]
      %v4781 = vld [vmem:[%s4765 + $0x78] sm:$0xff]
      %v4782 = vld [vmem:[%s4765 + $0x80] sm:$0xff]
      %v4783 = vld [vmem:[%s4765 + $0x88] sm:$0xff]
      %v4784 = vld [vmem:[%s4765 + $0x90] sm:$0xff]
      %v4785 = vld [vmem:[%s4765 + $0x98] sm:$0xff]
      %v4786 = vld [vmem:[%s4765 + $0xa0] sm:$0xff]
      %v4787 = vld [vmem:[%s4765 + $0xa8] sm:$0xff]
      %v4788 = vld [vmem:[%s4765 + $0xb0] sm:$0xff]
      %v4789 = vld [vmem:[%s4765 + $0xb8] sm:$0xff]
      %v4790 = vld [vmem:[%s4765 + $0xc0] sm:$0xff]
      %v4791 = vld [vmem:[%s4765 + $0xc8] sm:$0xff]
      %v4792 = vld [vmem:[%s4765 + $0xd0] sm:$0xff]
      %v4793 = vld [vmem:[%s4765 + $0xd8] sm:$0xff]
      %v4794 = vld [vmem:[%s4765 + $0xe0] sm:$0xff]
      %v4795 = vld [vmem:[%s4765 + $0xe8] sm:$0xff]
      %v4796 = vld [vmem:[%s4765 + $0xf0] sm:$0xff]
      %v4797 = vld [vmem:[%s4765 + $0xf8] sm:$0xff]
      %v4806 = vunpack.c.l.b16 %v4757
      %v4807 = vunpack.c.h.b16 %v4757
      %v4808 = vunpack.c.l.b16 %v4758
      %v4809 = vunpack.c.h.b16 %v4758
      %v4810 = vunpack.c.l.b16 %v4759
      %v4811 = vunpack.c.h.b16 %v4759
      %v4812 = vunpack.c.l.b16 %v4760
      %v4813 = vunpack.c.h.b16 %v4760
      %v4814 = vunpack.c.l.b16 %v4761
      %v4815 = vunpack.c.h.b16 %v4761
      %v4816 = vunpack.c.l.b16 %v4762
      %v4817 = vunpack.c.h.b16 %v4762
      %v4818 = vunpack.c.l.b16 %v4763
      %v4819 = vunpack.c.h.b16 %v4763
      %v4820 = vunpack.c.l.b16 %v4764
      %v4821 = vunpack.c.h.b16 %v4764
      %v4822 = vpack.c.b16 %v4808, %v4806
      %v4823 = vpack.c.b16 %v4809, %v4807
      %v4824 = vpack.c.b16 %v4812, %v4810
      %v4825 = vpack.c.b16 %v4813, %v4811
      %v4826 = vpack.c.b16 %v4816, %v4814
      %v4827 = vpack.c.b16 %v4817, %v4815
      %v4828 = vpack.c.b16 %v4820, %v4818
      %v4829 = vpack.c.b16 %v4821, %v4819
      %v4870 = vunpack.c.l.b16 %v4766
      %v4871 = vunpack.c.h.b16 %v4766
      %v4872 = vunpack.c.l.b16 %v4767
      %v4873 = vunpack.c.h.b16 %v4767
      %v4874 = vunpack.c.l.b16 %v4768
      %v4875 = vunpack.c.h.b16 %v4768
      %v4876 = vunpack.c.l.b16 %v4769
      %v4877 = vunpack.c.h.b16 %v4769
      %v4878 = vunpack.c.l.b16 %v4770
      %v4879 = vunpack.c.h.b16 %v4770
      %v4880 = vunpack.c.l.b16 %v4771
      %v4881 = vunpack.c.h.b16 %v4771
      %v4882 = vunpack.c.l.b16 %v4772
      %v4883 = vunpack.c.h.b16 %v4772
      %v4884 = vunpack.c.l.b16 %v4773
      %v4885 = vunpack.c.h.b16 %v4773
      %v4886 = vunpack.c.l.b16 %v4774
      %v4887 = vunpack.c.h.b16 %v4774
      %v4888 = vunpack.c.l.b16 %v4775
      %v4889 = vunpack.c.h.b16 %v4775
      %v4890 = vunpack.c.l.b16 %v4776
      %v4891 = vunpack.c.h.b16 %v4776
      %v4892 = vunpack.c.l.b16 %v4777
      %v4893 = vunpack.c.h.b16 %v4777
      %v4894 = vunpack.c.l.b16 %v4778
      %v4895 = vunpack.c.h.b16 %v4778
      %v4896 = vunpack.c.l.b16 %v4779
      %v4897 = vunpack.c.h.b16 %v4779
      %v4898 = vunpack.c.l.b16 %v4780
      %v4899 = vunpack.c.h.b16 %v4780
      %v4900 = vunpack.c.l.b16 %v4781
      %v4901 = vunpack.c.h.b16 %v4781
      %v4902 = vunpack.c.l.b16 %v4782
      %v4903 = vunpack.c.h.b16 %v4782
      %v4904 = vunpack.c.l.b16 %v4783
      %v4905 = vunpack.c.h.b16 %v4783
      %v4906 = vunpack.c.l.b16 %v4784
      %v4907 = vunpack.c.h.b16 %v4784
      %v4908 = vunpack.c.l.b16 %v4785
      %v4909 = vunpack.c.h.b16 %v4785
      %v4910 = vunpack.c.l.b16 %v4786
      %v4911 = vunpack.c.h.b16 %v4786
      %v4912 = vunpack.c.l.b16 %v4787
      %v4913 = vunpack.c.h.b16 %v4787
      %v4914 = vunpack.c.l.b16 %v4788
      %v4915 = vunpack.c.h.b16 %v4788
      %v4916 = vunpack.c.l.b16 %v4789
      %v4917 = vunpack.c.h.b16 %v4789
      %v4918 = vunpack.c.l.b16 %v4790
      %v4919 = vunpack.c.h.b16 %v4790
      %v4920 = vunpack.c.l.b16 %v4791
      %v4921 = vunpack.c.h.b16 %v4791
      %v4922 = vunpack.c.l.b16 %v4792
      %v4923 = vunpack.c.h.b16 %v4792
      %v4924 = vunpack.c.l.b16 %v4793
      %v4925 = vunpack.c.h.b16 %v4793
      %v4926 = vunpack.c.l.b16 %v4794
      %v4927 = vunpack.c.h.b16 %v4794
      %v4928 = vunpack.c.l.b16 %v4795
      %v4929 = vunpack.c.h.b16 %v4795
      %v4930 = vunpack.c.l.b16 %v4796
      %v4931 = vunpack.c.h.b16 %v4796
      %v4932 = vunpack.c.l.b16 %v4797
      %v4933 = vunpack.c.h.b16 %v4797
      %v4934 = vpack.c.b16 %v4872, %v4870
      %v4935 = vpack.c.b16 %v4873, %v4871
      %v4936 = vpack.c.b16 %v4876, %v4874
      %v4937 = vpack.c.b16 %v4877, %v4875
      %v4938 = vpack.c.b16 %v4880, %v4878
      %v4939 = vpack.c.b16 %v4881, %v4879
      %v4940 = vpack.c.b16 %v4884, %v4882
      %v4941 = vpack.c.b16 %v4885, %v4883
      %v4942 = vpack.c.b16 %v4888, %v4886
      %v4943 = vpack.c.b16 %v4889, %v4887
      %v4944 = vpack.c.b16 %v4892, %v4890
      %v4945 = vpack.c.b16 %v4893, %v4891
      %v4946 = vpack.c.b16 %v4896, %v4894
      %v4947 = vpack.c.b16 %v4897, %v4895
      %v4948 = vpack.c.b16 %v4900, %v4898
      %v4949 = vpack.c.b16 %v4901, %v4899
      %v4950 = vpack.c.b16 %v4904, %v4902
      %v4951 = vpack.c.b16 %v4905, %v4903
      %v4952 = vpack.c.b16 %v4908, %v4906
      %v4953 = vpack.c.b16 %v4909, %v4907
      %v4954 = vpack.c.b16 %v4912, %v4910
      %v4955 = vpack.c.b16 %v4913, %v4911
      %v4956 = vpack.c.b16 %v4916, %v4914
      %v4957 = vpack.c.b16 %v4917, %v4915
      %v4958 = vpack.c.b16 %v4920, %v4918
      %v4959 = vpack.c.b16 %v4921, %v4919
      %v4960 = vpack.c.b16 %v4924, %v4922
      %v4961 = vpack.c.b16 %v4925, %v4923
      %v4962 = vpack.c.b16 %v4928, %v4926
      %v4963 = vpack.c.b16 %v4929, %v4927
      %v4964 = vpack.c.b16 %v4932, %v4930
      %v4965 = vpack.c.b16 %v4933, %v4931
      %4998 = vmatpush.bf16.msra.mxu0 %v4948
      %4999 = vmatpush.bf16.msra.mxu0 %v4946
      %5000 = vmatpush.bf16.msra.mxu0 %v4944
      %5001 = vmatpush.bf16.msra.mxu0 %v4942
      %5002 = vmatpush.bf16.msra.mxu0 %v4940
      %5003 = vmatpush.bf16.msra.mxu0 %v4938
      %5004 = vmatpush.bf16.msra.mxu0 %v4936
      %5005 = vmatpush.bf16.msra.mxu0 %v4934
      %5006 = vmatmul.bf16.gmra.mxu0 %v4822
      %v5007 = vpop.f32.mrf.mxu0
      %v5008 = vadd.f32 0.0, %v5007
      %v5009 = vpop.f32.mrf.mxu0
      %v5010 = vadd.f32 0.0, %v5009
      %5011 = vmatmul.bf16.gmra.mxu0 %v4824
      %v5012 = vpop.f32.mrf.mxu0
      %v5013 = vadd.f32 0.0, %v5012
      %v5014 = vpop.f32.mrf.mxu0
      %v5015 = vadd.f32 0.0, %v5014
      %5016 = vmatmul.bf16.gmra.mxu0 %v4826
      %v5017 = vpop.f32.mrf.mxu0
      %v5018 = vadd.f32 0.0, %v5017
      %v5019 = vpop.f32.mrf.mxu0
      %v5020 = vadd.f32 0.0, %v5019
      %5021 = vmatmul.bf16.gmra.mxu0 %v4828
      %v5022 = vpop.f32.mrf.mxu0
      %v5023 = vadd.f32 0.0, %v5022
      %v5024 = vpop.f32.mrf.mxu0
      %v5025 = vadd.f32 0.0, %v5024
      %5026 = vdwg.mxu0
      %5027 = vmatpush.bf16.msra.mxu0 %v4964
      %5028 = vmatpush.bf16.msra.mxu0 %v4962
      %5029 = vmatpush.bf16.msra.mxu0 %v4960
      %5030 = vmatpush.bf16.msra.mxu0 %v4958
      %5031 = vmatpush.bf16.msra.mxu0 %v4956
      %5032 = vmatpush.bf16.msra.mxu0 %v4954
      %5033 = vmatpush.bf16.msra.mxu0 %v4952
      %5034 = vmatpush.bf16.msra.mxu0 %v4950
      %5035 = vmatmul.bf16.gmra.mxu0 %v4823
      %v5036 = vpop.f32.mrf.mxu0
      %v5037 = vadd.f32 %v5008, %v5036
      %v5038 = vpop.f32.mrf.mxu0
      %v5039 = vadd.f32 %v5010, %v5038
      %5040 = vmatmul.bf16.gmra.mxu0 %v4825
      %v5041 = vpop.f32.mrf.mxu0
      %v5042 = vadd.f32 %v5013, %v5041
      %v5043 = vpop.f32.mrf.mxu0
      %v5044 = vadd.f32 %v5015, %v5043
      %5045 = vmatmul.bf16.gmra.mxu0 %v4827
      %v5046 = vpop.f32.mrf.mxu0
      %v5047 = vadd.f32 %v5018, %v5046
      %v5048 = vpop.f32.mrf.mxu0
      %v5049 = vadd.f32 %v5020, %v5048
      %5050 = vmatmul.bf16.gmra.mxu0 %v4829
      %v5051 = vpop.f32.mrf.mxu0
      %v5052 = vadd.f32 %v5023, %v5051
      %v5053 = vpop.f32.mrf.mxu0
      %v5054 = vadd.f32 %v5025, %v5053
      %5055 = vdwg.mxu0
      %5056 = vmatpush.bf16.msra.mxu0 %v4949
      %5057 = vmatpush.bf16.msra.mxu0 %v4947
      %5058 = vmatpush.bf16.msra.mxu0 %v4945
      %5059 = vmatpush.bf16.msra.mxu0 %v4943
      %5060 = vmatpush.bf16.msra.mxu0 %v4941
      %5061 = vmatpush.bf16.msra.mxu0 %v4939
      %5062 = vmatpush.bf16.msra.mxu0 %v4937
      %5063 = vmatpush.bf16.msra.mxu0 %v4935
      %5064 = vmatmul.bf16.gmra.mxu0 %v4822
      %v5065 = vpop.f32.mrf.mxu0
      %v5066 = vadd.f32 0.0, %v5065
      %v5067 = vpop.f32.mrf.mxu0
      %v5068 = vadd.f32 0.0, %v5067
      %5069 = vmatmul.bf16.gmra.mxu0 %v4824
      %v5070 = vpop.f32.mrf.mxu0
      %v5071 = vadd.f32 0.0, %v5070
      %v5072 = vpop.f32.mrf.mxu0
      %v5073 = vadd.f32 0.0, %v5072
      %5074 = vmatmul.bf16.gmra.mxu0 %v4826
      %v5075 = vpop.f32.mrf.mxu0
      %v5076 = vadd.f32 0.0, %v5075
      %v5077 = vpop.f32.mrf.mxu0
      %v5078 = vadd.f32 0.0, %v5077
      %5079 = vmatmul.bf16.gmra.mxu0 %v4828
      %v5080 = vpop.f32.mrf.mxu0
      %v5081 = vadd.f32 0.0, %v5080
      %v5082 = vpop.f32.mrf.mxu0
      %v5083 = vadd.f32 0.0, %v5082
      %5084 = vdwg.mxu0
      %5085 = vmatpush.bf16.msra.mxu0 %v4965
      %5086 = vmatpush.bf16.msra.mxu0 %v4963
      %5087 = vmatpush.bf16.msra.mxu0 %v4961
      %5088 = vmatpush.bf16.msra.mxu0 %v4959
      %5089 = vmatpush.bf16.msra.mxu0 %v4957
      %5090 = vmatpush.bf16.msra.mxu0 %v4955
      %5091 = vmatpush.bf16.msra.mxu0 %v4953
      %5092 = vmatpush.bf16.msra.mxu0 %v4951
      %5093 = vmatmul.bf16.gmra.mxu0 %v4823
      %v5094 = vpop.f32.mrf.mxu0
      %v5095 = vadd.f32 %v5066, %v5094
      %v5096 = vpop.f32.mrf.mxu0
      %v5097 = vadd.f32 %v5068, %v5096
      %5098 = vmatmul.bf16.gmra.mxu0 %v4825
      %v5099 = vpop.f32.mrf.mxu0
      %v5100 = vadd.f32 %v5071, %v5099
      %v5101 = vpop.f32.mrf.mxu0
      %v5102 = vadd.f32 %v5073, %v5101
      %5103 = vmatmul.bf16.gmra.mxu0 %v4827
      %v5104 = vpop.f32.mrf.mxu0
      %v5105 = vadd.f32 %v5076, %v5104
      %v5106 = vpop.f32.mrf.mxu0
      %v5107 = vadd.f32 %v5078, %v5106
      %5108 = vmatmul.bf16.gmra.mxu0 %v4829
      %v5109 = vpop.f32.mrf.mxu0
      %v5110 = vadd.f32 %v5081, %v5109
      %v5111 = vpop.f32.mrf.mxu0
      %v5112 = vadd.f32 %v5083, %v5111
      %5113 = vdwg.mxu0
      %v5114 = vadd.f32 %v4741, %v5037
      %v5115 = vadd.f32 %v4742, %v5095
      %v5116 = vadd.f32 %v4743, %v5039
      %v5117 = vadd.f32 %v4744, %v5097
      %v5118 = vadd.f32 %v4745, %v5042
      %v5119 = vadd.f32 %v4746, %v5100
      %v5120 = vadd.f32 %v4747, %v5044
      %v5121 = vadd.f32 %v4748, %v5102
      %v5122 = vadd.f32 %v4749, %v5047
      %v5123 = vadd.f32 %v4750, %v5105
      %v5124 = vadd.f32 %v4751, %v5049
      %v5125 = vadd.f32 %v4752, %v5107
      %v5126 = vadd.f32 %v4753, %v5052
      %v5127 = vadd.f32 %v4754, %v5110
      %v5128 = vadd.f32 %v4755, %v5054
      %v5129 = vadd.f32 %v4756, %v5112
      %v5130 = vld [vmem:[%s3987 + $0x8] sm:$0xff]
      %v5131 = vld [vmem:[%s3987 + $0x10] sm:$0xff]
      %v5132 = vld [vmem:[%s3987 + $0x18] sm:$0xff]
      %v5133 = vld [vmem:[%s3987 + $0x20] sm:$0xff]
      %v5134 = vld [vmem:[%s3987 + $0x28] sm:$0xff]
      %v5135 = vld [vmem:[%s3987 + $0x30] sm:$0xff]
      %v5136 = vld [vmem:[%s3987 + $0x38] sm:$0xff]
      %v5137 = vld [vmem:[%s3987 + $0x40] sm:$0xff]
      %s5138 = scalar_lea.vmem %s2, 768
      %v5139 = vld [vmem:[%s5138] sm:$0xff]
      %v5140 = vld [vmem:[%s5138 + $0x8] sm:$0xff]
      %v5141 = vld [vmem:[%s5138 + $0x10] sm:$0xff]
      %v5142 = vld [vmem:[%s5138 + $0x18] sm:$0xff]
      %v5143 = vld [vmem:[%s5138 + $0x20] sm:$0xff]
      %v5144 = vld [vmem:[%s5138 + $0x28] sm:$0xff]
      %v5145 = vld [vmem:[%s5138 + $0x30] sm:$0xff]
      %v5146 = vld [vmem:[%s5138 + $0x38] sm:$0xff]
      %v5147 = vld [vmem:[%s5138 + $0x40] sm:$0xff]
      %v5148 = vld [vmem:[%s5138 + $0x48] sm:$0xff]
      %v5149 = vld [vmem:[%s5138 + $0x50] sm:$0xff]
      %v5150 = vld [vmem:[%s5138 + $0x58] sm:$0xff]
      %v5151 = vld [vmem:[%s5138 + $0x60] sm:$0xff]
      %v5152 = vld [vmem:[%s5138 + $0x68] sm:$0xff]
      %v5153 = vld [vmem:[%s5138 + $0x70] sm:$0xff]
      %v5154 = vld [vmem:[%s5138 + $0x78] sm:$0xff]
      %v5155 = vld [vmem:[%s5138 + $0x80] sm:$0xff]
      %v5156 = vld [vmem:[%s5138 + $0x88] sm:$0xff]
      %v5157 = vld [vmem:[%s5138 + $0x90] sm:$0xff]
      %v5158 = vld [vmem:[%s5138 + $0x98] sm:$0xff]
      %v5159 = vld [vmem:[%s5138 + $0xa0] sm:$0xff]
      %v5160 = vld [vmem:[%s5138 + $0xa8] sm:$0xff]
      %v5161 = vld [vmem:[%s5138 + $0xb0] sm:$0xff]
      %v5162 = vld [vmem:[%s5138 + $0xb8] sm:$0xff]
      %v5163 = vld [vmem:[%s5138 + $0xc0] sm:$0xff]
      %v5164 = vld [vmem:[%s5138 + $0xc8] sm:$0xff]
      %v5165 = vld [vmem:[%s5138 + $0xd0] sm:$0xff]
      %v5166 = vld [vmem:[%s5138 + $0xd8] sm:$0xff]
      %v5167 = vld [vmem:[%s5138 + $0xe0] sm:$0xff]
      %v5168 = vld [vmem:[%s5138 + $0xe8] sm:$0xff]
      %v5169 = vld [vmem:[%s5138 + $0xf0] sm:$0xff]
      %v5170 = vld [vmem:[%s5138 + $0xf8] sm:$0xff]
      %v5179 = vunpack.c.l.b16 %v5130
      %v5180 = vunpack.c.h.b16 %v5130
      %v5181 = vunpack.c.l.b16 %v5131
      %v5182 = vunpack.c.h.b16 %v5131
      %v5183 = vunpack.c.l.b16 %v5132
      %v5184 = vunpack.c.h.b16 %v5132
      %v5185 = vunpack.c.l.b16 %v5133
      %v5186 = vunpack.c.h.b16 %v5133
      %v5187 = vunpack.c.l.b16 %v5134
      %v5188 = vunpack.c.h.b16 %v5134
      %v5189 = vunpack.c.l.b16 %v5135
      %v5190 = vunpack.c.h.b16 %v5135
      %v5191 = vunpack.c.l.b16 %v5136
      %v5192 = vunpack.c.h.b16 %v5136
      %v5193 = vunpack.c.l.b16 %v5137
      %v5194 = vunpack.c.h.b16 %v5137
      %v5195 = vpack.c.b16 %v5181, %v5179
      %v5196 = vpack.c.b16 %v5182, %v5180
      %v5197 = vpack.c.b16 %v5185, %v5183
      %v5198 = vpack.c.b16 %v5186, %v5184
      %v5199 = vpack.c.b16 %v5189, %v5187
      %v5200 = vpack.c.b16 %v5190, %v5188
      %v5201 = vpack.c.b16 %v5193, %v5191
      %v5202 = vpack.c.b16 %v5194, %v5192
      %v5243 = vunpack.c.l.b16 %v5139
      %v5244 = vunpack.c.h.b16 %v5139
      %v5245 = vunpack.c.l.b16 %v5140
      %v5246 = vunpack.c.h.b16 %v5140
      %v5247 = vunpack.c.l.b16 %v5141
      %v5248 = vunpack.c.h.b16 %v5141
      %v5249 = vunpack.c.l.b16 %v5142
      %v5250 = vunpack.c.h.b16 %v5142
      %v5251 = vunpack.c.l.b16 %v5143
      %v5252 = vunpack.c.h.b16 %v5143
      %v5253 = vunpack.c.l.b16 %v5144
      %v5254 = vunpack.c.h.b16 %v5144
      %v5255 = vunpack.c.l.b16 %v5145
      %v5256 = vunpack.c.h.b16 %v5145
      %v5257 = vunpack.c.l.b16 %v5146
      %v5258 = vunpack.c.h.b16 %v5146
      %v5259 = vunpack.c.l.b16 %v5147
      %v5260 = vunpack.c.h.b16 %v5147
      %v5261 = vunpack.c.l.b16 %v5148
      %v5262 = vunpack.c.h.b16 %v5148
      %v5263 = vunpack.c.l.b16 %v5149
      %v5264 = vunpack.c.h.b16 %v5149
      %v5265 = vunpack.c.l.b16 %v5150
      %v5266 = vunpack.c.h.b16 %v5150
      %v5267 = vunpack.c.l.b16 %v5151
      %v5268 = vunpack.c.h.b16 %v5151
      %v5269 = vunpack.c.l.b16 %v5152
      %v5270 = vunpack.c.h.b16 %v5152
      %v5271 = vunpack.c.l.b16 %v5153
      %v5272 = vunpack.c.h.b16 %v5153
      %v5273 = vunpack.c.l.b16 %v5154
      %v5274 = vunpack.c.h.b16 %v5154
      %v5275 = vunpack.c.l.b16 %v5155
      %v5276 = vunpack.c.h.b16 %v5155
      %v5277 = vunpack.c.l.b16 %v5156
      %v5278 = vunpack.c.h.b16 %v5156
      %v5279 = vunpack.c.l.b16 %v5157
      %v5280 = vunpack.c.h.b16 %v5157
      %v5281 = vunpack.c.l.b16 %v5158
      %v5282 = vunpack.c.h.b16 %v5158
      %v5283 = vunpack.c.l.b16 %v5159
      %v5284 = vunpack.c.h.b16 %v5159
      %v5285 = vunpack.c.l.b16 %v5160
      %v5286 = vunpack.c.h.b16 %v5160
      %v5287 = vunpack.c.l.b16 %v5161
      %v5288 = vunpack.c.h.b16 %v5161
      %v5289 = vunpack.c.l.b16 %v5162
      %v5290 = vunpack.c.h.b16 %v5162
      %v5291 = vunpack.c.l.b16 %v5163
      %v5292 = vunpack.c.h.b16 %v5163
      %v5293 = vunpack.c.l.b16 %v5164
      %v5294 = vunpack.c.h.b16 %v5164
      %v5295 = vunpack.c.l.b16 %v5165
      %v5296 = vunpack.c.h.b16 %v5165
      %v5297 = vunpack.c.l.b16 %v5166
      %v5298 = vunpack.c.h.b16 %v5166
      %v5299 = vunpack.c.l.b16 %v5167
      %v5300 = vunpack.c.h.b16 %v5167
      %v5301 = vunpack.c.l.b16 %v5168
      %v5302 = vunpack.c.h.b16 %v5168
      %v5303 = vunpack.c.l.b16 %v5169
      %v5304 = vunpack.c.h.b16 %v5169
      %v5305 = vunpack.c.l.b16 %v5170
      %v5306 = vunpack.c.h.b16 %v5170
      %v5307 = vpack.c.b16 %v5245, %v5243
      %v5308 = vpack.c.b16 %v5246, %v5244
      %v5309 = vpack.c.b16 %v5249, %v5247
      %v5310 = vpack.c.b16 %v5250, %v5248
      %v5311 = vpack.c.b16 %v5253, %v5251
      %v5312 = vpack.c.b16 %v5254, %v5252
      %v5313 = vpack.c.b16 %v5257, %v5255
      %v5314 = vpack.c.b16 %v5258, %v5256
      %v5315 = vpack.c.b16 %v5261, %v5259
      %v5316 = vpack.c.b16 %v5262, %v5260
      %v5317 = vpack.c.b16 %v5265, %v5263
      %v5318 = vpack.c.b16 %v5266, %v5264
      %v5319 = vpack.c.b16 %v5269, %v5267
      %v5320 = vpack.c.b16 %v5270, %v5268
      %v5321 = vpack.c.b16 %v5273, %v5271
      %v5322 = vpack.c.b16 %v5274, %v5272
      %v5323 = vpack.c.b16 %v5277, %v5275
      %v5324 = vpack.c.b16 %v5278, %v5276
      %v5325 = vpack.c.b16 %v5281, %v5279
      %v5326 = vpack.c.b16 %v5282, %v5280
      %v5327 = vpack.c.b16 %v5285, %v5283
      %v5328 = vpack.c.b16 %v5286, %v5284
      %v5329 = vpack.c.b16 %v5289, %v5287
      %v5330 = vpack.c.b16 %v5290, %v5288
      %v5331 = vpack.c.b16 %v5293, %v5291
      %v5332 = vpack.c.b16 %v5294, %v5292
      %v5333 = vpack.c.b16 %v5297, %v5295
      %v5334 = vpack.c.b16 %v5298, %v5296
      %v5335 = vpack.c.b16 %v5301, %v5299
      %v5336 = vpack.c.b16 %v5302, %v5300
      %v5337 = vpack.c.b16 %v5305, %v5303
      %v5338 = vpack.c.b16 %v5306, %v5304
      %5371 = vmatpush.bf16.msra.mxu0 %v5321
      %5372 = vmatpush.bf16.msra.mxu0 %v5319
      %5373 = vmatpush.bf16.msra.mxu0 %v5317
      %5374 = vmatpush.bf16.msra.mxu0 %v5315
      %5375 = vmatpush.bf16.msra.mxu0 %v5313
      %5376 = vmatpush.bf16.msra.mxu0 %v5311
      %5377 = vmatpush.bf16.msra.mxu0 %v5309
      %5378 = vmatpush.bf16.msra.mxu0 %v5307
      %5379 = vmatmul.bf16.gmra.mxu0 %v5195
      %v5380 = vpop.f32.mrf.mxu0
      %v5381 = vadd.f32 0.0, %v5380
      %v5382 = vpop.f32.mrf.mxu0
      %v5383 = vadd.f32 0.0, %v5382
      %5384 = vmatmul.bf16.gmra.mxu0 %v5197
      %v5385 = vpop.f32.mrf.mxu0
      %v5386 = vadd.f32 0.0, %v5385
      %v5387 = vpop.f32.mrf.mxu0
      %v5388 = vadd.f32 0.0, %v5387
      %5389 = vmatmul.bf16.gmra.mxu0 %v5199
      %v5390 = vpop.f32.mrf.mxu0
      %v5391 = vadd.f32 0.0, %v5390
      %v5392 = vpop.f32.mrf.mxu0
      %v5393 = vadd.f32 0.0, %v5392
      %5394 = vmatmul.bf16.gmra.mxu0 %v5201
      %v5395 = vpop.f32.mrf.mxu0
      %v5396 = vadd.f32 0.0, %v5395
      %v5397 = vpop.f32.mrf.mxu0
      %v5398 = vadd.f32 0.0, %v5397
      %5399 = vdwg.mxu0
      %5400 = vmatpush.bf16.msra.mxu0 %v5337
      %5401 = vmatpush.bf16.msra.mxu0 %v5335
      %5402 = vmatpush.bf16.msra.mxu0 %v5333
      %5403 = vmatpush.bf16.msra.mxu0 %v5331
      %5404 = vmatpush.bf16.msra.mxu0 %v5329
      %5405 = vmatpush.bf16.msra.mxu0 %v5327
      %5406 = vmatpush.bf16.msra.mxu0 %v5325
      %5407 = vmatpush.bf16.msra.mxu0 %v5323
      %5408 = vmatmul.bf16.gmra.mxu0 %v5196
      %v5409 = vpop.f32.mrf.mxu0
      %v5410 = vadd.f32 %v5381, %v5409
      %v5411 = vpop.f32.mrf.mxu0
      %v5412 = vadd.f32 %v5383, %v5411
      %5413 = vmatmul.bf16.gmra.mxu0 %v5198
      %v5414 = vpop.f32.mrf.mxu0
      %v5415 = vadd.f32 %v5386, %v5414
      %v5416 = vpop.f32.mrf.mxu0
      %v5417 = vadd.f32 %v5388, %v5416
      %5418 = vmatmul.bf16.gmra.mxu0 %v5200
      %v5419 = vpop.f32.mrf.mxu0
      %v5420 = vadd.f32 %v5391, %v5419
      %v5421 = vpop.f32.mrf.mxu0
      %v5422 = vadd.f32 %v5393, %v5421
      %5423 = vmatmul.bf16.gmra.mxu0 %v5202
      %v5424 = vpop.f32.mrf.mxu0
      %v5425 = vadd.f32 %v5396, %v5424
      %v5426 = vpop.f32.mrf.mxu0
      %v5427 = vadd.f32 %v5398, %v5426
      %5428 = vdwg.mxu0
      %5429 = vmatpush.bf16.msra.mxu0 %v5322
      %5430 = vmatpush.bf16.msra.mxu0 %v5320
      %5431 = vmatpush.bf16.msra.mxu0 %v5318
      %5432 = vmatpush.bf16.msra.mxu0 %v5316
      %5433 = vmatpush.bf16.msra.mxu0 %v5314
      %5434 = vmatpush.bf16.msra.mxu0 %v5312
      %5435 = vmatpush.bf16.msra.mxu0 %v5310
      %5436 = vmatpush.bf16.msra.mxu0 %v5308
      %5437 = vmatmul.bf16.gmra.mxu0 %v5195
      %v5438 = vpop.f32.mrf.mxu0
      %v5439 = vadd.f32 0.0, %v5438
      %v5440 = vpop.f32.mrf.mxu0
      %v5441 = vadd.f32 0.0, %v5440
      %5442 = vmatmul.bf16.gmra.mxu0 %v5197
      %v5443 = vpop.f32.mrf.mxu0
      %v5444 = vadd.f32 0.0, %v5443
      %v5445 = vpop.f32.mrf.mxu0
      %v5446 = vadd.f32 0.0, %v5445
      %5447 = vmatmul.bf16.gmra.mxu0 %v5199
      %v5448 = vpop.f32.mrf.mxu0
      %v5449 = vadd.f32 0.0, %v5448
      %v5450 = vpop.f32.mrf.mxu0
      %v5451 = vadd.f32 0.0, %v5450
      %5452 = vmatmul.bf16.gmra.mxu0 %v5201
      %v5453 = vpop.f32.mrf.mxu0
      %v5454 = vadd.f32 0.0, %v5453
      %v5455 = vpop.f32.mrf.mxu0
      %v5456 = vadd.f32 0.0, %v5455
      %5457 = vdwg.mxu0
      %5458 = vmatpush.bf16.msra.mxu0 %v5338
      %5459 = vmatpush.bf16.msra.mxu0 %v5336
      %5460 = vmatpush.bf16.msra.mxu0 %v5334
      %5461 = vmatpush.bf16.msra.mxu0 %v5332
      %5462 = vmatpush.bf16.msra.mxu0 %v5330
      %5463 = vmatpush.bf16.msra.mxu0 %v5328
      %5464 = vmatpush.bf16.msra.mxu0 %v5326
      %5465 = vmatpush.bf16.msra.mxu0 %v5324
      %5466 = vmatmul.bf16.gmra.mxu0 %v5196
      %v5467 = vpop.f32.mrf.mxu0
      %v5468 = vadd.f32 %v5439, %v5467
      %v5469 = vpop.f32.mrf.mxu0
      %v5470 = vadd.f32 %v5441, %v5469
      %5471 = vmatmul.bf16.gmra.mxu0 %v5198
      %v5472 = vpop.f32.mrf.mxu0
      %v5473 = vadd.f32 %v5444, %v5472
      %v5474 = vpop.f32.mrf.mxu0
      %v5475 = vadd.f32 %v5446, %v5474
      %5476 = vmatmul.bf16.gmra.mxu0 %v5200
      %v5477 = vpop.f32.mrf.mxu0
      %v5478 = vadd.f32 %v5449, %v5477
      %v5479 = vpop.f32.mrf.mxu0
      %v5480 = vadd.f32 %v5451, %v5479
      %5481 = vmatmul.bf16.gmra.mxu0 %v5202
      %v5482 = vpop.f32.mrf.mxu0
      %v5483 = vadd.f32 %v5454, %v5482
      %v5484 = vpop.f32.mrf.mxu0
      %v5485 = vadd.f32 %v5456, %v5484
      %5486 = vdwg.mxu0
      %v5487 = vadd.f32 %v5114, %v5410
      %v5488 = vadd.f32 %v5115, %v5468
      %v5489 = vadd.f32 %v5116, %v5412
      %v5490 = vadd.f32 %v5117, %v5470
      %v5491 = vadd.f32 %v5118, %v5415
      %v5492 = vadd.f32 %v5119, %v5473
      %v5493 = vadd.f32 %v5120, %v5417
      %v5494 = vadd.f32 %v5121, %v5475
      %v5495 = vadd.f32 %v5122, %v5420
      %v5496 = vadd.f32 %v5123, %v5478
      %v5497 = vadd.f32 %v5124, %v5422
      %v5498 = vadd.f32 %v5125, %v5480
      %v5499 = vadd.f32 %v5126, %v5425
      %v5500 = vadd.f32 %v5127, %v5483
      %v5501 = vadd.f32 %v5128, %v5427
      %v5502 = vadd.f32 %v5129, %v5485
      %v5503 = vld [vmem:[#allocation3 + $0x10] sm:$0xff]
      %v5504 = vld [vmem:[#allocation3 + $0x18] sm:$0xff]
      %v5505 = vld [vmem:[#allocation3 + $0x20] sm:$0xff]
      %v5506 = vld [vmem:[#allocation3 + $0x28] sm:$0xff]
      %v5507 = vld [vmem:[#allocation3 + $0x30] sm:$0xff]
      %v5508 = vld [vmem:[#allocation3 + $0x38] sm:$0xff]
      %v5509 = vld [vmem:[#allocation3 + $0x40] sm:$0xff]
      %v5510 = vld [vmem:[#allocation3 + $0x48] sm:$0xff]
      %s5511 = scalar_lea.vmem %s2, 1024
      %v5512 = vld [vmem:[%s5511] sm:$0xff]
      %v5513 = vld [vmem:[%s5511 + $0x8] sm:$0xff]
      %v5514 = vld [vmem:[%s5511 + $0x10] sm:$0xff]
      %v5515 = vld [vmem:[%s5511 + $0x18] sm:$0xff]
      %v5516 = vld [vmem:[%s5511 + $0x20] sm:$0xff]
      %v5517 = vld [vmem:[%s5511 + $0x28] sm:$0xff]
      %v5518 = vld [vmem:[%s5511 + $0x30] sm:$0xff]
      %v5519 = vld [vmem:[%s5511 + $0x38] sm:$0xff]
      %v5520 = vld [vmem:[%s5511 + $0x40] sm:$0xff]
      %v5521 = vld [vmem:[%s5511 + $0x48] sm:$0xff]
      %v5522 = vld [vmem:[%s5511 + $0x50] sm:$0xff]
      %v5523 = vld [vmem:[%s5511 + $0x58] sm:$0xff]
      %v5524 = vld [vmem:[%s5511 + $0x60] sm:$0xff]
      %v5525 = vld [vmem:[%s5511 + $0x68] sm:$0xff]
      %v5526 = vld [vmem:[%s5511 + $0x70] sm:$0xff]
      %v5527 = vld [vmem:[%s5511 + $0x78] sm:$0xff]
      %v5528 = vld [vmem:[%s5511 + $0x80] sm:$0xff]
      %v5529 = vld [vmem:[%s5511 + $0x88] sm:$0xff]
      %v5530 = vld [vmem:[%s5511 + $0x90] sm:$0xff]
      %v5531 = vld [vmem:[%s5511 + $0x98] sm:$0xff]
      %v5532 = vld [vmem:[%s5511 + $0xa0] sm:$0xff]
      %v5533 = vld [vmem:[%s5511 + $0xa8] sm:$0xff]
      %v5534 = vld [vmem:[%s5511 + $0xb0] sm:$0xff]
      %v5535 = vld [vmem:[%s5511 + $0xb8] sm:$0xff]
      %v5536 = vld [vmem:[%s5511 + $0xc0] sm:$0xff]
      %v5537 = vld [vmem:[%s5511 + $0xc8] sm:$0xff]
      %v5538 = vld [vmem:[%s5511 + $0xd0] sm:$0xff]
      %v5539 = vld [vmem:[%s5511 + $0xd8] sm:$0xff]
      %v5540 = vld [vmem:[%s5511 + $0xe0] sm:$0xff]
      %v5541 = vld [vmem:[%s5511 + $0xe8] sm:$0xff]
      %v5542 = vld [vmem:[%s5511 + $0xf0] sm:$0xff]
      %v5543 = vld [vmem:[%s5511 + $0xf8] sm:$0xff]
      %v5552 = vunpack.c.l.b16 %v5503
      %v5553 = vunpack.c.h.b16 %v5503
      %v5554 = vunpack.c.l.b16 %v5504
      %v5555 = vunpack.c.h.b16 %v5504
      %v5556 = vunpack.c.l.b16 %v5505
      %v5557 = vunpack.c.h.b16 %v5505
      %v5558 = vunpack.c.l.b16 %v5506
      %v5559 = vunpack.c.h.b16 %v5506
      %v5560 = vunpack.c.l.b16 %v5507
      %v5561 = vunpack.c.h.b16 %v5507
      %v5562 = vunpack.c.l.b16 %v5508
      %v5563 = vunpack.c.h.b16 %v5508
      %v5564 = vunpack.c.l.b16 %v5509
      %v5565 = vunpack.c.h.b16 %v5509
      %v5566 = vunpack.c.l.b16 %v5510
      %v5567 = vunpack.c.h.b16 %v5510
      %v5568 = vpack.c.b16 %v5554, %v5552
      %v5569 = vpack.c.b16 %v5555, %v5553
      %v5570 = vpack.c.b16 %v5558, %v5556
      %v5571 = vpack.c.b16 %v5559, %v5557
      %v5572 = vpack.c.b16 %v5562, %v5560
      %v5573 = vpack.c.b16 %v5563, %v5561
      %v5574 = vpack.c.b16 %v5566, %v5564
      %v5575 = vpack.c.b16 %v5567, %v5565
      %v5616 = vunpack.c.l.b16 %v5512
      %v5617 = vunpack.c.h.b16 %v5512
      %v5618 = vunpack.c.l.b16 %v5513
      %v5619 = vunpack.c.h.b16 %v5513
      %v5620 = vunpack.c.l.b16 %v5514
      %v5621 = vunpack.c.h.b16 %v5514
      %v5622 = vunpack.c.l.b16 %v5515
      %v5623 = vunpack.c.h.b16 %v5515
      %v5624 = vunpack.c.l.b16 %v5516
      %v5625 = vunpack.c.h.b16 %v5516
      %v5626 = vunpack.c.l.b16 %v5517
      %v5627 = vunpack.c.h.b16 %v5517
      %v5628 = vunpack.c.l.b16 %v5518
      %v5629 = vunpack.c.h.b16 %v5518
      %v5630 = vunpack.c.l.b16 %v5519
      %v5631 = vunpack.c.h.b16 %v5519
      %v5632 = vunpack.c.l.b16 %v5520
      %v5633 = vunpack.c.h.b16 %v5520
      %v5634 = vunpack.c.l.b16 %v5521
      %v5635 = vunpack.c.h.b16 %v5521
      %v5636 = vunpack.c.l.b16 %v5522
      %v5637 = vunpack.c.h.b16 %v5522
      %v5638 = vunpack.c.l.b16 %v5523
      %v5639 = vunpack.c.h.b16 %v5523
      %v5640 = vunpack.c.l.b16 %v5524
      %v5641 = vunpack.c.h.b16 %v5524
      %v5642 = vunpack.c.l.b16 %v5525
      %v5643 = vunpack.c.h.b16 %v5525
      %v5644 = vunpack.c.l.b16 %v5526
      %v5645 = vunpack.c.h.b16 %v5526
      %v5646 = vunpack.c.l.b16 %v5527
      %v5647 = vunpack.c.h.b16 %v5527
      %v5648 = vunpack.c.l.b16 %v5528
      %v5649 = vunpack.c.h.b16 %v5528
      %v5650 = vunpack.c.l.b16 %v5529
      %v5651 = vunpack.c.h.b16 %v5529
      %v5652 = vunpack.c.l.b16 %v5530
      %v5653 = vunpack.c.h.b16 %v5530
      %v5654 = vunpack.c.l.b16 %v5531
      %v5655 = vunpack.c.h.b16 %v5531
      %v5656 = vunpack.c.l.b16 %v5532
      %v5657 = vunpack.c.h.b16 %v5532
      %v5658 = vunpack.c.l.b16 %v5533
      %v5659 = vunpack.c.h.b16 %v5533
      %v5660 = vunpack.c.l.b16 %v5534
      %v5661 = vunpack.c.h.b16 %v5534
      %v5662 = vunpack.c.l.b16 %v5535
      %v5663 = vunpack.c.h.b16 %v5535
      %v5664 = vunpack.c.l.b16 %v5536
      %v5665 = vunpack.c.h.b16 %v5536
      %v5666 = vunpack.c.l.b16 %v5537
      %v5667 = vunpack.c.h.b16 %v5537
      %v5668 = vunpack.c.l.b16 %v5538
      %v5669 = vunpack.c.h.b16 %v5538
      %v5670 = vunpack.c.l.b16 %v5539
      %v5671 = vunpack.c.h.b16 %v5539
      %v5672 = vunpack.c.l.b16 %v5540
      %v5673 = vunpack.c.h.b16 %v5540
      %v5674 = vunpack.c.l.b16 %v5541
      %v5675 = vunpack.c.h.b16 %v5541
      %v5676 = vunpack.c.l.b16 %v5542
      %v5677 = vunpack.c.h.b16 %v5542
      %v5678 = vunpack.c.l.b16 %v5543
      %v5679 = vunpack.c.h.b16 %v5543
      %v5680 = vpack.c.b16 %v5618, %v5616
      %v5681 = vpack.c.b16 %v5619, %v5617
      %v5682 = vpack.c.b16 %v5622, %v5620
      %v5683 = vpack.c.b16 %v5623, %v5621
      %v5684 = vpack.c.b16 %v5626, %v5624
      %v5685 = vpack.c.b16 %v5627, %v5625
      %v5686 = vpack.c.b16 %v5630, %v5628
      %v5687 = vpack.c.b16 %v5631, %v5629
      %v5688 = vpack.c.b16 %v5634, %v5632
      %v5689 = vpack.c.b16 %v5635, %v5633
      %v5690 = vpack.c.b16 %v5638, %v5636
      %v5691 = vpack.c.b16 %v5639, %v5637
      %v5692 = vpack.c.b16 %v5642, %v5640
      %v5693 = vpack.c.b16 %v5643, %v5641
      %v5694 = vpack.c.b16 %v5646, %v5644
      %v5695 = vpack.c.b16 %v5647, %v5645
      %v5696 = vpack.c.b16 %v5650, %v5648
      %v5697 = vpack.c.b16 %v5651, %v5649
      %v5698 = vpack.c.b16 %v5654, %v5652
      %v5699 = vpack.c.b16 %v5655, %v5653
      %v5700 = vpack.c.b16 %v5658, %v5656
      %v5701 = vpack.c.b16 %v5659, %v5657
      %v5702 = vpack.c.b16 %v5662, %v5660
      %v5703 = vpack.c.b16 %v5663, %v5661
      %v5704 = vpack.c.b16 %v5666, %v5664
      %v5705 = vpack.c.b16 %v5667, %v5665
      %v5706 = vpack.c.b16 %v5670, %v5668
      %v5707 = vpack.c.b16 %v5671, %v5669
      %v5708 = vpack.c.b16 %v5674, %v5672
      %v5709 = vpack.c.b16 %v5675, %v5673
      %v5710 = vpack.c.b16 %v5678, %v5676
      %v5711 = vpack.c.b16 %v5679, %v5677
      %5744 = vmatpush.bf16.msra.mxu0 %v5694
      %5745 = vmatpush.bf16.msra.mxu0 %v5692
      %5746 = vmatpush.bf16.msra.mxu0 %v5690
      %5747 = vmatpush.bf16.msra.mxu0 %v5688
      %5748 = vmatpush.bf16.msra.mxu0 %v5686
      %5749 = vmatpush.bf16.msra.mxu0 %v5684
      %5750 = vmatpush.bf16.msra.mxu0 %v5682
      %5751 = vmatpush.bf16.msra.mxu0 %v5680
      %5752 = vmatmul.bf16.gmra.mxu0 %v5568
      %v5753 = vpop.f32.mrf.mxu0
      %v5754 = vadd.f32 0.0, %v5753
      %v5755 = vpop.f32.mrf.mxu0
      %v5756 = vadd.f32 0.0, %v5755
      %5757 = vmatmul.bf16.gmra.mxu0 %v5570
      %v5758 = vpop.f32.mrf.mxu0
      %v5759 = vadd.f32 0.0, %v5758
      %v5760 = vpop.f32.mrf.mxu0
      %v5761 = vadd.f32 0.0, %v5760
      %5762 = vmatmul.bf16.gmra.mxu0 %v5572
      %v5763 = vpop.f32.mrf.mxu0
      %v5764 = vadd.f32 0.0, %v5763
      %v5765 = vpop.f32.mrf.mxu0
      %v5766 = vadd.f32 0.0, %v5765
      %5767 = vmatmul.bf16.gmra.mxu0 %v5574
      %v5768 = vpop.f32.mrf.mxu0
      %v5769 = vadd.f32 0.0, %v5768
      %v5770 = vpop.f32.mrf.mxu0
      %v5771 = vadd.f32 0.0, %v5770
      %5772 = vdwg.mxu0
      %5773 = vmatpush.bf16.msra.mxu0 %v5710
      %5774 = vmatpush.bf16.msra.mxu0 %v5708
      %5775 = vmatpush.bf16.msra.mxu0 %v5706
      %5776 = vmatpush.bf16.msra.mxu0 %v5704
      %5777 = vmatpush.bf16.msra.mxu0 %v5702
      %5778 = vmatpush.bf16.msra.mxu0 %v5700
      %5779 = vmatpush.bf16.msra.mxu0 %v5698
      %5780 = vmatpush.bf16.msra.mxu0 %v5696
      %5781 = vmatmul.bf16.gmra.mxu0 %v5569
      %v5782 = vpop.f32.mrf.mxu0
      %v5783 = vadd.f32 %v5754, %v5782
      %v5784 = vpop.f32.mrf.mxu0
      %v5785 = vadd.f32 %v5756, %v5784
      %5786 = vmatmul.bf16.gmra.mxu0 %v5571
      %v5787 = vpop.f32.mrf.mxu0
      %v5788 = vadd.f32 %v5759, %v5787
      %v5789 = vpop.f32.mrf.mxu0
      %v5790 = vadd.f32 %v5761, %v5789
      %5791 = vmatmul.bf16.gmra.mxu0 %v5573
      %v5792 = vpop.f32.mrf.mxu0
      %v5793 = vadd.f32 %v5764, %v5792
      %v5794 = vpop.f32.mrf.mxu0
      %v5795 = vadd.f32 %v5766, %v5794
      %5796 = vmatmul.bf16.gmra.mxu0 %v5575
      %v5797 = vpop.f32.mrf.mxu0
      %v5798 = vadd.f32 %v5769, %v5797
      %v5799 = vpop.f32.mrf.mxu0
      %v5800 = vadd.f32 %v5771, %v5799
      %5801 = vdwg.mxu0
      %5802 = vmatpush.bf16.msra.mxu0 %v5695
      %5803 = vmatpush.bf16.msra.mxu0 %v5693
      %5804 = vmatpush.bf16.msra.mxu0 %v5691
      %5805 = vmatpush.bf16.msra.mxu0 %v5689
      %5806 = vmatpush.bf16.msra.mxu0 %v5687
      %5807 = vmatpush.bf16.msra.mxu0 %v5685
      %5808 = vmatpush.bf16.msra.mxu0 %v5683
      %5809 = vmatpush.bf16.msra.mxu0 %v5681
      %5810 = vmatmul.bf16.gmra.mxu0 %v5568
      %v5811 = vpop.f32.mrf.mxu0
      %v5812 = vadd.f32 0.0, %v5811
      %v5813 = vpop.f32.mrf.mxu0
      %v5814 = vadd.f32 0.0, %v5813
      %5815 = vmatmul.bf16.gmra.mxu0 %v5570
      %v5816 = vpop.f32.mrf.mxu0
      %v5817 = vadd.f32 0.0, %v5816
      %v5818 = vpop.f32.mrf.mxu0
      %v5819 = vadd.f32 0.0, %v5818
      %5820 = vmatmul.bf16.gmra.mxu0 %v5572
      %v5821 = vpop.f32.mrf.mxu0
      %v5822 = vadd.f32 0.0, %v5821
      %v5823 = vpop.f32.mrf.mxu0
      %v5824 = vadd.f32 0.0, %v5823
      %5825 = vmatmul.bf16.gmra.mxu0 %v5574
      %v5826 = vpop.f32.mrf.mxu0
      %v5827 = vadd.f32 0.0, %v5826
      %v5828 = vpop.f32.mrf.mxu0
      %v5829 = vadd.f32 0.0, %v5828
      %5830 = vdwg.mxu0
      %5831 = vmatpush.bf16.msra.mxu0 %v5711
      %5832 = vmatpush.bf16.msra.mxu0 %v5709
      %5833 = vmatpush.bf16.msra.mxu0 %v5707
      %5834 = vmatpush.bf16.msra.mxu0 %v5705
      %5835 = vmatpush.bf16.msra.mxu0 %v5703
      %5836 = vmatpush.bf16.msra.mxu0 %v5701
      %5837 = vmatpush.bf16.msra.mxu0 %v5699
      %5838 = vmatpush.bf16.msra.mxu0 %v5697
      %5839 = vmatmul.bf16.gmra.mxu0 %v5569
      %v5840 = vpop.f32.mrf.mxu0
      %v5841 = vadd.f32 %v5812, %v5840
      %v5842 = vpop.f32.mrf.mxu0
      %v5843 = vadd.f32 %v5814, %v5842
      %5844 = vmatmul.bf16.gmra.mxu0 %v5571
      %v5845 = vpop.f32.mrf.mxu0
      %v5846 = vadd.f32 %v5817, %v5845
      %v5847 = vpop.f32.mrf.mxu0
      %v5848 = vadd.f32 %v5819, %v5847
      %5849 = vmatmul.bf16.gmra.mxu0 %v5573
      %v5850 = vpop.f32.mrf.mxu0
      %v5851 = vadd.f32 %v5822, %v5850
      %v5852 = vpop.f32.mrf.mxu0
      %v5853 = vadd.f32 %v5824, %v5852
      %5854 = vmatmul.bf16.gmra.mxu0 %v5575
      %v5855 = vpop.f32.mrf.mxu0
      %v5856 = vadd.f32 %v5827, %v5855
      %v5857 = vpop.f32.mrf.mxu0
      %v5858 = vadd.f32 %v5829, %v5857
      %5859 = vdwg.mxu0
      %v5860 = vadd.f32 %v5487, %v5783
      %v5861 = vadd.f32 %v5488, %v5841
      %v5862 = vadd.f32 %v5489, %v5785
      %v5863 = vadd.f32 %v5490, %v5843
      %v5864 = vadd.f32 %v5491, %v5788
      %v5865 = vadd.f32 %v5492, %v5846
      %v5866 = vadd.f32 %v5493, %v5790
      %v5867 = vadd.f32 %v5494, %v5848
      %v5868 = vadd.f32 %v5495, %v5793
      %v5869 = vadd.f32 %v5496, %v5851
      %v5870 = vadd.f32 %v5497, %v5795
      %v5871 = vadd.f32 %v5498, %v5853
      %v5872 = vadd.f32 %v5499, %v5798
      %v5873 = vadd.f32 %v5500, %v5856
      %v5874 = vadd.f32 %v5501, %v5800
      %v5875 = vadd.f32 %v5502, %v5858
      %vm5876 = vcmp.ge.f32.partialorder %v5860, 0.0
      %vm5877 = vcmp.ge.f32.partialorder %v5861, 0.0
      %vm5878 = vcmp.ge.f32.partialorder %v5862, 0.0
      %vm5879 = vcmp.ge.f32.partialorder %v5863, 0.0
      %vm5880 = vcmp.ge.f32.partialorder %v5864, 0.0
      %vm5881 = vcmp.ge.f32.partialorder %v5865, 0.0
      %vm5882 = vcmp.ge.f32.partialorder %v5866, 0.0
      %vm5883 = vcmp.ge.f32.partialorder %v5867, 0.0
      %vm5884 = vcmp.ge.f32.partialorder %v5868, 0.0
      %vm5885 = vcmp.ge.f32.partialorder %v5869, 0.0
      %vm5886 = vcmp.ge.f32.partialorder %v5870, 0.0
      %vm5887 = vcmp.ge.f32.partialorder %v5871, 0.0
      %vm5888 = vcmp.ge.f32.partialorder %v5872, 0.0
      %vm5889 = vcmp.ge.f32.partialorder %v5873, 0.0
      %vm5890 = vcmp.ge.f32.partialorder %v5874, 0.0
      %vm5891 = vcmp.ge.f32.partialorder %v5875, 0.0
      %v5892 = vmul.f32 %v5860, 0.1
      %v5893 = vmul.f32 %v5861, 0.1
      %v5894 = vmul.f32 %v5862, 0.1
      %v5895 = vmul.f32 %v5863, 0.1
      %v5896 = vmul.f32 %v5864, 0.1
      %v5897 = vmul.f32 %v5865, 0.1
      %v5898 = vmul.f32 %v5866, 0.1
      %v5899 = vmul.f32 %v5867, 0.1
      %v5900 = vmul.f32 %v5868, 0.1
      %v5901 = vmul.f32 %v5869, 0.1
      %v5902 = vmul.f32 %v5870, 0.1
      %v5903 = vmul.f32 %v5871, 0.1
      %v5904 = vmul.f32 %v5872, 0.1
      %v5905 = vmul.f32 %v5873, 0.1
      %v5906 = vmul.f32 %v5874, 0.1
      %v5907 = vmul.f32 %v5875, 0.1
      %v5908 = vsel %vm5876, %v5860, %v5892
      %v5909 = vsel %vm5877, %v5861, %v5893
      %v5910 = vsel %vm5878, %v5862, %v5894
      %v5911 = vsel %vm5879, %v5863, %v5895
      %v5912 = vsel %vm5880, %v5864, %v5896
      %v5913 = vsel %vm5881, %v5865, %v5897
      %v5914 = vsel %vm5882, %v5866, %v5898
      %v5915 = vsel %vm5883, %v5867, %v5899
      %v5916 = vsel %vm5884, %v5868, %v5900
      %v5917 = vsel %vm5885, %v5869, %v5901
      %v5918 = vsel %vm5886, %v5870, %v5902
      %v5919 = vsel %vm5887, %v5871, %v5903
      %v5920 = vsel %vm5888, %v5872, %v5904
      %v5921 = vsel %vm5889, %v5873, %v5905
      %v5922 = vsel %vm5890, %v5874, %v5906
      %v5923 = vsel %vm5891, %v5875, %v5907
      %5924 = vst [vmem:[#allocation4] sm:$0xff] 0
      %v5925 = vpack.c.bf16 %v5911, %v5910
      %5926 = vst [vmem:[#allocation4 + $0x8] sm:$0xff] %v5925
      %v5927 = vpack.c.bf16 %v5915, %v5914
      %5928 = vst [vmem:[#allocation4 + $0x10] sm:$0xff] %v5927
      %v5929 = vpack.c.bf16 %v5919, %v5918
      %5930 = vst [vmem:[#allocation4 + $0x18] sm:$0xff] %v5929
      %v5931 = vpack.c.bf16 %v5923, %v5922
      %5932 = vst [vmem:[#allocation4 + $0x20] sm:$0xff] %v5931
      %s5933 = scalar_lea.vmem [#allocation4], 40
      %5934 = vst [vmem:[%s5933 + $0x20] sm:$0xff] 0
      %v5935 = vpack.c.bf16 %v5909, %v5908
      %5936 = vst [vmem:[%s5933] sm:$0xff] %v5935
      %v5937 = vpack.c.bf16 %v5913, %v5912
      %5938 = vst [vmem:[%s5933 + $0x8] sm:$0xff] %v5937
      %v5939 = vpack.c.bf16 %v5917, %v5916
      %5940 = vst [vmem:[%s5933 + $0x10] sm:$0xff] %v5939
      %v5941 = vpack.c.bf16 %v5921, %v5920
      %5942 = vst [vmem:[%s5933 + $0x18] sm:$0xff] %v5941
      %v5943 = vld [vmem:[%s7] sm:$0x3]
      %v5945 = vperm.slane %v5943, 0
      %v5946 = vperm.slane %v5943, 1
      %v5949 = vld [vmem:[#allocation4] sm:$0xff]
      %v5950 = vld [vmem:[#allocation4 + $0x8] sm:$0xff]
      %v5951 = vld [vmem:[#allocation4 + $0x10] sm:$0xff]
      %v5952 = vld [vmem:[#allocation4 + $0x18] sm:$0xff]
      %v5953 = vld [vmem:[%s3] sm:$0xff]
      %v5954 = vld [vmem:[%s3 + $0x8] sm:$0xff]
      %v5955 = vld [vmem:[%s3 + $0x10] sm:$0xff]
      %v5956 = vld [vmem:[%s3 + $0x18] sm:$0xff]
      %v5957 = vld [vmem:[%s3 + $0x20] sm:$0xff]
      %v5958 = vld [vmem:[%s3 + $0x28] sm:$0xff]
      %v5959 = vld [vmem:[%s3 + $0x30] sm:$0xff]
      %v5960 = vld [vmem:[%s3 + $0x38] sm:$0xff]
      %v5961 = vld [vmem:[%s3 + $0x40] sm:$0xff]
      %v5962 = vld [vmem:[%s3 + $0x48] sm:$0xff]
      %v5963 = vld [vmem:[%s3 + $0x50] sm:$0xff]
      %v5964 = vld [vmem:[%s3 + $0x58] sm:$0xff]
      %v5965 = vld [vmem:[%s3 + $0x60] sm:$0xff]
      %v5966 = vld [vmem:[%s3 + $0x68] sm:$0xff]
      %v5967 = vld [vmem:[%s3 + $0x70] sm:$0xff]
      %v5968 = vld [vmem:[%s3 + $0x78] sm:$0xff]
      %v5969 = vld [vmem:[%s3 + $0x80] sm:$0xff]
      %v5970 = vld [vmem:[%s3 + $0x88] sm:$0xff]
      %v5971 = vld [vmem:[%s3 + $0x90] sm:$0xff]
      %v5972 = vld [vmem:[%s3 + $0x98] sm:$0xff]
      %v5973 = vld [vmem:[%s3 + $0xa0] sm:$0xff]
      %v5974 = vld [vmem:[%s3 + $0xa8] sm:$0xff]
      %v5975 = vld [vmem:[%s3 + $0xb0] sm:$0xff]
      %v5976 = vld [vmem:[%s3 + $0xb8] sm:$0xff]
      %v5977 = vld [vmem:[%s3 + $0xc0] sm:$0xff]
      %v5978 = vld [vmem:[%s3 + $0xc8] sm:$0xff]
      %v5979 = vld [vmem:[%s3 + $0xd0] sm:$0xff]
      %v5980 = vld [vmem:[%s3 + $0xd8] sm:$0xff]
      %v5981 = vld [vmem:[%s3 + $0xe0] sm:$0xff]
      %v5982 = vld [vmem:[%s3 + $0xe8] sm:$0xff]
      %v5983 = vld [vmem:[%s3 + $0xf0] sm:$0xff]
      %v5984 = vld [vmem:[%s3 + $0xf8] sm:$0xff]
      %v5989 = vunpack.c.l.b16 %v5949
      %v5990 = vunpack.c.h.b16 %v5949
      %v5991 = vunpack.c.l.b16 %v5950
      %v5992 = vunpack.c.h.b16 %v5950
      %v5993 = vunpack.c.l.b16 %v5951
      %v5994 = vunpack.c.h.b16 %v5951
      %v5995 = vunpack.c.l.b16 %v5952
      %v5996 = vunpack.c.h.b16 %v5952
      %v5997 = vpack.c.b16 %v5991, %v5989
      %v5998 = vpack.c.b16 %v5992, %v5990
      %v5999 = vpack.c.b16 %v5995, %v5993
      %v6000 = vpack.c.b16 %v5996, %v5994
      %v6037 = vunpack.c.l.b16 %v5953
      %v6038 = vunpack.c.h.b16 %v5953
      %v6039 = vunpack.c.l.b16 %v5954
      %v6040 = vunpack.c.h.b16 %v5954
      %v6041 = vunpack.c.l.b16 %v5955
      %v6042 = vunpack.c.h.b16 %v5955
      %v6043 = vunpack.c.l.b16 %v5956
      %v6044 = vunpack.c.h.b16 %v5956
      %v6045 = vunpack.c.l.b16 %v5957
      %v6046 = vunpack.c.h.b16 %v5957
      %v6047 = vunpack.c.l.b16 %v5958
      %v6048 = vunpack.c.h.b16 %v5958
      %v6049 = vunpack.c.l.b16 %v5959
      %v6050 = vunpack.c.h.b16 %v5959
      %v6051 = vunpack.c.l.b16 %v5960
      %v6052 = vunpack.c.h.b16 %v5960
      %v6053 = vunpack.c.l.b16 %v5961
      %v6054 = vunpack.c.h.b16 %v5961
      %v6055 = vunpack.c.l.b16 %v5962
      %v6056 = vunpack.c.h.b16 %v5962
      %v6057 = vunpack.c.l.b16 %v5963
      %v6058 = vunpack.c.h.b16 %v5963
      %v6059 = vunpack.c.l.b16 %v5964
      %v6060 = vunpack.c.h.b16 %v5964
      %v6061 = vunpack.c.l.b16 %v5965
      %v6062 = vunpack.c.h.b16 %v5965
      %v6063 = vunpack.c.l.b16 %v5966
      %v6064 = vunpack.c.h.b16 %v5966
      %v6065 = vunpack.c.l.b16 %v5967
      %v6066 = vunpack.c.h.b16 %v5967
      %v6067 = vunpack.c.l.b16 %v5968
      %v6068 = vunpack.c.h.b16 %v5968
      %v6069 = vunpack.c.l.b16 %v5969
      %v6070 = vunpack.c.h.b16 %v5969
      %v6071 = vunpack.c.l.b16 %v5970
      %v6072 = vunpack.c.h.b16 %v5970
      %v6073 = vunpack.c.l.b16 %v5971
      %v6074 = vunpack.c.h.b16 %v5971
      %v6075 = vunpack.c.l.b16 %v5972
      %v6076 = vunpack.c.h.b16 %v5972
      %v6077 = vunpack.c.l.b16 %v5973
      %v6078 = vunpack.c.h.b16 %v5973
      %v6079 = vunpack.c.l.b16 %v5974
      %v6080 = vunpack.c.h.b16 %v5974
      %v6081 = vunpack.c.l.b16 %v5975
      %v6082 = vunpack.c.h.b16 %v5975
      %v6083 = vunpack.c.l.b16 %v5976
      %v6084 = vunpack.c.h.b16 %v5976
      %v6085 = vunpack.c.l.b16 %v5977
      %v6086 = vunpack.c.h.b16 %v5977
      %v6087 = vunpack.c.l.b16 %v5978
      %v6088 = vunpack.c.h.b16 %v5978
      %v6089 = vunpack.c.l.b16 %v5979
      %v6090 = vunpack.c.h.b16 %v5979
      %v6091 = vunpack.c.l.b16 %v5980
      %v6092 = vunpack.c.h.b16 %v5980
      %v6093 = vunpack.c.l.b16 %v5981
      %v6094 = vunpack.c.h.b16 %v5981
      %v6095 = vunpack.c.l.b16 %v5982
      %v6096 = vunpack.c.h.b16 %v5982
      %v6097 = vunpack.c.l.b16 %v5983
      %v6098 = vunpack.c.h.b16 %v5983
      %v6099 = vunpack.c.l.b16 %v5984
      %v6100 = vunpack.c.h.b16 %v5984
      %v6101 = vpack.c.b16 %v6039, %v6037
      %v6102 = vpack.c.b16 %v6040, %v6038
      %v6103 = vpack.c.b16 %v6043, %v6041
      %v6104 = vpack.c.b16 %v6044, %v6042
      %v6105 = vpack.c.b16 %v6047, %v6045
      %v6106 = vpack.c.b16 %v6048, %v6046
      %v6107 = vpack.c.b16 %v6051, %v6049
      %v6108 = vpack.c.b16 %v6052, %v6050
      %v6109 = vpack.c.b16 %v6055, %v6053
      %v6110 = vpack.c.b16 %v6056, %v6054
      %v6111 = vpack.c.b16 %v6059, %v6057
      %v6112 = vpack.c.b16 %v6060, %v6058
      %v6113 = vpack.c.b16 %v6063, %v6061
      %v6114 = vpack.c.b16 %v6064, %v6062
      %v6115 = vpack.c.b16 %v6067, %v6065
      %v6116 = vpack.c.b16 %v6068, %v6066
      %v6117 = vpack.c.b16 %v6071, %v6069
      %v6118 = vpack.c.b16 %v6072, %v6070
      %v6119 = vpack.c.b16 %v6075, %v6073
      %v6120 = vpack.c.b16 %v6076, %v6074
      %v6121 = vpack.c.b16 %v6079, %v6077
      %v6122 = vpack.c.b16 %v6080, %v6078
      %v6123 = vpack.c.b16 %v6083, %v6081
      %v6124 = vpack.c.b16 %v6084, %v6082
      %v6125 = vpack.c.b16 %v6087, %v6085
      %v6126 = vpack.c.b16 %v6088, %v6086
      %v6127 = vpack.c.b16 %v6091, %v6089
      %v6128 = vpack.c.b16 %v6092, %v6090
      %v6129 = vpack.c.b16 %v6095, %v6093
      %v6130 = vpack.c.b16 %v6096, %v6094
      %v6131 = vpack.c.b16 %v6099, %v6097
      %v6132 = vpack.c.b16 %v6100, %v6098
      %6165 = vmatpush.bf16.msra.mxu0 %v6115
      %6166 = vmatpush.bf16.msra.mxu0 %v6113
      %6167 = vmatpush.bf16.msra.mxu0 %v6111
      %6168 = vmatpush.bf16.msra.mxu0 %v6109
      %6169 = vmatpush.bf16.msra.mxu0 %v6107
      %6170 = vmatpush.bf16.msra.mxu0 %v6105
      %6171 = vmatpush.bf16.msra.mxu0 %v6103
      %6172 = vmatpush.bf16.msra.mxu0 %v6101
      %6173 = vmatmul.bf16.gmra.mxu0 %v5997
      %v6174 = vpop.f32.mrf.mxu0
      %v6175 = vadd.f32 0.0, %v6174
      %v6176 = vpop.f32.mrf.mxu0
      %v6177 = vadd.f32 0.0, %v6176
      %6178 = vmatmul.bf16.gmra.mxu0 %v5999
      %v6179 = vpop.f32.mrf.mxu0
      %v6180 = vadd.f32 0.0, %v6179
      %v6181 = vpop.f32.mrf.mxu0
      %v6182 = vadd.f32 0.0, %v6181
      %6183 = vdwg.mxu0
      %6184 = vmatpush.bf16.msra.mxu0 %v6131
      %6185 = vmatpush.bf16.msra.mxu0 %v6129
      %6186 = vmatpush.bf16.msra.mxu0 %v6127
      %6187 = vmatpush.bf16.msra.mxu0 %v6125
      %6188 = vmatpush.bf16.msra.mxu0 %v6123
      %6189 = vmatpush.bf16.msra.mxu0 %v6121
      %6190 = vmatpush.bf16.msra.mxu0 %v6119
      %6191 = vmatpush.bf16.msra.mxu0 %v6117
      %6192 = vmatmul.bf16.gmra.mxu0 %v5998
      %v6193 = vpop.f32.mrf.mxu0
      %v6194 = vadd.f32 %v6175, %v6193
      %v6195 = vpop.f32.mrf.mxu0
      %v6196 = vadd.f32 %v6177, %v6195
      %6197 = vmatmul.bf16.gmra.mxu0 %v6000
      %v6198 = vpop.f32.mrf.mxu0
      %v6199 = vadd.f32 %v6180, %v6198
      %v6200 = vpop.f32.mrf.mxu0
      %v6201 = vadd.f32 %v6182, %v6200
      %6202 = vdwg.mxu0
      %6203 = vmatpush.bf16.msra.mxu0 %v6116
      %6204 = vmatpush.bf16.msra.mxu0 %v6114
      %6205 = vmatpush.bf16.msra.mxu0 %v6112
      %6206 = vmatpush.bf16.msra.mxu0 %v6110
      %6207 = vmatpush.bf16.msra.mxu0 %v6108
      %6208 = vmatpush.bf16.msra.mxu0 %v6106
      %6209 = vmatpush.bf16.msra.mxu0 %v6104
      %6210 = vmatpush.bf16.msra.mxu0 %v6102
      %6211 = vmatmul.bf16.gmra.mxu0 %v5997
      %v6212 = vpop.f32.mrf.mxu0
      %v6213 = vadd.f32 0.0, %v6212
      %v6214 = vpop.f32.mrf.mxu0
      %v6215 = vadd.f32 0.0, %v6214
      %6216 = vmatmul.bf16.gmra.mxu0 %v5999
      %v6217 = vpop.f32.mrf.mxu0
      %v6218 = vadd.f32 0.0, %v6217
      %v6219 = vpop.f32.mrf.mxu0
      %v6220 = vadd.f32 0.0, %v6219
      %6221 = vdwg.mxu0
      %6222 = vmatpush.bf16.msra.mxu0 %v6132
      %6223 = vmatpush.bf16.msra.mxu0 %v6130
      %6224 = vmatpush.bf16.msra.mxu0 %v6128
      %6225 = vmatpush.bf16.msra.mxu0 %v6126
      %6226 = vmatpush.bf16.msra.mxu0 %v6124
      %6227 = vmatpush.bf16.msra.mxu0 %v6122
      %6228 = vmatpush.bf16.msra.mxu0 %v6120
      %6229 = vmatpush.bf16.msra.mxu0 %v6118
      %6230 = vmatmul.bf16.gmra.mxu0 %v5998
      %v6231 = vpop.f32.mrf.mxu0
      %v6232 = vadd.f32 %v6213, %v6231
      %v6233 = vpop.f32.mrf.mxu0
      %v6234 = vadd.f32 %v6215, %v6233
      %6235 = vmatmul.bf16.gmra.mxu0 %v6000
      %v6236 = vpop.f32.mrf.mxu0
      %v6237 = vadd.f32 %v6218, %v6236
      %v6238 = vpop.f32.mrf.mxu0
      %v6239 = vadd.f32 %v6220, %v6238
      %6240 = vdwg.mxu0
      %v6241 = vadd.f32 %v5945, %v6194
      %v6242 = vadd.f32 %v5946, %v6232
      %v6243 = vadd.f32 %v5945, %v6196
      %v6244 = vadd.f32 %v5946, %v6234
      %v6245 = vadd.f32 %v5945, %v6199
      %v6246 = vadd.f32 %v5946, %v6237
      %v6247 = vadd.f32 %v5945, %v6201
      %v6248 = vadd.f32 %v5946, %v6239
      %v6249 = vld [vmem:[%s5933] sm:$0xff]
      %v6250 = vld [vmem:[%s5933 + $0x8] sm:$0xff]
      %v6251 = vld [vmem:[%s5933 + $0x10] sm:$0xff]
      %v6252 = vld [vmem:[%s5933 + $0x18] sm:$0xff]
      %s6253 = scalar_lea.vmem %s3, 256
      %v6254 = vld [vmem:[%s6253] sm:$0xff]
      %v6255 = vld [vmem:[%s6253 + $0x8] sm:$0xff]
      %v6256 = vld [vmem:[%s6253 + $0x10] sm:$0xff]
      %v6257 = vld [vmem:[%s6253 + $0x18] sm:$0xff]
      %v6258 = vld [vmem:[%s6253 + $0x20] sm:$0xff]
      %v6259 = vld [vmem:[%s6253 + $0x28] sm:$0xff]
      %v6260 = vld [vmem:[%s6253 + $0x30] sm:$0xff]
      %v6261 = vld [vmem:[%s6253 + $0x38] sm:$0xff]
      %v6262 = vld [vmem:[%s6253 + $0x40] sm:$0xff]
      %v6263 = vld [vmem:[%s6253 + $0x48] sm:$0xff]
      %v6264 = vld [vmem:[%s6253 + $0x50] sm:$0xff]
      %v6265 = vld [vmem:[%s6253 + $0x58] sm:$0xff]
      %v6266 = vld [vmem:[%s6253 + $0x60] sm:$0xff]
      %v6267 = vld [vmem:[%s6253 + $0x68] sm:$0xff]
      %v6268 = vld [vmem:[%s6253 + $0x70] sm:$0xff]
      %v6269 = vld [vmem:[%s6253 + $0x78] sm:$0xff]
      %v6270 = vld [vmem:[%s6253 + $0x80] sm:$0xff]
      %v6271 = vld [vmem:[%s6253 + $0x88] sm:$0xff]
      %v6272 = vld [vmem:[%s6253 + $0x90] sm:$0xff]
      %v6273 = vld [vmem:[%s6253 + $0x98] sm:$0xff]
      %v6274 = vld [vmem:[%s6253 + $0xa0] sm:$0xff]
      %v6275 = vld [vmem:[%s6253 + $0xa8] sm:$0xff]
      %v6276 = vld [vmem:[%s6253 + $0xb0] sm:$0xff]
      %v6277 = vld [vmem:[%s6253 + $0xb8] sm:$0xff]
      %v6278 = vld [vmem:[%s6253 + $0xc0] sm:$0xff]
      %v6279 = vld [vmem:[%s6253 + $0xc8] sm:$0xff]
      %v6280 = vld [vmem:[%s6253 + $0xd0] sm:$0xff]
      %v6281 = vld [vmem:[%s6253 + $0xd8] sm:$0xff]
      %v6282 = vld [vmem:[%s6253 + $0xe0] sm:$0xff]
      %v6283 = vld [vmem:[%s6253 + $0xe8] sm:$0xff]
      %v6284 = vld [vmem:[%s6253 + $0xf0] sm:$0xff]
      %v6285 = vld [vmem:[%s6253 + $0xf8] sm:$0xff]
      %v6290 = vunpack.c.l.b16 %v6249
      %v6291 = vunpack.c.h.b16 %v6249
      %v6292 = vunpack.c.l.b16 %v6250
      %v6293 = vunpack.c.h.b16 %v6250
      %v6294 = vunpack.c.l.b16 %v6251
      %v6295 = vunpack.c.h.b16 %v6251
      %v6296 = vunpack.c.l.b16 %v6252
      %v6297 = vunpack.c.h.b16 %v6252
      %v6298 = vpack.c.b16 %v6292, %v6290
      %v6299 = vpack.c.b16 %v6293, %v6291
      %v6300 = vpack.c.b16 %v6296, %v6294
      %v6301 = vpack.c.b16 %v6297, %v6295
      %v6338 = vunpack.c.l.b16 %v6254
      %v6339 = vunpack.c.h.b16 %v6254
      %v6340 = vunpack.c.l.b16 %v6255
      %v6341 = vunpack.c.h.b16 %v6255
      %v6342 = vunpack.c.l.b16 %v6256
      %v6343 = vunpack.c.h.b16 %v6256
      %v6344 = vunpack.c.l.b16 %v6257
      %v6345 = vunpack.c.h.b16 %v6257
      %v6346 = vunpack.c.l.b16 %v6258
      %v6347 = vunpack.c.h.b16 %v6258
      %v6348 = vunpack.c.l.b16 %v6259
      %v6349 = vunpack.c.h.b16 %v6259
      %v6350 = vunpack.c.l.b16 %v6260
      %v6351 = vunpack.c.h.b16 %v6260
      %v6352 = vunpack.c.l.b16 %v6261
      %v6353 = vunpack.c.h.b16 %v6261
      %v6354 = vunpack.c.l.b16 %v6262
      %v6355 = vunpack.c.h.b16 %v6262
      %v6356 = vunpack.c.l.b16 %v6263
      %v6357 = vunpack.c.h.b16 %v6263
      %v6358 = vunpack.c.l.b16 %v6264
      %v6359 = vunpack.c.h.b16 %v6264
      %v6360 = vunpack.c.l.b16 %v6265
      %v6361 = vunpack.c.h.b16 %v6265
      %v6362 = vunpack.c.l.b16 %v6266
      %v6363 = vunpack.c.h.b16 %v6266
      %v6364 = vunpack.c.l.b16 %v6267
      %v6365 = vunpack.c.h.b16 %v6267
      %v6366 = vunpack.c.l.b16 %v6268
      %v6367 = vunpack.c.h.b16 %v6268
      %v6368 = vunpack.c.l.b16 %v6269
      %v6369 = vunpack.c.h.b16 %v6269
      %v6370 = vunpack.c.l.b16 %v6270
      %v6371 = vunpack.c.h.b16 %v6270
      %v6372 = vunpack.c.l.b16 %v6271
      %v6373 = vunpack.c.h.b16 %v6271
      %v6374 = vunpack.c.l.b16 %v6272
      %v6375 = vunpack.c.h.b16 %v6272
      %v6376 = vunpack.c.l.b16 %v6273
      %v6377 = vunpack.c.h.b16 %v6273
      %v6378 = vunpack.c.l.b16 %v6274
      %v6379 = vunpack.c.h.b16 %v6274
      %v6380 = vunpack.c.l.b16 %v6275
      %v6381 = vunpack.c.h.b16 %v6275
      %v6382 = vunpack.c.l.b16 %v6276
      %v6383 = vunpack.c.h.b16 %v6276
      %v6384 = vunpack.c.l.b16 %v6277
      %v6385 = vunpack.c.h.b16 %v6277
      %v6386 = vunpack.c.l.b16 %v6278
      %v6387 = vunpack.c.h.b16 %v6278
      %v6388 = vunpack.c.l.b16 %v6279
      %v6389 = vunpack.c.h.b16 %v6279
      %v6390 = vunpack.c.l.b16 %v6280
      %v6391 = vunpack.c.h.b16 %v6280
      %v6392 = vunpack.c.l.b16 %v6281
      %v6393 = vunpack.c.h.b16 %v6281
      %v6394 = vunpack.c.l.b16 %v6282
      %v6395 = vunpack.c.h.b16 %v6282
      %v6396 = vunpack.c.l.b16 %v6283
      %v6397 = vunpack.c.h.b16 %v6283
      %v6398 = vunpack.c.l.b16 %v6284
      %v6399 = vunpack.c.h.b16 %v6284
      %v6400 = vunpack.c.l.b16 %v6285
      %v6401 = vunpack.c.h.b16 %v6285
      %v6402 = vpack.c.b16 %v6340, %v6338
      %v6403 = vpack.c.b16 %v6341, %v6339
      %v6404 = vpack.c.b16 %v6344, %v6342
      %v6405 = vpack.c.b16 %v6345, %v6343
      %v6406 = vpack.c.b16 %v6348, %v6346
      %v6407 = vpack.c.b16 %v6349, %v6347
      %v6408 = vpack.c.b16 %v6352, %v6350
      %v6409 = vpack.c.b16 %v6353, %v6351
      %v6410 = vpack.c.b16 %v6356, %v6354
      %v6411 = vpack.c.b16 %v6357, %v6355
      %v6412 = vpack.c.b16 %v6360, %v6358
      %v6413 = vpack.c.b16 %v6361, %v6359
      %v6414 = vpack.c.b16 %v6364, %v6362
      %v6415 = vpack.c.b16 %v6365, %v6363
      %v6416 = vpack.c.b16 %v6368, %v6366
      %v6417 = vpack.c.b16 %v6369, %v6367
      %v6418 = vpack.c.b16 %v6372, %v6370
      %v6419 = vpack.c.b16 %v6373, %v6371
      %v6420 = vpack.c.b16 %v6376, %v6374
      %v6421 = vpack.c.b16 %v6377, %v6375
      %v6422 = vpack.c.b16 %v6380, %v6378
      %v6423 = vpack.c.b16 %v6381, %v6379
      %v6424 = vpack.c.b16 %v6384, %v6382
      %v6425 = vpack.c.b16 %v6385, %v6383
      %v6426 = vpack.c.b16 %v6388, %v6386
      %v6427 = vpack.c.b16 %v6389, %v6387
      %v6428 = vpack.c.b16 %v6392, %v6390
      %v6429 = vpack.c.b16 %v6393, %v6391
      %v6430 = vpack.c.b16 %v6396, %v6394
      %v6431 = vpack.c.b16 %v6397, %v6395
      %v6432 = vpack.c.b16 %v6400, %v6398
      %v6433 = vpack.c.b16 %v6401, %v6399
      %6466 = vmatpush.bf16.msra.mxu0 %v6416
      %6467 = vmatpush.bf16.msra.mxu0 %v6414
      %6468 = vmatpush.bf16.msra.mxu0 %v6412
      %6469 = vmatpush.bf16.msra.mxu0 %v6410
      %6470 = vmatpush.bf16.msra.mxu0 %v6408
      %6471 = vmatpush.bf16.msra.mxu0 %v6406
      %6472 = vmatpush.bf16.msra.mxu0 %v6404
      %6473 = vmatpush.bf16.msra.mxu0 %v6402
      %6474 = vmatmul.bf16.gmra.mxu0 %v6298
      %v6475 = vpop.f32.mrf.mxu0
      %v6476 = vadd.f32 0.0, %v6475
      %v6477 = vpop.f32.mrf.mxu0
      %v6478 = vadd.f32 0.0, %v6477
      %6479 = vmatmul.bf16.gmra.mxu0 %v6300
      %v6480 = vpop.f32.mrf.mxu0
      %v6481 = vadd.f32 0.0, %v6480
      %v6482 = vpop.f32.mrf.mxu0
      %v6483 = vadd.f32 0.0, %v6482
      %6484 = vdwg.mxu0
      %6485 = vmatpush.bf16.msra.mxu0 %v6432
      %6486 = vmatpush.bf16.msra.mxu0 %v6430
      %6487 = vmatpush.bf16.msra.mxu0 %v6428
      %6488 = vmatpush.bf16.msra.mxu0 %v6426
      %6489 = vmatpush.bf16.msra.mxu0 %v6424
      %6490 = vmatpush.bf16.msra.mxu0 %v6422
      %6491 = vmatpush.bf16.msra.mxu0 %v6420
      %6492 = vmatpush.bf16.msra.mxu0 %v6418
      %6493 = vmatmul.bf16.gmra.mxu0 %v6299
      %v6494 = vpop.f32.mrf.mxu0
      %v6495 = vadd.f32 %v6476, %v6494
      %v6496 = vpop.f32.mrf.mxu0
      %v6497 = vadd.f32 %v6478, %v6496
      %6498 = vmatmul.bf16.gmra.mxu0 %v6301
      %v6499 = vpop.f32.mrf.mxu0
      %v6500 = vadd.f32 %v6481, %v6499
      %v6501 = vpop.f32.mrf.mxu0
      %v6502 = vadd.f32 %v6483, %v6501
      %6503 = vdwg.mxu0
      %6504 = vmatpush.bf16.msra.mxu0 %v6417
      %6505 = vmatpush.bf16.msra.mxu0 %v6415
      %6506 = vmatpush.bf16.msra.mxu0 %v6413
      %6507 = vmatpush.bf16.msra.mxu0 %v6411
      %6508 = vmatpush.bf16.msra.mxu0 %v6409
      %6509 = vmatpush.bf16.msra.mxu0 %v6407
      %6510 = vmatpush.bf16.msra.mxu0 %v6405
      %6511 = vmatpush.bf16.msra.mxu0 %v6403
      %6512 = vmatmul.bf16.gmra.mxu0 %v6298
      %v6513 = vpop.f32.mrf.mxu0
      %v6514 = vadd.f32 0.0, %v6513
      %v6515 = vpop.f32.mrf.mxu0
      %v6516 = vadd.f32 0.0, %v6515
      %6517 = vmatmul.bf16.gmra.mxu0 %v6300
      %v6518 = vpop.f32.mrf.mxu0
      %v6519 = vadd.f32 0.0, %v6518
      %v6520 = vpop.f32.mrf.mxu0
      %v6521 = vadd.f32 0.0, %v6520
      %6522 = vdwg.mxu0
      %6523 = vmatpush.bf16.msra.mxu0 %v6433
      %6524 = vmatpush.bf16.msra.mxu0 %v6431
      %6525 = vmatpush.bf16.msra.mxu0 %v6429
      %6526 = vmatpush.bf16.msra.mxu0 %v6427
      %6527 = vmatpush.bf16.msra.mxu0 %v6425
      %6528 = vmatpush.bf16.msra.mxu0 %v6423
      %6529 = vmatpush.bf16.msra.mxu0 %v6421
      %6530 = vmatpush.bf16.msra.mxu0 %v6419
      %6531 = vmatmul.bf16.gmra.mxu0 %v6299
      %v6532 = vpop.f32.mrf.mxu0
      %v6533 = vadd.f32 %v6514, %v6532
      %v6534 = vpop.f32.mrf.mxu0
      %v6535 = vadd.f32 %v6516, %v6534
      %6536 = vmatmul.bf16.gmra.mxu0 %v6301
      %v6537 = vpop.f32.mrf.mxu0
      %v6538 = vadd.f32 %v6519, %v6537
      %v6539 = vpop.f32.mrf.mxu0
      %v6540 = vadd.f32 %v6521, %v6539
      %6541 = vdwg.mxu0
      %v6542 = vadd.f32 %v6241, %v6495
      %v6543 = vadd.f32 %v6242, %v6533
      %v6544 = vadd.f32 %v6243, %v6497
      %v6545 = vadd.f32 %v6244, %v6535
      %v6546 = vadd.f32 %v6245, %v6500
      %v6547 = vadd.f32 %v6246, %v6538
      %v6548 = vadd.f32 %v6247, %v6502
      %v6549 = vadd.f32 %v6248, %v6540
      %v6550 = vld [vmem:[#allocation4 + $0x8] sm:$0xff]
      %v6551 = vld [vmem:[#allocation4 + $0x10] sm:$0xff]
      %v6552 = vld [vmem:[#allocation4 + $0x18] sm:$0xff]
      %v6553 = vld [vmem:[#allocation4 + $0x20] sm:$0xff]
      %s6554 = scalar_lea.vmem %s3, 512
      %v6555 = vld [vmem:[%s6554] sm:$0xff]
      %v6556 = vld [vmem:[%s6554 + $0x8] sm:$0xff]
      %v6557 = vld [vmem:[%s6554 + $0x10] sm:$0xff]
      %v6558 = vld [vmem:[%s6554 + $0x18] sm:$0xff]
      %v6559 = vld [vmem:[%s6554 + $0x20] sm:$0xff]
      %v6560 = vld [vmem:[%s6554 + $0x28] sm:$0xff]
      %v6561 = vld [vmem:[%s6554 + $0x30] sm:$0xff]
      %v6562 = vld [vmem:[%s6554 + $0x38] sm:$0xff]
      %v6563 = vld [vmem:[%s6554 + $0x40] sm:$0xff]
      %v6564 = vld [vmem:[%s6554 + $0x48] sm:$0xff]
      %v6565 = vld [vmem:[%s6554 + $0x50] sm:$0xff]
      %v6566 = vld [vmem:[%s6554 + $0x58] sm:$0xff]
      %v6567 = vld [vmem:[%s6554 + $0x60] sm:$0xff]
      %v6568 = vld [vmem:[%s6554 + $0x68] sm:$0xff]
      %v6569 = vld [vmem:[%s6554 + $0x70] sm:$0xff]
      %v6570 = vld [vmem:[%s6554 + $0x78] sm:$0xff]
      %v6571 = vld [vmem:[%s6554 + $0x80] sm:$0xff]
      %v6572 = vld [vmem:[%s6554 + $0x88] sm:$0xff]
      %v6573 = vld [vmem:[%s6554 + $0x90] sm:$0xff]
      %v6574 = vld [vmem:[%s6554 + $0x98] sm:$0xff]
      %v6575 = vld [vmem:[%s6554 + $0xa0] sm:$0xff]
      %v6576 = vld [vmem:[%s6554 + $0xa8] sm:$0xff]
      %v6577 = vld [vmem:[%s6554 + $0xb0] sm:$0xff]
      %v6578 = vld [vmem:[%s6554 + $0xb8] sm:$0xff]
      %v6579 = vld [vmem:[%s6554 + $0xc0] sm:$0xff]
      %v6580 = vld [vmem:[%s6554 + $0xc8] sm:$0xff]
      %v6581 = vld [vmem:[%s6554 + $0xd0] sm:$0xff]
      %v6582 = vld [vmem:[%s6554 + $0xd8] sm:$0xff]
      %v6583 = vld [vmem:[%s6554 + $0xe0] sm:$0xff]
      %v6584 = vld [vmem:[%s6554 + $0xe8] sm:$0xff]
      %v6585 = vld [vmem:[%s6554 + $0xf0] sm:$0xff]
      %v6586 = vld [vmem:[%s6554 + $0xf8] sm:$0xff]
      %v6591 = vunpack.c.l.b16 %v6550
      %v6592 = vunpack.c.h.b16 %v6550
      %v6593 = vunpack.c.l.b16 %v6551
      %v6594 = vunpack.c.h.b16 %v6551
      %v6595 = vunpack.c.l.b16 %v6552
      %v6596 = vunpack.c.h.b16 %v6552
      %v6597 = vunpack.c.l.b16 %v6553
      %v6598 = vunpack.c.h.b16 %v6553
      %v6599 = vpack.c.b16 %v6593, %v6591
      %v6600 = vpack.c.b16 %v6594, %v6592
      %v6601 = vpack.c.b16 %v6597, %v6595
      %v6602 = vpack.c.b16 %v6598, %v6596
      %v6639 = vunpack.c.l.b16 %v6555
      %v6640 = vunpack.c.h.b16 %v6555
      %v6641 = vunpack.c.l.b16 %v6556
      %v6642 = vunpack.c.h.b16 %v6556
      %v6643 = vunpack.c.l.b16 %v6557
      %v6644 = vunpack.c.h.b16 %v6557
      %v6645 = vunpack.c.l.b16 %v6558
      %v6646 = vunpack.c.h.b16 %v6558
      %v6647 = vunpack.c.l.b16 %v6559
      %v6648 = vunpack.c.h.b16 %v6559
      %v6649 = vunpack.c.l.b16 %v6560
      %v6650 = vunpack.c.h.b16 %v6560
      %v6651 = vunpack.c.l.b16 %v6561
      %v6652 = vunpack.c.h.b16 %v6561
      %v6653 = vunpack.c.l.b16 %v6562
      %v6654 = vunpack.c.h.b16 %v6562
      %v6655 = vunpack.c.l.b16 %v6563
      %v6656 = vunpack.c.h.b16 %v6563
      %v6657 = vunpack.c.l.b16 %v6564
      %v6658 = vunpack.c.h.b16 %v6564
      %v6659 = vunpack.c.l.b16 %v6565
      %v6660 = vunpack.c.h.b16 %v6565
      %v6661 = vunpack.c.l.b16 %v6566
      %v6662 = vunpack.c.h.b16 %v6566
      %v6663 = vunpack.c.l.b16 %v6567
      %v6664 = vunpack.c.h.b16 %v6567
      %v6665 = vunpack.c.l.b16 %v6568
      %v6666 = vunpack.c.h.b16 %v6568
      %v6667 = vunpack.c.l.b16 %v6569
      %v6668 = vunpack.c.h.b16 %v6569
      %v6669 = vunpack.c.l.b16 %v6570
      %v6670 = vunpack.c.h.b16 %v6570
      %v6671 = vunpack.c.l.b16 %v6571
      %v6672 = vunpack.c.h.b16 %v6571
      %v6673 = vunpack.c.l.b16 %v6572
      %v6674 = vunpack.c.h.b16 %v6572
      %v6675 = vunpack.c.l.b16 %v6573
      %v6676 = vunpack.c.h.b16 %v6573
      %v6677 = vunpack.c.l.b16 %v6574
      %v6678 = vunpack.c.h.b16 %v6574
      %v6679 = vunpack.c.l.b16 %v6575
      %v6680 = vunpack.c.h.b16 %v6575
      %v6681 = vunpack.c.l.b16 %v6576
      %v6682 = vunpack.c.h.b16 %v6576
      %v6683 = vunpack.c.l.b16 %v6577
      %v6684 = vunpack.c.h.b16 %v6577
      %v6685 = vunpack.c.l.b16 %v6578
      %v6686 = vunpack.c.h.b16 %v6578
      %v6687 = vunpack.c.l.b16 %v6579
      %v6688 = vunpack.c.h.b16 %v6579
      %v6689 = vunpack.c.l.b16 %v6580
      %v6690 = vunpack.c.h.b16 %v6580
      %v6691 = vunpack.c.l.b16 %v6581
      %v6692 = vunpack.c.h.b16 %v6581
      %v6693 = vunpack.c.l.b16 %v6582
      %v6694 = vunpack.c.h.b16 %v6582
      %v6695 = vunpack.c.l.b16 %v6583
      %v6696 = vunpack.c.h.b16 %v6583
      %v6697 = vunpack.c.l.b16 %v6584
      %v6698 = vunpack.c.h.b16 %v6584
      %v6699 = vunpack.c.l.b16 %v6585
      %v6700 = vunpack.c.h.b16 %v6585
      %v6701 = vunpack.c.l.b16 %v6586
      %v6702 = vunpack.c.h.b16 %v6586
      %v6703 = vpack.c.b16 %v6641, %v6639
      %v6704 = vpack.c.b16 %v6642, %v6640
      %v6705 = vpack.c.b16 %v6645, %v6643
      %v6706 = vpack.c.b16 %v6646, %v6644
      %v6707 = vpack.c.b16 %v6649, %v6647
      %v6708 = vpack.c.b16 %v6650, %v6648
      %v6709 = vpack.c.b16 %v6653, %v6651
      %v6710 = vpack.c.b16 %v6654, %v6652
      %v6711 = vpack.c.b16 %v6657, %v6655
      %v6712 = vpack.c.b16 %v6658, %v6656
      %v6713 = vpack.c.b16 %v6661, %v6659
      %v6714 = vpack.c.b16 %v6662, %v6660
      %v6715 = vpack.c.b16 %v6665, %v6663
      %v6716 = vpack.c.b16 %v6666, %v6664
      %v6717 = vpack.c.b16 %v6669, %v6667
      %v6718 = vpack.c.b16 %v6670, %v6668
      %v6719 = vpack.c.b16 %v6673, %v6671
      %v6720 = vpack.c.b16 %v6674, %v6672
      %v6721 = vpack.c.b16 %v6677, %v6675
      %v6722 = vpack.c.b16 %v6678, %v6676
      %v6723 = vpack.c.b16 %v6681, %v6679
      %v6724 = vpack.c.b16 %v6682, %v6680
      %v6725 = vpack.c.b16 %v6685, %v6683
      %v6726 = vpack.c.b16 %v6686, %v6684
      %v6727 = vpack.c.b16 %v6689, %v6687
      %v6728 = vpack.c.b16 %v6690, %v6688
      %v6729 = vpack.c.b16 %v6693, %v6691
      %v6730 = vpack.c.b16 %v6694, %v6692
      %v6731 = vpack.c.b16 %v6697, %v6695
      %v6732 = vpack.c.b16 %v6698, %v6696
      %v6733 = vpack.c.b16 %v6701, %v6699
      %v6734 = vpack.c.b16 %v6702, %v6700
      %6767 = vmatpush.bf16.msra.mxu0 %v6717
      %6768 = vmatpush.bf16.msra.mxu0 %v6715
      %6769 = vmatpush.bf16.msra.mxu0 %v6713
      %6770 = vmatpush.bf16.msra.mxu0 %v6711
      %6771 = vmatpush.bf16.msra.mxu0 %v6709
      %6772 = vmatpush.bf16.msra.mxu0 %v6707
      %6773 = vmatpush.bf16.msra.mxu0 %v6705
      %6774 = vmatpush.bf16.msra.mxu0 %v6703
      %6775 = vmatmul.bf16.gmra.mxu0 %v6599
      %v6776 = vpop.f32.mrf.mxu0
      %v6777 = vadd.f32 0.0, %v6776
      %v6778 = vpop.f32.mrf.mxu0
      %v6779 = vadd.f32 0.0, %v6778
      %6780 = vmatmul.bf16.gmra.mxu0 %v6601
      %v6781 = vpop.f32.mrf.mxu0
      %v6782 = vadd.f32 0.0, %v6781
      %v6783 = vpop.f32.mrf.mxu0
      %v6784 = vadd.f32 0.0, %v6783
      %6785 = vdwg.mxu0
      %6786 = vmatpush.bf16.msra.mxu0 %v6733
      %6787 = vmatpush.bf16.msra.mxu0 %v6731
      %6788 = vmatpush.bf16.msra.mxu0 %v6729
      %6789 = vmatpush.bf16.msra.mxu0 %v6727
      %6790 = vmatpush.bf16.msra.mxu0 %v6725
      %6791 = vmatpush.bf16.msra.mxu0 %v6723
      %6792 = vmatpush.bf16.msra.mxu0 %v6721
      %6793 = vmatpush.bf16.msra.mxu0 %v6719
      %6794 = vmatmul.bf16.gmra.mxu0 %v6600
      %v6795 = vpop.f32.mrf.mxu0
      %v6796 = vadd.f32 %v6777, %v6795
      %v6797 = vpop.f32.mrf.mxu0
      %v6798 = vadd.f32 %v6779, %v6797
      %6799 = vmatmul.bf16.gmra.mxu0 %v6602
      %v6800 = vpop.f32.mrf.mxu0
      %v6801 = vadd.f32 %v6782, %v6800
      %v6802 = vpop.f32.mrf.mxu0
      %v6803 = vadd.f32 %v6784, %v6802
      %6804 = vdwg.mxu0
      %6805 = vmatpush.bf16.msra.mxu0 %v6718
      %6806 = vmatpush.bf16.msra.mxu0 %v6716
      %6807 = vmatpush.bf16.msra.mxu0 %v6714
      %6808 = vmatpush.bf16.msra.mxu0 %v6712
      %6809 = vmatpush.bf16.msra.mxu0 %v6710
      %6810 = vmatpush.bf16.msra.mxu0 %v6708
      %6811 = vmatpush.bf16.msra.mxu0 %v6706
      %6812 = vmatpush.bf16.msra.mxu0 %v6704
      %6813 = vmatmul.bf16.gmra.mxu0 %v6599
      %v6814 = vpop.f32.mrf.mxu0
      %v6815 = vadd.f32 0.0, %v6814
      %v6816 = vpop.f32.mrf.mxu0
      %v6817 = vadd.f32 0.0, %v6816
      %6818 = vmatmul.bf16.gmra.mxu0 %v6601
      %v6819 = vpop.f32.mrf.mxu0
      %v6820 = vadd.f32 0.0, %v6819
      %v6821 = vpop.f32.mrf.mxu0
      %v6822 = vadd.f32 0.0, %v6821
      %6823 = vdwg.mxu0
      %6824 = vmatpush.bf16.msra.mxu0 %v6734
      %6825 = vmatpush.bf16.msra.mxu0 %v6732
      %6826 = vmatpush.bf16.msra.mxu0 %v6730
      %6827 = vmatpush.bf16.msra.mxu0 %v6728
      %6828 = vmatpush.bf16.msra.mxu0 %v6726
      %6829 = vmatpush.bf16.msra.mxu0 %v6724
      %6830 = vmatpush.bf16.msra.mxu0 %v6722
      %6831 = vmatpush.bf16.msra.mxu0 %v6720
      %6832 = vmatmul.bf16.gmra.mxu0 %v6600
      %v6833 = vpop.f32.mrf.mxu0
      %v6834 = vadd.f32 %v6815, %v6833
      %v6835 = vpop.f32.mrf.mxu0
      %v6836 = vadd.f32 %v6817, %v6835
      %6837 = vmatmul.bf16.gmra.mxu0 %v6602
      %v6838 = vpop.f32.mrf.mxu0
      %v6839 = vadd.f32 %v6820, %v6838
      %v6840 = vpop.f32.mrf.mxu0
      %v6841 = vadd.f32 %v6822, %v6840
      %6842 = vdwg.mxu0
      %v6843 = vadd.f32 %v6542, %v6796
      %v6844 = vadd.f32 %v6543, %v6834
      %v6845 = vadd.f32 %v6544, %v6798
      %v6846 = vadd.f32 %v6545, %v6836
      %v6847 = vadd.f32 %v6546, %v6801
      %v6848 = vadd.f32 %v6547, %v6839
      %v6849 = vadd.f32 %v6548, %v6803
      %v6850 = vadd.f32 %v6549, %v6841
      %vm6851 = vcmp.ge.f32.partialorder %v6843, 0.0
      %vm6852 = vcmp.ge.f32.partialorder %v6844, 0.0
      %vm6853 = vcmp.ge.f32.partialorder %v6845, 0.0
      %vm6854 = vcmp.ge.f32.partialorder %v6846, 0.0
      %vm6855 = vcmp.ge.f32.partialorder %v6847, 0.0
      %vm6856 = vcmp.ge.f32.partialorder %v6848, 0.0
      %vm6857 = vcmp.ge.f32.partialorder %v6849, 0.0
      %vm6858 = vcmp.ge.f32.partialorder %v6850, 0.0
      %v6859 = vmul.f32 %v6843, 0.1
      %v6860 = vmul.f32 %v6844, 0.1
      %v6861 = vmul.f32 %v6845, 0.1
      %v6862 = vmul.f32 %v6846, 0.1
      %v6863 = vmul.f32 %v6847, 0.1
      %v6864 = vmul.f32 %v6848, 0.1
      %v6865 = vmul.f32 %v6849, 0.1
      %v6866 = vmul.f32 %v6850, 0.1
      %v6867 = vsel %vm6851, %v6843, %v6859
      %v6868 = vsel %vm6852, %v6844, %v6860
      %v6869 = vsel %vm6853, %v6845, %v6861
      %v6870 = vsel %vm6854, %v6846, %v6862
      %v6871 = vsel %vm6855, %v6847, %v6863
      %v6872 = vsel %vm6856, %v6848, %v6864
      %v6873 = vsel %vm6857, %v6849, %v6865
      %v6874 = vsel %vm6858, %v6850, %v6866
      %6875 = vst [vmem:[#allocation5] sm:$0xff] 0
      %v6876 = vpack.c.bf16 %v6870, %v6869
      %6877 = vst [vmem:[#allocation5 + $0x8] sm:$0xff] %v6876
      %v6878 = vpack.c.bf16 %v6874, %v6873
      %6879 = vst [vmem:[#allocation5 + $0x10] sm:$0xff] %v6878
      %s6880 = scalar_lea.vmem [#allocation5], 24
      %6881 = vst [vmem:[%s6880 + $0x10] sm:$0xff] 0
      %v6882 = vpack.c.bf16 %v6868, %v6867
      %6883 = vst [vmem:[%s6880] sm:$0xff] %v6882
      %v6884 = vpack.c.bf16 %v6872, %v6871
      %6885 = vst [vmem:[%s6880 + $0x8] sm:$0xff] %v6884
      %v6886 = vld [vmem:[%s8] sm:$0x3]
      %v6888 = vperm.slane %v6886, 0
      %v6889 = vperm.slane %v6886, 1
      %v6892 = vld [vmem:[#allocation5] sm:$0xff]
      %v6893 = vld [vmem:[#allocation5 + $0x8] sm:$0xff]
      %v6894 = vld [vmem:[%s4] sm:$0xff]
      %v6895 = vld [vmem:[%s4 + $0x8] sm:$0xff]
      %v6896 = vld [vmem:[%s4 + $0x10] sm:$0xff]
      %v6897 = vld [vmem:[%s4 + $0x18] sm:$0xff]
      %v6898 = vld [vmem:[%s4 + $0x20] sm:$0xff]
      %v6899 = vld [vmem:[%s4 + $0x28] sm:$0xff]
      %v6900 = vld [vmem:[%s4 + $0x30] sm:$0xff]
      %v6901 = vld [vmem:[%s4 + $0x38] sm:$0xff]
      %v6902 = vld [vmem:[%s4 + $0x40] sm:$0xff]
      %v6903 = vld [vmem:[%s4 + $0x48] sm:$0xff]
      %v6904 = vld [vmem:[%s4 + $0x50] sm:$0xff]
      %v6905 = vld [vmem:[%s4 + $0x58] sm:$0xff]
      %v6906 = vld [vmem:[%s4 + $0x60] sm:$0xff]
      %v6907 = vld [vmem:[%s4 + $0x68] sm:$0xff]
      %v6908 = vld [vmem:[%s4 + $0x70] sm:$0xff]
      %v6909 = vld [vmem:[%s4 + $0x78] sm:$0xff]
      %v6910 = vld [vmem:[%s4 + $0x80] sm:$0xff]
      %v6911 = vld [vmem:[%s4 + $0x88] sm:$0xff]
      %v6912 = vld [vmem:[%s4 + $0x90] sm:$0xff]
      %v6913 = vld [vmem:[%s4 + $0x98] sm:$0xff]
      %v6914 = vld [vmem:[%s4 + $0xa0] sm:$0xff]
      %v6915 = vld [vmem:[%s4 + $0xa8] sm:$0xff]
      %v6916 = vld [vmem:[%s4 + $0xb0] sm:$0xff]
      %v6917 = vld [vmem:[%s4 + $0xb8] sm:$0xff]
      %v6918 = vld [vmem:[%s4 + $0xc0] sm:$0xff]
      %v6919 = vld [vmem:[%s4 + $0xc8] sm:$0xff]
      %v6920 = vld [vmem:[%s4 + $0xd0] sm:$0xff]
      %v6921 = vld [vmem:[%s4 + $0xd8] sm:$0xff]
      %v6922 = vld [vmem:[%s4 + $0xe0] sm:$0xff]
      %v6923 = vld [vmem:[%s4 + $0xe8] sm:$0xff]
      %v6924 = vld [vmem:[%s4 + $0xf0] sm:$0xff]
      %v6925 = vld [vmem:[%s4 + $0xf8] sm:$0xff]
      %v6928 = vunpack.c.l.b16 %v6892
      %v6929 = vunpack.c.h.b16 %v6892
      %v6930 = vunpack.c.l.b16 %v6893
      %v6931 = vunpack.c.h.b16 %v6893
      %v6932 = vpack.c.b16 %v6930, %v6928
      %v6933 = vpack.c.b16 %v6931, %v6929
      %v6968 = vunpack.c.l.b16 %v6894
      %v6969 = vunpack.c.h.b16 %v6894
      %v6970 = vunpack.c.l.b16 %v6895
      %v6971 = vunpack.c.h.b16 %v6895
      %v6972 = vunpack.c.l.b16 %v6896
      %v6973 = vunpack.c.h.b16 %v6896
      %v6974 = vunpack.c.l.b16 %v6897
      %v6975 = vunpack.c.h.b16 %v6897
      %v6976 = vunpack.c.l.b16 %v6898
      %v6977 = vunpack.c.h.b16 %v6898
      %v6978 = vunpack.c.l.b16 %v6899
      %v6979 = vunpack.c.h.b16 %v6899
      %v6980 = vunpack.c.l.b16 %v6900
      %v6981 = vunpack.c.h.b16 %v6900
      %v6982 = vunpack.c.l.b16 %v6901
      %v6983 = vunpack.c.h.b16 %v6901
      %v6984 = vunpack.c.l.b16 %v6902
      %v6985 = vunpack.c.h.b16 %v6902
      %v6986 = vunpack.c.l.b16 %v6903
      %v6987 = vunpack.c.h.b16 %v6903
      %v6988 = vunpack.c.l.b16 %v6904
      %v6989 = vunpack.c.h.b16 %v6904
      %v6990 = vunpack.c.l.b16 %v6905
      %v6991 = vunpack.c.h.b16 %v6905
      %v6992 = vunpack.c.l.b16 %v6906
      %v6993 = vunpack.c.h.b16 %v6906
      %v6994 = vunpack.c.l.b16 %v6907
      %v6995 = vunpack.c.h.b16 %v6907
      %v6996 = vunpack.c.l.b16 %v6908
      %v6997 = vunpack.c.h.b16 %v6908
      %v6998 = vunpack.c.l.b16 %v6909
      %v6999 = vunpack.c.h.b16 %v6909
      %v7000 = vunpack.c.l.b16 %v6910
      %v7001 = vunpack.c.h.b16 %v6910
      %v7002 = vunpack.c.l.b16 %v6911
      %v7003 = vunpack.c.h.b16 %v6911
      %v7004 = vunpack.c.l.b16 %v6912
      %v7005 = vunpack.c.h.b16 %v6912
      %v7006 = vunpack.c.l.b16 %v6913
      %v7007 = vunpack.c.h.b16 %v6913
      %v7008 = vunpack.c.l.b16 %v6914
      %v7009 = vunpack.c.h.b16 %v6914
      %v7010 = vunpack.c.l.b16 %v6915
      %v7011 = vunpack.c.h.b16 %v6915
      %v7012 = vunpack.c.l.b16 %v6916
      %v7013 = vunpack.c.h.b16 %v6916
      %v7014 = vunpack.c.l.b16 %v6917
      %v7015 = vunpack.c.h.b16 %v6917
      %v7016 = vunpack.c.l.b16 %v6918
      %v7017 = vunpack.c.h.b16 %v6918
      %v7018 = vunpack.c.l.b16 %v6919
      %v7019 = vunpack.c.h.b16 %v6919
      %v7020 = vunpack.c.l.b16 %v6920
      %v7021 = vunpack.c.h.b16 %v6920
      %v7022 = vunpack.c.l.b16 %v6921
      %v7023 = vunpack.c.h.b16 %v6921
      %v7024 = vunpack.c.l.b16 %v6922
      %v7025 = vunpack.c.h.b16 %v6922
      %v7026 = vunpack.c.l.b16 %v6923
      %v7027 = vunpack.c.h.b16 %v6923
      %v7028 = vunpack.c.l.b16 %v6924
      %v7029 = vunpack.c.h.b16 %v6924
      %v7030 = vunpack.c.l.b16 %v6925
      %v7031 = vunpack.c.h.b16 %v6925
      %v7032 = vpack.c.b16 %v6970, %v6968
      %v7033 = vpack.c.b16 %v6971, %v6969
      %v7034 = vpack.c.b16 %v6974, %v6972
      %v7035 = vpack.c.b16 %v6975, %v6973
      %v7036 = vpack.c.b16 %v6978, %v6976
      %v7037 = vpack.c.b16 %v6979, %v6977
      %v7038 = vpack.c.b16 %v6982, %v6980
      %v7039 = vpack.c.b16 %v6983, %v6981
      %v7040 = vpack.c.b16 %v6986, %v6984
      %v7041 = vpack.c.b16 %v6987, %v6985
      %v7042 = vpack.c.b16 %v6990, %v6988
      %v7043 = vpack.c.b16 %v6991, %v6989
      %v7044 = vpack.c.b16 %v6994, %v6992
      %v7045 = vpack.c.b16 %v6995, %v6993
      %v7046 = vpack.c.b16 %v6998, %v6996
      %v7047 = vpack.c.b16 %v6999, %v6997
      %v7048 = vpack.c.b16 %v7002, %v7000
      %v7049 = vpack.c.b16 %v7003, %v7001
      %v7050 = vpack.c.b16 %v7006, %v7004
      %v7051 = vpack.c.b16 %v7007, %v7005
      %v7052 = vpack.c.b16 %v7010, %v7008
      %v7053 = vpack.c.b16 %v7011, %v7009
      %v7054 = vpack.c.b16 %v7014, %v7012
      %v7055 = vpack.c.b16 %v7015, %v7013
      %v7056 = vpack.c.b16 %v7018, %v7016
      %v7057 = vpack.c.b16 %v7019, %v7017
      %v7058 = vpack.c.b16 %v7022, %v7020
      %v7059 = vpack.c.b16 %v7023, %v7021
      %v7060 = vpack.c.b16 %v7026, %v7024
      %v7061 = vpack.c.b16 %v7027, %v7025
      %v7062 = vpack.c.b16 %v7030, %v7028
      %v7063 = vpack.c.b16 %v7031, %v7029
      %7096 = vmatpush.bf16.msra.mxu0 %v7046
      %7097 = vmatpush.bf16.msra.mxu0 %v7044
      %7098 = vmatpush.bf16.msra.mxu0 %v7042
      %7099 = vmatpush.bf16.msra.mxu0 %v7040
      %7100 = vmatpush.bf16.msra.mxu0 %v7038
      %7101 = vmatpush.bf16.msra.mxu0 %v7036
      %7102 = vmatpush.bf16.msra.mxu0 %v7034
      %7103 = vmatpush.bf16.msra.mxu0 %v7032
      %7104 = vmatmul.bf16.gmra.mxu0 %v6932
      %v7105 = vpop.f32.mrf.mxu0
      %v7106 = vadd.f32 0.0, %v7105
      %v7107 = vpop.f32.mrf.mxu0
      %v7108 = vadd.f32 0.0, %v7107
      %7109 = vdwg.mxu0
      %7110 = vmatpush.bf16.msra.mxu0 %v7062
      %7111 = vmatpush.bf16.msra.mxu0 %v7060
      %7112 = vmatpush.bf16.msra.mxu0 %v7058
      %7113 = vmatpush.bf16.msra.mxu0 %v7056
      %7114 = vmatpush.bf16.msra.mxu0 %v7054
      %7115 = vmatpush.bf16.msra.mxu0 %v7052
      %7116 = vmatpush.bf16.msra.mxu0 %v7050
      %7117 = vmatpush.bf16.msra.mxu0 %v7048
      %7118 = vmatmul.bf16.gmra.mxu0 %v6933
      %v7119 = vpop.f32.mrf.mxu0
      %v7120 = vadd.f32 %v7106, %v7119
      %v7121 = vpop.f32.mrf.mxu0
      %v7122 = vadd.f32 %v7108, %v7121
      %7123 = vdwg.mxu0
      %7124 = vmatpush.bf16.msra.mxu0 %v7047
      %7125 = vmatpush.bf16.msra.mxu0 %v7045
      %7126 = vmatpush.bf16.msra.mxu0 %v7043
      %7127 = vmatpush.bf16.msra.mxu0 %v7041
      %7128 = vmatpush.bf16.msra.mxu0 %v7039
      %7129 = vmatpush.bf16.msra.mxu0 %v7037
      %7130 = vmatpush.bf16.msra.mxu0 %v7035
      %7131 = vmatpush.bf16.msra.mxu0 %v7033
      %7132 = vmatmul.bf16.gmra.mxu0 %v6932
      %v7133 = vpop.f32.mrf.mxu0
      %v7134 = vadd.f32 0.0, %v7133
      %v7135 = vpop.f32.mrf.mxu0
      %v7136 = vadd.f32 0.0, %v7135
      %7137 = vdwg.mxu0
      %7138 = vmatpush.bf16.msra.mxu0 %v7063
      %7139 = vmatpush.bf16.msra.mxu0 %v7061
      %7140 = vmatpush.bf16.msra.mxu0 %v7059
      %7141 = vmatpush.bf16.msra.mxu0 %v7057
      %7142 = vmatpush.bf16.msra.mxu0 %v7055
      %7143 = vmatpush.bf16.msra.mxu0 %v7053
      %7144 = vmatpush.bf16.msra.mxu0 %v7051
      %7145 = vmatpush.bf16.msra.mxu0 %v7049
      %7146 = vmatmul.bf16.gmra.mxu0 %v6933
      %v7147 = vpop.f32.mrf.mxu0
      %v7148 = vadd.f32 %v7134, %v7147
      %v7149 = vpop.f32.mrf.mxu0
      %v7150 = vadd.f32 %v7136, %v7149
      %7151 = vdwg.mxu0
      %v7152 = vadd.f32 %v6888, %v7120
      %v7153 = vadd.f32 %v6889, %v7148
      %v7154 = vadd.f32 %v6888, %v7122
      %v7155 = vadd.f32 %v6889, %v7150
      %v7156 = vld [vmem:[%s6880] sm:$0xff]
      %v7157 = vld [vmem:[%s6880 + $0x8] sm:$0xff]
      %s7158 = scalar_lea.vmem %s4, 256
      %v7159 = vld [vmem:[%s7158] sm:$0xff]
      %v7160 = vld [vmem:[%s7158 + $0x8] sm:$0xff]
      %v7161 = vld [vmem:[%s7158 + $0x10] sm:$0xff]
      %v7162 = vld [vmem:[%s7158 + $0x18] sm:$0xff]
      %v7163 = vld [vmem:[%s7158 + $0x20] sm:$0xff]
      %v7164 = vld [vmem:[%s7158 + $0x28] sm:$0xff]
      %v7165 = vld [vmem:[%s7158 + $0x30] sm:$0xff]
      %v7166 = vld [vmem:[%s7158 + $0x38] sm:$0xff]
      %v7167 = vld [vmem:[%s7158 + $0x40] sm:$0xff]
      %v7168 = vld [vmem:[%s7158 + $0x48] sm:$0xff]
      %v7169 = vld [vmem:[%s7158 + $0x50] sm:$0xff]
      %v7170 = vld [vmem:[%s7158 + $0x58] sm:$0xff]
      %v7171 = vld [vmem:[%s7158 + $0x60] sm:$0xff]
      %v7172 = vld [vmem:[%s7158 + $0x68] sm:$0xff]
      %v7173 = vld [vmem:[%s7158 + $0x70] sm:$0xff]
      %v7174 = vld [vmem:[%s7158 + $0x78] sm:$0xff]
      %v7175 = vld [vmem:[%s7158 + $0x80] sm:$0xff]
      %v7176 = vld [vmem:[%s7158 + $0x88] sm:$0xff]
      %v7177 = vld [vmem:[%s7158 + $0x90] sm:$0xff]
      %v7178 = vld [vmem:[%s7158 + $0x98] sm:$0xff]
      %v7179 = vld [vmem:[%s7158 + $0xa0] sm:$0xff]
      %v7180 = vld [vmem:[%s7158 + $0xa8] sm:$0xff]
      %v7181 = vld [vmem:[%s7158 + $0xb0] sm:$0xff]
      %v7182 = vld [vmem:[%s7158 + $0xb8] sm:$0xff]
      %v7183 = vld [vmem:[%s7158 + $0xc0] sm:$0xff]
      %v7184 = vld [vmem:[%s7158 + $0xc8] sm:$0xff]
      %v7185 = vld [vmem:[%s7158 + $0xd0] sm:$0xff]
      %v7186 = vld [vmem:[%s7158 + $0xd8] sm:$0xff]
      %v7187 = vld [vmem:[%s7158 + $0xe0] sm:$0xff]
      %v7188 = vld [vmem:[%s7158 + $0xe8] sm:$0xff]
      %v7189 = vld [vmem:[%s7158 + $0xf0] sm:$0xff]
      %v7190 = vld [vmem:[%s7158 + $0xf8] sm:$0xff]
      %v7193 = vunpack.c.l.b16 %v7156
      %v7194 = vunpack.c.h.b16 %v7156
      %v7195 = vunpack.c.l.b16 %v7157
      %v7196 = vunpack.c.h.b16 %v7157
      %v7197 = vpack.c.b16 %v7195, %v7193
      %v7198 = vpack.c.b16 %v7196, %v7194
      %v7233 = vunpack.c.l.b16 %v7159
      %v7234 = vunpack.c.h.b16 %v7159
      %v7235 = vunpack.c.l.b16 %v7160
      %v7236 = vunpack.c.h.b16 %v7160
      %v7237 = vunpack.c.l.b16 %v7161
      %v7238 = vunpack.c.h.b16 %v7161
      %v7239 = vunpack.c.l.b16 %v7162
      %v7240 = vunpack.c.h.b16 %v7162
      %v7241 = vunpack.c.l.b16 %v7163
      %v7242 = vunpack.c.h.b16 %v7163
      %v7243 = vunpack.c.l.b16 %v7164
      %v7244 = vunpack.c.h.b16 %v7164
      %v7245 = vunpack.c.l.b16 %v7165
      %v7246 = vunpack.c.h.b16 %v7165
      %v7247 = vunpack.c.l.b16 %v7166
      %v7248 = vunpack.c.h.b16 %v7166
      %v7249 = vunpack.c.l.b16 %v7167
      %v7250 = vunpack.c.h.b16 %v7167
      %v7251 = vunpack.c.l.b16 %v7168
      %v7252 = vunpack.c.h.b16 %v7168
      %v7253 = vunpack.c.l.b16 %v7169
      %v7254 = vunpack.c.h.b16 %v7169
      %v7255 = vunpack.c.l.b16 %v7170
      %v7256 = vunpack.c.h.b16 %v7170
      %v7257 = vunpack.c.l.b16 %v7171
      %v7258 = vunpack.c.h.b16 %v7171
      %v7259 = vunpack.c.l.b16 %v7172
      %v7260 = vunpack.c.h.b16 %v7172
      %v7261 = vunpack.c.l.b16 %v7173
      %v7262 = vunpack.c.h.b16 %v7173
      %v7263 = vunpack.c.l.b16 %v7174
      %v7264 = vunpack.c.h.b16 %v7174
      %v7265 = vunpack.c.l.b16 %v7175
      %v7266 = vunpack.c.h.b16 %v7175
      %v7267 = vunpack.c.l.b16 %v7176
      %v7268 = vunpack.c.h.b16 %v7176
      %v7269 = vunpack.c.l.b16 %v7177
      %v7270 = vunpack.c.h.b16 %v7177
      %v7271 = vunpack.c.l.b16 %v7178
      %v7272 = vunpack.c.h.b16 %v7178
      %v7273 = vunpack.c.l.b16 %v7179
      %v7274 = vunpack.c.h.b16 %v7179
      %v7275 = vunpack.c.l.b16 %v7180
      %v7276 = vunpack.c.h.b16 %v7180
      %v7277 = vunpack.c.l.b16 %v7181
      %v7278 = vunpack.c.h.b16 %v7181
      %v7279 = vunpack.c.l.b16 %v7182
      %v7280 = vunpack.c.h.b16 %v7182
      %v7281 = vunpack.c.l.b16 %v7183
      %v7282 = vunpack.c.h.b16 %v7183
      %v7283 = vunpack.c.l.b16 %v7184
      %v7284 = vunpack.c.h.b16 %v7184
      %v7285 = vunpack.c.l.b16 %v7185
      %v7286 = vunpack.c.h.b16 %v7185
      %v7287 = vunpack.c.l.b16 %v7186
      %v7288 = vunpack.c.h.b16 %v7186
      %v7289 = vunpack.c.l.b16 %v7187
      %v7290 = vunpack.c.h.b16 %v7187
      %v7291 = vunpack.c.l.b16 %v7188
      %v7292 = vunpack.c.h.b16 %v7188
      %v7293 = vunpack.c.l.b16 %v7189
      %v7294 = vunpack.c.h.b16 %v7189
      %v7295 = vunpack.c.l.b16 %v7190
      %v7296 = vunpack.c.h.b16 %v7190
      %v7297 = vpack.c.b16 %v7235, %v7233
      %v7298 = vpack.c.b16 %v7236, %v7234
      %v7299 = vpack.c.b16 %v7239, %v7237
      %v7300 = vpack.c.b16 %v7240, %v7238
      %v7301 = vpack.c.b16 %v7243, %v7241
      %v7302 = vpack.c.b16 %v7244, %v7242
      %v7303 = vpack.c.b16 %v7247, %v7245
      %v7304 = vpack.c.b16 %v7248, %v7246
      %v7305 = vpack.c.b16 %v7251, %v7249
      %v7306 = vpack.c.b16 %v7252, %v7250
      %v7307 = vpack.c.b16 %v7255, %v7253
      %v7308 = vpack.c.b16 %v7256, %v7254
      %v7309 = vpack.c.b16 %v7259, %v7257
      %v7310 = vpack.c.b16 %v7260, %v7258
      %v7311 = vpack.c.b16 %v7263, %v7261
      %v7312 = vpack.c.b16 %v7264, %v7262
      %v7313 = vpack.c.b16 %v7267, %v7265
      %v7314 = vpack.c.b16 %v7268, %v7266
      %v7315 = vpack.c.b16 %v7271, %v7269
      %v7316 = vpack.c.b16 %v7272, %v7270
      %v7317 = vpack.c.b16 %v7275, %v7273
      %v7318 = vpack.c.b16 %v7276, %v7274
      %v7319 = vpack.c.b16 %v7279, %v7277
      %v7320 = vpack.c.b16 %v7280, %v7278
      %v7321 = vpack.c.b16 %v7283, %v7281
      %v7322 = vpack.c.b16 %v7284, %v7282
      %v7323 = vpack.c.b16 %v7287, %v7285
      %v7324 = vpack.c.b16 %v7288, %v7286
      %v7325 = vpack.c.b16 %v7291, %v7289
      %v7326 = vpack.c.b16 %v7292, %v7290
      %v7327 = vpack.c.b16 %v7295, %v7293
      %v7328 = vpack.c.b16 %v7296, %v7294
      %7361 = vmatpush.bf16.msra.mxu0 %v7311
      %7362 = vmatpush.bf16.msra.mxu0 %v7309
      %7363 = vmatpush.bf16.msra.mxu0 %v7307
      %7364 = vmatpush.bf16.msra.mxu0 %v7305
      %7365 = vmatpush.bf16.msra.mxu0 %v7303
      %7366 = vmatpush.bf16.msra.mxu0 %v7301
      %7367 = vmatpush.bf16.msra.mxu0 %v7299
      %7368 = vmatpush.bf16.msra.mxu0 %v7297
      %7369 = vmatmul.bf16.gmra.mxu0 %v7197
      %v7370 = vpop.f32.mrf.mxu0
      %v7371 = vadd.f32 0.0, %v7370
      %v7372 = vpop.f32.mrf.mxu0
      %v7373 = vadd.f32 0.0, %v7372
      %7374 = vdwg.mxu0
      %7375 = vmatpush.bf16.msra.mxu0 %v7327
      %7376 = vmatpush.bf16.msra.mxu0 %v7325
      %7377 = vmatpush.bf16.msra.mxu0 %v7323
      %7378 = vmatpush.bf16.msra.mxu0 %v7321
      %7379 = vmatpush.bf16.msra.mxu0 %v7319
      %7380 = vmatpush.bf16.msra.mxu0 %v7317
      %7381 = vmatpush.bf16.msra.mxu0 %v7315
      %7382 = vmatpush.bf16.msra.mxu0 %v7313
      %7383 = vmatmul.bf16.gmra.mxu0 %v7198
      %v7384 = vpop.f32.mrf.mxu0
      %v7385 = vadd.f32 %v7371, %v7384
      %v7386 = vpop.f32.mrf.mxu0
      %v7387 = vadd.f32 %v7373, %v7386
      %7388 = vdwg.mxu0
      %7389 = vmatpush.bf16.msra.mxu0 %v7312
      %7390 = vmatpush.bf16.msra.mxu0 %v7310
      %7391 = vmatpush.bf16.msra.mxu0 %v7308
      %7392 = vmatpush.bf16.msra.mxu0 %v7306
      %7393 = vmatpush.bf16.msra.mxu0 %v7304
      %7394 = vmatpush.bf16.msra.mxu0 %v7302
      %7395 = vmatpush.bf16.msra.mxu0 %v7300
      %7396 = vmatpush.bf16.msra.mxu0 %v7298
      %7397 = vmatmul.bf16.gmra.mxu0 %v7197
      %v7398 = vpop.f32.mrf.mxu0
      %v7399 = vadd.f32 0.0, %v7398
      %v7400 = vpop.f32.mrf.mxu0
      %v7401 = vadd.f32 0.0, %v7400
      %7402 = vdwg.mxu0
      %7403 = vmatpush.bf16.msra.mxu0 %v7328
      %7404 = vmatpush.bf16.msra.mxu0 %v7326
      %7405 = vmatpush.bf16.msra.mxu0 %v7324
      %7406 = vmatpush.bf16.msra.mxu0 %v7322
      %7407 = vmatpush.bf16.msra.mxu0 %v7320
      %7408 = vmatpush.bf16.msra.mxu0 %v7318
      %7409 = vmatpush.bf16.msra.mxu0 %v7316
      %7410 = vmatpush.bf16.msra.mxu0 %v7314
      %7411 = vmatmul.bf16.gmra.mxu0 %v7198
      %v7412 = vpop.f32.mrf.mxu0
      %v7413 = vadd.f32 %v7399, %v7412
      %v7414 = vpop.f32.mrf.mxu0
      %v7415 = vadd.f32 %v7401, %v7414
      %7416 = vdwg.mxu0
      %v7417 = vadd.f32 %v7152, %v7385
      %v7418 = vadd.f32 %v7153, %v7413
      %v7419 = vadd.f32 %v7154, %v7387
      %v7420 = vadd.f32 %v7155, %v7415
      %v7421 = vld [vmem:[#allocation5 + $0x8] sm:$0xff]
      %v7422 = vld [vmem:[#allocation5 + $0x10] sm:$0xff]
      %s7423 = scalar_lea.vmem %s4, 512
      %v7424 = vld [vmem:[%s7423] sm:$0xff]
      %v7425 = vld [vmem:[%s7423 + $0x8] sm:$0xff]
      %v7426 = vld [vmem:[%s7423 + $0x10] sm:$0xff]
      %v7427 = vld [vmem:[%s7423 + $0x18] sm:$0xff]
      %v7428 = vld [vmem:[%s7423 + $0x20] sm:$0xff]
      %v7429 = vld [vmem:[%s7423 + $0x28] sm:$0xff]
      %v7430 = vld [vmem:[%s7423 + $0x30] sm:$0xff]
      %v7431 = vld [vmem:[%s7423 + $0x38] sm:$0xff]
      %v7432 = vld [vmem:[%s7423 + $0x40] sm:$0xff]
      %v7433 = vld [vmem:[%s7423 + $0x48] sm:$0xff]
      %v7434 = vld [vmem:[%s7423 + $0x50] sm:$0xff]
      %v7435 = vld [vmem:[%s7423 + $0x58] sm:$0xff]
      %v7436 = vld [vmem:[%s7423 + $0x60] sm:$0xff]
      %v7437 = vld [vmem:[%s7423 + $0x68] sm:$0xff]
      %v7438 = vld [vmem:[%s7423 + $0x70] sm:$0xff]
      %v7439 = vld [vmem:[%s7423 + $0x78] sm:$0xff]
      %v7440 = vld [vmem:[%s7423 + $0x80] sm:$0xff]
      %v7441 = vld [vmem:[%s7423 + $0x88] sm:$0xff]
      %v7442 = vld [vmem:[%s7423 + $0x90] sm:$0xff]
      %v7443 = vld [vmem:[%s7423 + $0x98] sm:$0xff]
      %v7444 = vld [vmem:[%s7423 + $0xa0] sm:$0xff]
      %v7445 = vld [vmem:[%s7423 + $0xa8] sm:$0xff]
      %v7446 = vld [vmem:[%s7423 + $0xb0] sm:$0xff]
      %v7447 = vld [vmem:[%s7423 + $0xb8] sm:$0xff]
      %v7448 = vld [vmem:[%s7423 + $0xc0] sm:$0xff]
      %v7449 = vld [vmem:[%s7423 + $0xc8] sm:$0xff]
      %v7450 = vld [vmem:[%s7423 + $0xd0] sm:$0xff]
      %v7451 = vld [vmem:[%s7423 + $0xd8] sm:$0xff]
      %v7452 = vld [vmem:[%s7423 + $0xe0] sm:$0xff]
      %v7453 = vld [vmem:[%s7423 + $0xe8] sm:$0xff]
      %v7454 = vld [vmem:[%s7423 + $0xf0] sm:$0xff]
      %v7455 = vld [vmem:[%s7423 + $0xf8] sm:$0xff]
      %v7458 = vunpack.c.l.b16 %v7421
      %v7459 = vunpack.c.h.b16 %v7421
      %v7460 = vunpack.c.l.b16 %v7422
      %v7461 = vunpack.c.h.b16 %v7422
      %v7462 = vpack.c.b16 %v7460, %v7458
      %v7463 = vpack.c.b16 %v7461, %v7459
      %v7498 = vunpack.c.l.b16 %v7424
      %v7499 = vunpack.c.h.b16 %v7424
      %v7500 = vunpack.c.l.b16 %v7425
      %v7501 = vunpack.c.h.b16 %v7425
      %v7502 = vunpack.c.l.b16 %v7426
      %v7503 = vunpack.c.h.b16 %v7426
      %v7504 = vunpack.c.l.b16 %v7427
      %v7505 = vunpack.c.h.b16 %v7427
      %v7506 = vunpack.c.l.b16 %v7428
      %v7507 = vunpack.c.h.b16 %v7428
      %v7508 = vunpack.c.l.b16 %v7429
      %v7509 = vunpack.c.h.b16 %v7429
      %v7510 = vunpack.c.l.b16 %v7430
      %v7511 = vunpack.c.h.b16 %v7430
      %v7512 = vunpack.c.l.b16 %v7431
      %v7513 = vunpack.c.h.b16 %v7431
      %v7514 = vunpack.c.l.b16 %v7432
      %v7515 = vunpack.c.h.b16 %v7432
      %v7516 = vunpack.c.l.b16 %v7433
      %v7517 = vunpack.c.h.b16 %v7433
      %v7518 = vunpack.c.l.b16 %v7434
      %v7519 = vunpack.c.h.b16 %v7434
      %v7520 = vunpack.c.l.b16 %v7435
      %v7521 = vunpack.c.h.b16 %v7435
      %v7522 = vunpack.c.l.b16 %v7436
      %v7523 = vunpack.c.h.b16 %v7436
      %v7524 = vunpack.c.l.b16 %v7437
      %v7525 = vunpack.c.h.b16 %v7437
      %v7526 = vunpack.c.l.b16 %v7438
      %v7527 = vunpack.c.h.b16 %v7438
      %v7528 = vunpack.c.l.b16 %v7439
      %v7529 = vunpack.c.h.b16 %v7439
      %v7530 = vunpack.c.l.b16 %v7440
      %v7531 = vunpack.c.h.b16 %v7440
      %v7532 = vunpack.c.l.b16 %v7441
      %v7533 = vunpack.c.h.b16 %v7441
      %v7534 = vunpack.c.l.b16 %v7442
      %v7535 = vunpack.c.h.b16 %v7442
      %v7536 = vunpack.c.l.b16 %v7443
      %v7537 = vunpack.c.h.b16 %v7443
      %v7538 = vunpack.c.l.b16 %v7444
      %v7539 = vunpack.c.h.b16 %v7444
      %v7540 = vunpack.c.l.b16 %v7445
      %v7541 = vunpack.c.h.b16 %v7445
      %v7542 = vunpack.c.l.b16 %v7446
      %v7543 = vunpack.c.h.b16 %v7446
      %v7544 = vunpack.c.l.b16 %v7447
      %v7545 = vunpack.c.h.b16 %v7447
      %v7546 = vunpack.c.l.b16 %v7448
      %v7547 = vunpack.c.h.b16 %v7448
      %v7548 = vunpack.c.l.b16 %v7449
      %v7549 = vunpack.c.h.b16 %v7449
      %v7550 = vunpack.c.l.b16 %v7450
      %v7551 = vunpack.c.h.b16 %v7450
      %v7552 = vunpack.c.l.b16 %v7451
      %v7553 = vunpack.c.h.b16 %v7451
      %v7554 = vunpack.c.l.b16 %v7452
      %v7555 = vunpack.c.h.b16 %v7452
      %v7556 = vunpack.c.l.b16 %v7453
      %v7557 = vunpack.c.h.b16 %v7453
      %v7558 = vunpack.c.l.b16 %v7454
      %v7559 = vunpack.c.h.b16 %v7454
      %v7560 = vunpack.c.l.b16 %v7455
      %v7561 = vunpack.c.h.b16 %v7455
      %v7562 = vpack.c.b16 %v7500, %v7498
      %v7563 = vpack.c.b16 %v7501, %v7499
      %v7564 = vpack.c.b16 %v7504, %v7502
      %v7565 = vpack.c.b16 %v7505, %v7503
      %v7566 = vpack.c.b16 %v7508, %v7506
      %v7567 = vpack.c.b16 %v7509, %v7507
      %v7568 = vpack.c.b16 %v7512, %v7510
      %v7569 = vpack.c.b16 %v7513, %v7511
      %v7570 = vpack.c.b16 %v7516, %v7514
      %v7571 = vpack.c.b16 %v7517, %v7515
      %v7572 = vpack.c.b16 %v7520, %v7518
      %v7573 = vpack.c.b16 %v7521, %v7519
      %v7574 = vpack.c.b16 %v7524, %v7522
      %v7575 = vpack.c.b16 %v7525, %v7523
      %v7576 = vpack.c.b16 %v7528, %v7526
      %v7577 = vpack.c.b16 %v7529, %v7527
      %v7578 = vpack.c.b16 %v7532, %v7530
      %v7579 = vpack.c.b16 %v7533, %v7531
      %v7580 = vpack.c.b16 %v7536, %v7534
      %v7581 = vpack.c.b16 %v7537, %v7535
      %v7582 = vpack.c.b16 %v7540, %v7538
      %v7583 = vpack.c.b16 %v7541, %v7539
      %v7584 = vpack.c.b16 %v7544, %v7542
      %v7585 = vpack.c.b16 %v7545, %v7543
      %v7586 = vpack.c.b16 %v7548, %v7546
      %v7587 = vpack.c.b16 %v7549, %v7547
      %v7588 = vpack.c.b16 %v7552, %v7550
      %v7589 = vpack.c.b16 %v7553, %v7551
      %v7590 = vpack.c.b16 %v7556, %v7554
      %v7591 = vpack.c.b16 %v7557, %v7555
      %v7592 = vpack.c.b16 %v7560, %v7558
      %v7593 = vpack.c.b16 %v7561, %v7559
      %7626 = vmatpush.bf16.msra.mxu0 %v7576
      %7627 = vmatpush.bf16.msra.mxu0 %v7574
      %7628 = vmatpush.bf16.msra.mxu0 %v7572
      %7629 = vmatpush.bf16.msra.mxu0 %v7570
      %7630 = vmatpush.bf16.msra.mxu0 %v7568
      %7631 = vmatpush.bf16.msra.mxu0 %v7566
      %7632 = vmatpush.bf16.msra.mxu0 %v7564
      %7633 = vmatpush.bf16.msra.mxu0 %v7562
      %7634 = vmatmul.bf16.gmra.mxu0 %v7462
      %v7635 = vpop.f32.mrf.mxu0
      %v7636 = vadd.f32 0.0, %v7635
      %v7637 = vpop.f32.mrf.mxu0
      %v7638 = vadd.f32 0.0, %v7637
      %7639 = vdwg.mxu0
      %7640 = vmatpush.bf16.msra.mxu0 %v7592
      %7641 = vmatpush.bf16.msra.mxu0 %v7590
      %7642 = vmatpush.bf16.msra.mxu0 %v7588
      %7643 = vmatpush.bf16.msra.mxu0 %v7586
      %7644 = vmatpush.bf16.msra.mxu0 %v7584
      %7645 = vmatpush.bf16.msra.mxu0 %v7582
      %7646 = vmatpush.bf16.msra.mxu0 %v7580
      %7647 = vmatpush.bf16.msra.mxu0 %v7578
      %7648 = vmatmul.bf16.gmra.mxu0 %v7463
      %v7649 = vpop.f32.mrf.mxu0
      %v7650 = vadd.f32 %v7636, %v7649
      %v7651 = vpop.f32.mrf.mxu0
      %v7652 = vadd.f32 %v7638, %v7651
      %7653 = vdwg.mxu0
      %7654 = vmatpush.bf16.msra.mxu0 %v7577
      %7655 = vmatpush.bf16.msra.mxu0 %v7575
      %7656 = vmatpush.bf16.msra.mxu0 %v7573
      %7657 = vmatpush.bf16.msra.mxu0 %v7571
      %7658 = vmatpush.bf16.msra.mxu0 %v7569
      %7659 = vmatpush.bf16.msra.mxu0 %v7567
      %7660 = vmatpush.bf16.msra.mxu0 %v7565
      %7661 = vmatpush.bf16.msra.mxu0 %v7563
      %7662 = vmatmul.bf16.gmra.mxu0 %v7462
      %v7663 = vpop.f32.mrf.mxu0
      %v7664 = vadd.f32 0.0, %v7663
      %v7665 = vpop.f32.mrf.mxu0
      %v7666 = vadd.f32 0.0, %v7665
      %7667 = vdwg.mxu0
      %7668 = vmatpush.bf16.msra.mxu0 %v7593
      %7669 = vmatpush.bf16.msra.mxu0 %v7591
      %7670 = vmatpush.bf16.msra.mxu0 %v7589
      %7671 = vmatpush.bf16.msra.mxu0 %v7587
      %7672 = vmatpush.bf16.msra.mxu0 %v7585
      %7673 = vmatpush.bf16.msra.mxu0 %v7583
      %7674 = vmatpush.bf16.msra.mxu0 %v7581
      %7675 = vmatpush.bf16.msra.mxu0 %v7579
      %7676 = vmatmul.bf16.gmra.mxu0 %v7463
      %v7677 = vpop.f32.mrf.mxu0
      %v7678 = vadd.f32 %v7664, %v7677
      %v7679 = vpop.f32.mrf.mxu0
      %v7680 = vadd.f32 %v7666, %v7679
      %7681 = vdwg.mxu0
      %v7682 = vadd.f32 %v7417, %v7650
      %v7683 = vadd.f32 %v7418, %v7678
      %v7684 = vadd.f32 %v7419, %v7652
      %v7685 = vadd.f32 %v7420, %v7680
      %vm7686 = vcmp.ge.f32.partialorder %v7682, 0.0
      %vm7687 = vcmp.ge.f32.partialorder %v7683, 0.0
      %vm7688 = vcmp.ge.f32.partialorder %v7684, 0.0
      %vm7689 = vcmp.ge.f32.partialorder %v7685, 0.0
      %v7690 = vmul.f32 %v7682, 0.1
      %v7691 = vmul.f32 %v7683, 0.1
      %v7692 = vmul.f32 %v7684, 0.1
      %v7693 = vmul.f32 %v7685, 0.1
      %v7694 = vsel %vm7686, %v7682, %v7690
      %v7695 = vsel %vm7687, %v7683, %v7691
      %v7696 = vsel %vm7688, %v7684, %v7692
      %v7697 = vsel %vm7689, %v7685, %v7693
      %7698 = vst [vmem:[%s332] sm:$0xff] %v7694
      %7699 = vst.msk [vmem:[%s332 + $0x8] sm:$0xff] %vm710, %v7695
      %7700 = vst [vmem:[%s332 + $0x10] sm:$0xff] %v7696
      %7701 = vst.msk [vmem:[%s332 + $0x18] sm:$0xff] %vm710, %v7697
      %p7702 = scmp.lt.s32.totalorder %s20, 1
      %s7703 = scalar_select %p7702, %s20, 1
      %s7704 = smul.addr %s7703, 4
      %s7705 = smul.addr %s7704, 8
      %s7706 = scalar_lea.vmem %s9, %s7705
      // Predicated region
      $region57: #{pose_bottleneck.1} parent=55 // pred_check
        %p7707 = pneg %p232
      $region58: #{pose_bottleneck.1} parent=55 // pred_check_branch
        %7709 = sbr.rel (%p7707) target = $region60
      $region59: #{pose_bottleneck.1} parent=55 // pred_region
        _
      $region60: #{pose_bottleneck.1} parent=55 // pred_fallthru
        _
    $region56: #{pose_bottleneck.1} parent=5 // pred_fallthru
      _
    %p7710 = scmp.le.s32.totalorder 2, %s15
    // Predicated region
    $region61: #{pose_bottleneck.1} parent=5 // pred_check
      %p7711 = pneg %p7710
    $region62: #{pose_bottleneck.1} parent=5 // pred_check_branch
      %7713 = sbr.rel (%p7711) target = $region64
    $region63: #{pose_bottleneck.1} parent=5 // pred_region
      %s7714 = ssub.s32 %s15, 2
      // Predicated region
      $region65: #{pose_bottleneck.1} parent=63 // pred_check
        %p7715 = pneg %p238
      $region66: #{pose_bottleneck.1} parent=63 // pred_check_branch
        %7717 = sbr.rel (%p7715) target = $region68
      $region67: #{pose_bottleneck.1} parent=63 // pred_region
        %p7718 = scmp.lt.s32.totalorder %s21, 1
        %s7719 = scalar_select %p7718, %s21, 1
        %s7720 = smul.addr %s7719, 4
        %s7721 = smul.addr %s7720, 8
        %s7722 = scalar_lea.vmem %s9, %s7721
      $region68: #{pose_bottleneck.1} parent=63 // pred_fallthru
        _
    $region64: #{pose_bottleneck.1} parent=5 // pred_fallthru
      _
  $region6: #{pose_bottleneck.1} parent=0 // loop_footer
    %s19 = sadd.s32 1, %s15
  $region7: #{pose_bottleneck.1} parent=0 // loop_footer_branch
    %14 = sbr.rel target = $region3
  $region8: #{pose_bottleneck.1} parent=0 // loop_exit
    _

</llo_original>
